<compile_context>
chip_gen: v7x
topology: tpu7x:2x2x1
jax: 0.10.0
libtpu: 0.0.40
codegen_flags: <defaults>
</compile_context>

<pallas_src>
import functools
import random

import numpy as np

import jax
import jax.numpy as jnp
from jax.experimental import pallas as pl
from jax.experimental.pallas import tpu as pltpu


_HEADROOM = 4 << 20


def _round_up(a: int, b: int) -> int:
    return (a + b - 1) // b * b


# ----------------------------------------------------------------------------
# Host glue: RNG draws -> interpolation matrix + mask vectors
# ----------------------------------------------------------------------------
def _interp_matrix(in_size: int, out_size: int) -> np.ndarray:
    """Dense (in_size, out_size) matrix M s.t. out = in @ M reproduces
    torch.nn.functional.interpolate(mode='bilinear', align_corners=False)
    along one axis (the other axis of the reference's bilinear call keeps its
    size, i.e. is the identity)."""
    W = np.zeros((in_size, out_size), dtype=np.float32)
    if in_size == 0 or out_size == 0:
        return W
    scale = in_size / out_size
    j = np.arange(out_size)
    src = (j + 0.5) * scale - 0.5
    src = np.maximum(src, 0.0)                       # torch clamps negatives to 0
    i0 = np.minimum(np.floor(src).astype(np.int64), in_size - 1)
    lam = (src - i0).astype(np.float32)
    i1 = np.minimum(i0 + 1, in_size - 1)
    np.add.at(W, (i0, j), 1.0 - lam)
    np.add.at(W, (i1, j), lam)
    return W


def _stretch_matrix(dim: int, max_stretch_length: int, rng: random.Random) -> np.ndarray:
    """(dim, dim) matrix implementing stretch_along_axis on one axis
    (out_along_axis = in_along_axis @ W)."""
    if 2 * max_stretch_length >= dim:
        raise ValueError(
            f"`max_stretch_length` {max_stretch_length} must be smaller than "
            f"half the size of the stretched axis {dim}.")
    w0 = rng.randrange(max_stretch_length, dim - max_stretch_length)
    w = rng.randrange(-max_stretch_length + 1, max_stretch_length)
    W = np.zeros((dim, dim), dtype=np.float32)
    W[:w0, : w0 + w] = _interp_matrix(w0, w0 + w)
    W[w0:, w0 + w:] = _interp_matrix(dim - w0, dim - w0 - w)
    return W


def _mask_intervals(dim, num_masks, max_mask_length, max_mask_proportion,
                    rng: random.Random):
    """Replicates mask_along_axis' random draws -> (starts, ends) lists."""
    starts, ends = [], []
    max_mask_length = min(max_mask_length, int(dim * max_mask_proportion))
    if max_mask_length >= 1:
        mask_size = rng.randrange(0, max_mask_length)   # shared across masks
        for _ in range(num_masks):
            s = rng.randrange(0, dim - mask_size)
            starts.append(s)
            ends.append(s + mask_size)
    return starts, ends


def _mask_vector(dim, starts, ends) -> np.ndarray:
    v = np.zeros((dim,), dtype=np.int32)
    for s, e in zip(starts, ends):
        v[s:e] = 1
    return v


# ----------------------------------------------------------------------------
# VMEM budgeting / tile planning
# ----------------------------------------------------------------------------
def _vmem_budget() -> int:
    """Generation-aware VMEM budget (v5e/v6e: 128 MiB physical, v7x: 64 MiB)."""
    try:
        cap = int(pltpu.get_tpu_info().vmem_capacity_bytes)
    except Exception:
        cap = 64 << 20               # conservative fallback (v7x per-core VMEM)
    return max(24 << 20, min(int(cap * 0.6), 96 << 20))


def _plan_right(M, D, itemsize, do_stretch, budget):
    """Tile plan for the flattened (M, D) right-matmul / masking kernel."""
    if D <= 2048:
        tn = D                        # full lane extent: no padding, resident W
    else:
        tn = 512 if do_stretch else 2048   # 128-multiple, ragged last block
    w_resident = do_stretch and tn == D
    if not do_stretch:
        w_blk = 0
    elif w_resident:
        w_blk = 2 * D * D * 2         # double-buffered bf16, DMA'd only once
    else:
        w_blk = 2 * D * tn * 2        # streamed bf16 column blocks

    tm = min(M, 512)

    def _bytes(tm_):
        x_blk = tm_ * (D if do_stretch else tn) * itemsize
        o_blk = tm_ * tn * itemsize
        m_blk = (tm_ + tn) * 4
        return 2 * (x_blk + o_blk + m_blk) + w_blk

    while tm > 8 and _bytes(tm) + _HEADROOM > budget:
        tm = _round_up(max(8, tm // 2), 8)
    return tm, tn, w_resident


def _freq_bytes(F, tn, itemsize):
    return 2 * (2 * F * tn * itemsize + F * F * 2 + (F + tn) * 4)


# ----------------------------------------------------------------------------
# Pallas kernels
# ----------------------------------------------------------------------------
def _right_kernel(x_ref, *rest, do_stretch, mask_value):
    """(M, D) path: time stretch (out = x @ W) and/or masking."""
    if do_stretch:
        w_ref, rm_ref, cm_ref, o_ref = rest
        # Single MXU matmul on the bf16 path, f32 accumulation.  K is the full
        # (unpadded) D so no edge garbage enters the contraction.
        y = jnp.dot(x_ref[...].astype(jnp.bfloat16), w_ref[...],
                    preferred_element_type=jnp.float32)
    else:
        rm_ref, cm_ref, o_ref = rest
        y = x_ref[...]                                  # bit-exact passthrough

    # (tm,1) row mask + (1,tn) col mask -> broadcast OR -> one select (VPU).
    masked = (rm_ref[...] + cm_ref[...]) > 0
    o_ref[...] = jnp.where(masked,
                           jnp.asarray(mask_value, dtype=y.dtype),
                           y).astype(o_ref.dtype)


def _freq_kernel(x_ref, w_ref, fm_ref, cm_ref, o_ref, *, mask_value):
    """Freq-stretch path: out[g, t] = sum_f W[f, g] x[f, t]  ==  W^T @ x,
    with T kept as the lane axis (no host transposes)."""
    y = jnp.dot(w_ref[...], x_ref[0].astype(jnp.bfloat16),
                preferred_element_type=jnp.float32)
    masked = (fm_ref[...] + cm_ref[...]) > 0
    o_ref[0] = jnp.where(masked,
                         jnp.asarray(mask_value, dtype=y.dtype),
                         y).astype(o_ref.dtype)


# ----------------------------------------------------------------------------
# pallas_call wrappers
# ----------------------------------------------------------------------------
def _spec_augment_right(x2, w, row_mask, col_mask, *, mask_value):
    """x2: (M, D) with the (possibly stretched) axis last.
    w: (D, D) numpy (out = in @ w) or None.  row_mask: (M,), col_mask: (D,)."""
    M, D = x2.shape
    dtype = x2.dtype
    itemsize = jnp.dtype(dtype).itemsize
    do_stretch = w is not None
    budget = _vmem_budget()
    tm, tn, w_resident = _plan_right(M, D, itemsize, do_stretch, budget)

    rm = jnp.asarray(np.asarray(row_mask, dtype=np.int32).reshape(M, 1))
    cm = jnp.asarray(np.asarray(col_mask, dtype=np.int32).reshape(1, D))

    inputs = [x2]
    if do_stretch:
        # x row tile is resident across j (constant column index).
        in_specs = [pl.BlockSpec((tm, D), lambda i, j: (i, 0))]
        inputs.append(jnp.asarray(w, dtype=jnp.bfloat16))   # un-padded bf16 W
        if w_resident:
            # Constant index map -> W is DMA'd from HBM exactly once.
            in_specs.append(pl.BlockSpec((D, D), lambda i, j: (0, 0)))
        else:
            in_specs.append(pl.BlockSpec((D, tn), lambda i, j: (0, j)))
    else:
        in_specs = [pl.BlockSpec((tm, tn), lambda i, j: (i, j))]
    inputs += [rm, cm]
    in_specs += [pl.BlockSpec((tm, 1), lambda i, j: (i, 0)),
                 pl.BlockSpec((1, tn), lambda i, j: (0, j))]

    return pl.pallas_call(
        functools.partial(_right_kernel, do_stretch=do_stretch,
                          mask_value=float(mask_value)),
        out_shape=jax.ShapeDtypeStruct((M, D), dtype),
        grid=(pl.cdiv(M, tm), pl.cdiv(D, tn)),
        in_specs=in_specs,
        out_specs=pl.BlockSpec((tm, tn), lambda i, j: (i, j)),
        compiler_params=pltpu.CompilerParams(
            dimension_semantics=("parallel", "parallel"),
            vmem_limit_bytes=budget),
    )(*inputs)


def _spec_augment_freq(x3, w, freq_vec, time_vec, *, mask_value):
    """Freq stretch without host transposes.  x3: (N, F, T); w: (F, F) numpy
    in right-multiply form (out = in @ w along F)."""
    N, F, T = x3.shape
    dtype = x3.dtype
    itemsize = jnp.dtype(dtype).itemsize
    budget = _vmem_budget()

    tn = T if T <= 2048 else 512
    while tn >= 256 and tn % 128 == 0 and _freq_bytes(F, tn, itemsize) + _HEADROOM > budget:
        tn //= 2

    wt = jnp.asarray(np.ascontiguousarray(w.T), dtype=jnp.bfloat16)   # left form
    fm = jnp.asarray(np.asarray(freq_vec, dtype=np.int32).reshape(F, 1))
    cm = jnp.asarray(np.asarray(time_vec, dtype=np.int32).reshape(1, T))

    return pl.pallas_call(
        functools.partial(_freq_kernel, mask_value=float(mask_value)),
        out_shape=jax.ShapeDtypeStruct((N, F, T), dtype),
        grid=(N, pl.cdiv(T, tn)),
        in_specs=[pl.BlockSpec((1, F, tn), lambda n, j: (n, 0, j)),
                  pl.BlockSpec((F, F), lambda n, j: (0, 0)),      # resident W^T
                  pl.BlockSpec((F, 1), lambda n, j: (0, 0)),
                  pl.BlockSpec((1, tn), lambda n, j: (0, j))],
        out_specs=pl.BlockSpec((1, F, tn), lambda n, j: (n, 0, j)),
        compiler_params=pltpu.CompilerParams(
            dimension_semantics=("parallel", "parallel"),
            vmem_limit_bytes=budget),
    )(x3, wt, fm, cm)


# ----------------------------------------------------------------------------
# Module-equivalent wrapper
# ----------------------------------------------------------------------------
class SpecAugmentTransformPallas:
    def __init__(self, stretch_axis=2, max_stretch_length=0,
                 num_freq_masks=0, freq_max_mask_length=0,
                 freq_max_mask_proportion=1.0,
                 num_time_masks=0, time_max_mask_length=0,
                 time_max_mask_proportion=1.0, mask_value=0.0, seed=0):
        self.stretch_axis = stretch_axis
        self.max_stretch_length = max_stretch_length
        self.num_freq_masks = num_freq_masks
        self.freq_max_mask_length = freq_max_mask_length
        self.freq_max_mask_proportion = freq_max_mask_proportion
        self.num_time_masks = num_time_masks
        self.time_max_mask_length = time_max_mask_length
        self.time_max_mask_proportion = time_max_mask_proportion
        self.mask_value = mask_value
        self.training = True
        self._rng = random.Random(seed)   # deterministic stand-in for `random`

    def __call__(self, specgram):
        if not self.training:
            return specgram
        if specgram.ndim == 2:
            specgram = specgram[None]     # the reference does not squeeze back
        N, F, T = specgram.shape
        if self.stretch_axis not in (1, 2):
            raise ValueError("Only Frequency and Time masking are supported")

        # ---- host-side random draws -> static kernel parameters ----
        stretch_dim = F if self.stretch_axis == 1 else T
        W = None
        if self.max_stretch_length != 0:
            W = _stretch_matrix(stretch_dim, self.max_stretch_length, self._rng)
        fs, fe = _mask_intervals(F, self.num_freq_masks,
                                 self.freq_max_mask_length,
                                 self.freq_max_mask_proportion, self._rng)
        ts, te = _mask_intervals(T, self.num_time_masks,
                                 self.time_max_mask_length,
                                 self.time_max_mask_proportion, self._rng)
        freq_vec = _mask_vector(F, fs, fe)
        time_vec = _mask_vector(T, ts, te)
        self._last_params = (W, fs, fe, ts, te)

        # Early exit: no stretch and empty masks -> identity.
        if W is None and not freq_vec.any() and not time_vec.any():
            return specgram

        if self.stretch_axis == 1 and W is not None:
            # Freq stretch as a left matmul -> no host-side transposes.
            return _spec_augment_freq(specgram, W, freq_vec, time_vec,
                                      mask_value=self.mask_value)

        # Time stretch (or masking only): fold batch into the row axis so the
        # stretched axis is the lane/contraction axis (free, contiguous reshape).
        x2 = specgram.reshape(N * F, T)
        row_mask = np.tile(freq_vec, N)          # row r -> freq index r % F
        col_mask = time_vec
        w_right = W if self.stretch_axis == 2 else None
        out2 = _spec_augment_right(x2, w_right, row_mask, col_mask,
                                   mask_value=self.mask_value)
        return out2.reshape(N, F, T)


# ----------------------------------------------------------------------------
# Pure-numpy reference with the same (deterministic) host random draws
# ----------------------------------------------------------------------------
def _reference(x, W, stretch_axis, fs, fe, ts, te, mask_value):
    y = np.array(x, dtype=np.float32)
    if W is not None:
        if stretch_axis == 2:
            y = np.einsum("nft,tu->nfu", y, W)
        else:
            y = np.einsum("nft,fg->ngt", y, W)
    for s, e in zip(fs, fe):
        y[:, s:e, :] = mask_value
    for s, e in zip(ts, te):
        y[:, :, s:e] = mask_value
    return y


if __name__ == "__main__":
    # ---- Test 1: time stretch + masks (resident bf16 W, ragged last row tile) ----
    N, F, T = 8, 80, 520
    x = jax.random.normal(jax.random.PRNGKey(0), (N, F, T), dtype=jnp.float32)
    tr = SpecAugmentTransformPallas(
        stretch_axis=2, max_stretch_length=80,
        num_freq_masks=2, freq_max_mask_length=6, freq_max_mask_proportion=1.0,
        num_time_masks=2, time_max_mask_length=100, time_max_mask_proportion=1.0,
        mask_value=0.0, seed=0)
    out = jax.block_until_ready(tr(x))
    assert out.shape == (N, F, T) and out.dtype == x.dtype
    W, fs, fe, ts, te = tr._last_params
    ref = _reference(np.asarray(x), W, 2, fs, fe, ts, te, tr.mask_value)
    # tolerance covers the deliberate bf16 MXU path (f32 accumulation)
    np.testing.assert_allclose(np.asarray(out), ref, rtol=2e-2, atol=8e-2)

    # ---- Test 2: masking only (no stretch) -> must be bit-exact ----
    x2 = jax.random.normal(jax.random.PRNGKey(1), (1, 16, 96), dtype=jnp.float32)
    tr2 = SpecAugmentTransformPallas(
        stretch_axis=2, max_stretch_length=0,
        num_freq_masks=1, freq_max_mask_length=8, freq_max_mask_proportion=1.0,
        num_time_masks=2, time_max_mask_length=50, time_max_mask_proportion=1.0,
        mask_value=-1.0, seed=3)
    out2 = jax.block_until_ready(tr2(x2))
    W2, fs2, fe2, ts2, te2 = tr2._last_params
    ref2 = _reference(np.asarray(x2), W2, 2, fs2, fe2, ts2, te2, tr2.mask_value)
    np.testing.assert_array_equal(np.asarray(out2), ref2)

    # ---- Test 3: freq stretch (left-matmul path, no host transposes) ----
    x3 = jax.random.normal(jax.random.PRNGKey(2), (2, 64, 192), dtype=jnp.float32)
    tr3 = SpecAugmentTransformPallas(
        stretch_axis=1, max_stretch_length=12,
        num_freq_masks=1, freq_max_mask_length=8, freq_max_mask_proportion=1.0,
        num_time_masks=1, time_max_mask_length=30, time_max_mask_proportion=1.0,
        mask_value=0.0, seed=7)
    out3 = jax.block_until_ready(tr3(x3))
    assert out3.shape == x3.shape and out3.dtype == x3.dtype
    W3, fs3, fe3, ts3, te3 = tr3._last_params
    ref3 = _reference(np.asarray(x3), W3, 1, fs3, fe3, ts3, te3, tr3.mask_value)
    np.testing.assert_allclose(np.asarray(out3), ref3, rtol=2e-2, atol=8e-2)

    print("KERNEL_OK")
</pallas_src>

<mosaic_0001>
module attributes {stable_mosaic.version = 11 : i64} {
  func.func @_right_kernel(%arg0: i32, %arg1: i32, %arg2: memref<512x520xf32, #tpu.memory_space<vmem>>, %arg3: memref<520x520xbf16, #tpu.memory_space<vmem>>, %arg4: memref<512x1xi32, #tpu.memory_space<vmem>>, %arg5: memref<1x520xi32, #tpu.memory_space<vmem>>, %arg6: memref<512x520xf32, #tpu.memory_space<vmem>>) attributes {dimension_semantics = [#tpu.dimension_semantics<parallel>, #tpu.dimension_semantics<parallel>], iteration_bounds = array<i64: 2, 1>, scalar_prefetch = 0 : i64, scratch_operands = 0 : i64, tpu.core_type = #tpu.core_type<tc>, window_params = [{transform_indices = @transform_0, window_bounds = array<i64: 512, 520>}, {pipeline_mode = #tpu.pipeline_mode<synchronous>, transform_indices = @transform_1, window_bounds = array<i64: 520, 520>}, {transform_indices = @transform_2, window_bounds = array<i64: 512, 1>}, {transform_indices = @transform_3, window_bounds = array<i64: 1, 520>}, {transform_indices = @transform_4, window_bounds = array<i64: 512, 520>}]} {
    %c0 = arith.constant 0 : index
    %c0_0 = arith.constant 0 : index
    %0 = vector.load %arg2[%c0, %c0_0] : memref<512x520xf32, #tpu.memory_space<vmem>>, vector<512x520xf32>
    %1 = arith.truncf %0 : vector<512x520xf32> to vector<512x520xbf16>
    %c0_1 = arith.constant 0 : index
    %c0_2 = arith.constant 0 : index
    %2 = vector.load %arg3[%c0_1, %c0_2] : memref<520x520xbf16, #tpu.memory_space<vmem>>, vector<520x520xbf16>
    %cst = arith.constant dense<0.000000e+00> : vector<512x520xf32>
    %3 = tpu.matmul %1, %2, %cst {dimension_numbers = #tpu.dot_dimension_numbers<[1], [0], [0], [1], [0, 0, 1, 1], [], []>} : vector<512x520xbf16>, vector<520x520xbf16>, vector<512x520xf32> -> vector<512x520xf32>
    %c0_3 = arith.constant 0 : index
    %c0_4 = arith.constant 0 : index
    %4 = vector.load %arg4[%c0_3, %c0_4] : memref<512x1xi32, #tpu.memory_space<vmem>>, vector<512x1xi32>
    %c0_5 = arith.constant 0 : index
    %c0_6 = arith.constant 0 : index
    %5 = vector.load %arg5[%c0_5, %c0_6] : memref<1x520xi32, #tpu.memory_space<vmem>>, vector<1x520xi32>
    %6 = vector.broadcast %4 : vector<512x1xi32> to vector<512x520xi32>
    %7 = vector.broadcast %5 : vector<1x520xi32> to vector<512x520xi32>
    %8 = arith.addi %6, %7 : vector<512x520xi32>
    %c0_i32 = arith.constant 0 : i32
    %9 = vector.broadcast %c0_i32 : i32 to vector<512x520xi32>
    %10 = arith.cmpi sgt, %8, %9 : vector<512x520xi32>
    %cst_7 = arith.constant 0.000000e+00 : f32
    %11 = vector.broadcast %cst_7 : f32 to vector<512x520xf32>
    %12 = arith.select %10, %11, %3 : vector<512x520xi1>, vector<512x520xf32>
    %c0_8 = arith.constant 0 : index
    %c0_9 = arith.constant 0 : index
    %13 = vector.load %arg6[%c0_8, %c0_9] : memref<512x520xf32, #tpu.memory_space<vmem>>, vector<512x520xf32>
    tpu.vector_store %arg6[%c0_8, %c0_9], %12 {strides = array<i32>} : memref<512x520xf32, #tpu.memory_space<vmem>>, vector<512x520xf32>,
    return
  }
  func.func @transform_0(%arg0: i32, %arg1: i32) -> (i32, i32) {
    %c0_i32 = arith.constant 0 : i32
    %c0_i32_0 = arith.constant 0 : i32
    return %arg0, %c0_i32 : i32, i32
  }
  func.func @transform_1(%arg0: i32, %arg1: i32) -> (i32, i32) {
    %c0_i32 = arith.constant 0 : i32
    %c0_i32_0 = arith.constant 0 : i32
    %c0_i32_1 = arith.constant 0 : i32
    return %c0_i32, %c0_i32_0 : i32, i32
  }
  func.func @transform_2(%arg0: i32, %arg1: i32) -> (i32, i32) {
    %c0_i32 = arith.constant 0 : i32
    %c0_i32_0 = arith.constant 0 : i32
    return %arg0, %c0_i32 : i32, i32
  }
  func.func @transform_3(%arg0: i32, %arg1: i32) -> (i32, i32) {
    %c0_i32 = arith.constant 0 : i32
    %c0_i32_0 = arith.constant 0 : i32
    return %c0_i32, %arg1 : i32, i32
  }
  func.func @transform_4(%arg0: i32, %arg1: i32) -> (i32, i32) {
    %c0_i32 = arith.constant 0 : i32
    return %arg0, %arg1 : i32, i32
  }
}

</mosaic_0001>

<llo_original>
// kernel: tpu_custom_call.1
$region0: #{tpu_custom_call.1}
  #allocation0 [shape = 'u32[]', space=smem, size = 0x4, offset = 0x4, fixed_abs, tag = 'smem constant byte address 0x4 - core index']
  #allocation1 [shape = 'u32[144,128]{1,0:T(1,128)}', space=vmem, size = 0x12000, scoped, tag = 'internal scratch']
  %s0 = inlined_call_operand.vmem [shape: f32[640,520], index: 0, kind: input, shape index: {}]
  %s1 = inlined_call_operand.vmem [shape: bf16[520,520], index: 1, kind: input, shape index: {}]
  %s2 = inlined_call_operand.vmem [shape: s32[640,1], index: 2, kind: input, shape index: {}]
  %s3 = inlined_call_operand.vmem [shape: s32[1,520], index: 3, kind: input, shape index: {}]
  %s4 = inlined_call_operand.vmem [shape: f32[640,520], index: 4, kind: output, shape index: {}]
  %s5 = sld [smem:[#allocation0]]
  $region75: #{tpu_custom_call.1} parent=0
    _
  %s7 = ssub.s32 1, %s5
  %s8 = scalar_select 0, %s7, %s5
  $region1: #{tpu_custom_call.1} parent=0
    #allocation2 [shape = 'u8[2621440]{0}', space=vmem, size = 0x280000, scoped, tag = 'output window, operand 0']
    loop: start=0, step=1, limit=4
    $region2: #{tpu_custom_call.1} parent=1 // loop_pre_header
      _
    $region3: #{tpu_custom_call.1} parent=1 // loop_header
      %s10 = sphi 0, %s14
      %p11 = scmp.ge.s32.totalorder %s10, 4
      %s17 = sphi 0, %s29
      %s18 = sphi 0, %s25
      %s19 = sphi 0, %s17
      %s20 = sphi 0, %s18
      %s21 = sphi 0, %s19
      %s22 = sphi 0, %s20
      %s32 = sphi 0, %s34
      %s35 = sphi 0, %s32
      %s36 = sphi 0, %s35
      %s52 = sphi 0, %s36
      %s56 = sphi 0, %s56
      %s58 = sphi 0, %s56
      %s59 = sphi 0, %s58
      %s73 = sphi 0, %s59
      %s79 = sphi 0, %s81
      %s82 = sphi 0, %s79
      %s83 = sphi 0, %s82
      %s99 = sphi 0, %s83
      %s105 = sphi 0, %s107
      %s108 = sphi 0, %s105
      %s109 = sphi 0, %s108
      %s125 = sphi 0, %s109
      %s133 = sphi 0, %s135
      %s136 = sphi 0, %s133
      %s137 = sphi 0, %s136
      %s153 = sphi 0, %s137
    $region4: #{tpu_custom_call.1} parent=1 // loop_header_branch
      %13 = sbr.rel (%p11) target = $region8
    $region5: #{tpu_custom_call.1} parent=1 // loop_body
      %s15 = ssub.s32 %s10, 1
      %s16 = ssub.s32 %s10, 2
      %s23 = sadd.s32 1, %s18
      %p24 = scmp.ge.s32.totalorder %s23, 1
      %s25 = scalar_select %p24, 0, %s23
      %s26 = sadd.s32 1, %s17
      %s27 = scalar_select %p24, %s26, %s17
      %p28 = scmp.ge.s32.totalorder %s27, 2
      %s29 = scalar_select %p28, 0, %s27
      %s30 = ssub.s32 %s17, %s29
      %p31 = scmp.eq.s32.totalorder %s30, 0
      %s33 = sadd.s32 %s32, 1
      %s34 = scalar_select %p31, %s32, %s33
      %p37 = pneg %p31
      %p38 = scmp.eq.s32.totalorder %s10, 1
      %p39 = por %p37, %p38
      %p40 = scmp.ne.s32.totalorder %s32, %s35
      %p41 = scmp.eq.s32.totalorder %s10, 0
      %p42 = por %p40, %p41
      %p43 = scmp.ne.s32.totalorder %s32, %s35
      %p44 = scmp.eq.s32.totalorder %s15, 1
      %p45 = por %p43, %p44
      %p46 = scmp.ne.s32.totalorder %s35, %s36
      %p47 = scmp.eq.s32.totalorder %s15, 0
      %p48 = por %p46, %p47
      %p49 = scmp.ne.s32.totalorder %s35, %s36
      %p50 = scmp.eq.s32.totalorder %s16, 1
      %p51 = por %p49, %p50
      %p53 = scmp.ne.s32.totalorder %s36, %s52
      %p54 = scmp.eq.s32.totalorder %s16, 0
      %p55 = por %p53, %p54
      %s57 = sadd.s32 %s56, 1
      %p60 = scmp.eq.s32.totalorder %s10, 1
      %p61 = scmp.ne.s32.totalorder %s56, %s58
      %p62 = scmp.eq.s32.totalorder %s10, 0
      %p63 = por %p61, %p62
      %p64 = scmp.ne.s32.totalorder %s56, %s58
      %p65 = scmp.eq.s32.totalorder %s15, 1
      %p66 = por %p64, %p65
      %p67 = scmp.ne.s32.totalorder %s58, %s59
      %p68 = scmp.eq.s32.totalorder %s15, 0
      %p69 = por %p67, %p68
      %p70 = scmp.ne.s32.totalorder %s58, %s59
      %p71 = scmp.eq.s32.totalorder %s16, 1
      %p72 = por %p70, %p71
      %p74 = scmp.ne.s32.totalorder %s59, %s73
      %p75 = scmp.eq.s32.totalorder %s16, 0
      %p76 = por %p74, %p75
      %s77 = ssub.s32 %s17, %s29
      %p78 = scmp.eq.s32.totalorder %s77, 0
      %s80 = sadd.s32 %s79, 1
      %s81 = scalar_select %p78, %s79, %s80
      %p84 = pneg %p78
      %p85 = scmp.eq.s32.totalorder %s10, 1
      %p86 = por %p84, %p85
      %p87 = scmp.ne.s32.totalorder %s79, %s82
      %p88 = scmp.eq.s32.totalorder %s10, 0
      %p89 = por %p87, %p88
      %p90 = scmp.ne.s32.totalorder %s79, %s82
      %p91 = scmp.eq.s32.totalorder %s15, 1
      %p92 = por %p90, %p91
      %p93 = scmp.ne.s32.totalorder %s82, %s83
      %p94 = scmp.eq.s32.totalorder %s15, 0
      %p95 = por %p93, %p94
      %p96 = scmp.ne.s32.totalorder %s82, %s83
      %p97 = scmp.eq.s32.totalorder %s16, 1
      %p98 = por %p96, %p97
      %p100 = scmp.ne.s32.totalorder %s83, %s99
      %p101 = scmp.eq.s32.totalorder %s16, 0
      %p102 = por %p100, %p101
      %s103 = ssub.s32 %s18, %s25
      %p104 = scmp.eq.s32.totalorder %s103, 0
      %s106 = sadd.s32 %s105, 1
      %s107 = scalar_select %p104, %s105, %s106
      %p110 = pneg %p104
      %p111 = scmp.eq.s32.totalorder %s10, 1
      %p112 = por %p110, %p111
      %p113 = scmp.ne.s32.totalorder %s105, %s108
      %p114 = scmp.eq.s32.totalorder %s10, 0
      %p115 = por %p113, %p114
      %p116 = scmp.ne.s32.totalorder %s105, %s108
      %p117 = scmp.eq.s32.totalorder %s15, 1
      %p118 = por %p116, %p117
      %p119 = scmp.ne.s32.totalorder %s108, %s109
      %p120 = scmp.eq.s32.totalorder %s15, 0
      %p121 = por %p119, %p120
      %p122 = scmp.ne.s32.totalorder %s108, %s109
      %p123 = scmp.eq.s32.totalorder %s16, 1
      %p124 = por %p122, %p123
      %p126 = scmp.ne.s32.totalorder %s109, %s125
      %p127 = scmp.eq.s32.totalorder %s16, 0
      %p128 = por %p126, %p127
      %s129 = ssub.s32 %s17, %s29
      %s130 = ssub.s32 %s18, %s25
      %s131 = sor.u32 %s129, %s130
      %p132 = scmp.eq.s32.totalorder %s131, 0
      %s134 = sadd.s32 %s133, 1
      %s135 = scalar_select %p132, %s133, %s134
      %p138 = pneg %p132
      %p139 = scmp.eq.s32.totalorder %s10, 1
      %p140 = por %p138, %p139
      %p141 = scmp.ne.s32.totalorder %s133, %s136
      %p142 = scmp.eq.s32.totalorder %s10, 0
      %p143 = por %p141, %p142
      %p144 = scmp.ne.s32.totalorder %s133, %s136
      %p145 = scmp.eq.s32.totalorder %s15, 1
      %p146 = por %p144, %p145
      %p147 = scmp.ne.s32.totalorder %s136, %s137
      %p148 = scmp.eq.s32.totalorder %s15, 0
      %p149 = por %p147, %p148
      %p150 = scmp.ne.s32.totalorder %s136, %s137
      %p151 = scmp.eq.s32.totalorder %s16, 1
      %p152 = por %p150, %p151
      %p154 = scmp.ne.s32.totalorder %s137, %s153
      %p155 = scmp.eq.s32.totalorder %s16, 0
      %p156 = por %p154, %p155
      %p157 = scmp.le.s32.totalorder 1, %s10
      %p158 = scmp.lt.s32.totalorder %s10, 3
      %p159 = pnand %p157, %p158
      %p160 = pneg %p159
      // Predicated region
      $region9: #{tpu_custom_call.1} parent=5 // pred_check
        _
      $region10: #{tpu_custom_call.1} parent=5 // pred_check_branch
        %162 = sbr.rel (%p159) target = $region12
      $region11: #{tpu_custom_call.1} parent=5 // pred_region
        %s163 = ssub.s32 %s10, 1
        // Predicated region
        $region13: #{tpu_custom_call.1} parent=11 // pred_check
          %p164 = pneg %p69
        $region14: #{tpu_custom_call.1} parent=11 // pred_check_branch
          %166 = sbr.rel (%p164) target = $region16
        $region15: #{tpu_custom_call.1} parent=11 // pred_region
          _
        $region16: #{tpu_custom_call.1} parent=11 // pred_fallthru
          _
        // Predicated region
        $region17: #{tpu_custom_call.1} parent=11 // pred_check
          %p167 = pneg %p121
        $region18: #{tpu_custom_call.1} parent=11 // pred_check_branch
          %169 = sbr.rel (%p167) target = $region20
        $region19: #{tpu_custom_call.1} parent=11 // pred_region
          %s170 = smul.u32 5, %s20
          %p171 = scmp.lt.s32.totalorder %s170, 4
          %s172 = scalar_select %p171, %s170, 4
          %s173 = scalar_lea.vmem %s3, %s172
          %s174 = smul.u32 5, %s20
        $region20: #{tpu_custom_call.1} parent=11 // pred_fallthru
          _
      $region12: #{tpu_custom_call.1} parent=5 // pred_fallthru
        _
      %p175 = scmp.lt.s32.totalorder %s10, 2
      // Predicated region
      $region21: #{tpu_custom_call.1} parent=5 // pred_check
        %p176 = pneg %p175
      $region22: #{tpu_custom_call.1} parent=5 // pred_check_branch
        %178 = sbr.rel (%p176) target = $region24
      $region23: #{tpu_custom_call.1} parent=5 // pred_region
        // Predicated region
        $region25: #{tpu_custom_call.1} parent=23 // pred_check
          %p179 = pneg %p42
        $region26: #{tpu_custom_call.1} parent=23 // pred_check_branch
          %181 = sbr.rel (%p179) target = $region28
        $region27: #{tpu_custom_call.1} parent=23 // pred_region
          %s182 = smul.u32 64, %s17
          %s183 = ssub.s32 80, %s182
          %p184 = scmp.lt.s32.totalorder %s183, 64
          %s185 = scalar_select %p184, %s183, 64
          %s186 = smul.u32 128, %s185
          %s187 = smul.u32 %s186, 5
          %p188 = scmp.lt.s32.totalorder %s182, 79
          %s189 = scalar_select %p188, %s182, 79
          %s190 = smul.addr %s189, 5
          %s191 = smul.addr %s190, 8
          %s192 = scalar_lea.vmem %s0, %s191
          %s193 = smul.u32 64, %s17
          %s194 = ssub.s32 80, %s193
          %p195 = scmp.lt.s32.totalorder %s194, 64
          %s196 = scalar_select %p195, %s194, 64
          %s197 = smul.u32 128, %s196
          %s198 = smul.u32 %s197, 5
        $region28: #{tpu_custom_call.1} parent=23 // pred_fallthru
          _
        // Predicated region
        $region29: #{tpu_custom_call.1} parent=23 // pred_check
          %p199 = pneg %p89
        $region30: #{tpu_custom_call.1} parent=23 // pred_check_branch
          %201 = sbr.rel (%p199) target = $region32
        $region31: #{tpu_custom_call.1} parent=23 // pred_region
          %s202 = smul.u32 64, %s17
          %s203 = ssub.s32 80, %s202
          %p204 = scmp.lt.s32.totalorder %s203, 64
          %s205 = scalar_select %p204, %s203, 64
          %s206 = smul.u32 128, %s205
          %p207 = scmp.lt.s32.totalorder %s202, 79
          %s208 = scalar_select %p207, %s202, 79
          %s209 = smul.addr %s208, 8
          %s210 = scalar_lea.vmem %s2, %s209
          %s211 = smul.u32 64, %s17
          %s212 = ssub.s32 80, %s211
          %p213 = scmp.lt.s32.totalorder %s212, 64
          %s214 = scalar_select %p213, %s212, 64
          %s215 = smul.u32 128, %s214
        $region32: #{tpu_custom_call.1} parent=23 // pred_fallthru
          _
      $region24: #{tpu_custom_call.1} parent=5 // pred_fallthru
        _
      %p216 = scmp.le.s32.totalorder 1, %s10
      %p217 = scmp.lt.s32.totalorder %s10, 3
      %p218 = pnand %p216, %p217
      %p219 = pneg %p218
      // Predicated region
      $region33: #{tpu_custom_call.1} parent=5 // pred_check
        _
      $region34: #{tpu_custom_call.1} parent=5 // pred_check_branch
        %221 = sbr.rel (%p218) target = $region36
      $region35: #{tpu_custom_call.1} parent=5 // pred_region
        %s222 = ssub.s32 %s10, 1
        %s223 = smul.u32 64, %s19
        %s224 = ssub.s32 80, %s223
        %p225 = scmp.lt.s32.totalorder %s224, 64
        %s226 = scalar_select %p225, %s224, 64
        %s227 = smul.u32 128, %s226
        %s228 = smul.u32 %s227, 5
        %p229 = scmp.lt.s32.totalorder %s223, 79
        %s230 = scalar_select %p229, %s223, 79
        %s231 = smul.addr %s230, 5
        %s232 = smul.addr %s231, 8
        %s233 = scalar_lea.vmem %s0, %s232
        %p234 = pneg %p48
        %p235 = pneg %p45
        %p236 = pneg %p69
        %p237 = pneg %p66
        %s238 = smul.u32 64, %s19
        %s239 = ssub.s32 80, %s238
        %p240 = scmp.lt.s32.totalorder %s239, 64
        %s241 = scalar_select %p240, %s239, 64
        %s242 = smul.u32 128, %s241
        %p243 = scmp.lt.s32.totalorder %s238, 79
        %s244 = scalar_select %p243, %s238, 79
        %s245 = smul.addr %s244, 8
        %s246 = scalar_lea.vmem %s2, %s245
        %p247 = pneg %p95
        %p248 = pneg %p92
        %s249 = smul.u32 5, %s20
        %p250 = scmp.lt.s32.totalorder %s249, 4
        %s251 = scalar_select %p250, %s249, 4
        %s252 = scalar_lea.vmem %s3, %s251
        %p253 = pneg %p121
        %p254 = pneg %p118
        %p255 = pneg %p149
        %p256 = pneg %p146
        %s257 = sand.u32 %s136, 1
        %s258 = sand.u32 %s136, 1
        %s259 = smul.addr %s258, 2560
        %s260 = scalar_lea.vmem [#allocation2], %s259
        %s261 = smul.u32 64, %s19
        %s262 = ssub.s32 80, %s261
        %p263 = scmp.lt.s32.totalorder %s262, 64
        %s264 = scalar_select %p263, %s262, 64
        %s265 = smul.u32 128, %s264
        %s266 = smul.u32 %s265, 5
        %p267 = scmp.lt.s32.totalorder %s261, 79
        %s268 = scalar_select %p267, %s261, 79
        %s269 = smul.addr %s268, 5
        %s270 = smul.addr %s269, 8
        %s271 = scalar_lea.vmem %s0, %s270
        %s272 = smul.u32 64, %s19
        %s273 = ssub.s32 80, %s272
        %p274 = scmp.lt.s32.totalorder %s273, 64
        %s275 = scalar_select %p274, %s273, 64
        %s276 = smul.u32 128, %s275
        %s277 = smul.u32 %s276, 5
        %s278 = smul.u32 64, %s19
        %s279 = ssub.s32 80, %s278
        %p280 = scmp.lt.s32.totalorder %s279, 64
        %s281 = scalar_select %p280, %s279, 64
        %s282 = smul.u32 128, %s281
        %p283 = scmp.lt.s32.totalorder %s278, 79
        %s284 = scalar_select %p283, %s278, 79
        %s285 = smul.addr %s284, 8
        %s286 = scalar_lea.vmem %s2, %s285
        %s287 = smul.u32 64, %s19
        %s288 = ssub.s32 80, %s287
        %p289 = scmp.lt.s32.totalorder %s288, 64
        %s290 = scalar_select %p289, %s288, 64
        %s291 = smul.u32 128, %s290
        %s292 = smul.u32 5, %s20
        %p293 = scmp.lt.s32.totalorder %s292, 4
        %s294 = scalar_select %p293, %s292, 4
        %s295 = scalar_lea.vmem %s3, %s294
        %s296 = smul.u32 5, %s20
        %s297 = smul.u32 64, %s19
        %s298 = smul.u32 5, %s20
        %s299 = ssub.s32 80, %s297
        %p300 = scmp.lt.s32.totalorder %s299, 64
        %s301 = scalar_select %p300, %s299, 64
        %s302 = smul.u32 128, %s301
        %s303 = smul.u32 %s302, 5
        %v305 = vld [vmem:[%s271] sm:$0xff]
        %v306 = vld [vmem:[%s271 + $0x8] sm:$0xff]
        %v307 = vld [vmem:[%s271 + $0x10] sm:$0xff]
        %v308 = vld [vmem:[%s271 + $0x18] sm:$0xff]
        %v309 = vld [vmem:[%s271 + $0x20] sm:$0xff]
        %v310 = vld [vmem:[%s271 + $0x28] sm:$0xff]
        %v311 = vld [vmem:[%s271 + $0x30] sm:$0xff]
        %v312 = vld [vmem:[%s271 + $0x38] sm:$0xff]
        %v313 = vld [vmem:[%s271 + $0x40] sm:$0xff]
        %v314 = vld [vmem:[%s271 + $0x48] sm:$0xff]
        %v315 = vld [vmem:[%s271 + $0x50] sm:$0xff]
        %v316 = vld [vmem:[%s271 + $0x58] sm:$0xff]
        %v317 = vld [vmem:[%s271 + $0x60] sm:$0xff]
        %v318 = vld [vmem:[%s271 + $0x68] sm:$0xff]
        %v319 = vld [vmem:[%s271 + $0x70] sm:$0xff]
        %v320 = vld [vmem:[%s271 + $0x78] sm:$0xff]
        %v321 = vld [vmem:[%s271 + $0x80] sm:$0xff]
        %v322 = vld [vmem:[%s271 + $0x88] sm:$0xff]
        %v323 = vld [vmem:[%s271 + $0x90] sm:$0xff]
        %v324 = vld [vmem:[%s271 + $0x98] sm:$0xff]
        %v325 = vld [vmem:[%s271 + $0xa0] sm:$0xff]
        %v326 = vld [vmem:[%s271 + $0xa8] sm:$0xff]
        %v327 = vld [vmem:[%s271 + $0xb0] sm:$0xff]
        %v328 = vld [vmem:[%s271 + $0xb8] sm:$0xff]
        %v329 = vld [vmem:[%s271 + $0xc0] sm:$0xff]
        %v330 = vld [vmem:[%s271 + $0xc8] sm:$0xff]
        %v331 = vld [vmem:[%s271 + $0xd0] sm:$0xff]
        %v332 = vld [vmem:[%s271 + $0xd8] sm:$0xff]
        %v333 = vld [vmem:[%s271 + $0xe0] sm:$0xff]
        %v334 = vld [vmem:[%s271 + $0xe8] sm:$0xff]
        %v335 = vld [vmem:[%s271 + $0xf0] sm:$0xff]
        %v336 = vld [vmem:[%s271 + $0xf8] sm:$0xff]
        %v337 = vld [vmem:[%s271 + $0x100] sm:$0xff]
        %v338 = vld [vmem:[%s271 + $0x108] sm:$0xff]
        %v339 = vld [vmem:[%s271 + $0x110] sm:$0xff]
        %v340 = vld [vmem:[%s271 + $0x118] sm:$0xff]
        %v341 = vld [vmem:[%s271 + $0x120] sm:$0xff]
        %v342 = vld [vmem:[%s271 + $0x128] sm:$0xff]
        %v343 = vld [vmem:[%s271 + $0x130] sm:$0xff]
        %v344 = vld [vmem:[%s271 + $0x138] sm:$0xff]
        %v345 = vld [vmem:[%s271 + $0x140] sm:$0xff]
        %v346 = vld [vmem:[%s271 + $0x148] sm:$0xff]
        %v347 = vld [vmem:[%s271 + $0x150] sm:$0xff]
        %v348 = vld [vmem:[%s271 + $0x158] sm:$0xff]
        %v349 = vld [vmem:[%s271 + $0x160] sm:$0xff]
        %v350 = vld [vmem:[%s271 + $0x168] sm:$0xff]
        %v351 = vld [vmem:[%s271 + $0x170] sm:$0xff]
        %v352 = vld [vmem:[%s271 + $0x178] sm:$0xff]
        %v353 = vld [vmem:[%s271 + $0x180] sm:$0xff]
        %v354 = vld [vmem:[%s271 + $0x188] sm:$0xff]
        %v355 = vld [vmem:[%s271 + $0x190] sm:$0xff]
        %v356 = vld [vmem:[%s271 + $0x198] sm:$0xff]
        %v357 = vld [vmem:[%s271 + $0x1a0] sm:$0xff]
        %v358 = vld [vmem:[%s271 + $0x1a8] sm:$0xff]
        %v359 = vld [vmem:[%s271 + $0x1b0] sm:$0xff]
        %v360 = vld [vmem:[%s271 + $0x1b8] sm:$0xff]
        %v361 = vld [vmem:[%s271 + $0x1c0] sm:$0xff]
        %v362 = vld [vmem:[%s271 + $0x1c8] sm:$0xff]
        %v363 = vld [vmem:[%s271 + $0x1d0] sm:$0xff]
        %v364 = vld [vmem:[%s271 + $0x1d8] sm:$0xff]
        %v365 = vld [vmem:[%s271 + $0x1e0] sm:$0xff]
        %v366 = vld [vmem:[%s271 + $0x1e8] sm:$0xff]
        %v367 = vld [vmem:[%s271 + $0x1f0] sm:$0xff]
        %v368 = vld [vmem:[%s271 + $0x1f8] sm:$0xff]
        %v369 = vld [vmem:[%s271 + $0x200] sm:$0xff]
        %v370 = vld [vmem:[%s271 + $0x208] sm:$0xff]
        %v371 = vld [vmem:[%s271 + $0x210] sm:$0xff]
        %v372 = vld [vmem:[%s271 + $0x218] sm:$0xff]
        %v373 = vld [vmem:[%s271 + $0x220] sm:$0xff]
        %v374 = vld [vmem:[%s271 + $0x228] sm:$0xff]
        %v375 = vld [vmem:[%s271 + $0x230] sm:$0xff]
        %v376 = vld [vmem:[%s271 + $0x238] sm:$0xff]
        %v377 = vld [vmem:[%s271 + $0x240] sm:$0xff]
        %v378 = vld [vmem:[%s271 + $0x248] sm:$0xff]
        %v379 = vld [vmem:[%s271 + $0x250] sm:$0xff]
        %v380 = vld [vmem:[%s271 + $0x258] sm:$0xff]
        %v381 = vld [vmem:[%s271 + $0x260] sm:$0xff]
        %v382 = vld [vmem:[%s271 + $0x268] sm:$0xff]
        %v383 = vld [vmem:[%s271 + $0x270] sm:$0xff]
        %v384 = vld [vmem:[%s271 + $0x278] sm:$0xff]
        %v385 = vld [vmem:[%s271 + $0x280] sm:$0xff]
        %v386 = vld [vmem:[%s271 + $0x288] sm:$0xff]
        %v387 = vld [vmem:[%s271 + $0x290] sm:$0xff]
        %v388 = vld [vmem:[%s271 + $0x298] sm:$0xff]
        %v389 = vld [vmem:[%s271 + $0x2a0] sm:$0xff]
        %v390 = vld [vmem:[%s271 + $0x2a8] sm:$0xff]
        %v391 = vld [vmem:[%s271 + $0x2b0] sm:$0xff]
        %v392 = vld [vmem:[%s271 + $0x2b8] sm:$0xff]
        %v393 = vld [vmem:[%s271 + $0x2c0] sm:$0xff]
        %v394 = vld [vmem:[%s271 + $0x2c8] sm:$0xff]
        %v395 = vld [vmem:[%s271 + $0x2d0] sm:$0xff]
        %v396 = vld [vmem:[%s271 + $0x2d8] sm:$0xff]
        %v397 = vld [vmem:[%s271 + $0x2e0] sm:$0xff]
        %v398 = vld [vmem:[%s271 + $0x2e8] sm:$0xff]
        %v399 = vld [vmem:[%s271 + $0x2f0] sm:$0xff]
        %v400 = vld [vmem:[%s271 + $0x2f8] sm:$0xff]
        %v401 = vld [vmem:[%s271 + $0x300] sm:$0xff]
        %v402 = vld [vmem:[%s271 + $0x308] sm:$0xff]
        %v403 = vld [vmem:[%s271 + $0x310] sm:$0xff]
        %v404 = vld [vmem:[%s271 + $0x318] sm:$0xff]
        %v405 = vld [vmem:[%s271 + $0x320] sm:$0xff]
        %v406 = vld [vmem:[%s271 + $0x328] sm:$0xff]
        %v407 = vld [vmem:[%s271 + $0x330] sm:$0xff]
        %v408 = vld [vmem:[%s271 + $0x338] sm:$0xff]
        %v409 = vld [vmem:[%s271 + $0x340] sm:$0xff]
        %v410 = vld [vmem:[%s271 + $0x348] sm:$0xff]
        %v411 = vld [vmem:[%s271 + $0x350] sm:$0xff]
        %v412 = vld [vmem:[%s271 + $0x358] sm:$0xff]
        %v413 = vld [vmem:[%s271 + $0x360] sm:$0xff]
        %v414 = vld [vmem:[%s271 + $0x368] sm:$0xff]
        %v415 = vld [vmem:[%s271 + $0x370] sm:$0xff]
        %v416 = vld [vmem:[%s271 + $0x378] sm:$0xff]
        %v417 = vld [vmem:[%s271 + $0x380] sm:$0xff]
        %v418 = vld [vmem:[%s271 + $0x388] sm:$0xff]
        %v419 = vld [vmem:[%s271 + $0x390] sm:$0xff]
        %v420 = vld [vmem:[%s271 + $0x398] sm:$0xff]
        %v421 = vld [vmem:[%s271 + $0x3a0] sm:$0xff]
        %v422 = vld [vmem:[%s271 + $0x3a8] sm:$0xff]
        %v423 = vld [vmem:[%s271 + $0x3b0] sm:$0xff]
        %v424 = vld [vmem:[%s271 + $0x3b8] sm:$0xff]
        %v425 = vld [vmem:[%s271 + $0x3c0] sm:$0xff]
        %v426 = vld [vmem:[%s271 + $0x3c8] sm:$0xff]
        %v427 = vld [vmem:[%s271 + $0x3d0] sm:$0xff]
        %v428 = vld [vmem:[%s271 + $0x3d8] sm:$0xff]
        %v429 = vld [vmem:[%s271 + $0x3e0] sm:$0xff]
        %v430 = vld [vmem:[%s271 + $0x3e8] sm:$0xff]
        %v431 = vld [vmem:[%s271 + $0x3f0] sm:$0xff]
        %v432 = vld [vmem:[%s271 + $0x3f8] sm:$0xff]
        %v433 = vld [vmem:[%s271 + $0x400] sm:$0xff]
        %v434 = vld [vmem:[%s271 + $0x408] sm:$0xff]
        %v435 = vld [vmem:[%s271 + $0x410] sm:$0xff]
        %v436 = vld [vmem:[%s271 + $0x418] sm:$0xff]
        %v437 = vld [vmem:[%s271 + $0x420] sm:$0xff]
        %v438 = vld [vmem:[%s271 + $0x428] sm:$0xff]
        %v439 = vld [vmem:[%s271 + $0x430] sm:$0xff]
        %v440 = vld [vmem:[%s271 + $0x438] sm:$0xff]
        %v441 = vld [vmem:[%s271 + $0x440] sm:$0xff]
        %v442 = vld [vmem:[%s271 + $0x448] sm:$0xff]
        %v443 = vld [vmem:[%s271 + $0x450] sm:$0xff]
        %v444 = vld [vmem:[%s271 + $0x458] sm:$0xff]
        %v445 = vld [vmem:[%s271 + $0x460] sm:$0xff]
        %v446 = vld [vmem:[%s271 + $0x468] sm:$0xff]
        %v447 = vld [vmem:[%s271 + $0x470] sm:$0xff]
        %v448 = vld [vmem:[%s271 + $0x478] sm:$0xff]
        %v449 = vld [vmem:[%s271 + $0x480] sm:$0xff]
        %v450 = vld [vmem:[%s271 + $0x488] sm:$0xff]
        %v451 = vld [vmem:[%s271 + $0x490] sm:$0xff]
        %v452 = vld [vmem:[%s271 + $0x498] sm:$0xff]
        %v453 = vld [vmem:[%s271 + $0x4a0] sm:$0xff]
        %v454 = vld [vmem:[%s271 + $0x4a8] sm:$0xff]
        %v455 = vld [vmem:[%s271 + $0x4b0] sm:$0xff]
        %v456 = vld [vmem:[%s271 + $0x4b8] sm:$0xff]
        %v457 = vld [vmem:[%s271 + $0x4c0] sm:$0xff]
        %v458 = vld [vmem:[%s271 + $0x4c8] sm:$0xff]
        %v459 = vld [vmem:[%s271 + $0x4d0] sm:$0xff]
        %v460 = vld [vmem:[%s271 + $0x4d8] sm:$0xff]
        %v461 = vld [vmem:[%s271 + $0x4e0] sm:$0xff]
        %v462 = vld [vmem:[%s271 + $0x4e8] sm:$0xff]
        %v463 = vld [vmem:[%s271 + $0x4f0] sm:$0xff]
        %v464 = vld [vmem:[%s271 + $0x4f8] sm:$0xff]
        %v465 = vld [vmem:[%s271 + $0x500] sm:$0xff]
        %v466 = vld [vmem:[%s271 + $0x508] sm:$0xff]
        %v467 = vld [vmem:[%s271 + $0x510] sm:$0xff]
        %v468 = vld [vmem:[%s271 + $0x518] sm:$0xff]
        %v469 = vld [vmem:[%s271 + $0x520] sm:$0xff]
        %v470 = vld [vmem:[%s271 + $0x528] sm:$0xff]
        %v471 = vld [vmem:[%s271 + $0x530] sm:$0xff]
        %v472 = vld [vmem:[%s271 + $0x538] sm:$0xff]
        %v473 = vld [vmem:[%s271 + $0x540] sm:$0xff]
        %v474 = vld [vmem:[%s271 + $0x548] sm:$0xff]
        %v475 = vld [vmem:[%s271 + $0x550] sm:$0xff]
        %v476 = vld [vmem:[%s271 + $0x558] sm:$0xff]
        %v477 = vld [vmem:[%s271 + $0x560] sm:$0xff]
        %v478 = vld [vmem:[%s271 + $0x568] sm:$0xff]
        %v479 = vld [vmem:[%s271 + $0x570] sm:$0xff]
        %v480 = vld [vmem:[%s271 + $0x578] sm:$0xff]
        %v481 = vld [vmem:[%s271 + $0x580] sm:$0xff]
        %v482 = vld [vmem:[%s271 + $0x588] sm:$0xff]
        %v483 = vld [vmem:[%s271 + $0x590] sm:$0xff]
        %v484 = vld [vmem:[%s271 + $0x598] sm:$0xff]
        %v485 = vld [vmem:[%s271 + $0x5a0] sm:$0xff]
        %v486 = vld [vmem:[%s271 + $0x5a8] sm:$0xff]
        %v487 = vld [vmem:[%s271 + $0x5b0] sm:$0xff]
        %v488 = vld [vmem:[%s271 + $0x5b8] sm:$0xff]
        %v489 = vld [vmem:[%s271 + $0x5c0] sm:$0xff]
        %v490 = vld [vmem:[%s271 + $0x5c8] sm:$0xff]
        %v491 = vld [vmem:[%s271 + $0x5d0] sm:$0xff]
        %v492 = vld [vmem:[%s271 + $0x5d8] sm:$0xff]
        %v493 = vld [vmem:[%s271 + $0x5e0] sm:$0xff]
        %v494 = vld [vmem:[%s271 + $0x5e8] sm:$0xff]
        %v495 = vld [vmem:[%s271 + $0x5f0] sm:$0xff]
        %v496 = vld [vmem:[%s271 + $0x5f8] sm:$0xff]
        %v497 = vld [vmem:[%s271 + $0x600] sm:$0xff]
        %v498 = vld [vmem:[%s271 + $0x608] sm:$0xff]
        %v499 = vld [vmem:[%s271 + $0x610] sm:$0xff]
        %v500 = vld [vmem:[%s271 + $0x618] sm:$0xff]
        %v501 = vld [vmem:[%s271 + $0x620] sm:$0xff]
        %v502 = vld [vmem:[%s271 + $0x628] sm:$0xff]
        %v503 = vld [vmem:[%s271 + $0x630] sm:$0xff]
        %v504 = vld [vmem:[%s271 + $0x638] sm:$0xff]
        %v505 = vld [vmem:[%s271 + $0x640] sm:$0xff]
        %v506 = vld [vmem:[%s271 + $0x648] sm:$0xff]
        %v507 = vld [vmem:[%s271 + $0x650] sm:$0xff]
        %v508 = vld [vmem:[%s271 + $0x658] sm:$0xff]
        %v509 = vld [vmem:[%s271 + $0x660] sm:$0xff]
        %v510 = vld [vmem:[%s271 + $0x668] sm:$0xff]
        %v511 = vld [vmem:[%s271 + $0x670] sm:$0xff]
        %v512 = vld [vmem:[%s271 + $0x678] sm:$0xff]
        %v513 = vld [vmem:[%s271 + $0x680] sm:$0xff]
        %v514 = vld [vmem:[%s271 + $0x688] sm:$0xff]
        %v515 = vld [vmem:[%s271 + $0x690] sm:$0xff]
        %v516 = vld [vmem:[%s271 + $0x698] sm:$0xff]
        %v517 = vld [vmem:[%s271 + $0x6a0] sm:$0xff]
        %v518 = vld [vmem:[%s271 + $0x6a8] sm:$0xff]
        %v519 = vld [vmem:[%s271 + $0x6b0] sm:$0xff]
        %v520 = vld [vmem:[%s271 + $0x6b8] sm:$0xff]
        %v521 = vld [vmem:[%s271 + $0x6c0] sm:$0xff]
        %v522 = vld [vmem:[%s271 + $0x6c8] sm:$0xff]
        %v523 = vld [vmem:[%s271 + $0x6d0] sm:$0xff]
        %v524 = vld [vmem:[%s271 + $0x6d8] sm:$0xff]
        %v525 = vld [vmem:[%s271 + $0x6e0] sm:$0xff]
        %v526 = vld [vmem:[%s271 + $0x6e8] sm:$0xff]
        %v527 = vld [vmem:[%s271 + $0x6f0] sm:$0xff]
        %v528 = vld [vmem:[%s271 + $0x6f8] sm:$0xff]
        %v529 = vld [vmem:[%s271 + $0x700] sm:$0xff]
        %v530 = vld [vmem:[%s271 + $0x708] sm:$0xff]
        %v531 = vld [vmem:[%s271 + $0x710] sm:$0xff]
        %v532 = vld [vmem:[%s271 + $0x718] sm:$0xff]
        %v533 = vld [vmem:[%s271 + $0x720] sm:$0xff]
        %v534 = vld [vmem:[%s271 + $0x728] sm:$0xff]
        %v535 = vld [vmem:[%s271 + $0x730] sm:$0xff]
        %v536 = vld [vmem:[%s271 + $0x738] sm:$0xff]
        %v537 = vld [vmem:[%s271 + $0x740] sm:$0xff]
        %v538 = vld [vmem:[%s271 + $0x748] sm:$0xff]
        %v539 = vld [vmem:[%s271 + $0x750] sm:$0xff]
        %v540 = vld [vmem:[%s271 + $0x758] sm:$0xff]
        %v541 = vld [vmem:[%s271 + $0x760] sm:$0xff]
        %v542 = vld [vmem:[%s271 + $0x768] sm:$0xff]
        %v543 = vld [vmem:[%s271 + $0x770] sm:$0xff]
        %v544 = vld [vmem:[%s271 + $0x778] sm:$0xff]
        %v545 = vld [vmem:[%s271 + $0x780] sm:$0xff]
        %v546 = vld [vmem:[%s271 + $0x788] sm:$0xff]
        %v547 = vld [vmem:[%s271 + $0x790] sm:$0xff]
        %v548 = vld [vmem:[%s271 + $0x798] sm:$0xff]
        %v549 = vld [vmem:[%s271 + $0x7a0] sm:$0xff]
        %v550 = vld [vmem:[%s271 + $0x7a8] sm:$0xff]
        %v551 = vld [vmem:[%s271 + $0x7b0] sm:$0xff]
        %v552 = vld [vmem:[%s271 + $0x7b8] sm:$0xff]
        %v553 = vld [vmem:[%s271 + $0x7c0] sm:$0xff]
        %v554 = vld [vmem:[%s271 + $0x7c8] sm:$0xff]
        %v555 = vld [vmem:[%s271 + $0x7d0] sm:$0xff]
        %v556 = vld [vmem:[%s271 + $0x7d8] sm:$0xff]
        %v557 = vld [vmem:[%s271 + $0x7e0] sm:$0xff]
        %v558 = vld [vmem:[%s271 + $0x7e8] sm:$0xff]
        %v559 = vld [vmem:[%s271 + $0x7f0] sm:$0xff]
        %v560 = vld [vmem:[%s271 + $0x7f8] sm:$0xff]
        %v561 = vld [vmem:[%s271 + $0x800] sm:$0xff]
        %v562 = vld [vmem:[%s271 + $0x808] sm:$0xff]
        %v563 = vld [vmem:[%s271 + $0x810] sm:$0xff]
        %v564 = vld [vmem:[%s271 + $0x818] sm:$0xff]
        %v565 = vld [vmem:[%s271 + $0x820] sm:$0xff]
        %v566 = vld [vmem:[%s271 + $0x828] sm:$0xff]
        %v567 = vld [vmem:[%s271 + $0x830] sm:$0xff]
        %v568 = vld [vmem:[%s271 + $0x838] sm:$0xff]
        %v569 = vld [vmem:[%s271 + $0x840] sm:$0xff]
        %v570 = vld [vmem:[%s271 + $0x848] sm:$0xff]
        %v571 = vld [vmem:[%s271 + $0x850] sm:$0xff]
        %v572 = vld [vmem:[%s271 + $0x858] sm:$0xff]
        %v573 = vld [vmem:[%s271 + $0x860] sm:$0xff]
        %v574 = vld [vmem:[%s271 + $0x868] sm:$0xff]
        %v575 = vld [vmem:[%s271 + $0x870] sm:$0xff]
        %v576 = vld [vmem:[%s271 + $0x878] sm:$0xff]
        %v577 = vld [vmem:[%s271 + $0x880] sm:$0xff]
        %v578 = vld [vmem:[%s271 + $0x888] sm:$0xff]
        %v579 = vld [vmem:[%s271 + $0x890] sm:$0xff]
        %v580 = vld [vmem:[%s271 + $0x898] sm:$0xff]
        %v581 = vld [vmem:[%s271 + $0x8a0] sm:$0xff]
        %v582 = vld [vmem:[%s271 + $0x8a8] sm:$0xff]
        %v583 = vld [vmem:[%s271 + $0x8b0] sm:$0xff]
        %v584 = vld [vmem:[%s271 + $0x8b8] sm:$0xff]
        %v585 = vld [vmem:[%s271 + $0x8c0] sm:$0xff]
        %v586 = vld [vmem:[%s271 + $0x8c8] sm:$0xff]
        %v587 = vld [vmem:[%s271 + $0x8d0] sm:$0xff]
        %v588 = vld [vmem:[%s271 + $0x8d8] sm:$0xff]
        %v589 = vld [vmem:[%s271 + $0x8e0] sm:$0xff]
        %v590 = vld [vmem:[%s271 + $0x8e8] sm:$0xff]
        %v591 = vld [vmem:[%s271 + $0x8f0] sm:$0xff]
        %v592 = vld [vmem:[%s271 + $0x8f8] sm:$0xff]
        %v593 = vld [vmem:[%s271 + $0x900] sm:$0xff]
        %v594 = vld [vmem:[%s271 + $0x908] sm:$0xff]
        %v595 = vld [vmem:[%s271 + $0x910] sm:$0xff]
        %v596 = vld [vmem:[%s271 + $0x918] sm:$0xff]
        %v597 = vld [vmem:[%s271 + $0x920] sm:$0xff]
        %v598 = vld [vmem:[%s271 + $0x928] sm:$0xff]
        %v599 = vld [vmem:[%s271 + $0x930] sm:$0xff]
        %v600 = vld [vmem:[%s271 + $0x938] sm:$0xff]
        %v601 = vld [vmem:[%s271 + $0x940] sm:$0xff]
        %v602 = vld [vmem:[%s271 + $0x948] sm:$0xff]
        %v603 = vld [vmem:[%s271 + $0x950] sm:$0xff]
        %v604 = vld [vmem:[%s271 + $0x958] sm:$0xff]
        %v605 = vld [vmem:[%s271 + $0x960] sm:$0xff]
        %v606 = vld [vmem:[%s271 + $0x968] sm:$0xff]
        %v607 = vld [vmem:[%s271 + $0x970] sm:$0xff]
        %v608 = vld [vmem:[%s271 + $0x978] sm:$0xff]
        %v609 = vld [vmem:[%s271 + $0x980] sm:$0xff]
        %v610 = vld [vmem:[%s271 + $0x988] sm:$0xff]
        %v611 = vld [vmem:[%s271 + $0x990] sm:$0xff]
        %v612 = vld [vmem:[%s271 + $0x998] sm:$0xff]
        %v613 = vld [vmem:[%s271 + $0x9a0] sm:$0xff]
        %v614 = vld [vmem:[%s271 + $0x9a8] sm:$0xff]
        %v615 = vld [vmem:[%s271 + $0x9b0] sm:$0xff]
        %v616 = vld [vmem:[%s271 + $0x9b8] sm:$0xff]
        %v617 = vld [vmem:[%s271 + $0x9c0] sm:$0xff]
        %v618 = vld [vmem:[%s271 + $0x9c8] sm:$0xff]
        %v619 = vld [vmem:[%s271 + $0x9d0] sm:$0xff]
        %v620 = vld [vmem:[%s271 + $0x9d8] sm:$0xff]
        %v621 = vld [vmem:[%s271 + $0x9e0] sm:$0xff]
        %v622 = vld [vmem:[%s271 + $0x9e8] sm:$0xff]
        %v623 = vld [vmem:[%s271 + $0x9f0] sm:$0xff]
        %v624 = vld [vmem:[%s271 + $0x9f8] sm:$0xff]
        %v625 = vpack.c.bf16 %v310, %v305
        %v626 = vpack.c.bf16 %v311, %v306
        %v627 = vpack.c.bf16 %v312, %v307
        %v628 = vpack.c.bf16 %v313, %v308
        %v629 = vpack.c.bf16 %v314, %v309
        %v630 = vpack.c.bf16 %v320, %v315
        %v631 = vpack.c.bf16 %v321, %v316
        %v632 = vpack.c.bf16 %v322, %v317
        %v633 = vpack.c.bf16 %v323, %v318
        %v634 = vpack.c.bf16 %v324, %v319
        %v635 = vpack.c.bf16 %v330, %v325
        %v636 = vpack.c.bf16 %v331, %v326
        %v637 = vpack.c.bf16 %v332, %v327
        %v638 = vpack.c.bf16 %v333, %v328
        %v639 = vpack.c.bf16 %v334, %v329
        %v640 = vpack.c.bf16 %v340, %v335
        %v641 = vpack.c.bf16 %v341, %v336
        %v642 = vpack.c.bf16 %v342, %v337
        %v643 = vpack.c.bf16 %v343, %v338
        %v644 = vpack.c.bf16 %v344, %v339
        %v645 = vpack.c.bf16 %v350, %v345
        %v646 = vpack.c.bf16 %v351, %v346
        %v647 = vpack.c.bf16 %v352, %v347
        %v648 = vpack.c.bf16 %v353, %v348
        %v649 = vpack.c.bf16 %v354, %v349
        %v650 = vpack.c.bf16 %v360, %v355
        %v651 = vpack.c.bf16 %v361, %v356
        %v652 = vpack.c.bf16 %v362, %v357
        %v653 = vpack.c.bf16 %v363, %v358
        %v654 = vpack.c.bf16 %v364, %v359
        %v655 = vpack.c.bf16 %v370, %v365
        %v656 = vpack.c.bf16 %v371, %v366
        %v657 = vpack.c.bf16 %v372, %v367
        %v658 = vpack.c.bf16 %v373, %v368
        %v659 = vpack.c.bf16 %v374, %v369
        %v660 = vpack.c.bf16 %v380, %v375
        %v661 = vpack.c.bf16 %v381, %v376
        %v662 = vpack.c.bf16 %v382, %v377
        %v663 = vpack.c.bf16 %v383, %v378
        %v664 = vpack.c.bf16 %v384, %v379
        %v665 = vpack.c.bf16 %v390, %v385
        %v666 = vpack.c.bf16 %v391, %v386
        %v667 = vpack.c.bf16 %v392, %v387
        %v668 = vpack.c.bf16 %v393, %v388
        %v669 = vpack.c.bf16 %v394, %v389
        %v670 = vpack.c.bf16 %v400, %v395
        %v671 = vpack.c.bf16 %v401, %v396
        %v672 = vpack.c.bf16 %v402, %v397
        %v673 = vpack.c.bf16 %v403, %v398
        %v674 = vpack.c.bf16 %v404, %v399
        %v675 = vpack.c.bf16 %v410, %v405
        %v676 = vpack.c.bf16 %v411, %v406
        %v677 = vpack.c.bf16 %v412, %v407
        %v678 = vpack.c.bf16 %v413, %v408
        %v679 = vpack.c.bf16 %v414, %v409
        %v680 = vpack.c.bf16 %v420, %v415
        %v681 = vpack.c.bf16 %v421, %v416
        %v682 = vpack.c.bf16 %v422, %v417
        %v683 = vpack.c.bf16 %v423, %v418
        %v684 = vpack.c.bf16 %v424, %v419
        %v685 = vpack.c.bf16 %v430, %v425
        %v686 = vpack.c.bf16 %v431, %v426
        %v687 = vpack.c.bf16 %v432, %v427
        %v688 = vpack.c.bf16 %v433, %v428
        %v689 = vpack.c.bf16 %v434, %v429
        %v690 = vpack.c.bf16 %v440, %v435
        %v691 = vpack.c.bf16 %v441, %v436
        %v692 = vpack.c.bf16 %v442, %v437
        %v693 = vpack.c.bf16 %v443, %v438
        %v694 = vpack.c.bf16 %v444, %v439
        %v695 = vpack.c.bf16 %v450, %v445
        %v696 = vpack.c.bf16 %v451, %v446
        %v697 = vpack.c.bf16 %v452, %v447
        %v698 = vpack.c.bf16 %v453, %v448
        %v699 = vpack.c.bf16 %v454, %v449
        %v700 = vpack.c.bf16 %v460, %v455
        %v701 = vpack.c.bf16 %v461, %v456
        %v702 = vpack.c.bf16 %v462, %v457
        %v703 = vpack.c.bf16 %v463, %v458
        %v704 = vpack.c.bf16 %v464, %v459
        %v705 = vpack.c.bf16 %v470, %v465
        %v706 = vpack.c.bf16 %v471, %v466
        %v707 = vpack.c.bf16 %v472, %v467
        %v708 = vpack.c.bf16 %v473, %v468
        %v709 = vpack.c.bf16 %v474, %v469
        %v710 = vpack.c.bf16 %v480, %v475
        %v711 = vpack.c.bf16 %v481, %v476
        %v712 = vpack.c.bf16 %v482, %v477
        %v713 = vpack.c.bf16 %v483, %v478
        %v714 = vpack.c.bf16 %v484, %v479
        %v715 = vpack.c.bf16 %v490, %v485
        %v716 = vpack.c.bf16 %v491, %v486
        %v717 = vpack.c.bf16 %v492, %v487
        %v718 = vpack.c.bf16 %v493, %v488
        %v719 = vpack.c.bf16 %v494, %v489
        %v720 = vpack.c.bf16 %v500, %v495
        %v721 = vpack.c.bf16 %v501, %v496
        %v722 = vpack.c.bf16 %v502, %v497
        %v723 = vpack.c.bf16 %v503, %v498
        %v724 = vpack.c.bf16 %v504, %v499
        %v725 = vpack.c.bf16 %v510, %v505
        %v726 = vpack.c.bf16 %v511, %v506
        %v727 = vpack.c.bf16 %v512, %v507
        %v728 = vpack.c.bf16 %v513, %v508
        %v729 = vpack.c.bf16 %v514, %v509
        %v730 = vpack.c.bf16 %v520, %v515
        %v731 = vpack.c.bf16 %v521, %v516
        %v732 = vpack.c.bf16 %v522, %v517
        %v733 = vpack.c.bf16 %v523, %v518
        %v734 = vpack.c.bf16 %v524, %v519
        %v735 = vpack.c.bf16 %v530, %v525
        %v736 = vpack.c.bf16 %v531, %v526
        %v737 = vpack.c.bf16 %v532, %v527
        %v738 = vpack.c.bf16 %v533, %v528
        %v739 = vpack.c.bf16 %v534, %v529
        %v740 = vpack.c.bf16 %v540, %v535
        %v741 = vpack.c.bf16 %v541, %v536
        %v742 = vpack.c.bf16 %v542, %v537
        %v743 = vpack.c.bf16 %v543, %v538
        %v744 = vpack.c.bf16 %v544, %v539
        %v745 = vpack.c.bf16 %v550, %v545
        %v746 = vpack.c.bf16 %v551, %v546
        %v747 = vpack.c.bf16 %v552, %v547
        %v748 = vpack.c.bf16 %v553, %v548
        %v749 = vpack.c.bf16 %v554, %v549
        %v750 = vpack.c.bf16 %v560, %v555
        %v751 = vpack.c.bf16 %v561, %v556
        %v752 = vpack.c.bf16 %v562, %v557
        %v753 = vpack.c.bf16 %v563, %v558
        %v754 = vpack.c.bf16 %v564, %v559
        %v755 = vpack.c.bf16 %v570, %v565
        %v756 = vpack.c.bf16 %v571, %v566
        %v757 = vpack.c.bf16 %v572, %v567
        %v758 = vpack.c.bf16 %v573, %v568
        %v759 = vpack.c.bf16 %v574, %v569
        %v760 = vpack.c.bf16 %v580, %v575
        %v761 = vpack.c.bf16 %v581, %v576
        %v762 = vpack.c.bf16 %v582, %v577
        %v763 = vpack.c.bf16 %v583, %v578
        %v764 = vpack.c.bf16 %v584, %v579
        %v765 = vpack.c.bf16 %v590, %v585
        %v766 = vpack.c.bf16 %v591, %v586
        %v767 = vpack.c.bf16 %v592, %v587
        %v768 = vpack.c.bf16 %v593, %v588
        %v769 = vpack.c.bf16 %v594, %v589
        %v770 = vpack.c.bf16 %v600, %v595
        %v771 = vpack.c.bf16 %v601, %v596
        %v772 = vpack.c.bf16 %v602, %v597
        %v773 = vpack.c.bf16 %v603, %v598
        %v774 = vpack.c.bf16 %v604, %v599
        %v775 = vpack.c.bf16 %v610, %v605
        %v776 = vpack.c.bf16 %v611, %v606
        %v777 = vpack.c.bf16 %v612, %v607
        %v778 = vpack.c.bf16 %v613, %v608
        %v779 = vpack.c.bf16 %v614, %v609
        %v780 = vpack.c.bf16 %v620, %v615
        %v781 = vpack.c.bf16 %v621, %v616
        %v782 = vpack.c.bf16 %v622, %v617
        %v783 = vpack.c.bf16 %v623, %v618
        %v784 = vpack.c.bf16 %v624, %v619
        %v785 = vld [vmem:[%s1] sm:$0xff]
        %v786 = vld [vmem:[%s1 + $0x8] sm:$0xff]
        %v787 = vld [vmem:[%s1 + $0x10] sm:$0xf]
        %v788 = vld [vmem:[%s1 + $0x14] sm:$0xff]
        %v789 = vld [vmem:[%s1 + $0x1c] sm:$0xff]
        %v790 = vld [vmem:[%s1 + $0x24] sm:$0xf]
        %v791 = vld [vmem:[%s1 + $0x28] sm:$0xff]
        %v792 = vld [vmem:[%s1 + $0x30] sm:$0xff]
        %v793 = vld [vmem:[%s1 + $0x38] sm:$0xf]
        %v794 = vld [vmem:[%s1 + $0x3c] sm:$0xff]
        %v795 = vld [vmem:[%s1 + $0x44] sm:$0xff]
        %v796 = vld [vmem:[%s1 + $0x4c] sm:$0xf]
        %v797 = vld [vmem:[%s1 + $0x50] sm:$0xff]
        %v798 = vld [vmem:[%s1 + $0x58] sm:$0xff]
        %v799 = vld [vmem:[%s1 + $0x60] sm:$0xf]
        %v800 = vld [vmem:[%s1 + $0x64] sm:$0xff]
        %v801 = vld [vmem:[%s1 + $0x6c] sm:$0xff]
        %v802 = vld [vmem:[%s1 + $0x74] sm:$0xf]
        %v803 = vld [vmem:[%s1 + $0x78] sm:$0xff]
        %v804 = vld [vmem:[%s1 + $0x80] sm:$0xff]
        %v805 = vld [vmem:[%s1 + $0x88] sm:$0xf]
        %v806 = vld [vmem:[%s1 + $0x8c] sm:$0xff]
        %v807 = vld [vmem:[%s1 + $0x94] sm:$0xff]
        %v808 = vld [vmem:[%s1 + $0x9c] sm:$0xf]
        %v809 = vld [vmem:[%s1 + $0xa0] sm:$0xff]
        %v810 = vld [vmem:[%s1 + $0xa8] sm:$0xff]
        %v811 = vld [vmem:[%s1 + $0xb0] sm:$0xf]
        %v812 = vld [vmem:[%s1 + $0xb4] sm:$0xff]
        %v813 = vld [vmem:[%s1 + $0xbc] sm:$0xff]
        %v814 = vld [vmem:[%s1 + $0xc4] sm:$0xf]
        %v815 = vld [vmem:[%s1 + $0xc8] sm:$0xff]
        %v816 = vld [vmem:[%s1 + $0xd0] sm:$0xff]
        %v817 = vld [vmem:[%s1 + $0xd8] sm:$0xf]
        %v818 = vld [vmem:[%s1 + $0xdc] sm:$0xff]
        %v819 = vld [vmem:[%s1 + $0xe4] sm:$0xff]
        %v820 = vld [vmem:[%s1 + $0xec] sm:$0xf]
        %v821 = vld [vmem:[%s1 + $0xf0] sm:$0xff]
        %v822 = vld [vmem:[%s1 + $0xf8] sm:$0xff]
        %v823 = vld [vmem:[%s1 + $0x100] sm:$0xf]
        %v824 = vld [vmem:[%s1 + $0x104] sm:$0xff]
        %v825 = vld [vmem:[%s1 + $0x10c] sm:$0xff]
        %v826 = vld [vmem:[%s1 + $0x114] sm:$0xf]
        %v827 = vld [vmem:[%s1 + $0x118] sm:$0xff]
        %v828 = vld [vmem:[%s1 + $0x120] sm:$0xff]
        %v829 = vld [vmem:[%s1 + $0x128] sm:$0xf]
        %v830 = vld [vmem:[%s1 + $0x12c] sm:$0xff]
        %v831 = vld [vmem:[%s1 + $0x134] sm:$0xff]
        %v832 = vld [vmem:[%s1 + $0x13c] sm:$0xf]
        %v833 = vld [vmem:[%s1 + $0x140] sm:$0xff]
        %v834 = vld [vmem:[%s1 + $0x148] sm:$0xff]
        %v835 = vld [vmem:[%s1 + $0x150] sm:$0xf]
        %v836 = vld [vmem:[%s1 + $0x154] sm:$0xff]
        %v837 = vld [vmem:[%s1 + $0x15c] sm:$0xff]
        %v838 = vld [vmem:[%s1 + $0x164] sm:$0xf]
        %v839 = vld [vmem:[%s1 + $0x168] sm:$0xff]
        %v840 = vld [vmem:[%s1 + $0x170] sm:$0xff]
        %v841 = vld [vmem:[%s1 + $0x178] sm:$0xf]
        %v842 = vld [vmem:[%s1 + $0x17c] sm:$0xff]
        %v843 = vld [vmem:[%s1 + $0x184] sm:$0xff]
        %v844 = vld [vmem:[%s1 + $0x18c] sm:$0xf]
        %v845 = vld [vmem:[%s1 + $0x190] sm:$0xff]
        %v846 = vld [vmem:[%s1 + $0x198] sm:$0xff]
        %v847 = vld [vmem:[%s1 + $0x1a0] sm:$0xf]
        %v848 = vld [vmem:[%s1 + $0x1a4] sm:$0xff]
        %v849 = vld [vmem:[%s1 + $0x1ac] sm:$0xff]
        %v850 = vld [vmem:[%s1 + $0x1b4] sm:$0xf]
        %v851 = vld [vmem:[%s1 + $0x1b8] sm:$0xff]
        %v852 = vld [vmem:[%s1 + $0x1c0] sm:$0xff]
        %v853 = vld [vmem:[%s1 + $0x1c8] sm:$0xf]
        %v854 = vld [vmem:[%s1 + $0x1cc] sm:$0xff]
        %v855 = vld [vmem:[%s1 + $0x1d4] sm:$0xff]
        %v856 = vld [vmem:[%s1 + $0x1dc] sm:$0xf]
        %v857 = vld [vmem:[%s1 + $0x1e0] sm:$0xff]
        %v858 = vld [vmem:[%s1 + $0x1e8] sm:$0xff]
        %v859 = vld [vmem:[%s1 + $0x1f0] sm:$0xf]
        %v860 = vld [vmem:[%s1 + $0x1f4] sm:$0xff]
        %v861 = vld [vmem:[%s1 + $0x1fc] sm:$0xff]
        %v862 = vld [vmem:[%s1 + $0x204] sm:$0xf]
        %v863 = vld [vmem:[%s1 + $0x208] sm:$0xff]
        %v864 = vld [vmem:[%s1 + $0x210] sm:$0xff]
        %v865 = vld [vmem:[%s1 + $0x218] sm:$0xf]
        %v866 = vld [vmem:[%s1 + $0x21c] sm:$0xff]
        %v867 = vld [vmem:[%s1 + $0x224] sm:$0xff]
        %v868 = vld [vmem:[%s1 + $0x22c] sm:$0xf]
        %v869 = vld [vmem:[%s1 + $0x230] sm:$0xff]
        %v870 = vld [vmem:[%s1 + $0x238] sm:$0xff]
        %v871 = vld [vmem:[%s1 + $0x240] sm:$0xf]
        %v872 = vld [vmem:[%s1 + $0x244] sm:$0xff]
        %v873 = vld [vmem:[%s1 + $0x24c] sm:$0xff]
        %v874 = vld [vmem:[%s1 + $0x254] sm:$0xf]
        %v875 = vld [vmem:[%s1 + $0x258] sm:$0xff]
        %v876 = vld [vmem:[%s1 + $0x260] sm:$0xff]
        %v877 = vld [vmem:[%s1 + $0x268] sm:$0xf]
        %v878 = vld [vmem:[%s1 + $0x26c] sm:$0xff]
        %v879 = vld [vmem:[%s1 + $0x274] sm:$0xff]
        %v880 = vld [vmem:[%s1 + $0x27c] sm:$0xf]
        %v881 = vld [vmem:[%s1 + $0x280] sm:$0xff]
        %v882 = vld [vmem:[%s1 + $0x288] sm:$0xff]
        %v883 = vld [vmem:[%s1 + $0x290] sm:$0xf]
        %v884 = vld [vmem:[%s1 + $0x294] sm:$0xff]
        %v885 = vld [vmem:[%s1 + $0x29c] sm:$0xff]
        %v886 = vld [vmem:[%s1 + $0x2a4] sm:$0xf]
        %v887 = vld [vmem:[%s1 + $0x2a8] sm:$0xff]
        %v888 = vld [vmem:[%s1 + $0x2b0] sm:$0xff]
        %v889 = vld [vmem:[%s1 + $0x2b8] sm:$0xf]
        %v890 = vld [vmem:[%s1 + $0x2bc] sm:$0xff]
        %v891 = vld [vmem:[%s1 + $0x2c4] sm:$0xff]
        %v892 = vld [vmem:[%s1 + $0x2cc] sm:$0xf]
        %v893 = vld [vmem:[%s1 + $0x2d0] sm:$0xff]
        %v894 = vld [vmem:[%s1 + $0x2d8] sm:$0xff]
        %v895 = vld [vmem:[%s1 + $0x2e0] sm:$0xf]
        %v896 = vld [vmem:[%s1 + $0x2e4] sm:$0xff]
        %v897 = vld [vmem:[%s1 + $0x2ec] sm:$0xff]
        %v898 = vld [vmem:[%s1 + $0x2f4] sm:$0xf]
        %v899 = vld [vmem:[%s1 + $0x2f8] sm:$0xff]
        %v900 = vld [vmem:[%s1 + $0x300] sm:$0xff]
        %v901 = vld [vmem:[%s1 + $0x308] sm:$0xf]
        %v902 = vld [vmem:[%s1 + $0x30c] sm:$0xff]
        %v903 = vld [vmem:[%s1 + $0x314] sm:$0xff]
        %v904 = vld [vmem:[%s1 + $0x31c] sm:$0xf]
        %v905 = vld [vmem:[%s1 + $0x320] sm:$0xff]
        %v906 = vld [vmem:[%s1 + $0x328] sm:$0xff]
        %v907 = vld [vmem:[%s1 + $0x330] sm:$0xf]
        %v908 = vld [vmem:[%s1 + $0x334] sm:$0xff]
        %v909 = vld [vmem:[%s1 + $0x33c] sm:$0xff]
        %v910 = vld [vmem:[%s1 + $0x344] sm:$0xf]
        %v911 = vld [vmem:[%s1 + $0x348] sm:$0xff]
        %v912 = vld [vmem:[%s1 + $0x350] sm:$0xff]
        %v913 = vld [vmem:[%s1 + $0x358] sm:$0xf]
        %v914 = vld [vmem:[%s1 + $0x35c] sm:$0xff]
        %v915 = vld [vmem:[%s1 + $0x364] sm:$0xff]
        %v916 = vld [vmem:[%s1 + $0x36c] sm:$0xf]
        %v917 = vld [vmem:[%s1 + $0x370] sm:$0xff]
        %v918 = vld [vmem:[%s1 + $0x378] sm:$0xff]
        %v919 = vld [vmem:[%s1 + $0x380] sm:$0xf]
        %v920 = vld [vmem:[%s1 + $0x384] sm:$0xff]
        %v921 = vld [vmem:[%s1 + $0x38c] sm:$0xff]
        %v922 = vld [vmem:[%s1 + $0x394] sm:$0xf]
        %v923 = vld [vmem:[%s1 + $0x398] sm:$0xff]
        %v924 = vld [vmem:[%s1 + $0x3a0] sm:$0xff]
        %v925 = vld [vmem:[%s1 + $0x3a8] sm:$0xf]
        %v926 = vld [vmem:[%s1 + $0x3ac] sm:$0xff]
        %v927 = vld [vmem:[%s1 + $0x3b4] sm:$0xff]
        %v928 = vld [vmem:[%s1 + $0x3bc] sm:$0xf]
        %v929 = vld [vmem:[%s1 + $0x3c0] sm:$0xff]
        %v930 = vld [vmem:[%s1 + $0x3c8] sm:$0xff]
        %v931 = vld [vmem:[%s1 + $0x3d0] sm:$0xf]
        %v932 = vld [vmem:[%s1 + $0x3d4] sm:$0xff]
        %v933 = vld [vmem:[%s1 + $0x3dc] sm:$0xff]
        %v934 = vld [vmem:[%s1 + $0x3e4] sm:$0xf]
        %v935 = vld [vmem:[%s1 + $0x3e8] sm:$0xff]
        %v936 = vld [vmem:[%s1 + $0x3f0] sm:$0xff]
        %v937 = vld [vmem:[%s1 + $0x3f8] sm:$0xf]
        %v938 = vld [vmem:[%s1 + $0x3fc] sm:$0xff]
        %v939 = vld [vmem:[%s1 + $0x404] sm:$0xff]
        %v940 = vld [vmem:[%s1 + $0x40c] sm:$0xf]
        %v941 = vld [vmem:[%s1 + $0x410] sm:$0xff]
        %v942 = vld [vmem:[%s1 + $0x418] sm:$0xff]
        %v943 = vld [vmem:[%s1 + $0x420] sm:$0xf]
        %v944 = vld [vmem:[%s1 + $0x424] sm:$0xff]
        %v945 = vld [vmem:[%s1 + $0x42c] sm:$0xff]
        %v946 = vld [vmem:[%s1 + $0x434] sm:$0xf]
        %v947 = vld [vmem:[%s1 + $0x438] sm:$0xff]
        %v948 = vld [vmem:[%s1 + $0x440] sm:$0xff]
        %v949 = vld [vmem:[%s1 + $0x448] sm:$0xf]
        %v950 = vld [vmem:[%s1 + $0x44c] sm:$0xff]
        %v951 = vld [vmem:[%s1 + $0x454] sm:$0xff]
        %v952 = vld [vmem:[%s1 + $0x45c] sm:$0xf]
        %v953 = vld [vmem:[%s1 + $0x460] sm:$0xff]
        %v954 = vld [vmem:[%s1 + $0x468] sm:$0xff]
        %v955 = vld [vmem:[%s1 + $0x470] sm:$0xf]
        %v956 = vld [vmem:[%s1 + $0x474] sm:$0xff]
        %v957 = vld [vmem:[%s1 + $0x47c] sm:$0xff]
        %v958 = vld [vmem:[%s1 + $0x484] sm:$0xf]
        %v959 = vld [vmem:[%s1 + $0x488] sm:$0xff]
        %v960 = vld [vmem:[%s1 + $0x490] sm:$0xff]
        %v961 = vld [vmem:[%s1 + $0x498] sm:$0xf]
        %v962 = vld [vmem:[%s1 + $0x49c] sm:$0xff]
        %v963 = vld [vmem:[%s1 + $0x4a4] sm:$0xff]
        %v964 = vld [vmem:[%s1 + $0x4ac] sm:$0xf]
        %v965 = vld [vmem:[%s1 + $0x4b0] sm:$0xff]
        %v966 = vld [vmem:[%s1 + $0x4b8] sm:$0xff]
        %v967 = vld [vmem:[%s1 + $0x4c0] sm:$0xf]
        %v968 = vld [vmem:[%s1 + $0x4c4] sm:$0xff]
        %v969 = vld [vmem:[%s1 + $0x4cc] sm:$0xff]
        %v970 = vld [vmem:[%s1 + $0x4d4] sm:$0xf]
        %v971 = vld [vmem:[%s1 + $0x4d8] sm:$0xff]
        %v972 = vld [vmem:[%s1 + $0x4e0] sm:$0xff]
        %v973 = vld [vmem:[%s1 + $0x4e8] sm:$0xf]
        %v974 = vld [vmem:[%s1 + $0x4ec] sm:$0xff]
        %v975 = vld [vmem:[%s1 + $0x4f4] sm:$0xff]
        %v976 = vld [vmem:[%s1 + $0x4fc] sm:$0xf]
        %v977 = vld [vmem:[%s1 + $0x500] sm:$0xff]
        %v978 = vld [vmem:[%s1 + $0x508] sm:$0xff]
        %v979 = vld [vmem:[%s1 + $0x510] sm:$0xf]
        %v1175 = vunpack.c.l.b16 %v785
        %v1176 = vunpack.c.h.b16 %v785
        %v1177 = vunpack.c.l.b16 %v786
        %v1178 = vunpack.c.h.b16 %v786
        %v1179 = vunpack.c.l.b16 %v787
        %v1180 = vunpack.c.l.b16 %v788
        %v1181 = vunpack.c.h.b16 %v788
        %v1182 = vunpack.c.l.b16 %v789
        %v1183 = vunpack.c.h.b16 %v789
        %v1184 = vunpack.c.l.b16 %v790
        %v1185 = vunpack.c.l.b16 %v791
        %v1186 = vunpack.c.h.b16 %v791
        %v1187 = vunpack.c.l.b16 %v792
        %v1188 = vunpack.c.h.b16 %v792
        %v1189 = vunpack.c.l.b16 %v793
        %v1190 = vunpack.c.l.b16 %v794
        %v1191 = vunpack.c.h.b16 %v794
        %v1192 = vunpack.c.l.b16 %v795
        %v1193 = vunpack.c.h.b16 %v795
        %v1194 = vunpack.c.l.b16 %v796
        %v1195 = vunpack.c.l.b16 %v797
        %v1196 = vunpack.c.h.b16 %v797
        %v1197 = vunpack.c.l.b16 %v798
        %v1198 = vunpack.c.h.b16 %v798
        %v1199 = vunpack.c.l.b16 %v799
        %v1200 = vunpack.c.l.b16 %v800
        %v1201 = vunpack.c.h.b16 %v800
        %v1202 = vunpack.c.l.b16 %v801
        %v1203 = vunpack.c.h.b16 %v801
        %v1204 = vunpack.c.l.b16 %v802
        %v1205 = vunpack.c.l.b16 %v803
        %v1206 = vunpack.c.h.b16 %v803
        %v1207 = vunpack.c.l.b16 %v804
        %v1208 = vunpack.c.h.b16 %v804
        %v1209 = vunpack.c.l.b16 %v805
        %v1210 = vunpack.c.l.b16 %v806
        %v1211 = vunpack.c.h.b16 %v806
        %v1212 = vunpack.c.l.b16 %v807
        %v1213 = vunpack.c.h.b16 %v807
        %v1214 = vunpack.c.l.b16 %v808
        %v1215 = vunpack.c.l.b16 %v809
        %v1216 = vunpack.c.h.b16 %v809
        %v1217 = vunpack.c.l.b16 %v810
        %v1218 = vunpack.c.h.b16 %v810
        %v1219 = vunpack.c.l.b16 %v811
        %v1220 = vunpack.c.l.b16 %v812
        %v1221 = vunpack.c.h.b16 %v812
        %v1222 = vunpack.c.l.b16 %v813
        %v1223 = vunpack.c.h.b16 %v813
        %v1224 = vunpack.c.l.b16 %v814
        %v1225 = vunpack.c.l.b16 %v815
        %v1226 = vunpack.c.h.b16 %v815
        %v1227 = vunpack.c.l.b16 %v816
        %v1228 = vunpack.c.h.b16 %v816
        %v1229 = vunpack.c.l.b16 %v817
        %v1230 = vunpack.c.l.b16 %v818
        %v1231 = vunpack.c.h.b16 %v818
        %v1232 = vunpack.c.l.b16 %v819
        %v1233 = vunpack.c.h.b16 %v819
        %v1234 = vunpack.c.l.b16 %v820
        %v1235 = vunpack.c.l.b16 %v821
        %v1236 = vunpack.c.h.b16 %v821
        %v1237 = vunpack.c.l.b16 %v822
        %v1238 = vunpack.c.h.b16 %v822
        %v1239 = vunpack.c.l.b16 %v823
        %v1240 = vunpack.c.l.b16 %v824
        %v1241 = vunpack.c.h.b16 %v824
        %v1242 = vunpack.c.l.b16 %v825
        %v1243 = vunpack.c.h.b16 %v825
        %v1244 = vunpack.c.l.b16 %v826
        %v1245 = vunpack.c.l.b16 %v827
        %v1246 = vunpack.c.h.b16 %v827
        %v1247 = vunpack.c.l.b16 %v828
        %v1248 = vunpack.c.h.b16 %v828
        %v1249 = vunpack.c.l.b16 %v829
        %v1250 = vunpack.c.l.b16 %v830
        %v1251 = vunpack.c.h.b16 %v830
        %v1252 = vunpack.c.l.b16 %v831
        %v1253 = vunpack.c.h.b16 %v831
        %v1254 = vunpack.c.l.b16 %v832
        %v1255 = vunpack.c.l.b16 %v833
        %v1256 = vunpack.c.h.b16 %v833
        %v1257 = vunpack.c.l.b16 %v834
        %v1258 = vunpack.c.h.b16 %v834
        %v1259 = vunpack.c.l.b16 %v835
        %v1260 = vunpack.c.l.b16 %v836
        %v1261 = vunpack.c.h.b16 %v836
        %v1262 = vunpack.c.l.b16 %v837
        %v1263 = vunpack.c.h.b16 %v837
        %v1264 = vunpack.c.l.b16 %v838
        %v1265 = vunpack.c.l.b16 %v839
        %v1266 = vunpack.c.h.b16 %v839
        %v1267 = vunpack.c.l.b16 %v840
        %v1268 = vunpack.c.h.b16 %v840
        %v1269 = vunpack.c.l.b16 %v841
        %v1270 = vunpack.c.l.b16 %v842
        %v1271 = vunpack.c.h.b16 %v842
        %v1272 = vunpack.c.l.b16 %v843
        %v1273 = vunpack.c.h.b16 %v843
        %v1274 = vunpack.c.l.b16 %v844
        %v1275 = vunpack.c.l.b16 %v845
        %v1276 = vunpack.c.h.b16 %v845
        %v1277 = vunpack.c.l.b16 %v846
        %v1278 = vunpack.c.h.b16 %v846
        %v1279 = vunpack.c.l.b16 %v847
        %v1280 = vunpack.c.l.b16 %v848
        %v1281 = vunpack.c.h.b16 %v848
        %v1282 = vunpack.c.l.b16 %v849
        %v1283 = vunpack.c.h.b16 %v849
        %v1284 = vunpack.c.l.b16 %v850
        %v1285 = vunpack.c.l.b16 %v851
        %v1286 = vunpack.c.h.b16 %v851
        %v1287 = vunpack.c.l.b16 %v852
        %v1288 = vunpack.c.h.b16 %v852
        %v1289 = vunpack.c.l.b16 %v853
        %v1290 = vunpack.c.l.b16 %v854
        %v1291 = vunpack.c.h.b16 %v854
        %v1292 = vunpack.c.l.b16 %v855
        %v1293 = vunpack.c.h.b16 %v855
        %v1294 = vunpack.c.l.b16 %v856
        %v1295 = vunpack.c.l.b16 %v857
        %v1296 = vunpack.c.h.b16 %v857
        %v1297 = vunpack.c.l.b16 %v858
        %v1298 = vunpack.c.h.b16 %v858
        %v1299 = vunpack.c.l.b16 %v859
        %v1300 = vunpack.c.l.b16 %v860
        %v1301 = vunpack.c.h.b16 %v860
        %v1302 = vunpack.c.l.b16 %v861
        %v1303 = vunpack.c.h.b16 %v861
        %v1304 = vunpack.c.l.b16 %v862
        %v1305 = vunpack.c.l.b16 %v863
        %v1306 = vunpack.c.h.b16 %v863
        %v1307 = vunpack.c.l.b16 %v864
        %v1308 = vunpack.c.h.b16 %v864
        %v1309 = vunpack.c.l.b16 %v865
        %v1310 = vunpack.c.l.b16 %v866
        %v1311 = vunpack.c.h.b16 %v866
        %v1312 = vunpack.c.l.b16 %v867
        %v1313 = vunpack.c.h.b16 %v867
        %v1314 = vunpack.c.l.b16 %v868
        %v1315 = vunpack.c.l.b16 %v869
        %v1316 = vunpack.c.h.b16 %v869
        %v1317 = vunpack.c.l.b16 %v870
        %v1318 = vunpack.c.h.b16 %v870
        %v1319 = vunpack.c.l.b16 %v871
        %v1320 = vunpack.c.l.b16 %v872
        %v1321 = vunpack.c.h.b16 %v872
        %v1322 = vunpack.c.l.b16 %v873
        %v1323 = vunpack.c.h.b16 %v873
        %v1324 = vunpack.c.l.b16 %v874
        %v1325 = vunpack.c.l.b16 %v875
        %v1326 = vunpack.c.h.b16 %v875
        %v1327 = vunpack.c.l.b16 %v876
        %v1328 = vunpack.c.h.b16 %v876
        %v1329 = vunpack.c.l.b16 %v877
        %v1330 = vunpack.c.l.b16 %v878
        %v1331 = vunpack.c.h.b16 %v878
        %v1332 = vunpack.c.l.b16 %v879
        %v1333 = vunpack.c.h.b16 %v879
        %v1334 = vunpack.c.l.b16 %v880
        %v1335 = vunpack.c.l.b16 %v881
        %v1336 = vunpack.c.h.b16 %v881
        %v1337 = vunpack.c.l.b16 %v882
        %v1338 = vunpack.c.h.b16 %v882
        %v1339 = vunpack.c.l.b16 %v883
        %v1340 = vunpack.c.l.b16 %v884
        %v1341 = vunpack.c.h.b16 %v884
        %v1342 = vunpack.c.l.b16 %v885
        %v1343 = vunpack.c.h.b16 %v885
        %v1344 = vunpack.c.l.b16 %v886
        %v1345 = vunpack.c.l.b16 %v887
        %v1346 = vunpack.c.h.b16 %v887
        %v1347 = vunpack.c.l.b16 %v888
        %v1348 = vunpack.c.h.b16 %v888
        %v1349 = vunpack.c.l.b16 %v889
        %v1350 = vunpack.c.l.b16 %v890
        %v1351 = vunpack.c.h.b16 %v890
        %v1352 = vunpack.c.l.b16 %v891
        %v1353 = vunpack.c.h.b16 %v891
        %v1354 = vunpack.c.l.b16 %v892
        %v1355 = vunpack.c.l.b16 %v893
        %v1356 = vunpack.c.h.b16 %v893
        %v1357 = vunpack.c.l.b16 %v894
        %v1358 = vunpack.c.h.b16 %v894
        %v1359 = vunpack.c.l.b16 %v895
        %v1360 = vunpack.c.l.b16 %v896
        %v1361 = vunpack.c.h.b16 %v896
        %v1362 = vunpack.c.l.b16 %v897
        %v1363 = vunpack.c.h.b16 %v897
        %v1364 = vunpack.c.l.b16 %v898
        %v1365 = vunpack.c.l.b16 %v899
        %v1366 = vunpack.c.h.b16 %v899
        %v1367 = vunpack.c.l.b16 %v900
        %v1368 = vunpack.c.h.b16 %v900
        %v1369 = vunpack.c.l.b16 %v901
        %v1370 = vunpack.c.l.b16 %v902
        %v1371 = vunpack.c.h.b16 %v902
        %v1372 = vunpack.c.l.b16 %v903
        %v1373 = vunpack.c.h.b16 %v903
        %v1374 = vunpack.c.l.b16 %v904
        %v1375 = vunpack.c.l.b16 %v905
        %v1376 = vunpack.c.h.b16 %v905
        %v1377 = vunpack.c.l.b16 %v906
        %v1378 = vunpack.c.h.b16 %v906
        %v1379 = vunpack.c.l.b16 %v907
        %v1380 = vunpack.c.l.b16 %v908
        %v1381 = vunpack.c.h.b16 %v908
        %v1382 = vunpack.c.l.b16 %v909
        %v1383 = vunpack.c.h.b16 %v909
        %v1384 = vunpack.c.l.b16 %v910
        %v1385 = vunpack.c.l.b16 %v911
        %v1386 = vunpack.c.h.b16 %v911
        %v1387 = vunpack.c.l.b16 %v912
        %v1388 = vunpack.c.h.b16 %v912
        %v1389 = vunpack.c.l.b16 %v913
        %v1390 = vunpack.c.l.b16 %v914
        %v1391 = vunpack.c.h.b16 %v914
        %v1392 = vunpack.c.l.b16 %v915
        %v1393 = vunpack.c.h.b16 %v915
        %v1394 = vunpack.c.l.b16 %v916
        %v1395 = vunpack.c.l.b16 %v917
        %v1396 = vunpack.c.h.b16 %v917
        %v1397 = vunpack.c.l.b16 %v918
        %v1398 = vunpack.c.h.b16 %v918
        %v1399 = vunpack.c.l.b16 %v919
        %v1400 = vunpack.c.l.b16 %v920
        %v1401 = vunpack.c.h.b16 %v920
        %v1402 = vunpack.c.l.b16 %v921
        %v1403 = vunpack.c.h.b16 %v921
        %v1404 = vunpack.c.l.b16 %v922
        %v1405 = vunpack.c.l.b16 %v923
        %v1406 = vunpack.c.h.b16 %v923
        %v1407 = vunpack.c.l.b16 %v924
        %v1408 = vunpack.c.h.b16 %v924
        %v1409 = vunpack.c.l.b16 %v925
        %v1410 = vunpack.c.l.b16 %v926
        %v1411 = vunpack.c.h.b16 %v926
        %v1412 = vunpack.c.l.b16 %v927
        %v1413 = vunpack.c.h.b16 %v927
        %v1414 = vunpack.c.l.b16 %v928
        %v1415 = vunpack.c.l.b16 %v929
        %v1416 = vunpack.c.h.b16 %v929
        %v1417 = vunpack.c.l.b16 %v930
        %v1418 = vunpack.c.h.b16 %v930
        %v1419 = vunpack.c.l.b16 %v931
        %v1420 = vunpack.c.l.b16 %v932
        %v1421 = vunpack.c.h.b16 %v932
        %v1422 = vunpack.c.l.b16 %v933
        %v1423 = vunpack.c.h.b16 %v933
        %v1424 = vunpack.c.l.b16 %v934
        %v1425 = vunpack.c.l.b16 %v935
        %v1426 = vunpack.c.h.b16 %v935
        %v1427 = vunpack.c.l.b16 %v936
        %v1428 = vunpack.c.h.b16 %v936
        %v1429 = vunpack.c.l.b16 %v937
        %v1430 = vunpack.c.l.b16 %v938
        %v1431 = vunpack.c.h.b16 %v938
        %v1432 = vunpack.c.l.b16 %v939
        %v1433 = vunpack.c.h.b16 %v939
        %v1434 = vunpack.c.l.b16 %v940
        %v1435 = vunpack.c.l.b16 %v941
        %v1436 = vunpack.c.h.b16 %v941
        %v1437 = vunpack.c.l.b16 %v942
        %v1438 = vunpack.c.h.b16 %v942
        %v1439 = vunpack.c.l.b16 %v943
        %v1440 = vunpack.c.l.b16 %v944
        %v1441 = vunpack.c.h.b16 %v944
        %v1442 = vunpack.c.l.b16 %v945
        %v1443 = vunpack.c.h.b16 %v945
        %v1444 = vunpack.c.l.b16 %v946
        %v1445 = vunpack.c.l.b16 %v947
        %v1446 = vunpack.c.h.b16 %v947
        %v1447 = vunpack.c.l.b16 %v948
        %v1448 = vunpack.c.h.b16 %v948
        %v1449 = vunpack.c.l.b16 %v949
        %v1450 = vunpack.c.l.b16 %v950
        %v1451 = vunpack.c.h.b16 %v950
        %v1452 = vunpack.c.l.b16 %v951
        %v1453 = vunpack.c.h.b16 %v951
        %v1454 = vunpack.c.l.b16 %v952
        %v1455 = vunpack.c.l.b16 %v953
        %v1456 = vunpack.c.h.b16 %v953
        %v1457 = vunpack.c.l.b16 %v954
        %v1458 = vunpack.c.h.b16 %v954
        %v1459 = vunpack.c.l.b16 %v955
        %v1460 = vunpack.c.l.b16 %v956
        %v1461 = vunpack.c.h.b16 %v956
        %v1462 = vunpack.c.l.b16 %v957
        %v1463 = vunpack.c.h.b16 %v957
        %v1464 = vunpack.c.l.b16 %v958
        %v1465 = vunpack.c.l.b16 %v959
        %v1466 = vunpack.c.h.b16 %v959
        %v1467 = vunpack.c.l.b16 %v960
        %v1468 = vunpack.c.h.b16 %v960
        %v1469 = vunpack.c.l.b16 %v961
        %v1470 = vunpack.c.l.b16 %v962
        %v1471 = vunpack.c.h.b16 %v962
        %v1472 = vunpack.c.l.b16 %v963
        %v1473 = vunpack.c.h.b16 %v963
        %v1474 = vunpack.c.l.b16 %v964
        %v1475 = vunpack.c.l.b16 %v965
        %v1476 = vunpack.c.h.b16 %v965
        %v1477 = vunpack.c.l.b16 %v966
        %v1478 = vunpack.c.h.b16 %v966
        %v1479 = vunpack.c.l.b16 %v967
        %v1480 = vunpack.c.l.b16 %v968
        %v1481 = vunpack.c.h.b16 %v968
        %v1482 = vunpack.c.l.b16 %v969
        %v1483 = vunpack.c.h.b16 %v969
        %v1484 = vunpack.c.l.b16 %v970
        %v1485 = vunpack.c.l.b16 %v971
        %v1486 = vunpack.c.h.b16 %v971
        %v1487 = vunpack.c.l.b16 %v972
        %v1488 = vunpack.c.h.b16 %v972
        %v1489 = vunpack.c.l.b16 %v973
        %v1490 = vunpack.c.l.b16 %v974
        %v1491 = vunpack.c.h.b16 %v974
        %v1492 = vunpack.c.l.b16 %v975
        %v1493 = vunpack.c.h.b16 %v975
        %v1494 = vunpack.c.l.b16 %v976
        %v1495 = vunpack.c.l.b16 %v977
        %v1496 = vunpack.c.h.b16 %v977
        %v1497 = vunpack.c.l.b16 %v978
        %v1498 = vunpack.c.h.b16 %v978
        %v1499 = vunpack.c.l.b16 %v979
        %v1500 = vpack.c.b16 %v1180, %v1175
        %v1501 = vpack.c.b16 %v1181, %v1176
        %v1502 = vpack.c.b16 %v1182, %v1177
        %v1503 = vpack.c.b16 %v1183, %v1178
        %v1504 = vpack.c.b16 %v1184, %v1179
        %v1505 = vpack.c.b16 %v1190, %v1185
        %v1506 = vpack.c.b16 %v1191, %v1186
        %v1507 = vpack.c.b16 %v1192, %v1187
        %v1508 = vpack.c.b16 %v1193, %v1188
        %v1509 = vpack.c.b16 %v1194, %v1189
        %v1510 = vpack.c.b16 %v1200, %v1195
        %v1511 = vpack.c.b16 %v1201, %v1196
        %v1512 = vpack.c.b16 %v1202, %v1197
        %v1513 = vpack.c.b16 %v1203, %v1198
        %v1514 = vpack.c.b16 %v1204, %v1199
        %v1515 = vpack.c.b16 %v1210, %v1205
        %v1516 = vpack.c.b16 %v1211, %v1206
        %v1517 = vpack.c.b16 %v1212, %v1207
        %v1518 = vpack.c.b16 %v1213, %v1208
        %v1519 = vpack.c.b16 %v1214, %v1209
        %v1520 = vpack.c.b16 %v1220, %v1215
        %v1521 = vpack.c.b16 %v1221, %v1216
        %v1522 = vpack.c.b16 %v1222, %v1217
        %v1523 = vpack.c.b16 %v1223, %v1218
        %v1524 = vpack.c.b16 %v1224, %v1219
        %v1525 = vpack.c.b16 %v1230, %v1225
        %v1526 = vpack.c.b16 %v1231, %v1226
        %v1527 = vpack.c.b16 %v1232, %v1227
        %v1528 = vpack.c.b16 %v1233, %v1228
        %v1529 = vpack.c.b16 %v1234, %v1229
        %v1530 = vpack.c.b16 %v1240, %v1235
        %v1531 = vpack.c.b16 %v1241, %v1236
        %v1532 = vpack.c.b16 %v1242, %v1237
        %v1533 = vpack.c.b16 %v1243, %v1238
        %v1534 = vpack.c.b16 %v1244, %v1239
        %v1535 = vpack.c.b16 %v1250, %v1245
        %v1536 = vpack.c.b16 %v1251, %v1246
        %v1537 = vpack.c.b16 %v1252, %v1247
        %v1538 = vpack.c.b16 %v1253, %v1248
        %v1539 = vpack.c.b16 %v1254, %v1249
        %v1540 = vpack.c.b16 %v1260, %v1255
        %v1541 = vpack.c.b16 %v1261, %v1256
        %v1542 = vpack.c.b16 %v1262, %v1257
        %v1543 = vpack.c.b16 %v1263, %v1258
        %v1544 = vpack.c.b16 %v1264, %v1259
        %v1545 = vpack.c.b16 %v1270, %v1265
        %v1546 = vpack.c.b16 %v1271, %v1266
        %v1547 = vpack.c.b16 %v1272, %v1267
        %v1548 = vpack.c.b16 %v1273, %v1268
        %v1549 = vpack.c.b16 %v1274, %v1269
        %v1550 = vpack.c.b16 %v1280, %v1275
        %v1551 = vpack.c.b16 %v1281, %v1276
        %v1552 = vpack.c.b16 %v1282, %v1277
        %v1553 = vpack.c.b16 %v1283, %v1278
        %v1554 = vpack.c.b16 %v1284, %v1279
        %v1555 = vpack.c.b16 %v1290, %v1285
        %v1556 = vpack.c.b16 %v1291, %v1286
        %v1557 = vpack.c.b16 %v1292, %v1287
        %v1558 = vpack.c.b16 %v1293, %v1288
        %v1559 = vpack.c.b16 %v1294, %v1289
        %v1560 = vpack.c.b16 %v1300, %v1295
        %v1561 = vpack.c.b16 %v1301, %v1296
        %v1562 = vpack.c.b16 %v1302, %v1297
        %v1563 = vpack.c.b16 %v1303, %v1298
        %v1564 = vpack.c.b16 %v1304, %v1299
        %v1565 = vpack.c.b16 %v1310, %v1305
        %v1566 = vpack.c.b16 %v1311, %v1306
        %v1567 = vpack.c.b16 %v1312, %v1307
        %v1568 = vpack.c.b16 %v1313, %v1308
        %v1569 = vpack.c.b16 %v1314, %v1309
        %v1570 = vpack.c.b16 %v1320, %v1315
        %v1571 = vpack.c.b16 %v1321, %v1316
        %v1572 = vpack.c.b16 %v1322, %v1317
        %v1573 = vpack.c.b16 %v1323, %v1318
        %v1574 = vpack.c.b16 %v1324, %v1319
        %v1575 = vpack.c.b16 %v1330, %v1325
        %v1576 = vpack.c.b16 %v1331, %v1326
        %v1577 = vpack.c.b16 %v1332, %v1327
        %v1578 = vpack.c.b16 %v1333, %v1328
        %v1579 = vpack.c.b16 %v1334, %v1329
        %v1580 = vpack.c.b16 %v1340, %v1335
        %v1581 = vpack.c.b16 %v1341, %v1336
        %v1582 = vpack.c.b16 %v1342, %v1337
        %v1583 = vpack.c.b16 %v1343, %v1338
        %v1584 = vpack.c.b16 %v1344, %v1339
        %v1585 = vpack.c.b16 %v1350, %v1345
        %v1586 = vpack.c.b16 %v1351, %v1346
        %v1587 = vpack.c.b16 %v1352, %v1347
        %v1588 = vpack.c.b16 %v1353, %v1348
        %v1589 = vpack.c.b16 %v1354, %v1349
        %v1590 = vpack.c.b16 %v1360, %v1355
        %v1591 = vpack.c.b16 %v1361, %v1356
        %v1592 = vpack.c.b16 %v1362, %v1357
        %v1593 = vpack.c.b16 %v1363, %v1358
        %v1594 = vpack.c.b16 %v1364, %v1359
        %v1595 = vpack.c.b16 %v1370, %v1365
        %v1596 = vpack.c.b16 %v1371, %v1366
        %v1597 = vpack.c.b16 %v1372, %v1367
        %v1598 = vpack.c.b16 %v1373, %v1368
        %v1599 = vpack.c.b16 %v1374, %v1369
        %v1600 = vpack.c.b16 %v1380, %v1375
        %v1601 = vpack.c.b16 %v1381, %v1376
        %v1602 = vpack.c.b16 %v1382, %v1377
        %v1603 = vpack.c.b16 %v1383, %v1378
        %v1604 = vpack.c.b16 %v1384, %v1379
        %v1605 = vpack.c.b16 %v1390, %v1385
        %v1606 = vpack.c.b16 %v1391, %v1386
        %v1607 = vpack.c.b16 %v1392, %v1387
        %v1608 = vpack.c.b16 %v1393, %v1388
        %v1609 = vpack.c.b16 %v1394, %v1389
        %v1610 = vpack.c.b16 %v1400, %v1395
        %v1611 = vpack.c.b16 %v1401, %v1396
        %v1612 = vpack.c.b16 %v1402, %v1397
        %v1613 = vpack.c.b16 %v1403, %v1398
        %v1614 = vpack.c.b16 %v1404, %v1399
        %v1615 = vpack.c.b16 %v1410, %v1405
        %v1616 = vpack.c.b16 %v1411, %v1406
        %v1617 = vpack.c.b16 %v1412, %v1407
        %v1618 = vpack.c.b16 %v1413, %v1408
        %v1619 = vpack.c.b16 %v1414, %v1409
        %v1620 = vpack.c.b16 %v1420, %v1415
        %v1621 = vpack.c.b16 %v1421, %v1416
        %v1622 = vpack.c.b16 %v1422, %v1417
        %v1623 = vpack.c.b16 %v1423, %v1418
        %v1624 = vpack.c.b16 %v1424, %v1419
        %v1625 = vpack.c.b16 %v1430, %v1425
        %v1626 = vpack.c.b16 %v1431, %v1426
        %v1627 = vpack.c.b16 %v1432, %v1427
        %v1628 = vpack.c.b16 %v1433, %v1428
        %v1629 = vpack.c.b16 %v1434, %v1429
        %v1630 = vpack.c.b16 %v1440, %v1435
        %v1631 = vpack.c.b16 %v1441, %v1436
        %v1632 = vpack.c.b16 %v1442, %v1437
        %v1633 = vpack.c.b16 %v1443, %v1438
        %v1634 = vpack.c.b16 %v1444, %v1439
        %v1635 = vpack.c.b16 %v1450, %v1445
        %v1636 = vpack.c.b16 %v1451, %v1446
        %v1637 = vpack.c.b16 %v1452, %v1447
        %v1638 = vpack.c.b16 %v1453, %v1448
        %v1639 = vpack.c.b16 %v1454, %v1449
        %v1640 = vpack.c.b16 %v1460, %v1455
        %v1641 = vpack.c.b16 %v1461, %v1456
        %v1642 = vpack.c.b16 %v1462, %v1457
        %v1643 = vpack.c.b16 %v1463, %v1458
        %v1644 = vpack.c.b16 %v1464, %v1459
        %v1645 = vpack.c.b16 %v1470, %v1465
        %v1646 = vpack.c.b16 %v1471, %v1466
        %v1647 = vpack.c.b16 %v1472, %v1467
        %v1648 = vpack.c.b16 %v1473, %v1468
        %v1649 = vpack.c.b16 %v1474, %v1469
        %v1650 = vpack.c.b16 %v1480, %v1475
        %v1651 = vpack.c.b16 %v1481, %v1476
        %v1652 = vpack.c.b16 %v1482, %v1477
        %v1653 = vpack.c.b16 %v1483, %v1478
        %v1654 = vpack.c.b16 %v1484, %v1479
        %v1655 = vpack.c.b16 %v1490, %v1485
        %v1656 = vpack.c.b16 %v1491, %v1486
        %v1657 = vpack.c.b16 %v1492, %v1487
        %v1658 = vpack.c.b16 %v1493, %v1488
        %v1659 = vpack.c.b16 %v1494, %v1489
        %v1660 = vpack.c.b16 %v1495, %v1495
        %v1661 = vpack.c.b16 %v1496, %v1496
        %v1662 = vpack.c.b16 %v1497, %v1497
        %v1663 = vpack.c.b16 %v1498, %v1498
        %v1664 = vpack.c.b16 %v1499, %v1499
        %vm1825 = vcmask 64512
        %v1827 = vsel %vm1825, %v629, 0
        %v1830 = vsel %vm1825, %v634, 0
        %v1833 = vsel %vm1825, %v639, 0
        %v1836 = vsel %vm1825, %v644, 0
        %v1839 = vsel %vm1825, %v649, 0
        %v1842 = vsel %vm1825, %v654, 0
        %v1845 = vsel %vm1825, %v659, 0
        %v1848 = vsel %vm1825, %v664, 0
        %v1851 = vsel %vm1825, %v669, 0
        %v1854 = vsel %vm1825, %v674, 0
        %v1857 = vsel %vm1825, %v679, 0
        %v1860 = vsel %vm1825, %v684, 0
        %v1863 = vsel %vm1825, %v689, 0
        %v1866 = vsel %vm1825, %v694, 0
        %v1869 = vsel %vm1825, %v699, 0
        %v1872 = vsel %vm1825, %v704, 0
        %v1875 = vsel %vm1825, %v709, 0
        %v1878 = vsel %vm1825, %v714, 0
        %v1881 = vsel %vm1825, %v719, 0
        %v1884 = vsel %vm1825, %v724, 0
        %v1887 = vsel %vm1825, %v729, 0
        %v1890 = vsel %vm1825, %v734, 0
        %v1893 = vsel %vm1825, %v739, 0
        %v1896 = vsel %vm1825, %v744, 0
        %v1899 = vsel %vm1825, %v749, 0
        %v1902 = vsel %vm1825, %v754, 0
        %v1905 = vsel %vm1825, %v759, 0
        %v1908 = vsel %vm1825, %v764, 0
        %v1911 = vsel %vm1825, %v769, 0
        %v1914 = vsel %vm1825, %v774, 0
        %v1917 = vsel %vm1825, %v779, 0
        %v1920 = vsel %vm1825, %v784, 0
        %vm1922 = vcmask 1043456
        %v1924 = vsel %vm1922, %v1660, 0
        %v1927 = vsel %vm1922, %v1661, 0
        %v1930 = vsel %vm1922, %v1662, 0
        %v1933 = vsel %vm1922, %v1663, 0
        %v1936 = vsel %vm1922, %v1664, 0
        %1938 = vmatprep.subr.bf16.mxu0 %v1501
        %1939 = vmatpush1.bf16.msra.mxu0 %v1500
        %1940 = vmatprep.subr.bf16.mxu0 %v1506
        %1941 = vmatpush1.bf16.msra.mxu0 %v1505
        %1942 = vmatprep.subr.bf16.mxu0 %v1511
        %1943 = vmatpush1.bf16.msra.mxu0 %v1510
        %1944 = vmatprep.subr.bf16.mxu0 %v1516
        %1945 = vmatpush1.bf16.msra.mxu0 %v1515
        %1946 = vmatprep.subr.bf16.mxu0 %v1521
        %1947 = vmatpush1.bf16.msra.mxu0 %v1520
        %1948 = vmatprep.subr.bf16.mxu0 %v1526
        %1949 = vmatpush1.bf16.msra.mxu0 %v1525
        %1950 = vmatprep.subr.bf16.mxu0 %v1531
        %1951 = vmatpush1.bf16.msra.mxu0 %v1530
        %1952 = vmatprep.subr.bf16.mxu0 %v1536
        %1953 = vmatpush1.bf16.msra.mxu0 %v1535
        %1954 = vmatprep.subr.bf16.mxu0 %v1541
        %1955 = vmatpush1.bf16.msra.mxu0 %v1540
        %1956 = vmatprep.subr.bf16.mxu0 %v1546
        %1957 = vmatpush1.bf16.msra.mxu0 %v1545
        %1958 = vmatprep.subr.bf16.mxu0 %v1551
        %1959 = vmatpush1.bf16.msra.mxu0 %v1550
        %1960 = vmatprep.subr.bf16.mxu0 %v1556
        %1961 = vmatpush1.bf16.msra.mxu0 %v1555
        %1962 = vmatprep.subr.bf16.mxu0 %v1561
        %1963 = vmatpush1.bf16.msra.mxu0 %v1560
        %1964 = vmatprep.subr.bf16.mxu0 %v1566
        %1965 = vmatpush1.bf16.msra.mxu0 %v1565
        %1966 = vmatprep.subr.bf16.mxu0 %v1571
        %1967 = vmatpush1.bf16.msra.mxu0 %v1570
        %1968 = vmatprep.subr.bf16.mxu0 %v1576
        %1969 = vmatpush1.bf16.msra.mxu0 %v1575
        %1970 = vmatprep.mubr.bf16.mxu0 %v626
        %1971 = vmatmul.mubr.bf16.gmra.mrb[0].mxu0 %v625
        %v1972 = vpop.f32.mrb[0].mxu0
        %v1973 = vadd.f32 0.0, %v1972
        %v1974 = vpop.f32.mrb[0].mxu0
        %v1975 = vadd.f32 0.0, %v1974
        %v1976 = vpop.f32.mrb[0].mxu0
        %v1977 = vadd.f32 0.0, %v1976
        %v1978 = vpop.f32.mrb[0].mxu0
        %v1979 = vadd.f32 0.0, %v1978
        %1980 = vmatprep.mubr.bf16.mxu0 %v631
        %1981 = vmatmul.mubr.bf16.gmra.mrb[0].mxu0 %v630
        %v1982 = vpop.f32.mrb[0].mxu0
        %v1983 = vadd.f32 0.0, %v1982
        %v1984 = vpop.f32.mrb[0].mxu0
        %v1985 = vadd.f32 0.0, %v1984
        %v1986 = vpop.f32.mrb[0].mxu0
        %v1987 = vadd.f32 0.0, %v1986
        %v1988 = vpop.f32.mrb[0].mxu0
        %v1989 = vadd.f32 0.0, %v1988
        %1990 = vmatprep.mubr.bf16.mxu0 %v636
        %1991 = vmatmul.mubr.bf16.gmra.mrb[0].mxu0 %v635
        %v1992 = vpop.f32.mrb[0].mxu0
        %v1993 = vadd.f32 0.0, %v1992
        %v1994 = vpop.f32.mrb[0].mxu0
        %v1995 = vadd.f32 0.0, %v1994
        %v1996 = vpop.f32.mrb[0].mxu0
        %v1997 = vadd.f32 0.0, %v1996
        %v1998 = vpop.f32.mrb[0].mxu0
        %v1999 = vadd.f32 0.0, %v1998
        %2000 = vmatprep.mubr.bf16.mxu0 %v641
        %2001 = vmatmul.mubr.bf16.gmra.mrb[0].mxu0 %v640
        %v2002 = vpop.f32.mrb[0].mxu0
        %v2003 = vadd.f32 0.0, %v2002
        %v2004 = vpop.f32.mrb[0].mxu0
        %v2005 = vadd.f32 0.0, %v2004
        %v2006 = vpop.f32.mrb[0].mxu0
        %v2007 = vadd.f32 0.0, %v2006
        %v2008 = vpop.f32.mrb[0].mxu0
        %v2009 = vadd.f32 0.0, %v2008
        %2010 = vmatprep.mubr.bf16.mxu0 %v646
        %2011 = vmatmul.mubr.bf16.gmra.mrb[0].mxu0 %v645
        %v2012 = vpop.f32.mrb[0].mxu0
        %v2013 = vadd.f32 0.0, %v2012
        %v2014 = vpop.f32.mrb[0].mxu0
        %v2015 = vadd.f32 0.0, %v2014
        %v2016 = vpop.f32.mrb[0].mxu0
        %v2017 = vadd.f32 0.0, %v2016
        %v2018 = vpop.f32.mrb[0].mxu0
        %v2019 = vadd.f32 0.0, %v2018
        %2020 = vmatprep.mubr.bf16.mxu0 %v651
        %2021 = vmatmul.mubr.bf16.gmra.mrb[0].mxu0 %v650
        %v2022 = vpop.f32.mrb[0].mxu0
        %v2023 = vadd.f32 0.0, %v2022
        %v2024 = vpop.f32.mrb[0].mxu0
        %v2025 = vadd.f32 0.0, %v2024
        %v2026 = vpop.f32.mrb[0].mxu0
        %v2027 = vadd.f32 0.0, %v2026
        %v2028 = vpop.f32.mrb[0].mxu0
        %v2029 = vadd.f32 0.0, %v2028
        %2030 = vmatprep.mubr.bf16.mxu0 %v656
        %2031 = vmatmul.mubr.bf16.gmra.mrb[0].mxu0 %v655
        %v2032 = vpop.f32.mrb[0].mxu0
        %v2033 = vadd.f32 0.0, %v2032
        %v2034 = vpop.f32.mrb[0].mxu0
        %v2035 = vadd.f32 0.0, %v2034
        %v2036 = vpop.f32.mrb[0].mxu0
        %v2037 = vadd.f32 0.0, %v2036
        %v2038 = vpop.f32.mrb[0].mxu0
        %v2039 = vadd.f32 0.0, %v2038
        %2040 = vmatprep.mubr.bf16.mxu0 %v661
        %2041 = vmatmul.mubr.bf16.gmra.mrb[0].mxu0 %v660
        %v2042 = vpop.f32.mrb[0].mxu0
        %v2043 = vadd.f32 0.0, %v2042
        %v2044 = vpop.f32.mrb[0].mxu0
        %v2045 = vadd.f32 0.0, %v2044
        %v2046 = vpop.f32.mrb[0].mxu0
        %v2047 = vadd.f32 0.0, %v2046
        %v2048 = vpop.f32.mrb[0].mxu0
        %v2049 = vadd.f32 0.0, %v2048
        %2050 = vmatprep.mubr.bf16.mxu0 %v666
        %2051 = vmatmul.mubr.bf16.gmra.mrb[0].mxu0 %v665
        %v2052 = vpop.f32.mrb[0].mxu0
        %v2053 = vadd.f32 0.0, %v2052
        %v2054 = vpop.f32.mrb[0].mxu0
        %v2055 = vadd.f32 0.0, %v2054
        %v2056 = vpop.f32.mrb[0].mxu0
        %v2057 = vadd.f32 0.0, %v2056
        %v2058 = vpop.f32.mrb[0].mxu0
        %v2059 = vadd.f32 0.0, %v2058
        %2060 = vmatprep.mubr.bf16.mxu0 %v671
        %2061 = vmatmul.mubr.bf16.gmra.mrb[0].mxu0 %v670
        %v2062 = vpop.f32.mrb[0].mxu0
        %v2063 = vadd.f32 0.0, %v2062
        %v2064 = vpop.f32.mrb[0].mxu0
        %v2065 = vadd.f32 0.0, %v2064
        %v2066 = vpop.f32.mrb[0].mxu0
        %v2067 = vadd.f32 0.0, %v2066
        %v2068 = vpop.f32.mrb[0].mxu0
        %v2069 = vadd.f32 0.0, %v2068
        %2070 = vmatprep.mubr.bf16.mxu0 %v676
        %2071 = vmatmul.mubr.bf16.gmra.mrb[0].mxu0 %v675
        %v2072 = vpop.f32.mrb[0].mxu0
        %v2073 = vadd.f32 0.0, %v2072
        %v2074 = vpop.f32.mrb[0].mxu0
        %v2075 = vadd.f32 0.0, %v2074
        %v2076 = vpop.f32.mrb[0].mxu0
        %v2077 = vadd.f32 0.0, %v2076
        %v2078 = vpop.f32.mrb[0].mxu0
        %v2079 = vadd.f32 0.0, %v2078
        %2080 = vmatprep.mubr.bf16.mxu0 %v681
        %2081 = vmatmul.mubr.bf16.gmra.mrb[0].mxu0 %v680
        %v2082 = vpop.f32.mrb[0].mxu0
        %v2083 = vadd.f32 0.0, %v2082
        %v2084 = vpop.f32.mrb[0].mxu0
        %v2085 = vadd.f32 0.0, %v2084
        %v2086 = vpop.f32.mrb[0].mxu0
        %v2087 = vadd.f32 0.0, %v2086
        %v2088 = vpop.f32.mrb[0].mxu0
        %v2089 = vadd.f32 0.0, %v2088
        %2090 = vmatprep.mubr.bf16.mxu0 %v686
        %2091 = vmatmul.mubr.bf16.gmra.mrb[0].mxu0 %v685
        %v2092 = vpop.f32.mrb[0].mxu0
        %v2093 = vadd.f32 0.0, %v2092
        %v2094 = vpop.f32.mrb[0].mxu0
        %v2095 = vadd.f32 0.0, %v2094
        %v2096 = vpop.f32.mrb[0].mxu0
        %v2097 = vadd.f32 0.0, %v2096
        %v2098 = vpop.f32.mrb[0].mxu0
        %v2099 = vadd.f32 0.0, %v2098
        %2100 = vmatprep.mubr.bf16.mxu0 %v691
        %2101 = vmatmul.mubr.bf16.gmra.mrb[0].mxu0 %v690
        %v2102 = vpop.f32.mrb[0].mxu0
        %v2103 = vadd.f32 0.0, %v2102
        %v2104 = vpop.f32.mrb[0].mxu0
        %v2105 = vadd.f32 0.0, %v2104
        %v2106 = vpop.f32.mrb[0].mxu0
        %v2107 = vadd.f32 0.0, %v2106
        %v2108 = vpop.f32.mrb[0].mxu0
        %v2109 = vadd.f32 0.0, %v2108
        %2110 = vmatprep.mubr.bf16.mxu0 %v696
        %2111 = vmatmul.mubr.bf16.gmra.mrb[0].mxu0 %v695
        %v2112 = vpop.f32.mrb[0].mxu0
        %v2113 = vadd.f32 0.0, %v2112
        %v2114 = vpop.f32.mrb[0].mxu0
        %v2115 = vadd.f32 0.0, %v2114
        %v2116 = vpop.f32.mrb[0].mxu0
        %v2117 = vadd.f32 0.0, %v2116
        %v2118 = vpop.f32.mrb[0].mxu0
        %v2119 = vadd.f32 0.0, %v2118
        %2120 = vmatprep.mubr.bf16.mxu0 %v701
        %2121 = vmatmul.mubr.bf16.gmra.mrb[0].mxu0 %v700
        %v2122 = vpop.f32.mrb[0].mxu0
        %v2123 = vadd.f32 0.0, %v2122
        %v2124 = vpop.f32.mrb[0].mxu0
        %v2125 = vadd.f32 0.0, %v2124
        %v2126 = vpop.f32.mrb[0].mxu0
        %v2127 = vadd.f32 0.0, %v2126
        %v2128 = vpop.f32.mrb[0].mxu0
        %v2129 = vadd.f32 0.0, %v2128
        %2130 = vmatprep.mubr.bf16.mxu0 %v706
        %2131 = vmatmul.mubr.bf16.gmra.mrb[0].mxu0 %v705
        %v2132 = vpop.f32.mrb[0].mxu0
        %v2133 = vadd.f32 0.0, %v2132
        %v2134 = vpop.f32.mrb[0].mxu0
        %v2135 = vadd.f32 0.0, %v2134
        %v2136 = vpop.f32.mrb[0].mxu0
        %v2137 = vadd.f32 0.0, %v2136
        %v2138 = vpop.f32.mrb[0].mxu0
        %v2139 = vadd.f32 0.0, %v2138
        %2140 = vmatprep.mubr.bf16.mxu0 %v711
        %2141 = vmatmul.mubr.bf16.gmra.mrb[0].mxu0 %v710
        %v2142 = vpop.f32.mrb[0].mxu0
        %v2143 = vadd.f32 0.0, %v2142
        %v2144 = vpop.f32.mrb[0].mxu0
        %v2145 = vadd.f32 0.0, %v2144
        %v2146 = vpop.f32.mrb[0].mxu0
        %v2147 = vadd.f32 0.0, %v2146
        %v2148 = vpop.f32.mrb[0].mxu0
        %v2149 = vadd.f32 0.0, %v2148
        %2150 = vmatprep.mubr.bf16.mxu0 %v716
        %2151 = vmatmul.mubr.bf16.gmra.mrb[0].mxu0 %v715
        %v2152 = vpop.f32.mrb[0].mxu0
        %v2153 = vadd.f32 0.0, %v2152
        %v2154 = vpop.f32.mrb[0].mxu0
        %v2155 = vadd.f32 0.0, %v2154
        %v2156 = vpop.f32.mrb[0].mxu0
        %v2157 = vadd.f32 0.0, %v2156
        %v2158 = vpop.f32.mrb[0].mxu0
        %v2159 = vadd.f32 0.0, %v2158
        %2160 = vmatprep.mubr.bf16.mxu0 %v721
        %2161 = vmatmul.mubr.bf16.gmra.mrb[0].mxu0 %v720
        %v2162 = vpop.f32.mrb[0].mxu0
        %v2163 = vadd.f32 0.0, %v2162
        %v2164 = vpop.f32.mrb[0].mxu0
        %v2165 = vadd.f32 0.0, %v2164
        %v2166 = vpop.f32.mrb[0].mxu0
        %v2167 = vadd.f32 0.0, %v2166
        %v2168 = vpop.f32.mrb[0].mxu0
        %v2169 = vadd.f32 0.0, %v2168
        %2170 = vmatprep.mubr.bf16.mxu0 %v726
        %2171 = vmatmul.mubr.bf16.gmra.mrb[0].mxu0 %v725
        %v2172 = vpop.f32.mrb[0].mxu0
        %v2173 = vadd.f32 0.0, %v2172
        %v2174 = vpop.f32.mrb[0].mxu0
        %v2175 = vadd.f32 0.0, %v2174
        %v2176 = vpop.f32.mrb[0].mxu0
        %v2177 = vadd.f32 0.0, %v2176
        %v2178 = vpop.f32.mrb[0].mxu0
        %v2179 = vadd.f32 0.0, %v2178
        %2180 = vmatprep.mubr.bf16.mxu0 %v731
        %2181 = vmatmul.mubr.bf16.gmra.mrb[0].mxu0 %v730
        %v2182 = vpop.f32.mrb[0].mxu0
        %v2183 = vadd.f32 0.0, %v2182
        %v2184 = vpop.f32.mrb[0].mxu0
        %v2185 = vadd.f32 0.0, %v2184
        %v2186 = vpop.f32.mrb[0].mxu0
        %v2187 = vadd.f32 0.0, %v2186
        %v2188 = vpop.f32.mrb[0].mxu0
        %v2189 = vadd.f32 0.0, %v2188
        %2190 = vmatprep.mubr.bf16.mxu0 %v736
        %2191 = vmatmul.mubr.bf16.gmra.mrb[0].mxu0 %v735
        %v2192 = vpop.f32.mrb[0].mxu0
        %v2193 = vadd.f32 0.0, %v2192
        %v2194 = vpop.f32.mrb[0].mxu0
        %v2195 = vadd.f32 0.0, %v2194
        %v2196 = vpop.f32.mrb[0].mxu0
        %v2197 = vadd.f32 0.0, %v2196
        %v2198 = vpop.f32.mrb[0].mxu0
        %v2199 = vadd.f32 0.0, %v2198
        %2200 = vmatprep.mubr.bf16.mxu0 %v741
        %2201 = vmatmul.mubr.bf16.gmra.mrb[0].mxu0 %v740
        %v2202 = vpop.f32.mrb[0].mxu0
        %v2203 = vadd.f32 0.0, %v2202
        %v2204 = vpop.f32.mrb[0].mxu0
        %v2205 = vadd.f32 0.0, %v2204
        %v2206 = vpop.f32.mrb[0].mxu0
        %v2207 = vadd.f32 0.0, %v2206
        %v2208 = vpop.f32.mrb[0].mxu0
        %v2209 = vadd.f32 0.0, %v2208
        %2210 = vmatprep.mubr.bf16.mxu0 %v746
        %2211 = vmatmul.mubr.bf16.gmra.mrb[0].mxu0 %v745
        %v2212 = vpop.f32.mrb[0].mxu0
        %v2213 = vadd.f32 0.0, %v2212
        %v2214 = vpop.f32.mrb[0].mxu0
        %v2215 = vadd.f32 0.0, %v2214
        %v2216 = vpop.f32.mrb[0].mxu0
        %v2217 = vadd.f32 0.0, %v2216
        %v2218 = vpop.f32.mrb[0].mxu0
        %v2219 = vadd.f32 0.0, %v2218
        %2220 = vmatprep.mubr.bf16.mxu0 %v751
        %2221 = vmatmul.mubr.bf16.gmra.mrb[0].mxu0 %v750
        %v2222 = vpop.f32.mrb[0].mxu0
        %v2223 = vadd.f32 0.0, %v2222
        %v2224 = vpop.f32.mrb[0].mxu0
        %v2225 = vadd.f32 0.0, %v2224
        %v2226 = vpop.f32.mrb[0].mxu0
        %v2227 = vadd.f32 0.0, %v2226
        %v2228 = vpop.f32.mrb[0].mxu0
        %v2229 = vadd.f32 0.0, %v2228
        %2230 = vmatprep.mubr.bf16.mxu0 %v756
        %2231 = vmatmul.mubr.bf16.gmra.mrb[0].mxu0 %v755
        %v2232 = vpop.f32.mrb[0].mxu0
        %v2233 = vadd.f32 0.0, %v2232
        %v2234 = vpop.f32.mrb[0].mxu0
        %v2235 = vadd.f32 0.0, %v2234
        %v2236 = vpop.f32.mrb[0].mxu0
        %v2237 = vadd.f32 0.0, %v2236
        %v2238 = vpop.f32.mrb[0].mxu0
        %v2239 = vadd.f32 0.0, %v2238
        %2240 = vmatprep.mubr.bf16.mxu0 %v761
        %2241 = vmatmul.mubr.bf16.gmra.mrb[0].mxu0 %v760
        %v2242 = vpop.f32.mrb[0].mxu0
        %v2243 = vadd.f32 0.0, %v2242
        %v2244 = vpop.f32.mrb[0].mxu0
        %v2245 = vadd.f32 0.0, %v2244
        %v2246 = vpop.f32.mrb[0].mxu0
        %v2247 = vadd.f32 0.0, %v2246
        %v2248 = vpop.f32.mrb[0].mxu0
        %v2249 = vadd.f32 0.0, %v2248
        %2250 = vmatprep.mubr.bf16.mxu0 %v766
        %2251 = vmatmul.mubr.bf16.gmra.mrb[0].mxu0 %v765
        %v2252 = vpop.f32.mrb[0].mxu0
        %v2253 = vadd.f32 0.0, %v2252
        %v2254 = vpop.f32.mrb[0].mxu0
        %v2255 = vadd.f32 0.0, %v2254
        %v2256 = vpop.f32.mrb[0].mxu0
        %v2257 = vadd.f32 0.0, %v2256
        %v2258 = vpop.f32.mrb[0].mxu0
        %v2259 = vadd.f32 0.0, %v2258
        %2260 = vmatprep.mubr.bf16.mxu0 %v771
        %2261 = vmatmul.mubr.bf16.gmra.mrb[0].mxu0 %v770
        %v2262 = vpop.f32.mrb[0].mxu0
        %v2263 = vadd.f32 0.0, %v2262
        %v2264 = vpop.f32.mrb[0].mxu0
        %v2265 = vadd.f32 0.0, %v2264
        %v2266 = vpop.f32.mrb[0].mxu0
        %v2267 = vadd.f32 0.0, %v2266
        %v2268 = vpop.f32.mrb[0].mxu0
        %v2269 = vadd.f32 0.0, %v2268
        %2270 = vmatprep.mubr.bf16.mxu0 %v776
        %2271 = vmatmul.mubr.bf16.gmra.mrb[0].mxu0 %v775
        %v2272 = vpop.f32.mrb[0].mxu0
        %v2273 = vadd.f32 0.0, %v2272
        %v2274 = vpop.f32.mrb[0].mxu0
        %v2275 = vadd.f32 0.0, %v2274
        %v2276 = vpop.f32.mrb[0].mxu0
        %v2277 = vadd.f32 0.0, %v2276
        %v2278 = vpop.f32.mrb[0].mxu0
        %v2279 = vadd.f32 0.0, %v2278
        %2280 = vmatprep.mubr.bf16.mxu0 %v781
        %2281 = vmatmul.mubr.bf16.gmra.mrb[0].mxu0 %v780
        %v2282 = vpop.f32.mrb[0].mxu0
        %v2283 = vadd.f32 0.0, %v2282
        %v2284 = vpop.f32.mrb[0].mxu0
        %v2285 = vadd.f32 0.0, %v2284
        %v2286 = vpop.f32.mrb[0].mxu0
        %v2287 = vadd.f32 0.0, %v2286
        %v2288 = vpop.f32.mrb[0].mxu0
        %v2289 = vadd.f32 0.0, %v2288
        %2290 = vdwg.mxu0
        %2291 = vmatprep.subr.bf16.mxu0 %v1581
        %2292 = vmatpush1.bf16.msra.mxu0 %v1580
        %2293 = vmatprep.subr.bf16.mxu0 %v1586
        %2294 = vmatpush1.bf16.msra.mxu0 %v1585
        %2295 = vmatprep.subr.bf16.mxu0 %v1591
        %2296 = vmatpush1.bf16.msra.mxu0 %v1590
        %2297 = vmatprep.subr.bf16.mxu0 %v1596
        %2298 = vmatpush1.bf16.msra.mxu0 %v1595
        %2299 = vmatprep.subr.bf16.mxu0 %v1601
        %2300 = vmatpush1.bf16.msra.mxu0 %v1600
        %2301 = vmatprep.subr.bf16.mxu0 %v1606
        %2302 = vmatpush1.bf16.msra.mxu0 %v1605
        %2303 = vmatprep.subr.bf16.mxu0 %v1611
        %2304 = vmatpush1.bf16.msra.mxu0 %v1610
        %2305 = vmatprep.subr.bf16.mxu0 %v1616
        %2306 = vmatpush1.bf16.msra.mxu0 %v1615
        %2307 = vmatprep.subr.bf16.mxu0 %v1621
        %2308 = vmatpush1.bf16.msra.mxu0 %v1620
        %2309 = vmatprep.subr.bf16.mxu0 %v1626
        %2310 = vmatpush1.bf16.msra.mxu0 %v1625
        %2311 = vmatprep.subr.bf16.mxu0 %v1631
        %2312 = vmatpush1.bf16.msra.mxu0 %v1630
        %2313 = vmatprep.subr.bf16.mxu0 %v1636
        %2314 = vmatpush1.bf16.msra.mxu0 %v1635
        %2315 = vmatprep.subr.bf16.mxu0 %v1641
        %2316 = vmatpush1.bf16.msra.mxu0 %v1640
        %2317 = vmatprep.subr.bf16.mxu0 %v1646
        %2318 = vmatpush1.bf16.msra.mxu0 %v1645
        %2319 = vmatprep.subr.bf16.mxu0 %v1651
        %2320 = vmatpush1.bf16.msra.mxu0 %v1650
        %2321 = vmatprep.subr.bf16.mxu0 %v1656
        %2322 = vmatpush1.bf16.msra.mxu0 %v1655
        %2323 = vmatprep.mubr.bf16.mxu0 %v628
        %2324 = vmatmul.mubr.bf16.gmra.mrb[0].mxu0 %v627
        %v2325 = vpop.f32.mrb[0].mxu0
        %v2326 = vadd.f32 %v1973, %v2325
        %v2327 = vpop.f32.mrb[0].mxu0
        %v2328 = vadd.f32 %v1975, %v2327
        %v2329 = vpop.f32.mrb[0].mxu0
        %v2330 = vadd.f32 %v1977, %v2329
        %v2331 = vpop.f32.mrb[0].mxu0
        %v2332 = vadd.f32 %v1979, %v2331
        %2333 = vmatprep.mubr.bf16.mxu0 %v633
        %2334 = vmatmul.mubr.bf16.gmra.mrb[0].mxu0 %v632
        %v2335 = vpop.f32.mrb[0].mxu0
        %v2336 = vadd.f32 %v1983, %v2335
        %v2337 = vpop.f32.mrb[0].mxu0
        %v2338 = vadd.f32 %v1985, %v2337
        %v2339 = vpop.f32.mrb[0].mxu0
        %v2340 = vadd.f32 %v1987, %v2339
        %v2341 = vpop.f32.mrb[0].mxu0
        %v2342 = vadd.f32 %v1989, %v2341
        %2343 = vmatprep.mubr.bf16.mxu0 %v638
        %2344 = vmatmul.mubr.bf16.gmra.mrb[0].mxu0 %v637
        %v2345 = vpop.f32.mrb[0].mxu0
        %v2346 = vadd.f32 %v1993, %v2345
        %v2347 = vpop.f32.mrb[0].mxu0
        %v2348 = vadd.f32 %v1995, %v2347
        %v2349 = vpop.f32.mrb[0].mxu0
        %v2350 = vadd.f32 %v1997, %v2349
        %v2351 = vpop.f32.mrb[0].mxu0
        %v2352 = vadd.f32 %v1999, %v2351
        %2353 = vmatprep.mubr.bf16.mxu0 %v643
        %2354 = vmatmul.mubr.bf16.gmra.mrb[0].mxu0 %v642
        %v2355 = vpop.f32.mrb[0].mxu0
        %v2356 = vadd.f32 %v2003, %v2355
        %v2357 = vpop.f32.mrb[0].mxu0
        %v2358 = vadd.f32 %v2005, %v2357
        %v2359 = vpop.f32.mrb[0].mxu0
        %v2360 = vadd.f32 %v2007, %v2359
        %v2361 = vpop.f32.mrb[0].mxu0
        %v2362 = vadd.f32 %v2009, %v2361
        %2363 = vmatprep.mubr.bf16.mxu0 %v648
        %2364 = vmatmul.mubr.bf16.gmra.mrb[0].mxu0 %v647
        %v2365 = vpop.f32.mrb[0].mxu0
        %v2366 = vadd.f32 %v2013, %v2365
        %v2367 = vpop.f32.mrb[0].mxu0
        %v2368 = vadd.f32 %v2015, %v2367
        %v2369 = vpop.f32.mrb[0].mxu0
        %v2370 = vadd.f32 %v2017, %v2369
        %v2371 = vpop.f32.mrb[0].mxu0
        %v2372 = vadd.f32 %v2019, %v2371
        %2373 = vmatprep.mubr.bf16.mxu0 %v653
        %2374 = vmatmul.mubr.bf16.gmra.mrb[0].mxu0 %v652
        %v2375 = vpop.f32.mrb[0].mxu0
        %v2376 = vadd.f32 %v2023, %v2375
        %v2377 = vpop.f32.mrb[0].mxu0
        %v2378 = vadd.f32 %v2025, %v2377
        %v2379 = vpop.f32.mrb[0].mxu0
        %v2380 = vadd.f32 %v2027, %v2379
        %v2381 = vpop.f32.mrb[0].mxu0
        %v2382 = vadd.f32 %v2029, %v2381
        %2383 = vmatprep.mubr.bf16.mxu0 %v658
        %2384 = vmatmul.mubr.bf16.gmra.mrb[0].mxu0 %v657
        %v2385 = vpop.f32.mrb[0].mxu0
        %v2386 = vadd.f32 %v2033, %v2385
        %v2387 = vpop.f32.mrb[0].mxu0
        %v2388 = vadd.f32 %v2035, %v2387
        %v2389 = vpop.f32.mrb[0].mxu0
        %v2390 = vadd.f32 %v2037, %v2389
        %v2391 = vpop.f32.mrb[0].mxu0
        %v2392 = vadd.f32 %v2039, %v2391
        %2393 = vmatprep.mubr.bf16.mxu0 %v663
        %2394 = vmatmul.mubr.bf16.gmra.mrb[0].mxu0 %v662
        %v2395 = vpop.f32.mrb[0].mxu0
        %v2396 = vadd.f32 %v2043, %v2395
        %v2397 = vpop.f32.mrb[0].mxu0
        %v2398 = vadd.f32 %v2045, %v2397
        %v2399 = vpop.f32.mrb[0].mxu0
        %v2400 = vadd.f32 %v2047, %v2399
        %v2401 = vpop.f32.mrb[0].mxu0
        %v2402 = vadd.f32 %v2049, %v2401
        %2403 = vmatprep.mubr.bf16.mxu0 %v668
        %2404 = vmatmul.mubr.bf16.gmra.mrb[0].mxu0 %v667
        %v2405 = vpop.f32.mrb[0].mxu0
        %v2406 = vadd.f32 %v2053, %v2405
        %v2407 = vpop.f32.mrb[0].mxu0
        %v2408 = vadd.f32 %v2055, %v2407
        %v2409 = vpop.f32.mrb[0].mxu0
        %v2410 = vadd.f32 %v2057, %v2409
        %v2411 = vpop.f32.mrb[0].mxu0
        %v2412 = vadd.f32 %v2059, %v2411
        %2413 = vmatprep.mubr.bf16.mxu0 %v673
        %2414 = vmatmul.mubr.bf16.gmra.mrb[0].mxu0 %v672
        %v2415 = vpop.f32.mrb[0].mxu0
        %v2416 = vadd.f32 %v2063, %v2415
        %v2417 = vpop.f32.mrb[0].mxu0
        %v2418 = vadd.f32 %v2065, %v2417
        %v2419 = vpop.f32.mrb[0].mxu0
        %v2420 = vadd.f32 %v2067, %v2419
        %v2421 = vpop.f32.mrb[0].mxu0
        %v2422 = vadd.f32 %v2069, %v2421
        %2423 = vmatprep.mubr.bf16.mxu0 %v678
        %2424 = vmatmul.mubr.bf16.gmra.mrb[0].mxu0 %v677
        %v2425 = vpop.f32.mrb[0].mxu0
        %v2426 = vadd.f32 %v2073, %v2425
        %v2427 = vpop.f32.mrb[0].mxu0
        %v2428 = vadd.f32 %v2075, %v2427
        %v2429 = vpop.f32.mrb[0].mxu0
        %v2430 = vadd.f32 %v2077, %v2429
        %v2431 = vpop.f32.mrb[0].mxu0
        %v2432 = vadd.f32 %v2079, %v2431
        %2433 = vmatprep.mubr.bf16.mxu0 %v683
        %2434 = vmatmul.mubr.bf16.gmra.mrb[0].mxu0 %v682
        %v2435 = vpop.f32.mrb[0].mxu0
        %v2436 = vadd.f32 %v2083, %v2435
        %v2437 = vpop.f32.mrb[0].mxu0
        %v2438 = vadd.f32 %v2085, %v2437
        %v2439 = vpop.f32.mrb[0].mxu0
        %v2440 = vadd.f32 %v2087, %v2439
        %v2441 = vpop.f32.mrb[0].mxu0
        %v2442 = vadd.f32 %v2089, %v2441
        %2443 = vmatprep.mubr.bf16.mxu0 %v688
        %2444 = vmatmul.mubr.bf16.gmra.mrb[0].mxu0 %v687
        %v2445 = vpop.f32.mrb[0].mxu0
        %v2446 = vadd.f32 %v2093, %v2445
        %v2447 = vpop.f32.mrb[0].mxu0
        %v2448 = vadd.f32 %v2095, %v2447
        %v2449 = vpop.f32.mrb[0].mxu0
        %v2450 = vadd.f32 %v2097, %v2449
        %v2451 = vpop.f32.mrb[0].mxu0
        %v2452 = vadd.f32 %v2099, %v2451
        %2453 = vmatprep.mubr.bf16.mxu0 %v693
        %2454 = vmatmul.mubr.bf16.gmra.mrb[0].mxu0 %v692
        %v2455 = vpop.f32.mrb[0].mxu0
        %v2456 = vadd.f32 %v2103, %v2455
        %v2457 = vpop.f32.mrb[0].mxu0
        %v2458 = vadd.f32 %v2105, %v2457
        %v2459 = vpop.f32.mrb[0].mxu0
        %v2460 = vadd.f32 %v2107, %v2459
        %v2461 = vpop.f32.mrb[0].mxu0
        %v2462 = vadd.f32 %v2109, %v2461
        %2463 = vmatprep.mubr.bf16.mxu0 %v698
        %2464 = vmatmul.mubr.bf16.gmra.mrb[0].mxu0 %v697
        %v2465 = vpop.f32.mrb[0].mxu0
        %v2466 = vadd.f32 %v2113, %v2465
        %v2467 = vpop.f32.mrb[0].mxu0
        %v2468 = vadd.f32 %v2115, %v2467
        %v2469 = vpop.f32.mrb[0].mxu0
        %v2470 = vadd.f32 %v2117, %v2469
        %v2471 = vpop.f32.mrb[0].mxu0
        %v2472 = vadd.f32 %v2119, %v2471
        %2473 = vmatprep.mubr.bf16.mxu0 %v703
        %2474 = vmatmul.mubr.bf16.gmra.mrb[0].mxu0 %v702
        %v2475 = vpop.f32.mrb[0].mxu0
        %v2476 = vadd.f32 %v2123, %v2475
        %v2477 = vpop.f32.mrb[0].mxu0
        %v2478 = vadd.f32 %v2125, %v2477
        %v2479 = vpop.f32.mrb[0].mxu0
        %v2480 = vadd.f32 %v2127, %v2479
        %v2481 = vpop.f32.mrb[0].mxu0
        %v2482 = vadd.f32 %v2129, %v2481
        %2483 = vmatprep.mubr.bf16.mxu0 %v708
        %2484 = vmatmul.mubr.bf16.gmra.mrb[0].mxu0 %v707
        %v2485 = vpop.f32.mrb[0].mxu0
        %v2486 = vadd.f32 %v2133, %v2485
        %v2487 = vpop.f32.mrb[0].mxu0
        %v2488 = vadd.f32 %v2135, %v2487
        %v2489 = vpop.f32.mrb[0].mxu0
        %v2490 = vadd.f32 %v2137, %v2489
        %v2491 = vpop.f32.mrb[0].mxu0
        %v2492 = vadd.f32 %v2139, %v2491
        %2493 = vmatprep.mubr.bf16.mxu0 %v713
        %2494 = vmatmul.mubr.bf16.gmra.mrb[0].mxu0 %v712
        %v2495 = vpop.f32.mrb[0].mxu0
        %v2496 = vadd.f32 %v2143, %v2495
        %v2497 = vpop.f32.mrb[0].mxu0
        %v2498 = vadd.f32 %v2145, %v2497
        %v2499 = vpop.f32.mrb[0].mxu0
        %v2500 = vadd.f32 %v2147, %v2499
        %v2501 = vpop.f32.mrb[0].mxu0
        %v2502 = vadd.f32 %v2149, %v2501
        %2503 = vmatprep.mubr.bf16.mxu0 %v718
        %2504 = vmatmul.mubr.bf16.gmra.mrb[0].mxu0 %v717
        %v2505 = vpop.f32.mrb[0].mxu0
        %v2506 = vadd.f32 %v2153, %v2505
        %v2507 = vpop.f32.mrb[0].mxu0
        %v2508 = vadd.f32 %v2155, %v2507
        %v2509 = vpop.f32.mrb[0].mxu0
        %v2510 = vadd.f32 %v2157, %v2509
        %v2511 = vpop.f32.mrb[0].mxu0
        %v2512 = vadd.f32 %v2159, %v2511
        %2513 = vmatprep.mubr.bf16.mxu0 %v723
        %2514 = vmatmul.mubr.bf16.gmra.mrb[0].mxu0 %v722
        %v2515 = vpop.f32.mrb[0].mxu0
        %v2516 = vadd.f32 %v2163, %v2515
        %v2517 = vpop.f32.mrb[0].mxu0
        %v2518 = vadd.f32 %v2165, %v2517
        %v2519 = vpop.f32.mrb[0].mxu0
        %v2520 = vadd.f32 %v2167, %v2519
        %v2521 = vpop.f32.mrb[0].mxu0
        %v2522 = vadd.f32 %v2169, %v2521
        %2523 = vmatprep.mubr.bf16.mxu0 %v728
        %2524 = vmatmul.mubr.bf16.gmra.mrb[0].mxu0 %v727
        %v2525 = vpop.f32.mrb[0].mxu0
        %v2526 = vadd.f32 %v2173, %v2525
        %v2527 = vpop.f32.mrb[0].mxu0
        %v2528 = vadd.f32 %v2175, %v2527
        %v2529 = vpop.f32.mrb[0].mxu0
        %v2530 = vadd.f32 %v2177, %v2529
        %v2531 = vpop.f32.mrb[0].mxu0
        %v2532 = vadd.f32 %v2179, %v2531
        %2533 = vmatprep.mubr.bf16.mxu0 %v733
        %2534 = vmatmul.mubr.bf16.gmra.mrb[0].mxu0 %v732
        %v2535 = vpop.f32.mrb[0].mxu0
        %v2536 = vadd.f32 %v2183, %v2535
        %v2537 = vpop.f32.mrb[0].mxu0
        %v2538 = vadd.f32 %v2185, %v2537
        %v2539 = vpop.f32.mrb[0].mxu0
        %v2540 = vadd.f32 %v2187, %v2539
        %v2541 = vpop.f32.mrb[0].mxu0
        %v2542 = vadd.f32 %v2189, %v2541
        %2543 = vmatprep.mubr.bf16.mxu0 %v738
        %2544 = vmatmul.mubr.bf16.gmra.mrb[0].mxu0 %v737
        %v2545 = vpop.f32.mrb[0].mxu0
        %v2546 = vadd.f32 %v2193, %v2545
        %v2547 = vpop.f32.mrb[0].mxu0
        %v2548 = vadd.f32 %v2195, %v2547
        %v2549 = vpop.f32.mrb[0].mxu0
        %v2550 = vadd.f32 %v2197, %v2549
        %v2551 = vpop.f32.mrb[0].mxu0
        %v2552 = vadd.f32 %v2199, %v2551
        %2553 = vmatprep.mubr.bf16.mxu0 %v743
        %2554 = vmatmul.mubr.bf16.gmra.mrb[0].mxu0 %v742
        %v2555 = vpop.f32.mrb[0].mxu0
        %v2556 = vadd.f32 %v2203, %v2555
        %v2557 = vpop.f32.mrb[0].mxu0
        %v2558 = vadd.f32 %v2205, %v2557
        %v2559 = vpop.f32.mrb[0].mxu0
        %v2560 = vadd.f32 %v2207, %v2559
        %v2561 = vpop.f32.mrb[0].mxu0
        %v2562 = vadd.f32 %v2209, %v2561
        %2563 = vmatprep.mubr.bf16.mxu0 %v748
        %2564 = vmatmul.mubr.bf16.gmra.mrb[0].mxu0 %v747
        %v2565 = vpop.f32.mrb[0].mxu0
        %v2566 = vadd.f32 %v2213, %v2565
        %v2567 = vpop.f32.mrb[0].mxu0
        %v2568 = vadd.f32 %v2215, %v2567
        %v2569 = vpop.f32.mrb[0].mxu0
        %v2570 = vadd.f32 %v2217, %v2569
        %v2571 = vpop.f32.mrb[0].mxu0
        %v2572 = vadd.f32 %v2219, %v2571
        %2573 = vmatprep.mubr.bf16.mxu0 %v753
        %2574 = vmatmul.mubr.bf16.gmra.mrb[0].mxu0 %v752
        %v2575 = vpop.f32.mrb[0].mxu0
        %v2576 = vadd.f32 %v2223, %v2575
        %v2577 = vpop.f32.mrb[0].mxu0
        %v2578 = vadd.f32 %v2225, %v2577
        %v2579 = vpop.f32.mrb[0].mxu0
        %v2580 = vadd.f32 %v2227, %v2579
        %v2581 = vpop.f32.mrb[0].mxu0
        %v2582 = vadd.f32 %v2229, %v2581
        %2583 = vmatprep.mubr.bf16.mxu0 %v758
        %2584 = vmatmul.mubr.bf16.gmra.mrb[0].mxu0 %v757
        %v2585 = vpop.f32.mrb[0].mxu0
        %v2586 = vadd.f32 %v2233, %v2585
        %v2587 = vpop.f32.mrb[0].mxu0
        %v2588 = vadd.f32 %v2235, %v2587
        %v2589 = vpop.f32.mrb[0].mxu0
        %v2590 = vadd.f32 %v2237, %v2589
        %v2591 = vpop.f32.mrb[0].mxu0
        %v2592 = vadd.f32 %v2239, %v2591
        %2593 = vmatprep.mubr.bf16.mxu0 %v763
        %2594 = vmatmul.mubr.bf16.gmra.mrb[0].mxu0 %v762
        %v2595 = vpop.f32.mrb[0].mxu0
        %v2596 = vadd.f32 %v2243, %v2595
        %v2597 = vpop.f32.mrb[0].mxu0
        %v2598 = vadd.f32 %v2245, %v2597
        %v2599 = vpop.f32.mrb[0].mxu0
        %v2600 = vadd.f32 %v2247, %v2599
        %v2601 = vpop.f32.mrb[0].mxu0
        %v2602 = vadd.f32 %v2249, %v2601
        %2603 = vmatprep.mubr.bf16.mxu0 %v768
        %2604 = vmatmul.mubr.bf16.gmra.mrb[0].mxu0 %v767
        %v2605 = vpop.f32.mrb[0].mxu0
        %v2606 = vadd.f32 %v2253, %v2605
        %v2607 = vpop.f32.mrb[0].mxu0
        %v2608 = vadd.f32 %v2255, %v2607
        %v2609 = vpop.f32.mrb[0].mxu0
        %v2610 = vadd.f32 %v2257, %v2609
        %v2611 = vpop.f32.mrb[0].mxu0
        %v2612 = vadd.f32 %v2259, %v2611
        %2613 = vmatprep.mubr.bf16.mxu0 %v773
        %2614 = vmatmul.mubr.bf16.gmra.mrb[0].mxu0 %v772
        %v2615 = vpop.f32.mrb[0].mxu0
        %v2616 = vadd.f32 %v2263, %v2615
        %v2617 = vpop.f32.mrb[0].mxu0
        %v2618 = vadd.f32 %v2265, %v2617
        %v2619 = vpop.f32.mrb[0].mxu0
        %v2620 = vadd.f32 %v2267, %v2619
        %v2621 = vpop.f32.mrb[0].mxu0
        %v2622 = vadd.f32 %v2269, %v2621
        %2623 = vmatprep.mubr.bf16.mxu0 %v778
        %2624 = vmatmul.mubr.bf16.gmra.mrb[0].mxu0 %v777
        %v2625 = vpop.f32.mrb[0].mxu0
        %v2626 = vadd.f32 %v2273, %v2625
        %v2627 = vpop.f32.mrb[0].mxu0
        %v2628 = vadd.f32 %v2275, %v2627
        %v2629 = vpop.f32.mrb[0].mxu0
        %v2630 = vadd.f32 %v2277, %v2629
        %v2631 = vpop.f32.mrb[0].mxu0
        %v2632 = vadd.f32 %v2279, %v2631
        %2633 = vmatprep.mubr.bf16.mxu0 %v783
        %2634 = vmatmul.mubr.bf16.gmra.mrb[0].mxu0 %v782
        %v2635 = vpop.f32.mrb[0].mxu0
        %v2636 = vadd.f32 %v2283, %v2635
        %v2637 = vpop.f32.mrb[0].mxu0
        %v2638 = vadd.f32 %v2285, %v2637
        %v2639 = vpop.f32.mrb[0].mxu0
        %v2640 = vadd.f32 %v2287, %v2639
        %v2641 = vpop.f32.mrb[0].mxu0
        %v2642 = vadd.f32 %v2289, %v2641
        %2643 = vdwg.mxu0
        %2644 = vmatprep.subr.bf16.mxu0 %v1927
        %2645 = vmatpush1.bf16.msra.mxu0 %v1924
        %2646 = vmatprep.subr.bf16.mxu0 0
        %2647 = vmatpush1.bf16.msra.mxu0 0
        %2648 = vmatprep.subr.bf16.mxu0 0
        %2649 = vmatpush1.bf16.msra.mxu0 0
        %2650 = vmatprep.subr.bf16.mxu0 0
        %2651 = vmatpush1.bf16.msra.mxu0 0
        %2652 = vmatprep.subr.bf16.mxu0 0
        %2653 = vmatpush1.bf16.msra.mxu0 0
        %2654 = vmatprep.subr.bf16.mxu0 0
        %2655 = vmatpush1.bf16.msra.mxu0 0
        %2656 = vmatprep.subr.bf16.mxu0 0
        %2657 = vmatpush1.bf16.msra.mxu0 0
        %2658 = vmatprep.subr.bf16.mxu0 0
        %2659 = vmatpush1.bf16.msra.mxu0 0
        %2660 = vmatprep.subr.bf16.mxu0 0
        %2661 = vmatpush1.bf16.msra.mxu0 0
        %2662 = vmatprep.subr.bf16.mxu0 0
        %2663 = vmatpush1.bf16.msra.mxu0 0
        %2664 = vmatprep.subr.bf16.mxu0 0
        %2665 = vmatpush1.bf16.msra.mxu0 0
        %2666 = vmatprep.subr.bf16.mxu0 0
        %2667 = vmatpush1.bf16.msra.mxu0 0
        %2668 = vmatprep.subr.bf16.mxu0 0
        %2669 = vmatpush1.bf16.msra.mxu0 0
        %2670 = vmatprep.subr.bf16.mxu0 0
        %2671 = vmatpush1.bf16.msra.mxu0 0
        %2672 = vmatprep.subr.bf16.mxu0 0
        %2673 = vmatpush1.bf16.msra.mxu0 0
        %2674 = vmatprep.subr.bf16.mxu0 0
        %2675 = vmatpush1.bf16.msra.mxu0 0
        %2676 = vmatprep.mubr.bf16.mxu0 0
        %2677 = vmatmul.mubr.bf16.gmra.mrb[0].mxu0 %v1827
        %v2678 = vpop.f32.mrb[0].mxu0
        %v2679 = vadd.f32 %v2326, %v2678
        %v2680 = vpop.f32.mrb[0].mxu0
        %v2681 = vadd.f32 %v2328, %v2680
        %v2682 = vpop.f32.mrb[0].mxu0
        %v2683 = vadd.f32 %v2330, %v2682
        %v2684 = vpop.f32.mrb[0].mxu0
        %v2685 = vadd.f32 %v2332, %v2684
        %2686 = vmatprep.mubr.bf16.mxu0 0
        %2687 = vmatmul.mubr.bf16.gmra.mrb[0].mxu0 %v1830
        %v2688 = vpop.f32.mrb[0].mxu0
        %v2689 = vadd.f32 %v2336, %v2688
        %v2690 = vpop.f32.mrb[0].mxu0
        %v2691 = vadd.f32 %v2338, %v2690
        %v2692 = vpop.f32.mrb[0].mxu0
        %v2693 = vadd.f32 %v2340, %v2692
        %v2694 = vpop.f32.mrb[0].mxu0
        %v2695 = vadd.f32 %v2342, %v2694
        %2696 = vmatprep.mubr.bf16.mxu0 0
        %2697 = vmatmul.mubr.bf16.gmra.mrb[0].mxu0 %v1833
        %v2698 = vpop.f32.mrb[0].mxu0
        %v2699 = vadd.f32 %v2346, %v2698
        %v2700 = vpop.f32.mrb[0].mxu0
        %v2701 = vadd.f32 %v2348, %v2700
        %v2702 = vpop.f32.mrb[0].mxu0
        %v2703 = vadd.f32 %v2350, %v2702
        %v2704 = vpop.f32.mrb[0].mxu0
        %v2705 = vadd.f32 %v2352, %v2704
        %2706 = vmatprep.mubr.bf16.mxu0 0
        %2707 = vmatmul.mubr.bf16.gmra.mrb[0].mxu0 %v1836
        %v2708 = vpop.f32.mrb[0].mxu0
        %v2709 = vadd.f32 %v2356, %v2708
        %v2710 = vpop.f32.mrb[0].mxu0
        %v2711 = vadd.f32 %v2358, %v2710
        %v2712 = vpop.f32.mrb[0].mxu0
        %v2713 = vadd.f32 %v2360, %v2712
        %v2714 = vpop.f32.mrb[0].mxu0
        %v2715 = vadd.f32 %v2362, %v2714
        %2716 = vmatprep.mubr.bf16.mxu0 0
        %2717 = vmatmul.mubr.bf16.gmra.mrb[0].mxu0 %v1839
        %v2718 = vpop.f32.mrb[0].mxu0
        %v2719 = vadd.f32 %v2366, %v2718
        %v2720 = vpop.f32.mrb[0].mxu0
        %v2721 = vadd.f32 %v2368, %v2720
        %v2722 = vpop.f32.mrb[0].mxu0
        %v2723 = vadd.f32 %v2370, %v2722
        %v2724 = vpop.f32.mrb[0].mxu0
        %v2725 = vadd.f32 %v2372, %v2724
        %2726 = vmatprep.mubr.bf16.mxu0 0
        %2727 = vmatmul.mubr.bf16.gmra.mrb[0].mxu0 %v1842
        %v2728 = vpop.f32.mrb[0].mxu0
        %v2729 = vadd.f32 %v2376, %v2728
        %v2730 = vpop.f32.mrb[0].mxu0
        %v2731 = vadd.f32 %v2378, %v2730
        %v2732 = vpop.f32.mrb[0].mxu0
        %v2733 = vadd.f32 %v2380, %v2732
        %v2734 = vpop.f32.mrb[0].mxu0
        %v2735 = vadd.f32 %v2382, %v2734
        %2736 = vmatprep.mubr.bf16.mxu0 0
        %2737 = vmatmul.mubr.bf16.gmra.mrb[0].mxu0 %v1845
        %v2738 = vpop.f32.mrb[0].mxu0
        %v2739 = vadd.f32 %v2386, %v2738
        %v2740 = vpop.f32.mrb[0].mxu0
        %v2741 = vadd.f32 %v2388, %v2740
        %v2742 = vpop.f32.mrb[0].mxu0
        %v2743 = vadd.f32 %v2390, %v2742
        %v2744 = vpop.f32.mrb[0].mxu0
        %v2745 = vadd.f32 %v2392, %v2744
        %2746 = vmatprep.mubr.bf16.mxu0 0
        %2747 = vmatmul.mubr.bf16.gmra.mrb[0].mxu0 %v1848
        %v2748 = vpop.f32.mrb[0].mxu0
        %v2749 = vadd.f32 %v2396, %v2748
        %v2750 = vpop.f32.mrb[0].mxu0
        %v2751 = vadd.f32 %v2398, %v2750
        %v2752 = vpop.f32.mrb[0].mxu0
        %v2753 = vadd.f32 %v2400, %v2752
        %v2754 = vpop.f32.mrb[0].mxu0
        %v2755 = vadd.f32 %v2402, %v2754
        %2756 = vmatprep.mubr.bf16.mxu0 0
        %2757 = vmatmul.mubr.bf16.gmra.mrb[0].mxu0 %v1851
        %v2758 = vpop.f32.mrb[0].mxu0
        %v2759 = vadd.f32 %v2406, %v2758
        %v2760 = vpop.f32.mrb[0].mxu0
        %v2761 = vadd.f32 %v2408, %v2760
        %v2762 = vpop.f32.mrb[0].mxu0
        %v2763 = vadd.f32 %v2410, %v2762
        %v2764 = vpop.f32.mrb[0].mxu0
        %v2765 = vadd.f32 %v2412, %v2764
        %2766 = vmatprep.mubr.bf16.mxu0 0
        %2767 = vmatmul.mubr.bf16.gmra.mrb[0].mxu0 %v1854
        %v2768 = vpop.f32.mrb[0].mxu0
        %v2769 = vadd.f32 %v2416, %v2768
        %v2770 = vpop.f32.mrb[0].mxu0
        %v2771 = vadd.f32 %v2418, %v2770
        %v2772 = vpop.f32.mrb[0].mxu0
        %v2773 = vadd.f32 %v2420, %v2772
        %v2774 = vpop.f32.mrb[0].mxu0
        %v2775 = vadd.f32 %v2422, %v2774
        %2776 = vmatprep.mubr.bf16.mxu0 0
        %2777 = vmatmul.mubr.bf16.gmra.mrb[0].mxu0 %v1857
        %v2778 = vpop.f32.mrb[0].mxu0
        %v2779 = vadd.f32 %v2426, %v2778
        %v2780 = vpop.f32.mrb[0].mxu0
        %v2781 = vadd.f32 %v2428, %v2780
        %v2782 = vpop.f32.mrb[0].mxu0
        %v2783 = vadd.f32 %v2430, %v2782
        %v2784 = vpop.f32.mrb[0].mxu0
        %v2785 = vadd.f32 %v2432, %v2784
        %2786 = vmatprep.mubr.bf16.mxu0 0
        %2787 = vmatmul.mubr.bf16.gmra.mrb[0].mxu0 %v1860
        %v2788 = vpop.f32.mrb[0].mxu0
        %v2789 = vadd.f32 %v2436, %v2788
        %v2790 = vpop.f32.mrb[0].mxu0
        %v2791 = vadd.f32 %v2438, %v2790
        %v2792 = vpop.f32.mrb[0].mxu0
        %v2793 = vadd.f32 %v2440, %v2792
        %v2794 = vpop.f32.mrb[0].mxu0
        %v2795 = vadd.f32 %v2442, %v2794
        %2796 = vmatprep.mubr.bf16.mxu0 0
        %2797 = vmatmul.mubr.bf16.gmra.mrb[0].mxu0 %v1863
        %v2798 = vpop.f32.mrb[0].mxu0
        %v2799 = vadd.f32 %v2446, %v2798
        %v2800 = vpop.f32.mrb[0].mxu0
        %v2801 = vadd.f32 %v2448, %v2800
        %v2802 = vpop.f32.mrb[0].mxu0
        %v2803 = vadd.f32 %v2450, %v2802
        %v2804 = vpop.f32.mrb[0].mxu0
        %v2805 = vadd.f32 %v2452, %v2804
        %2806 = vmatprep.mubr.bf16.mxu0 0
        %2807 = vmatmul.mubr.bf16.gmra.mrb[0].mxu0 %v1866
        %v2808 = vpop.f32.mrb[0].mxu0
        %v2809 = vadd.f32 %v2456, %v2808
        %v2810 = vpop.f32.mrb[0].mxu0
        %v2811 = vadd.f32 %v2458, %v2810
        %v2812 = vpop.f32.mrb[0].mxu0
        %v2813 = vadd.f32 %v2460, %v2812
        %v2814 = vpop.f32.mrb[0].mxu0
        %v2815 = vadd.f32 %v2462, %v2814
        %2816 = vmatprep.mubr.bf16.mxu0 0
        %2817 = vmatmul.mubr.bf16.gmra.mrb[0].mxu0 %v1869
        %v2818 = vpop.f32.mrb[0].mxu0
        %v2819 = vadd.f32 %v2466, %v2818
        %v2820 = vpop.f32.mrb[0].mxu0
        %v2821 = vadd.f32 %v2468, %v2820
        %v2822 = vpop.f32.mrb[0].mxu0
        %v2823 = vadd.f32 %v2470, %v2822
        %v2824 = vpop.f32.mrb[0].mxu0
        %v2825 = vadd.f32 %v2472, %v2824
        %2826 = vmatprep.mubr.bf16.mxu0 0
        %2827 = vmatmul.mubr.bf16.gmra.mrb[0].mxu0 %v1872
        %v2828 = vpop.f32.mrb[0].mxu0
        %v2829 = vadd.f32 %v2476, %v2828
        %v2830 = vpop.f32.mrb[0].mxu0
        %v2831 = vadd.f32 %v2478, %v2830
        %v2832 = vpop.f32.mrb[0].mxu0
        %v2833 = vadd.f32 %v2480, %v2832
        %v2834 = vpop.f32.mrb[0].mxu0
        %v2835 = vadd.f32 %v2482, %v2834
        %2836 = vmatprep.mubr.bf16.mxu0 0
        %2837 = vmatmul.mubr.bf16.gmra.mrb[0].mxu0 %v1875
        %v2838 = vpop.f32.mrb[0].mxu0
        %v2839 = vadd.f32 %v2486, %v2838
        %v2840 = vpop.f32.mrb[0].mxu0
        %v2841 = vadd.f32 %v2488, %v2840
        %v2842 = vpop.f32.mrb[0].mxu0
        %v2843 = vadd.f32 %v2490, %v2842
        %v2844 = vpop.f32.mrb[0].mxu0
        %v2845 = vadd.f32 %v2492, %v2844
        %2846 = vmatprep.mubr.bf16.mxu0 0
        %2847 = vmatmul.mubr.bf16.gmra.mrb[0].mxu0 %v1878
        %v2848 = vpop.f32.mrb[0].mxu0
        %v2849 = vadd.f32 %v2496, %v2848
        %v2850 = vpop.f32.mrb[0].mxu0
        %v2851 = vadd.f32 %v2498, %v2850
        %v2852 = vpop.f32.mrb[0].mxu0
        %v2853 = vadd.f32 %v2500, %v2852
        %v2854 = vpop.f32.mrb[0].mxu0
        %v2855 = vadd.f32 %v2502, %v2854
        %2856 = vmatprep.mubr.bf16.mxu0 0
        %2857 = vmatmul.mubr.bf16.gmra.mrb[0].mxu0 %v1881
        %v2858 = vpop.f32.mrb[0].mxu0
        %v2859 = vadd.f32 %v2506, %v2858
        %v2860 = vpop.f32.mrb[0].mxu0
        %v2861 = vadd.f32 %v2508, %v2860
        %v2862 = vpop.f32.mrb[0].mxu0
        %v2863 = vadd.f32 %v2510, %v2862
        %v2864 = vpop.f32.mrb[0].mxu0
        %v2865 = vadd.f32 %v2512, %v2864
        %2866 = vmatprep.mubr.bf16.mxu0 0
        %2867 = vmatmul.mubr.bf16.gmra.mrb[0].mxu0 %v1884
        %v2868 = vpop.f32.mrb[0].mxu0
        %v2869 = vadd.f32 %v2516, %v2868
        %v2870 = vpop.f32.mrb[0].mxu0
        %v2871 = vadd.f32 %v2518, %v2870
        %v2872 = vpop.f32.mrb[0].mxu0
        %v2873 = vadd.f32 %v2520, %v2872
        %v2874 = vpop.f32.mrb[0].mxu0
        %v2875 = vadd.f32 %v2522, %v2874
        %2876 = vmatprep.mubr.bf16.mxu0 0
        %2877 = vmatmul.mubr.bf16.gmra.mrb[0].mxu0 %v1887
        %v2878 = vpop.f32.mrb[0].mxu0
        %v2879 = vadd.f32 %v2526, %v2878
        %v2880 = vpop.f32.mrb[0].mxu0
        %v2881 = vadd.f32 %v2528, %v2880
        %v2882 = vpop.f32.mrb[0].mxu0
        %v2883 = vadd.f32 %v2530, %v2882
        %v2884 = vpop.f32.mrb[0].mxu0
        %v2885 = vadd.f32 %v2532, %v2884
        %2886 = vmatprep.mubr.bf16.mxu0 0
        %2887 = vmatmul.mubr.bf16.gmra.mrb[0].mxu0 %v1890
        %v2888 = vpop.f32.mrb[0].mxu0
        %v2889 = vadd.f32 %v2536, %v2888
        %v2890 = vpop.f32.mrb[0].mxu0
        %v2891 = vadd.f32 %v2538, %v2890
        %v2892 = vpop.f32.mrb[0].mxu0
        %v2893 = vadd.f32 %v2540, %v2892
        %v2894 = vpop.f32.mrb[0].mxu0
        %v2895 = vadd.f32 %v2542, %v2894
        %2896 = vmatprep.mubr.bf16.mxu0 0
        %2897 = vmatmul.mubr.bf16.gmra.mrb[0].mxu0 %v1893
        %v2898 = vpop.f32.mrb[0].mxu0
        %v2899 = vadd.f32 %v2546, %v2898
        %v2900 = vpop.f32.mrb[0].mxu0
        %v2901 = vadd.f32 %v2548, %v2900
        %v2902 = vpop.f32.mrb[0].mxu0
        %v2903 = vadd.f32 %v2550, %v2902
        %v2904 = vpop.f32.mrb[0].mxu0
        %v2905 = vadd.f32 %v2552, %v2904
        %2906 = vmatprep.mubr.bf16.mxu0 0
        %2907 = vmatmul.mubr.bf16.gmra.mrb[0].mxu0 %v1896
        %v2908 = vpop.f32.mrb[0].mxu0
        %v2909 = vadd.f32 %v2556, %v2908
        %v2910 = vpop.f32.mrb[0].mxu0
        %v2911 = vadd.f32 %v2558, %v2910
        %v2912 = vpop.f32.mrb[0].mxu0
        %v2913 = vadd.f32 %v2560, %v2912
        %v2914 = vpop.f32.mrb[0].mxu0
        %v2915 = vadd.f32 %v2562, %v2914
        %2916 = vmatprep.mubr.bf16.mxu0 0
        %2917 = vmatmul.mubr.bf16.gmra.mrb[0].mxu0 %v1899
        %v2918 = vpop.f32.mrb[0].mxu0
        %v2919 = vadd.f32 %v2566, %v2918
        %v2920 = vpop.f32.mrb[0].mxu0
        %v2921 = vadd.f32 %v2568, %v2920
        %v2922 = vpop.f32.mrb[0].mxu0
        %v2923 = vadd.f32 %v2570, %v2922
        %v2924 = vpop.f32.mrb[0].mxu0
        %v2925 = vadd.f32 %v2572, %v2924
        %2926 = vmatprep.mubr.bf16.mxu0 0
        %2927 = vmatmul.mubr.bf16.gmra.mrb[0].mxu0 %v1902
        %v2928 = vpop.f32.mrb[0].mxu0
        %v2929 = vadd.f32 %v2576, %v2928
        %v2930 = vpop.f32.mrb[0].mxu0
        %v2931 = vadd.f32 %v2578, %v2930
        %v2932 = vpop.f32.mrb[0].mxu0
        %v2933 = vadd.f32 %v2580, %v2932
        %v2934 = vpop.f32.mrb[0].mxu0
        %v2935 = vadd.f32 %v2582, %v2934
        %2936 = vmatprep.mubr.bf16.mxu0 0
        %2937 = vmatmul.mubr.bf16.gmra.mrb[0].mxu0 %v1905
        %v2938 = vpop.f32.mrb[0].mxu0
        %v2939 = vadd.f32 %v2586, %v2938
        %v2940 = vpop.f32.mrb[0].mxu0
        %v2941 = vadd.f32 %v2588, %v2940
        %v2942 = vpop.f32.mrb[0].mxu0
        %v2943 = vadd.f32 %v2590, %v2942
        %v2944 = vpop.f32.mrb[0].mxu0
        %v2945 = vadd.f32 %v2592, %v2944
        %2946 = vmatprep.mubr.bf16.mxu0 0
        %2947 = vmatmul.mubr.bf16.gmra.mrb[0].mxu0 %v1908
        %v2948 = vpop.f32.mrb[0].mxu0
        %v2949 = vadd.f32 %v2596, %v2948
        %v2950 = vpop.f32.mrb[0].mxu0
        %v2951 = vadd.f32 %v2598, %v2950
        %v2952 = vpop.f32.mrb[0].mxu0
        %v2953 = vadd.f32 %v2600, %v2952
        %v2954 = vpop.f32.mrb[0].mxu0
        %v2955 = vadd.f32 %v2602, %v2954
        %2956 = vmatprep.mubr.bf16.mxu0 0
        %2957 = vmatmul.mubr.bf16.gmra.mrb[0].mxu0 %v1911
        %v2958 = vpop.f32.mrb[0].mxu0
        %v2959 = vadd.f32 %v2606, %v2958
        %v2960 = vpop.f32.mrb[0].mxu0
        %v2961 = vadd.f32 %v2608, %v2960
        %v2962 = vpop.f32.mrb[0].mxu0
        %v2963 = vadd.f32 %v2610, %v2962
        %v2964 = vpop.f32.mrb[0].mxu0
        %v2965 = vadd.f32 %v2612, %v2964
        %2966 = vmatprep.mubr.bf16.mxu0 0
        %2967 = vmatmul.mubr.bf16.gmra.mrb[0].mxu0 %v1914
        %v2968 = vpop.f32.mrb[0].mxu0
        %v2969 = vadd.f32 %v2616, %v2968
        %v2970 = vpop.f32.mrb[0].mxu0
        %v2971 = vadd.f32 %v2618, %v2970
        %v2972 = vpop.f32.mrb[0].mxu0
        %v2973 = vadd.f32 %v2620, %v2972
        %v2974 = vpop.f32.mrb[0].mxu0
        %v2975 = vadd.f32 %v2622, %v2974
        %2976 = vmatprep.mubr.bf16.mxu0 0
        %2977 = vmatmul.mubr.bf16.gmra.mrb[0].mxu0 %v1917
        %v2978 = vpop.f32.mrb[0].mxu0
        %v2979 = vadd.f32 %v2626, %v2978
        %v2980 = vpop.f32.mrb[0].mxu0
        %v2981 = vadd.f32 %v2628, %v2980
        %v2982 = vpop.f32.mrb[0].mxu0
        %v2983 = vadd.f32 %v2630, %v2982
        %v2984 = vpop.f32.mrb[0].mxu0
        %v2985 = vadd.f32 %v2632, %v2984
        %2986 = vmatprep.mubr.bf16.mxu0 0
        %2987 = vmatmul.mubr.bf16.gmra.mrb[0].mxu0 %v1920
        %v2988 = vpop.f32.mrb[0].mxu0
        %v2989 = vadd.f32 %v2636, %v2988
        %v2990 = vpop.f32.mrb[0].mxu0
        %v2991 = vadd.f32 %v2638, %v2990
        %v2992 = vpop.f32.mrb[0].mxu0
        %v2993 = vadd.f32 %v2640, %v2992
        %v2994 = vpop.f32.mrb[0].mxu0
        %v2995 = vadd.f32 %v2642, %v2994
        %2996 = vdwg.mxu0
        %2997 = vmatprep.subr.bf16.mxu0 %v1503
        %2998 = vmatpush1.bf16.msra.mxu0 %v1502
        %2999 = vmatprep.subr.bf16.mxu0 %v1508
        %3000 = vmatpush1.bf16.msra.mxu0 %v1507
        %3001 = vmatprep.subr.bf16.mxu0 %v1513
        %3002 = vmatpush1.bf16.msra.mxu0 %v1512
        %3003 = vmatprep.subr.bf16.mxu0 %v1518
        %3004 = vmatpush1.bf16.msra.mxu0 %v1517
        %3005 = vmatprep.subr.bf16.mxu0 %v1523
        %3006 = vmatpush1.bf16.msra.mxu0 %v1522
        %3007 = vmatprep.subr.bf16.mxu0 %v1528
        %3008 = vmatpush1.bf16.msra.mxu0 %v1527
        %3009 = vmatprep.subr.bf16.mxu0 %v1533
        %3010 = vmatpush1.bf16.msra.mxu0 %v1532
        %3011 = vmatprep.subr.bf16.mxu0 %v1538
        %3012 = vmatpush1.bf16.msra.mxu0 %v1537
        %3013 = vmatprep.subr.bf16.mxu0 %v1543
        %3014 = vmatpush1.bf16.msra.mxu0 %v1542
        %3015 = vmatprep.subr.bf16.mxu0 %v1548
        %3016 = vmatpush1.bf16.msra.mxu0 %v1547
        %3017 = vmatprep.subr.bf16.mxu0 %v1553
        %3018 = vmatpush1.bf16.msra.mxu0 %v1552
        %3019 = vmatprep.subr.bf16.mxu0 %v1558
        %3020 = vmatpush1.bf16.msra.mxu0 %v1557
        %3021 = vmatprep.subr.bf16.mxu0 %v1563
        %3022 = vmatpush1.bf16.msra.mxu0 %v1562
        %3023 = vmatprep.subr.bf16.mxu0 %v1568
        %3024 = vmatpush1.bf16.msra.mxu0 %v1567
        %3025 = vmatprep.subr.bf16.mxu0 %v1573
        %3026 = vmatpush1.bf16.msra.mxu0 %v1572
        %3027 = vmatprep.subr.bf16.mxu0 %v1578
        %3028 = vmatpush1.bf16.msra.mxu0 %v1577
        %3029 = vmatprep.mubr.bf16.mxu0 %v626
        %3030 = vmatmul.mubr.bf16.gmra.mrb[0].mxu0 %v625
        %v3031 = vpop.f32.mrb[0].mxu0
        %v3032 = vadd.f32 0.0, %v3031
        %v3033 = vpop.f32.mrb[0].mxu0
        %v3034 = vadd.f32 0.0, %v3033
        %v3035 = vpop.f32.mrb[0].mxu0
        %v3036 = vadd.f32 0.0, %v3035
        %v3037 = vpop.f32.mrb[0].mxu0
        %v3038 = vadd.f32 0.0, %v3037
        %3039 = vmatprep.mubr.bf16.mxu0 %v631
        %3040 = vmatmul.mubr.bf16.gmra.mrb[0].mxu0 %v630
        %v3041 = vpop.f32.mrb[0].mxu0
        %v3042 = vadd.f32 0.0, %v3041
        %v3043 = vpop.f32.mrb[0].mxu0
        %v3044 = vadd.f32 0.0, %v3043
        %v3045 = vpop.f32.mrb[0].mxu0
        %v3046 = vadd.f32 0.0, %v3045
        %v3047 = vpop.f32.mrb[0].mxu0
        %v3048 = vadd.f32 0.0, %v3047
        %3049 = vmatprep.mubr.bf16.mxu0 %v636
        %3050 = vmatmul.mubr.bf16.gmra.mrb[0].mxu0 %v635
        %v3051 = vpop.f32.mrb[0].mxu0
        %v3052 = vadd.f32 0.0, %v3051
        %v3053 = vpop.f32.mrb[0].mxu0
        %v3054 = vadd.f32 0.0, %v3053
        %v3055 = vpop.f32.mrb[0].mxu0
        %v3056 = vadd.f32 0.0, %v3055
        %v3057 = vpop.f32.mrb[0].mxu0
        %v3058 = vadd.f32 0.0, %v3057
        %3059 = vmatprep.mubr.bf16.mxu0 %v641
        %3060 = vmatmul.mubr.bf16.gmra.mrb[0].mxu0 %v640
        %v3061 = vpop.f32.mrb[0].mxu0
        %v3062 = vadd.f32 0.0, %v3061
        %v3063 = vpop.f32.mrb[0].mxu0
        %v3064 = vadd.f32 0.0, %v3063
        %v3065 = vpop.f32.mrb[0].mxu0
        %v3066 = vadd.f32 0.0, %v3065
        %v3067 = vpop.f32.mrb[0].mxu0
        %v3068 = vadd.f32 0.0, %v3067
        %3069 = vmatprep.mubr.bf16.mxu0 %v646
        %3070 = vmatmul.mubr.bf16.gmra.mrb[0].mxu0 %v645
        %v3071 = vpop.f32.mrb[0].mxu0
        %v3072 = vadd.f32 0.0, %v3071
        %v3073 = vpop.f32.mrb[0].mxu0
        %v3074 = vadd.f32 0.0, %v3073
        %v3075 = vpop.f32.mrb[0].mxu0
        %v3076 = vadd.f32 0.0, %v3075
        %v3077 = vpop.f32.mrb[0].mxu0
        %v3078 = vadd.f32 0.0, %v3077
        %3079 = vmatprep.mubr.bf16.mxu0 %v651
        %3080 = vmatmul.mubr.bf16.gmra.mrb[0].mxu0 %v650
        %v3081 = vpop.f32.mrb[0].mxu0
        %v3082 = vadd.f32 0.0, %v3081
        %v3083 = vpop.f32.mrb[0].mxu0
        %v3084 = vadd.f32 0.0, %v3083
        %v3085 = vpop.f32.mrb[0].mxu0
        %v3086 = vadd.f32 0.0, %v3085
        %v3087 = vpop.f32.mrb[0].mxu0
        %v3088 = vadd.f32 0.0, %v3087
        %3089 = vmatprep.mubr.bf16.mxu0 %v656
        %3090 = vmatmul.mubr.bf16.gmra.mrb[0].mxu0 %v655
        %v3091 = vpop.f32.mrb[0].mxu0
        %v3092 = vadd.f32 0.0, %v3091
        %v3093 = vpop.f32.mrb[0].mxu0
        %v3094 = vadd.f32 0.0, %v3093
        %v3095 = vpop.f32.mrb[0].mxu0
        %v3096 = vadd.f32 0.0, %v3095
        %v3097 = vpop.f32.mrb[0].mxu0
        %v3098 = vadd.f32 0.0, %v3097
        %3099 = vmatprep.mubr.bf16.mxu0 %v661
        %3100 = vmatmul.mubr.bf16.gmra.mrb[0].mxu0 %v660
        %v3101 = vpop.f32.mrb[0].mxu0
        %v3102 = vadd.f32 0.0, %v3101
        %v3103 = vpop.f32.mrb[0].mxu0
        %v3104 = vadd.f32 0.0, %v3103
        %v3105 = vpop.f32.mrb[0].mxu0
        %v3106 = vadd.f32 0.0, %v3105
        %v3107 = vpop.f32.mrb[0].mxu0
        %v3108 = vadd.f32 0.0, %v3107
        %3109 = vmatprep.mubr.bf16.mxu0 %v666
        %3110 = vmatmul.mubr.bf16.gmra.mrb[0].mxu0 %v665
        %v3111 = vpop.f32.mrb[0].mxu0
        %v3112 = vadd.f32 0.0, %v3111
        %v3113 = vpop.f32.mrb[0].mxu0
        %v3114 = vadd.f32 0.0, %v3113
        %v3115 = vpop.f32.mrb[0].mxu0
        %v3116 = vadd.f32 0.0, %v3115
        %v3117 = vpop.f32.mrb[0].mxu0
        %v3118 = vadd.f32 0.0, %v3117
        %3119 = vmatprep.mubr.bf16.mxu0 %v671
        %3120 = vmatmul.mubr.bf16.gmra.mrb[0].mxu0 %v670
        %v3121 = vpop.f32.mrb[0].mxu0
        %v3122 = vadd.f32 0.0, %v3121
        %v3123 = vpop.f32.mrb[0].mxu0
        %v3124 = vadd.f32 0.0, %v3123
        %v3125 = vpop.f32.mrb[0].mxu0
        %v3126 = vadd.f32 0.0, %v3125
        %v3127 = vpop.f32.mrb[0].mxu0
        %v3128 = vadd.f32 0.0, %v3127
        %3129 = vmatprep.mubr.bf16.mxu0 %v676
        %3130 = vmatmul.mubr.bf16.gmra.mrb[0].mxu0 %v675
        %v3131 = vpop.f32.mrb[0].mxu0
        %v3132 = vadd.f32 0.0, %v3131
        %v3133 = vpop.f32.mrb[0].mxu0
        %v3134 = vadd.f32 0.0, %v3133
        %v3135 = vpop.f32.mrb[0].mxu0
        %v3136 = vadd.f32 0.0, %v3135
        %v3137 = vpop.f32.mrb[0].mxu0
        %v3138 = vadd.f32 0.0, %v3137
        %3139 = vmatprep.mubr.bf16.mxu0 %v681
        %3140 = vmatmul.mubr.bf16.gmra.mrb[0].mxu0 %v680
        %v3141 = vpop.f32.mrb[0].mxu0
        %v3142 = vadd.f32 0.0, %v3141
        %v3143 = vpop.f32.mrb[0].mxu0
        %v3144 = vadd.f32 0.0, %v3143
        %v3145 = vpop.f32.mrb[0].mxu0
        %v3146 = vadd.f32 0.0, %v3145
        %v3147 = vpop.f32.mrb[0].mxu0
        %v3148 = vadd.f32 0.0, %v3147
        %3149 = vmatprep.mubr.bf16.mxu0 %v686
        %3150 = vmatmul.mubr.bf16.gmra.mrb[0].mxu0 %v685
        %v3151 = vpop.f32.mrb[0].mxu0
        %v3152 = vadd.f32 0.0, %v3151
        %v3153 = vpop.f32.mrb[0].mxu0
        %v3154 = vadd.f32 0.0, %v3153
        %v3155 = vpop.f32.mrb[0].mxu0
        %v3156 = vadd.f32 0.0, %v3155
        %v3157 = vpop.f32.mrb[0].mxu0
        %v3158 = vadd.f32 0.0, %v3157
        %3159 = vmatprep.mubr.bf16.mxu0 %v691
        %3160 = vmatmul.mubr.bf16.gmra.mrb[0].mxu0 %v690
        %v3161 = vpop.f32.mrb[0].mxu0
        %v3162 = vadd.f32 0.0, %v3161
        %v3163 = vpop.f32.mrb[0].mxu0
        %v3164 = vadd.f32 0.0, %v3163
        %v3165 = vpop.f32.mrb[0].mxu0
        %v3166 = vadd.f32 0.0, %v3165
        %v3167 = vpop.f32.mrb[0].mxu0
        %v3168 = vadd.f32 0.0, %v3167
        %3169 = vmatprep.mubr.bf16.mxu0 %v696
        %3170 = vmatmul.mubr.bf16.gmra.mrb[0].mxu0 %v695
        %v3171 = vpop.f32.mrb[0].mxu0
        %v3172 = vadd.f32 0.0, %v3171
        %v3173 = vpop.f32.mrb[0].mxu0
        %v3174 = vadd.f32 0.0, %v3173
        %v3175 = vpop.f32.mrb[0].mxu0
        %v3176 = vadd.f32 0.0, %v3175
        %v3177 = vpop.f32.mrb[0].mxu0
        %v3178 = vadd.f32 0.0, %v3177
        %3179 = vmatprep.mubr.bf16.mxu0 %v701
        %3180 = vmatmul.mubr.bf16.gmra.mrb[0].mxu0 %v700
        %v3181 = vpop.f32.mrb[0].mxu0
        %v3182 = vadd.f32 0.0, %v3181
        %v3183 = vpop.f32.mrb[0].mxu0
        %v3184 = vadd.f32 0.0, %v3183
        %v3185 = vpop.f32.mrb[0].mxu0
        %v3186 = vadd.f32 0.0, %v3185
        %v3187 = vpop.f32.mrb[0].mxu0
        %v3188 = vadd.f32 0.0, %v3187
        %3189 = vmatprep.mubr.bf16.mxu0 %v706
        %3190 = vmatmul.mubr.bf16.gmra.mrb[0].mxu0 %v705
        %v3191 = vpop.f32.mrb[0].mxu0
        %v3192 = vadd.f32 0.0, %v3191
        %v3193 = vpop.f32.mrb[0].mxu0
        %v3194 = vadd.f32 0.0, %v3193
        %v3195 = vpop.f32.mrb[0].mxu0
        %v3196 = vadd.f32 0.0, %v3195
        %v3197 = vpop.f32.mrb[0].mxu0
        %v3198 = vadd.f32 0.0, %v3197
        %3199 = vmatprep.mubr.bf16.mxu0 %v711
        %3200 = vmatmul.mubr.bf16.gmra.mrb[0].mxu0 %v710
        %v3201 = vpop.f32.mrb[0].mxu0
        %v3202 = vadd.f32 0.0, %v3201
        %v3203 = vpop.f32.mrb[0].mxu0
        %v3204 = vadd.f32 0.0, %v3203
        %v3205 = vpop.f32.mrb[0].mxu0
        %v3206 = vadd.f32 0.0, %v3205
        %v3207 = vpop.f32.mrb[0].mxu0
        %v3208 = vadd.f32 0.0, %v3207
        %3209 = vmatprep.mubr.bf16.mxu0 %v716
        %3210 = vmatmul.mubr.bf16.gmra.mrb[0].mxu0 %v715
        %v3211 = vpop.f32.mrb[0].mxu0
        %v3212 = vadd.f32 0.0, %v3211
        %v3213 = vpop.f32.mrb[0].mxu0
        %v3214 = vadd.f32 0.0, %v3213
        %v3215 = vpop.f32.mrb[0].mxu0
        %v3216 = vadd.f32 0.0, %v3215
        %v3217 = vpop.f32.mrb[0].mxu0
        %v3218 = vadd.f32 0.0, %v3217
        %3219 = vmatprep.mubr.bf16.mxu0 %v721
        %3220 = vmatmul.mubr.bf16.gmra.mrb[0].mxu0 %v720
        %v3221 = vpop.f32.mrb[0].mxu0
        %v3222 = vadd.f32 0.0, %v3221
        %v3223 = vpop.f32.mrb[0].mxu0
        %v3224 = vadd.f32 0.0, %v3223
        %v3225 = vpop.f32.mrb[0].mxu0
        %v3226 = vadd.f32 0.0, %v3225
        %v3227 = vpop.f32.mrb[0].mxu0
        %v3228 = vadd.f32 0.0, %v3227
        %3229 = vmatprep.mubr.bf16.mxu0 %v726
        %3230 = vmatmul.mubr.bf16.gmra.mrb[0].mxu0 %v725
        %v3231 = vpop.f32.mrb[0].mxu0
        %v3232 = vadd.f32 0.0, %v3231
        %v3233 = vpop.f32.mrb[0].mxu0
        %v3234 = vadd.f32 0.0, %v3233
        %v3235 = vpop.f32.mrb[0].mxu0
        %v3236 = vadd.f32 0.0, %v3235
        %v3237 = vpop.f32.mrb[0].mxu0
        %v3238 = vadd.f32 0.0, %v3237
        %3239 = vmatprep.mubr.bf16.mxu0 %v731
        %3240 = vmatmul.mubr.bf16.gmra.mrb[0].mxu0 %v730
        %v3241 = vpop.f32.mrb[0].mxu0
        %v3242 = vadd.f32 0.0, %v3241
        %v3243 = vpop.f32.mrb[0].mxu0
        %v3244 = vadd.f32 0.0, %v3243
        %v3245 = vpop.f32.mrb[0].mxu0
        %v3246 = vadd.f32 0.0, %v3245
        %v3247 = vpop.f32.mrb[0].mxu0
        %v3248 = vadd.f32 0.0, %v3247
        %3249 = vmatprep.mubr.bf16.mxu0 %v736
        %3250 = vmatmul.mubr.bf16.gmra.mrb[0].mxu0 %v735
        %v3251 = vpop.f32.mrb[0].mxu0
        %v3252 = vadd.f32 0.0, %v3251
        %v3253 = vpop.f32.mrb[0].mxu0
        %v3254 = vadd.f32 0.0, %v3253
        %v3255 = vpop.f32.mrb[0].mxu0
        %v3256 = vadd.f32 0.0, %v3255
        %v3257 = vpop.f32.mrb[0].mxu0
        %v3258 = vadd.f32 0.0, %v3257
        %3259 = vmatprep.mubr.bf16.mxu0 %v741
        %3260 = vmatmul.mubr.bf16.gmra.mrb[0].mxu0 %v740
        %v3261 = vpop.f32.mrb[0].mxu0
        %v3262 = vadd.f32 0.0, %v3261
        %v3263 = vpop.f32.mrb[0].mxu0
        %v3264 = vadd.f32 0.0, %v3263
        %v3265 = vpop.f32.mrb[0].mxu0
        %v3266 = vadd.f32 0.0, %v3265
        %v3267 = vpop.f32.mrb[0].mxu0
        %v3268 = vadd.f32 0.0, %v3267
        %3269 = vmatprep.mubr.bf16.mxu0 %v746
        %3270 = vmatmul.mubr.bf16.gmra.mrb[0].mxu0 %v745
        %v3271 = vpop.f32.mrb[0].mxu0
        %v3272 = vadd.f32 0.0, %v3271
        %v3273 = vpop.f32.mrb[0].mxu0
        %v3274 = vadd.f32 0.0, %v3273
        %v3275 = vpop.f32.mrb[0].mxu0
        %v3276 = vadd.f32 0.0, %v3275
        %v3277 = vpop.f32.mrb[0].mxu0
        %v3278 = vadd.f32 0.0, %v3277
        %3279 = vmatprep.mubr.bf16.mxu0 %v751
        %3280 = vmatmul.mubr.bf16.gmra.mrb[0].mxu0 %v750
        %v3281 = vpop.f32.mrb[0].mxu0
        %v3282 = vadd.f32 0.0, %v3281
        %v3283 = vpop.f32.mrb[0].mxu0
        %v3284 = vadd.f32 0.0, %v3283
        %v3285 = vpop.f32.mrb[0].mxu0
        %v3286 = vadd.f32 0.0, %v3285
        %v3287 = vpop.f32.mrb[0].mxu0
        %v3288 = vadd.f32 0.0, %v3287
        %3289 = vmatprep.mubr.bf16.mxu0 %v756
        %3290 = vmatmul.mubr.bf16.gmra.mrb[0].mxu0 %v755
        %v3291 = vpop.f32.mrb[0].mxu0
        %v3292 = vadd.f32 0.0, %v3291
        %v3293 = vpop.f32.mrb[0].mxu0
        %v3294 = vadd.f32 0.0, %v3293
        %v3295 = vpop.f32.mrb[0].mxu0
        %v3296 = vadd.f32 0.0, %v3295
        %v3297 = vpop.f32.mrb[0].mxu0
        %v3298 = vadd.f32 0.0, %v3297
        %3299 = vmatprep.mubr.bf16.mxu0 %v761
        %3300 = vmatmul.mubr.bf16.gmra.mrb[0].mxu0 %v760
        %v3301 = vpop.f32.mrb[0].mxu0
        %v3302 = vadd.f32 0.0, %v3301
        %v3303 = vpop.f32.mrb[0].mxu0
        %v3304 = vadd.f32 0.0, %v3303
        %v3305 = vpop.f32.mrb[0].mxu0
        %v3306 = vadd.f32 0.0, %v3305
        %v3307 = vpop.f32.mrb[0].mxu0
        %v3308 = vadd.f32 0.0, %v3307
        %3309 = vmatprep.mubr.bf16.mxu0 %v766
        %3310 = vmatmul.mubr.bf16.gmra.mrb[0].mxu0 %v765
        %v3311 = vpop.f32.mrb[0].mxu0
        %v3312 = vadd.f32 0.0, %v3311
        %v3313 = vpop.f32.mrb[0].mxu0
        %v3314 = vadd.f32 0.0, %v3313
        %v3315 = vpop.f32.mrb[0].mxu0
        %v3316 = vadd.f32 0.0, %v3315
        %v3317 = vpop.f32.mrb[0].mxu0
        %v3318 = vadd.f32 0.0, %v3317
        %3319 = vmatprep.mubr.bf16.mxu0 %v771
        %3320 = vmatmul.mubr.bf16.gmra.mrb[0].mxu0 %v770
        %v3321 = vpop.f32.mrb[0].mxu0
        %v3322 = vadd.f32 0.0, %v3321
        %v3323 = vpop.f32.mrb[0].mxu0
        %v3324 = vadd.f32 0.0, %v3323
        %v3325 = vpop.f32.mrb[0].mxu0
        %v3326 = vadd.f32 0.0, %v3325
        %v3327 = vpop.f32.mrb[0].mxu0
        %v3328 = vadd.f32 0.0, %v3327
        %3329 = vmatprep.mubr.bf16.mxu0 %v776
        %3330 = vmatmul.mubr.bf16.gmra.mrb[0].mxu0 %v775
        %v3331 = vpop.f32.mrb[0].mxu0
        %v3332 = vadd.f32 0.0, %v3331
        %v3333 = vpop.f32.mrb[0].mxu0
        %v3334 = vadd.f32 0.0, %v3333
        %v3335 = vpop.f32.mrb[0].mxu0
        %v3336 = vadd.f32 0.0, %v3335
        %v3337 = vpop.f32.mrb[0].mxu0
        %v3338 = vadd.f32 0.0, %v3337
        %3339 = vmatprep.mubr.bf16.mxu0 %v781
        %3340 = vmatmul.mubr.bf16.gmra.mrb[0].mxu0 %v780
        %v3341 = vpop.f32.mrb[0].mxu0
        %v3342 = vadd.f32 0.0, %v3341
        %v3343 = vpop.f32.mrb[0].mxu0
        %v3344 = vadd.f32 0.0, %v3343
        %v3345 = vpop.f32.mrb[0].mxu0
        %v3346 = vadd.f32 0.0, %v3345
        %v3347 = vpop.f32.mrb[0].mxu0
        %v3348 = vadd.f32 0.0, %v3347
        %3349 = vdwg.mxu0
        %3350 = vmatprep.subr.bf16.mxu0 %v1583
        %3351 = vmatpush1.bf16.msra.mxu0 %v1582
        %3352 = vmatprep.subr.bf16.mxu0 %v1588
        %3353 = vmatpush1.bf16.msra.mxu0 %v1587
        %3354 = vmatprep.subr.bf16.mxu0 %v1593
        %3355 = vmatpush1.bf16.msra.mxu0 %v1592
        %3356 = vmatprep.subr.bf16.mxu0 %v1598
        %3357 = vmatpush1.bf16.msra.mxu0 %v1597
        %3358 = vmatprep.subr.bf16.mxu0 %v1603
        %3359 = vmatpush1.bf16.msra.mxu0 %v1602
        %3360 = vmatprep.subr.bf16.mxu0 %v1608
        %3361 = vmatpush1.bf16.msra.mxu0 %v1607
        %3362 = vmatprep.subr.bf16.mxu0 %v1613
        %3363 = vmatpush1.bf16.msra.mxu0 %v1612
        %3364 = vmatprep.subr.bf16.mxu0 %v1618
        %3365 = vmatpush1.bf16.msra.mxu0 %v1617
        %3366 = vmatprep.subr.bf16.mxu0 %v1623
        %3367 = vmatpush1.bf16.msra.mxu0 %v1622
        %3368 = vmatprep.subr.bf16.mxu0 %v1628
        %3369 = vmatpush1.bf16.msra.mxu0 %v1627
        %3370 = vmatprep.subr.bf16.mxu0 %v1633
        %3371 = vmatpush1.bf16.msra.mxu0 %v1632
        %3372 = vmatprep.subr.bf16.mxu0 %v1638
        %3373 = vmatpush1.bf16.msra.mxu0 %v1637
        %3374 = vmatprep.subr.bf16.mxu0 %v1643
        %3375 = vmatpush1.bf16.msra.mxu0 %v1642
        %3376 = vmatprep.subr.bf16.mxu0 %v1648
        %3377 = vmatpush1.bf16.msra.mxu0 %v1647
        %3378 = vmatprep.subr.bf16.mxu0 %v1653
        %3379 = vmatpush1.bf16.msra.mxu0 %v1652
        %3380 = vmatprep.subr.bf16.mxu0 %v1658
        %3381 = vmatpush1.bf16.msra.mxu0 %v1657
        %3382 = vmatprep.mubr.bf16.mxu0 %v628
        %3383 = vmatmul.mubr.bf16.gmra.mrb[0].mxu0 %v627
        %v3384 = vpop.f32.mrb[0].mxu0
        %v3385 = vadd.f32 %v3032, %v3384
        %v3386 = vpop.f32.mrb[0].mxu0
        %v3387 = vadd.f32 %v3034, %v3386
        %v3388 = vpop.f32.mrb[0].mxu0
        %v3389 = vadd.f32 %v3036, %v3388
        %v3390 = vpop.f32.mrb[0].mxu0
        %v3391 = vadd.f32 %v3038, %v3390
        %3392 = vmatprep.mubr.bf16.mxu0 %v633
        %3393 = vmatmul.mubr.bf16.gmra.mrb[0].mxu0 %v632
        %v3394 = vpop.f32.mrb[0].mxu0
        %v3395 = vadd.f32 %v3042, %v3394
        %v3396 = vpop.f32.mrb[0].mxu0
        %v3397 = vadd.f32 %v3044, %v3396
        %v3398 = vpop.f32.mrb[0].mxu0
        %v3399 = vadd.f32 %v3046, %v3398
        %v3400 = vpop.f32.mrb[0].mxu0
        %v3401 = vadd.f32 %v3048, %v3400
        %3402 = vmatprep.mubr.bf16.mxu0 %v638
        %3403 = vmatmul.mubr.bf16.gmra.mrb[0].mxu0 %v637
        %v3404 = vpop.f32.mrb[0].mxu0
        %v3405 = vadd.f32 %v3052, %v3404
        %v3406 = vpop.f32.mrb[0].mxu0
        %v3407 = vadd.f32 %v3054, %v3406
        %v3408 = vpop.f32.mrb[0].mxu0
        %v3409 = vadd.f32 %v3056, %v3408
        %v3410 = vpop.f32.mrb[0].mxu0
        %v3411 = vadd.f32 %v3058, %v3410
        %3412 = vmatprep.mubr.bf16.mxu0 %v643
        %3413 = vmatmul.mubr.bf16.gmra.mrb[0].mxu0 %v642
        %v3414 = vpop.f32.mrb[0].mxu0
        %v3415 = vadd.f32 %v3062, %v3414
        %v3416 = vpop.f32.mrb[0].mxu0
        %v3417 = vadd.f32 %v3064, %v3416
        %v3418 = vpop.f32.mrb[0].mxu0
        %v3419 = vadd.f32 %v3066, %v3418
        %v3420 = vpop.f32.mrb[0].mxu0
        %v3421 = vadd.f32 %v3068, %v3420
        %3422 = vmatprep.mubr.bf16.mxu0 %v648
        %3423 = vmatmul.mubr.bf16.gmra.mrb[0].mxu0 %v647
        %v3424 = vpop.f32.mrb[0].mxu0
        %v3425 = vadd.f32 %v3072, %v3424
        %v3426 = vpop.f32.mrb[0].mxu0
        %v3427 = vadd.f32 %v3074, %v3426
        %v3428 = vpop.f32.mrb[0].mxu0
        %v3429 = vadd.f32 %v3076, %v3428
        %v3430 = vpop.f32.mrb[0].mxu0
        %v3431 = vadd.f32 %v3078, %v3430
        %3432 = vmatprep.mubr.bf16.mxu0 %v653
        %3433 = vmatmul.mubr.bf16.gmra.mrb[0].mxu0 %v652
        %v3434 = vpop.f32.mrb[0].mxu0
        %v3435 = vadd.f32 %v3082, %v3434
        %v3436 = vpop.f32.mrb[0].mxu0
        %v3437 = vadd.f32 %v3084, %v3436
        %v3438 = vpop.f32.mrb[0].mxu0
        %v3439 = vadd.f32 %v3086, %v3438
        %v3440 = vpop.f32.mrb[0].mxu0
        %v3441 = vadd.f32 %v3088, %v3440
        %3442 = vmatprep.mubr.bf16.mxu0 %v658
        %3443 = vmatmul.mubr.bf16.gmra.mrb[0].mxu0 %v657
        %v3444 = vpop.f32.mrb[0].mxu0
        %v3445 = vadd.f32 %v3092, %v3444
        %v3446 = vpop.f32.mrb[0].mxu0
        %v3447 = vadd.f32 %v3094, %v3446
        %v3448 = vpop.f32.mrb[0].mxu0
        %v3449 = vadd.f32 %v3096, %v3448
        %v3450 = vpop.f32.mrb[0].mxu0
        %v3451 = vadd.f32 %v3098, %v3450
        %3452 = vmatprep.mubr.bf16.mxu0 %v663
        %3453 = vmatmul.mubr.bf16.gmra.mrb[0].mxu0 %v662
        %v3454 = vpop.f32.mrb[0].mxu0
        %v3455 = vadd.f32 %v3102, %v3454
        %v3456 = vpop.f32.mrb[0].mxu0
        %v3457 = vadd.f32 %v3104, %v3456
        %v3458 = vpop.f32.mrb[0].mxu0
        %v3459 = vadd.f32 %v3106, %v3458
        %v3460 = vpop.f32.mrb[0].mxu0
        %v3461 = vadd.f32 %v3108, %v3460
        %3462 = vmatprep.mubr.bf16.mxu0 %v668
        %3463 = vmatmul.mubr.bf16.gmra.mrb[0].mxu0 %v667
        %v3464 = vpop.f32.mrb[0].mxu0
        %v3465 = vadd.f32 %v3112, %v3464
        %v3466 = vpop.f32.mrb[0].mxu0
        %v3467 = vadd.f32 %v3114, %v3466
        %v3468 = vpop.f32.mrb[0].mxu0
        %v3469 = vadd.f32 %v3116, %v3468
        %v3470 = vpop.f32.mrb[0].mxu0
        %v3471 = vadd.f32 %v3118, %v3470
        %3472 = vmatprep.mubr.bf16.mxu0 %v673
        %3473 = vmatmul.mubr.bf16.gmra.mrb[0].mxu0 %v672
        %v3474 = vpop.f32.mrb[0].mxu0
        %v3475 = vadd.f32 %v3122, %v3474
        %v3476 = vpop.f32.mrb[0].mxu0
        %v3477 = vadd.f32 %v3124, %v3476
        %v3478 = vpop.f32.mrb[0].mxu0
        %v3479 = vadd.f32 %v3126, %v3478
        %v3480 = vpop.f32.mrb[0].mxu0
        %v3481 = vadd.f32 %v3128, %v3480
        %3482 = vmatprep.mubr.bf16.mxu0 %v678
        %3483 = vmatmul.mubr.bf16.gmra.mrb[0].mxu0 %v677
        %v3484 = vpop.f32.mrb[0].mxu0
        %v3485 = vadd.f32 %v3132, %v3484
        %v3486 = vpop.f32.mrb[0].mxu0
        %v3487 = vadd.f32 %v3134, %v3486
        %v3488 = vpop.f32.mrb[0].mxu0
        %v3489 = vadd.f32 %v3136, %v3488
        %v3490 = vpop.f32.mrb[0].mxu0
        %v3491 = vadd.f32 %v3138, %v3490
        %3492 = vmatprep.mubr.bf16.mxu0 %v683
        %3493 = vmatmul.mubr.bf16.gmra.mrb[0].mxu0 %v682
        %v3494 = vpop.f32.mrb[0].mxu0
        %v3495 = vadd.f32 %v3142, %v3494
        %v3496 = vpop.f32.mrb[0].mxu0
        %v3497 = vadd.f32 %v3144, %v3496
        %v3498 = vpop.f32.mrb[0].mxu0
        %v3499 = vadd.f32 %v3146, %v3498
        %v3500 = vpop.f32.mrb[0].mxu0
        %v3501 = vadd.f32 %v3148, %v3500
        %3502 = vmatprep.mubr.bf16.mxu0 %v688
        %3503 = vmatmul.mubr.bf16.gmra.mrb[0].mxu0 %v687
        %v3504 = vpop.f32.mrb[0].mxu0
        %v3505 = vadd.f32 %v3152, %v3504
        %v3506 = vpop.f32.mrb[0].mxu0
        %v3507 = vadd.f32 %v3154, %v3506
        %v3508 = vpop.f32.mrb[0].mxu0
        %v3509 = vadd.f32 %v3156, %v3508
        %v3510 = vpop.f32.mrb[0].mxu0
        %v3511 = vadd.f32 %v3158, %v3510
        %3512 = vmatprep.mubr.bf16.mxu0 %v693
        %3513 = vmatmul.mubr.bf16.gmra.mrb[0].mxu0 %v692
        %v3514 = vpop.f32.mrb[0].mxu0
        %v3515 = vadd.f32 %v3162, %v3514
        %v3516 = vpop.f32.mrb[0].mxu0
        %v3517 = vadd.f32 %v3164, %v3516
        %v3518 = vpop.f32.mrb[0].mxu0
        %v3519 = vadd.f32 %v3166, %v3518
        %v3520 = vpop.f32.mrb[0].mxu0
        %v3521 = vadd.f32 %v3168, %v3520
        %3522 = vmatprep.mubr.bf16.mxu0 %v698
        %3523 = vmatmul.mubr.bf16.gmra.mrb[0].mxu0 %v697
        %v3524 = vpop.f32.mrb[0].mxu0
        %v3525 = vadd.f32 %v3172, %v3524
        %v3526 = vpop.f32.mrb[0].mxu0
        %v3527 = vadd.f32 %v3174, %v3526
        %v3528 = vpop.f32.mrb[0].mxu0
        %v3529 = vadd.f32 %v3176, %v3528
        %v3530 = vpop.f32.mrb[0].mxu0
        %v3531 = vadd.f32 %v3178, %v3530
        %3532 = vmatprep.mubr.bf16.mxu0 %v703
        %3533 = vmatmul.mubr.bf16.gmra.mrb[0].mxu0 %v702
        %v3534 = vpop.f32.mrb[0].mxu0
        %v3535 = vadd.f32 %v3182, %v3534
        %v3536 = vpop.f32.mrb[0].mxu0
        %v3537 = vadd.f32 %v3184, %v3536
        %v3538 = vpop.f32.mrb[0].mxu0
        %v3539 = vadd.f32 %v3186, %v3538
        %v3540 = vpop.f32.mrb[0].mxu0
        %v3541 = vadd.f32 %v3188, %v3540
        %3542 = vmatprep.mubr.bf16.mxu0 %v708
        %3543 = vmatmul.mubr.bf16.gmra.mrb[0].mxu0 %v707
        %v3544 = vpop.f32.mrb[0].mxu0
        %v3545 = vadd.f32 %v3192, %v3544
        %v3546 = vpop.f32.mrb[0].mxu0
        %v3547 = vadd.f32 %v3194, %v3546
        %v3548 = vpop.f32.mrb[0].mxu0
        %v3549 = vadd.f32 %v3196, %v3548
        %v3550 = vpop.f32.mrb[0].mxu0
        %v3551 = vadd.f32 %v3198, %v3550
        %3552 = vmatprep.mubr.bf16.mxu0 %v713
        %3553 = vmatmul.mubr.bf16.gmra.mrb[0].mxu0 %v712
        %v3554 = vpop.f32.mrb[0].mxu0
        %v3555 = vadd.f32 %v3202, %v3554
        %v3556 = vpop.f32.mrb[0].mxu0
        %v3557 = vadd.f32 %v3204, %v3556
        %v3558 = vpop.f32.mrb[0].mxu0
        %v3559 = vadd.f32 %v3206, %v3558
        %v3560 = vpop.f32.mrb[0].mxu0
        %v3561 = vadd.f32 %v3208, %v3560
        %3562 = vmatprep.mubr.bf16.mxu0 %v718
        %3563 = vmatmul.mubr.bf16.gmra.mrb[0].mxu0 %v717
        %v3564 = vpop.f32.mrb[0].mxu0
        %v3565 = vadd.f32 %v3212, %v3564
        %v3566 = vpop.f32.mrb[0].mxu0
        %v3567 = vadd.f32 %v3214, %v3566
        %v3568 = vpop.f32.mrb[0].mxu0
        %v3569 = vadd.f32 %v3216, %v3568
        %v3570 = vpop.f32.mrb[0].mxu0
        %v3571 = vadd.f32 %v3218, %v3570
        %3572 = vmatprep.mubr.bf16.mxu0 %v723
        %3573 = vmatmul.mubr.bf16.gmra.mrb[0].mxu0 %v722
        %v3574 = vpop.f32.mrb[0].mxu0
        %v3575 = vadd.f32 %v3222, %v3574
        %v3576 = vpop.f32.mrb[0].mxu0
        %v3577 = vadd.f32 %v3224, %v3576
        %v3578 = vpop.f32.mrb[0].mxu0
        %v3579 = vadd.f32 %v3226, %v3578
        %v3580 = vpop.f32.mrb[0].mxu0
        %v3581 = vadd.f32 %v3228, %v3580
        %3582 = vmatprep.mubr.bf16.mxu0 %v728
        %3583 = vmatmul.mubr.bf16.gmra.mrb[0].mxu0 %v727
        %v3584 = vpop.f32.mrb[0].mxu0
        %v3585 = vadd.f32 %v3232, %v3584
        %v3586 = vpop.f32.mrb[0].mxu0
        %v3587 = vadd.f32 %v3234, %v3586
        %v3588 = vpop.f32.mrb[0].mxu0
        %v3589 = vadd.f32 %v3236, %v3588
        %v3590 = vpop.f32.mrb[0].mxu0
        %v3591 = vadd.f32 %v3238, %v3590
        %3592 = vmatprep.mubr.bf16.mxu0 %v733
        %3593 = vmatmul.mubr.bf16.gmra.mrb[0].mxu0 %v732
        %v3594 = vpop.f32.mrb[0].mxu0
        %v3595 = vadd.f32 %v3242, %v3594
        %v3596 = vpop.f32.mrb[0].mxu0
        %v3597 = vadd.f32 %v3244, %v3596
        %v3598 = vpop.f32.mrb[0].mxu0
        %v3599 = vadd.f32 %v3246, %v3598
        %v3600 = vpop.f32.mrb[0].mxu0
        %v3601 = vadd.f32 %v3248, %v3600
        %3602 = vmatprep.mubr.bf16.mxu0 %v738
        %3603 = vmatmul.mubr.bf16.gmra.mrb[0].mxu0 %v737
        %v3604 = vpop.f32.mrb[0].mxu0
        %v3605 = vadd.f32 %v3252, %v3604
        %v3606 = vpop.f32.mrb[0].mxu0
        %v3607 = vadd.f32 %v3254, %v3606
        %v3608 = vpop.f32.mrb[0].mxu0
        %v3609 = vadd.f32 %v3256, %v3608
        %v3610 = vpop.f32.mrb[0].mxu0
        %v3611 = vadd.f32 %v3258, %v3610
        %3612 = vmatprep.mubr.bf16.mxu0 %v743
        %3613 = vmatmul.mubr.bf16.gmra.mrb[0].mxu0 %v742
        %v3614 = vpop.f32.mrb[0].mxu0
        %v3615 = vadd.f32 %v3262, %v3614
        %v3616 = vpop.f32.mrb[0].mxu0
        %v3617 = vadd.f32 %v3264, %v3616
        %v3618 = vpop.f32.mrb[0].mxu0
        %v3619 = vadd.f32 %v3266, %v3618
        %v3620 = vpop.f32.mrb[0].mxu0
        %v3621 = vadd.f32 %v3268, %v3620
        %3622 = vmatprep.mubr.bf16.mxu0 %v748
        %3623 = vmatmul.mubr.bf16.gmra.mrb[0].mxu0 %v747
        %v3624 = vpop.f32.mrb[0].mxu0
        %v3625 = vadd.f32 %v3272, %v3624
        %v3626 = vpop.f32.mrb[0].mxu0
        %v3627 = vadd.f32 %v3274, %v3626
        %v3628 = vpop.f32.mrb[0].mxu0
        %v3629 = vadd.f32 %v3276, %v3628
        %v3630 = vpop.f32.mrb[0].mxu0
        %v3631 = vadd.f32 %v3278, %v3630
        %3632 = vmatprep.mubr.bf16.mxu0 %v753
        %3633 = vmatmul.mubr.bf16.gmra.mrb[0].mxu0 %v752
        %v3634 = vpop.f32.mrb[0].mxu0
        %v3635 = vadd.f32 %v3282, %v3634
        %v3636 = vpop.f32.mrb[0].mxu0
        %v3637 = vadd.f32 %v3284, %v3636
        %v3638 = vpop.f32.mrb[0].mxu0
        %v3639 = vadd.f32 %v3286, %v3638
        %v3640 = vpop.f32.mrb[0].mxu0
        %v3641 = vadd.f32 %v3288, %v3640
        %3642 = vmatprep.mubr.bf16.mxu0 %v758
        %3643 = vmatmul.mubr.bf16.gmra.mrb[0].mxu0 %v757
        %v3644 = vpop.f32.mrb[0].mxu0
        %v3645 = vadd.f32 %v3292, %v3644
        %v3646 = vpop.f32.mrb[0].mxu0
        %v3647 = vadd.f32 %v3294, %v3646
        %v3648 = vpop.f32.mrb[0].mxu0
        %v3649 = vadd.f32 %v3296, %v3648
        %v3650 = vpop.f32.mrb[0].mxu0
        %v3651 = vadd.f32 %v3298, %v3650
        %3652 = vmatprep.mubr.bf16.mxu0 %v763
        %3653 = vmatmul.mubr.bf16.gmra.mrb[0].mxu0 %v762
        %v3654 = vpop.f32.mrb[0].mxu0
        %v3655 = vadd.f32 %v3302, %v3654
        %v3656 = vpop.f32.mrb[0].mxu0
        %v3657 = vadd.f32 %v3304, %v3656
        %v3658 = vpop.f32.mrb[0].mxu0
        %v3659 = vadd.f32 %v3306, %v3658
        %v3660 = vpop.f32.mrb[0].mxu0
        %v3661 = vadd.f32 %v3308, %v3660
        %3662 = vmatprep.mubr.bf16.mxu0 %v768
        %3663 = vmatmul.mubr.bf16.gmra.mrb[0].mxu0 %v767
        %v3664 = vpop.f32.mrb[0].mxu0
        %v3665 = vadd.f32 %v3312, %v3664
        %v3666 = vpop.f32.mrb[0].mxu0
        %v3667 = vadd.f32 %v3314, %v3666
        %v3668 = vpop.f32.mrb[0].mxu0
        %v3669 = vadd.f32 %v3316, %v3668
        %v3670 = vpop.f32.mrb[0].mxu0
        %v3671 = vadd.f32 %v3318, %v3670
        %3672 = vmatprep.mubr.bf16.mxu0 %v773
        %3673 = vmatmul.mubr.bf16.gmra.mrb[0].mxu0 %v772
        %v3674 = vpop.f32.mrb[0].mxu0
        %v3675 = vadd.f32 %v3322, %v3674
        %v3676 = vpop.f32.mrb[0].mxu0
        %v3677 = vadd.f32 %v3324, %v3676
        %v3678 = vpop.f32.mrb[0].mxu0
        %v3679 = vadd.f32 %v3326, %v3678
        %v3680 = vpop.f32.mrb[0].mxu0
        %v3681 = vadd.f32 %v3328, %v3680
        %3682 = vmatprep.mubr.bf16.mxu0 %v778
        %3683 = vmatmul.mubr.bf16.gmra.mrb[0].mxu0 %v777
        %v3684 = vpop.f32.mrb[0].mxu0
        %v3685 = vadd.f32 %v3332, %v3684
        %v3686 = vpop.f32.mrb[0].mxu0
        %v3687 = vadd.f32 %v3334, %v3686
        %v3688 = vpop.f32.mrb[0].mxu0
        %v3689 = vadd.f32 %v3336, %v3688
        %v3690 = vpop.f32.mrb[0].mxu0
        %v3691 = vadd.f32 %v3338, %v3690
        %3692 = vmatprep.mubr.bf16.mxu0 %v783
        %3693 = vmatmul.mubr.bf16.gmra.mrb[0].mxu0 %v782
        %v3694 = vpop.f32.mrb[0].mxu0
        %v3695 = vadd.f32 %v3342, %v3694
        %v3696 = vpop.f32.mrb[0].mxu0
        %v3697 = vadd.f32 %v3344, %v3696
        %v3698 = vpop.f32.mrb[0].mxu0
        %v3699 = vadd.f32 %v3346, %v3698
        %v3700 = vpop.f32.mrb[0].mxu0
        %v3701 = vadd.f32 %v3348, %v3700
        %3702 = vdwg.mxu0
        %3703 = vmatprep.subr.bf16.mxu0 %v1933
        %3704 = vmatpush1.bf16.msra.mxu0 %v1930
        %3705 = vmatprep.subr.bf16.mxu0 0
        %3706 = vmatpush1.bf16.msra.mxu0 0
        %3707 = vmatprep.subr.bf16.mxu0 0
        %3708 = vmatpush1.bf16.msra.mxu0 0
        %3709 = vmatprep.subr.bf16.mxu0 0
        %3710 = vmatpush1.bf16.msra.mxu0 0
        %3711 = vmatprep.subr.bf16.mxu0 0
        %3712 = vmatpush1.bf16.msra.mxu0 0
        %3713 = vmatprep.subr.bf16.mxu0 0
        %3714 = vmatpush1.bf16.msra.mxu0 0
        %3715 = vmatprep.subr.bf16.mxu0 0
        %3716 = vmatpush1.bf16.msra.mxu0 0
        %3717 = vmatprep.subr.bf16.mxu0 0
        %3718 = vmatpush1.bf16.msra.mxu0 0
        %3719 = vmatprep.subr.bf16.mxu0 0
        %3720 = vmatpush1.bf16.msra.mxu0 0
        %3721 = vmatprep.subr.bf16.mxu0 0
        %3722 = vmatpush1.bf16.msra.mxu0 0
        %3723 = vmatprep.subr.bf16.mxu0 0
        %3724 = vmatpush1.bf16.msra.mxu0 0
        %3725 = vmatprep.subr.bf16.mxu0 0
        %3726 = vmatpush1.bf16.msra.mxu0 0
        %3727 = vmatprep.subr.bf16.mxu0 0
        %3728 = vmatpush1.bf16.msra.mxu0 0
        %3729 = vmatprep.subr.bf16.mxu0 0
        %3730 = vmatpush1.bf16.msra.mxu0 0
        %3731 = vmatprep.subr.bf16.mxu0 0
        %3732 = vmatpush1.bf16.msra.mxu0 0
        %3733 = vmatprep.subr.bf16.mxu0 0
        %3734 = vmatpush1.bf16.msra.mxu0 0
        %3735 = vmatprep.mubr.bf16.mxu0 0
        %3736 = vmatmul.mubr.bf16.gmra.mrb[0].mxu0 %v1827
        %v3737 = vpop.f32.mrb[0].mxu0
        %v3738 = vadd.f32 %v3385, %v3737
        %v3739 = vpop.f32.mrb[0].mxu0
        %v3740 = vadd.f32 %v3387, %v3739
        %v3741 = vpop.f32.mrb[0].mxu0
        %v3742 = vadd.f32 %v3389, %v3741
        %v3743 = vpop.f32.mrb[0].mxu0
        %v3744 = vadd.f32 %v3391, %v3743
        %3745 = vmatprep.mubr.bf16.mxu0 0
        %3746 = vmatmul.mubr.bf16.gmra.mrb[0].mxu0 %v1830
        %v3747 = vpop.f32.mrb[0].mxu0
        %v3748 = vadd.f32 %v3395, %v3747
        %v3749 = vpop.f32.mrb[0].mxu0
        %v3750 = vadd.f32 %v3397, %v3749
        %v3751 = vpop.f32.mrb[0].mxu0
        %v3752 = vadd.f32 %v3399, %v3751
        %v3753 = vpop.f32.mrb[0].mxu0
        %v3754 = vadd.f32 %v3401, %v3753
        %3755 = vmatprep.mubr.bf16.mxu0 0
        %3756 = vmatmul.mubr.bf16.gmra.mrb[0].mxu0 %v1833
        %v3757 = vpop.f32.mrb[0].mxu0
        %v3758 = vadd.f32 %v3405, %v3757
        %v3759 = vpop.f32.mrb[0].mxu0
        %v3760 = vadd.f32 %v3407, %v3759
        %v3761 = vpop.f32.mrb[0].mxu0
        %v3762 = vadd.f32 %v3409, %v3761
        %v3763 = vpop.f32.mrb[0].mxu0
        %v3764 = vadd.f32 %v3411, %v3763
        %3765 = vmatprep.mubr.bf16.mxu0 0
        %3766 = vmatmul.mubr.bf16.gmra.mrb[0].mxu0 %v1836
        %v3767 = vpop.f32.mrb[0].mxu0
        %v3768 = vadd.f32 %v3415, %v3767
        %v3769 = vpop.f32.mrb[0].mxu0
        %v3770 = vadd.f32 %v3417, %v3769
        %v3771 = vpop.f32.mrb[0].mxu0
        %v3772 = vadd.f32 %v3419, %v3771
        %v3773 = vpop.f32.mrb[0].mxu0
        %v3774 = vadd.f32 %v3421, %v3773
        %3775 = vmatprep.mubr.bf16.mxu0 0
        %3776 = vmatmul.mubr.bf16.gmra.mrb[0].mxu0 %v1839
        %v3777 = vpop.f32.mrb[0].mxu0
        %v3778 = vadd.f32 %v3425, %v3777
        %v3779 = vpop.f32.mrb[0].mxu0
        %v3780 = vadd.f32 %v3427, %v3779
        %v3781 = vpop.f32.mrb[0].mxu0
        %v3782 = vadd.f32 %v3429, %v3781
        %v3783 = vpop.f32.mrb[0].mxu0
        %v3784 = vadd.f32 %v3431, %v3783
        %3785 = vmatprep.mubr.bf16.mxu0 0
        %3786 = vmatmul.mubr.bf16.gmra.mrb[0].mxu0 %v1842
        %v3787 = vpop.f32.mrb[0].mxu0
        %v3788 = vadd.f32 %v3435, %v3787
        %v3789 = vpop.f32.mrb[0].mxu0
        %v3790 = vadd.f32 %v3437, %v3789
        %v3791 = vpop.f32.mrb[0].mxu0
        %v3792 = vadd.f32 %v3439, %v3791
        %v3793 = vpop.f32.mrb[0].mxu0
        %v3794 = vadd.f32 %v3441, %v3793
        %3795 = vmatprep.mubr.bf16.mxu0 0
        %3796 = vmatmul.mubr.bf16.gmra.mrb[0].mxu0 %v1845
        %v3797 = vpop.f32.mrb[0].mxu0
        %v3798 = vadd.f32 %v3445, %v3797
        %v3799 = vpop.f32.mrb[0].mxu0
        %v3800 = vadd.f32 %v3447, %v3799
        %v3801 = vpop.f32.mrb[0].mxu0
        %v3802 = vadd.f32 %v3449, %v3801
        %v3803 = vpop.f32.mrb[0].mxu0
        %v3804 = vadd.f32 %v3451, %v3803
        %3805 = vmatprep.mubr.bf16.mxu0 0
        %3806 = vmatmul.mubr.bf16.gmra.mrb[0].mxu0 %v1848
        %v3807 = vpop.f32.mrb[0].mxu0
        %v3808 = vadd.f32 %v3455, %v3807
        %v3809 = vpop.f32.mrb[0].mxu0
        %v3810 = vadd.f32 %v3457, %v3809
        %v3811 = vpop.f32.mrb[0].mxu0
        %v3812 = vadd.f32 %v3459, %v3811
        %v3813 = vpop.f32.mrb[0].mxu0
        %v3814 = vadd.f32 %v3461, %v3813
        %3815 = vmatprep.mubr.bf16.mxu0 0
        %3816 = vmatmul.mubr.bf16.gmra.mrb[0].mxu0 %v1851
        %v3817 = vpop.f32.mrb[0].mxu0
        %v3818 = vadd.f32 %v3465, %v3817
        %v3819 = vpop.f32.mrb[0].mxu0
        %v3820 = vadd.f32 %v3467, %v3819
        %v3821 = vpop.f32.mrb[0].mxu0
        %v3822 = vadd.f32 %v3469, %v3821
        %v3823 = vpop.f32.mrb[0].mxu0
        %v3824 = vadd.f32 %v3471, %v3823
        %3825 = vmatprep.mubr.bf16.mxu0 0
        %3826 = vmatmul.mubr.bf16.gmra.mrb[0].mxu0 %v1854
        %v3827 = vpop.f32.mrb[0].mxu0
        %v3828 = vadd.f32 %v3475, %v3827
        %v3829 = vpop.f32.mrb[0].mxu0
        %v3830 = vadd.f32 %v3477, %v3829
        %v3831 = vpop.f32.mrb[0].mxu0
        %v3832 = vadd.f32 %v3479, %v3831
        %v3833 = vpop.f32.mrb[0].mxu0
        %v3834 = vadd.f32 %v3481, %v3833
        %3835 = vmatprep.mubr.bf16.mxu0 0
        %3836 = vmatmul.mubr.bf16.gmra.mrb[0].mxu0 %v1857
        %v3837 = vpop.f32.mrb[0].mxu0
        %v3838 = vadd.f32 %v3485, %v3837
        %v3839 = vpop.f32.mrb[0].mxu0
        %v3840 = vadd.f32 %v3487, %v3839
        %v3841 = vpop.f32.mrb[0].mxu0
        %v3842 = vadd.f32 %v3489, %v3841
        %v3843 = vpop.f32.mrb[0].mxu0
        %v3844 = vadd.f32 %v3491, %v3843
        %3845 = vmatprep.mubr.bf16.mxu0 0
        %3846 = vmatmul.mubr.bf16.gmra.mrb[0].mxu0 %v1860
        %v3847 = vpop.f32.mrb[0].mxu0
        %v3848 = vadd.f32 %v3495, %v3847
        %v3849 = vpop.f32.mrb[0].mxu0
        %v3850 = vadd.f32 %v3497, %v3849
        %v3851 = vpop.f32.mrb[0].mxu0
        %v3852 = vadd.f32 %v3499, %v3851
        %v3853 = vpop.f32.mrb[0].mxu0
        %v3854 = vadd.f32 %v3501, %v3853
        %3855 = vmatprep.mubr.bf16.mxu0 0
        %3856 = vmatmul.mubr.bf16.gmra.mrb[0].mxu0 %v1863
        %v3857 = vpop.f32.mrb[0].mxu0
        %v3858 = vadd.f32 %v3505, %v3857
        %v3859 = vpop.f32.mrb[0].mxu0
        %v3860 = vadd.f32 %v3507, %v3859
        %v3861 = vpop.f32.mrb[0].mxu0
        %v3862 = vadd.f32 %v3509, %v3861
        %v3863 = vpop.f32.mrb[0].mxu0
        %v3864 = vadd.f32 %v3511, %v3863
        %3865 = vmatprep.mubr.bf16.mxu0 0
        %3866 = vmatmul.mubr.bf16.gmra.mrb[0].mxu0 %v1866
        %v3867 = vpop.f32.mrb[0].mxu0
        %v3868 = vadd.f32 %v3515, %v3867
        %v3869 = vpop.f32.mrb[0].mxu0
        %v3870 = vadd.f32 %v3517, %v3869
        %v3871 = vpop.f32.mrb[0].mxu0
        %v3872 = vadd.f32 %v3519, %v3871
        %v3873 = vpop.f32.mrb[0].mxu0
        %v3874 = vadd.f32 %v3521, %v3873
        %3875 = vmatprep.mubr.bf16.mxu0 0
        %3876 = vmatmul.mubr.bf16.gmra.mrb[0].mxu0 %v1869
        %v3877 = vpop.f32.mrb[0].mxu0
        %v3878 = vadd.f32 %v3525, %v3877
        %v3879 = vpop.f32.mrb[0].mxu0
        %v3880 = vadd.f32 %v3527, %v3879
        %v3881 = vpop.f32.mrb[0].mxu0
        %v3882 = vadd.f32 %v3529, %v3881
        %v3883 = vpop.f32.mrb[0].mxu0
        %v3884 = vadd.f32 %v3531, %v3883
        %3885 = vmatprep.mubr.bf16.mxu0 0
        %3886 = vmatmul.mubr.bf16.gmra.mrb[0].mxu0 %v1872
        %v3887 = vpop.f32.mrb[0].mxu0
        %v3888 = vadd.f32 %v3535, %v3887
        %v3889 = vpop.f32.mrb[0].mxu0
        %v3890 = vadd.f32 %v3537, %v3889
        %v3891 = vpop.f32.mrb[0].mxu0
        %v3892 = vadd.f32 %v3539, %v3891
        %v3893 = vpop.f32.mrb[0].mxu0
        %v3894 = vadd.f32 %v3541, %v3893
        %3895 = vmatprep.mubr.bf16.mxu0 0
        %3896 = vmatmul.mubr.bf16.gmra.mrb[0].mxu0 %v1875
        %v3897 = vpop.f32.mrb[0].mxu0
        %v3898 = vadd.f32 %v3545, %v3897
        %v3899 = vpop.f32.mrb[0].mxu0
        %v3900 = vadd.f32 %v3547, %v3899
        %v3901 = vpop.f32.mrb[0].mxu0
        %v3902 = vadd.f32 %v3549, %v3901
        %v3903 = vpop.f32.mrb[0].mxu0
        %v3904 = vadd.f32 %v3551, %v3903
        %3905 = vmatprep.mubr.bf16.mxu0 0
        %3906 = vmatmul.mubr.bf16.gmra.mrb[0].mxu0 %v1878
        %v3907 = vpop.f32.mrb[0].mxu0
        %v3908 = vadd.f32 %v3555, %v3907
        %v3909 = vpop.f32.mrb[0].mxu0
        %v3910 = vadd.f32 %v3557, %v3909
        %v3911 = vpop.f32.mrb[0].mxu0
        %v3912 = vadd.f32 %v3559, %v3911
        %v3913 = vpop.f32.mrb[0].mxu0
        %v3914 = vadd.f32 %v3561, %v3913
        %3915 = vmatprep.mubr.bf16.mxu0 0
        %3916 = vmatmul.mubr.bf16.gmra.mrb[0].mxu0 %v1881
        %v3917 = vpop.f32.mrb[0].mxu0
        %v3918 = vadd.f32 %v3565, %v3917
        %v3919 = vpop.f32.mrb[0].mxu0
        %v3920 = vadd.f32 %v3567, %v3919
        %v3921 = vpop.f32.mrb[0].mxu0
        %v3922 = vadd.f32 %v3569, %v3921
        %v3923 = vpop.f32.mrb[0].mxu0
        %v3924 = vadd.f32 %v3571, %v3923
        %3925 = vmatprep.mubr.bf16.mxu0 0
        %3926 = vmatmul.mubr.bf16.gmra.mrb[0].mxu0 %v1884
        %v3927 = vpop.f32.mrb[0].mxu0
        %v3928 = vadd.f32 %v3575, %v3927
        %v3929 = vpop.f32.mrb[0].mxu0
        %v3930 = vadd.f32 %v3577, %v3929
        %v3931 = vpop.f32.mrb[0].mxu0
        %v3932 = vadd.f32 %v3579, %v3931
        %v3933 = vpop.f32.mrb[0].mxu0
        %v3934 = vadd.f32 %v3581, %v3933
        %3935 = vmatprep.mubr.bf16.mxu0 0
        %3936 = vmatmul.mubr.bf16.gmra.mrb[0].mxu0 %v1887
        %v3937 = vpop.f32.mrb[0].mxu0
        %v3938 = vadd.f32 %v3585, %v3937
        %v3939 = vpop.f32.mrb[0].mxu0
        %v3940 = vadd.f32 %v3587, %v3939
        %v3941 = vpop.f32.mrb[0].mxu0
        %v3942 = vadd.f32 %v3589, %v3941
        %v3943 = vpop.f32.mrb[0].mxu0
        %v3944 = vadd.f32 %v3591, %v3943
        %3945 = vmatprep.mubr.bf16.mxu0 0
        %3946 = vmatmul.mubr.bf16.gmra.mrb[0].mxu0 %v1890
        %v3947 = vpop.f32.mrb[0].mxu0
        %v3948 = vadd.f32 %v3595, %v3947
        %v3949 = vpop.f32.mrb[0].mxu0
        %v3950 = vadd.f32 %v3597, %v3949
        %v3951 = vpop.f32.mrb[0].mxu0
        %v3952 = vadd.f32 %v3599, %v3951
        %v3953 = vpop.f32.mrb[0].mxu0
        %v3954 = vadd.f32 %v3601, %v3953
        %3955 = vmatprep.mubr.bf16.mxu0 0
        %3956 = vmatmul.mubr.bf16.gmra.mrb[0].mxu0 %v1893
        %v3957 = vpop.f32.mrb[0].mxu0
        %v3958 = vadd.f32 %v3605, %v3957
        %v3959 = vpop.f32.mrb[0].mxu0
        %v3960 = vadd.f32 %v3607, %v3959
        %v3961 = vpop.f32.mrb[0].mxu0
        %v3962 = vadd.f32 %v3609, %v3961
        %v3963 = vpop.f32.mrb[0].mxu0
        %v3964 = vadd.f32 %v3611, %v3963
        %3965 = vmatprep.mubr.bf16.mxu0 0
        %3966 = vmatmul.mubr.bf16.gmra.mrb[0].mxu0 %v1896
        %v3967 = vpop.f32.mrb[0].mxu0
        %v3968 = vadd.f32 %v3615, %v3967
        %v3969 = vpop.f32.mrb[0].mxu0
        %v3970 = vadd.f32 %v3617, %v3969
        %v3971 = vpop.f32.mrb[0].mxu0
        %v3972 = vadd.f32 %v3619, %v3971
        %v3973 = vpop.f32.mrb[0].mxu0
        %v3974 = vadd.f32 %v3621, %v3973
        %3975 = vmatprep.mubr.bf16.mxu0 0
        %3976 = vmatmul.mubr.bf16.gmra.mrb[0].mxu0 %v1899
        %v3977 = vpop.f32.mrb[0].mxu0
        %v3978 = vadd.f32 %v3625, %v3977
        %v3979 = vpop.f32.mrb[0].mxu0
        %v3980 = vadd.f32 %v3627, %v3979
        %v3981 = vpop.f32.mrb[0].mxu0
        %v3982 = vadd.f32 %v3629, %v3981
        %v3983 = vpop.f32.mrb[0].mxu0
        %v3984 = vadd.f32 %v3631, %v3983
        %3985 = vmatprep.mubr.bf16.mxu0 0
        %3986 = vmatmul.mubr.bf16.gmra.mrb[0].mxu0 %v1902
        %v3987 = vpop.f32.mrb[0].mxu0
        %v3988 = vadd.f32 %v3635, %v3987
        %v3989 = vpop.f32.mrb[0].mxu0
        %v3990 = vadd.f32 %v3637, %v3989
        %v3991 = vpop.f32.mrb[0].mxu0
        %v3992 = vadd.f32 %v3639, %v3991
        %v3993 = vpop.f32.mrb[0].mxu0
        %v3994 = vadd.f32 %v3641, %v3993
        %3995 = vmatprep.mubr.bf16.mxu0 0
        %3996 = vmatmul.mubr.bf16.gmra.mrb[0].mxu0 %v1905
        %v3997 = vpop.f32.mrb[0].mxu0
        %v3998 = vadd.f32 %v3645, %v3997
        %v3999 = vpop.f32.mrb[0].mxu0
        %v4000 = vadd.f32 %v3647, %v3999
        %v4001 = vpop.f32.mrb[0].mxu0
        %v4002 = vadd.f32 %v3649, %v4001
        %v4003 = vpop.f32.mrb[0].mxu0
        %v4004 = vadd.f32 %v3651, %v4003
        %4005 = vmatprep.mubr.bf16.mxu0 0
        %4006 = vmatmul.mubr.bf16.gmra.mrb[0].mxu0 %v1908
        %v4007 = vpop.f32.mrb[0].mxu0
        %v4008 = vadd.f32 %v3655, %v4007
        %v4009 = vpop.f32.mrb[0].mxu0
        %v4010 = vadd.f32 %v3657, %v4009
        %v4011 = vpop.f32.mrb[0].mxu0
        %v4012 = vadd.f32 %v3659, %v4011
        %v4013 = vpop.f32.mrb[0].mxu0
        %v4014 = vadd.f32 %v3661, %v4013
        %4015 = vmatprep.mubr.bf16.mxu0 0
        %4016 = vmatmul.mubr.bf16.gmra.mrb[0].mxu0 %v1911
        %v4017 = vpop.f32.mrb[0].mxu0
        %v4018 = vadd.f32 %v3665, %v4017
        %v4019 = vpop.f32.mrb[0].mxu0
        %v4020 = vadd.f32 %v3667, %v4019
        %v4021 = vpop.f32.mrb[0].mxu0
        %v4022 = vadd.f32 %v3669, %v4021
        %v4023 = vpop.f32.mrb[0].mxu0
        %v4024 = vadd.f32 %v3671, %v4023
        %4025 = vmatprep.mubr.bf16.mxu0 0
        %4026 = vmatmul.mubr.bf16.gmra.mrb[0].mxu0 %v1914
        %v4027 = vpop.f32.mrb[0].mxu0
        %v4028 = vadd.f32 %v3675, %v4027
        %v4029 = vpop.f32.mrb[0].mxu0
        %v4030 = vadd.f32 %v3677, %v4029
        %v4031 = vpop.f32.mrb[0].mxu0
        %v4032 = vadd.f32 %v3679, %v4031
        %v4033 = vpop.f32.mrb[0].mxu0
        %v4034 = vadd.f32 %v3681, %v4033
        %4035 = vmatprep.mubr.bf16.mxu0 0
        %4036 = vmatmul.mubr.bf16.gmra.mrb[0].mxu0 %v1917
        %v4037 = vpop.f32.mrb[0].mxu0
        %v4038 = vadd.f32 %v3685, %v4037
        %v4039 = vpop.f32.mrb[0].mxu0
        %v4040 = vadd.f32 %v3687, %v4039
        %v4041 = vpop.f32.mrb[0].mxu0
        %v4042 = vadd.f32 %v3689, %v4041
        %v4043 = vpop.f32.mrb[0].mxu0
        %v4044 = vadd.f32 %v3691, %v4043
        %4045 = vmatprep.mubr.bf16.mxu0 0
        %4046 = vmatmul.mubr.bf16.gmra.mrb[0].mxu0 %v1920
        %v4047 = vpop.f32.mrb[0].mxu0
        %v4048 = vadd.f32 %v3695, %v4047
        %v4049 = vpop.f32.mrb[0].mxu0
        %v4050 = vadd.f32 %v3697, %v4049
        %v4051 = vpop.f32.mrb[0].mxu0
        %v4052 = vadd.f32 %v3699, %v4051
        %v4053 = vpop.f32.mrb[0].mxu0
        %v4054 = vadd.f32 %v3701, %v4053
        %4055 = vdwg.mxu0
        %4056 = vmatprep.subr.bf16.mxu0 0
        %4057 = vmatpush1.bf16.msra.mxu0 %v1504
        %4058 = vmatprep.subr.bf16.mxu0 0
        %4059 = vmatpush1.bf16.msra.mxu0 %v1509
        %4060 = vmatprep.subr.bf16.mxu0 0
        %4061 = vmatpush1.bf16.msra.mxu0 %v1514
        %4062 = vmatprep.subr.bf16.mxu0 0
        %4063 = vmatpush1.bf16.msra.mxu0 %v1519
        %4064 = vmatprep.subr.bf16.mxu0 0
        %4065 = vmatpush1.bf16.msra.mxu0 %v1524
        %4066 = vmatprep.subr.bf16.mxu0 0
        %4067 = vmatpush1.bf16.msra.mxu0 %v1529
        %4068 = vmatprep.subr.bf16.mxu0 0
        %4069 = vmatpush1.bf16.msra.mxu0 %v1534
        %4070 = vmatprep.subr.bf16.mxu0 0
        %4071 = vmatpush1.bf16.msra.mxu0 %v1539
        %4072 = vmatprep.subr.bf16.mxu0 0
        %4073 = vmatpush1.bf16.msra.mxu0 %v1544
        %4074 = vmatprep.subr.bf16.mxu0 0
        %4075 = vmatpush1.bf16.msra.mxu0 %v1549
        %4076 = vmatprep.subr.bf16.mxu0 0
        %4077 = vmatpush1.bf16.msra.mxu0 %v1554
        %4078 = vmatprep.subr.bf16.mxu0 0
        %4079 = vmatpush1.bf16.msra.mxu0 %v1559
        %4080 = vmatprep.subr.bf16.mxu0 0
        %4081 = vmatpush1.bf16.msra.mxu0 %v1564
        %4082 = vmatprep.subr.bf16.mxu0 0
        %4083 = vmatpush1.bf16.msra.mxu0 %v1569
        %4084 = vmatprep.subr.bf16.mxu0 0
        %4085 = vmatpush1.bf16.msra.mxu0 %v1574
        %4086 = vmatprep.subr.bf16.mxu0 0
        %4087 = vmatpush1.bf16.msra.mxu0 %v1579
        %4088 = vmatprep.mubr.bf16.mxu0 %v626
        %4089 = vmatmul.mubr.bf16.gmra.mrb[0].mxu0 %v625
        %v4090 = vpop.f32.mrb[0].mxu0
        %v4091 = vadd.f32 0.0, %v4090
        %v4092 = vpop.f32.mrb[0].mxu0
        %v4093 = vpop.f32.mrb[0].mxu0
        %v4094 = vadd.f32 0.0, %v4093
        %v4095 = vpop.f32.mrb[0].mxu0
        %4096 = vmatprep.mubr.bf16.mxu0 %v631
        %4097 = vmatmul.mubr.bf16.gmra.mrb[0].mxu0 %v630
        %v4098 = vpop.f32.mrb[0].mxu0
        %v4099 = vadd.f32 0.0, %v4098
        %v4100 = vpop.f32.mrb[0].mxu0
        %v4101 = vpop.f32.mrb[0].mxu0
        %v4102 = vadd.f32 0.0, %v4101
        %v4103 = vpop.f32.mrb[0].mxu0
        %4104 = vmatprep.mubr.bf16.mxu0 %v636
        %4105 = vmatmul.mubr.bf16.gmra.mrb[0].mxu0 %v635
        %v4106 = vpop.f32.mrb[0].mxu0
        %v4107 = vadd.f32 0.0, %v4106
        %v4108 = vpop.f32.mrb[0].mxu0
        %v4109 = vpop.f32.mrb[0].mxu0
        %v4110 = vadd.f32 0.0, %v4109
        %v4111 = vpop.f32.mrb[0].mxu0
        %4112 = vmatprep.mubr.bf16.mxu0 %v641
        %4113 = vmatmul.mubr.bf16.gmra.mrb[0].mxu0 %v640
        %v4114 = vpop.f32.mrb[0].mxu0
        %v4115 = vadd.f32 0.0, %v4114
        %v4116 = vpop.f32.mrb[0].mxu0
        %v4117 = vpop.f32.mrb[0].mxu0
        %v4118 = vadd.f32 0.0, %v4117
        %v4119 = vpop.f32.mrb[0].mxu0
        %4120 = vmatprep.mubr.bf16.mxu0 %v646
        %4121 = vmatmul.mubr.bf16.gmra.mrb[0].mxu0 %v645
        %v4122 = vpop.f32.mrb[0].mxu0
        %v4123 = vadd.f32 0.0, %v4122
        %v4124 = vpop.f32.mrb[0].mxu0
        %v4125 = vpop.f32.mrb[0].mxu0
        %v4126 = vadd.f32 0.0, %v4125
        %v4127 = vpop.f32.mrb[0].mxu0
        %4128 = vmatprep.mubr.bf16.mxu0 %v651
        %4129 = vmatmul.mubr.bf16.gmra.mrb[0].mxu0 %v650
        %v4130 = vpop.f32.mrb[0].mxu0
        %v4131 = vadd.f32 0.0, %v4130
        %v4132 = vpop.f32.mrb[0].mxu0
        %v4133 = vpop.f32.mrb[0].mxu0
        %v4134 = vadd.f32 0.0, %v4133
        %v4135 = vpop.f32.mrb[0].mxu0
        %4136 = vmatprep.mubr.bf16.mxu0 %v656
        %4137 = vmatmul.mubr.bf16.gmra.mrb[0].mxu0 %v655
        %v4138 = vpop.f32.mrb[0].mxu0
        %v4139 = vadd.f32 0.0, %v4138
        %v4140 = vpop.f32.mrb[0].mxu0
        %v4141 = vpop.f32.mrb[0].mxu0
        %v4142 = vadd.f32 0.0, %v4141
        %v4143 = vpop.f32.mrb[0].mxu0
        %4144 = vmatprep.mubr.bf16.mxu0 %v661
        %4145 = vmatmul.mubr.bf16.gmra.mrb[0].mxu0 %v660
        %v4146 = vpop.f32.mrb[0].mxu0
        %v4147 = vadd.f32 0.0, %v4146
        %v4148 = vpop.f32.mrb[0].mxu0
        %v4149 = vpop.f32.mrb[0].mxu0
        %v4150 = vadd.f32 0.0, %v4149
        %v4151 = vpop.f32.mrb[0].mxu0
        %4152 = vmatprep.mubr.bf16.mxu0 %v666
        %4153 = vmatmul.mubr.bf16.gmra.mrb[0].mxu0 %v665
        %v4154 = vpop.f32.mrb[0].mxu0
        %v4155 = vadd.f32 0.0, %v4154
        %v4156 = vpop.f32.mrb[0].mxu0
        %v4157 = vpop.f32.mrb[0].mxu0
        %v4158 = vadd.f32 0.0, %v4157
        %v4159 = vpop.f32.mrb[0].mxu0
        %4160 = vmatprep.mubr.bf16.mxu0 %v671
        %4161 = vmatmul.mubr.bf16.gmra.mrb[0].mxu0 %v670
        %v4162 = vpop.f32.mrb[0].mxu0
        %v4163 = vadd.f32 0.0, %v4162
        %v4164 = vpop.f32.mrb[0].mxu0
        %v4165 = vpop.f32.mrb[0].mxu0
        %v4166 = vadd.f32 0.0, %v4165
        %v4167 = vpop.f32.mrb[0].mxu0
        %4168 = vmatprep.mubr.bf16.mxu0 %v676
        %4169 = vmatmul.mubr.bf16.gmra.mrb[0].mxu0 %v675
        %v4170 = vpop.f32.mrb[0].mxu0
        %v4171 = vadd.f32 0.0, %v4170
        %v4172 = vpop.f32.mrb[0].mxu0
        %v4173 = vpop.f32.mrb[0].mxu0
        %v4174 = vadd.f32 0.0, %v4173
        %v4175 = vpop.f32.mrb[0].mxu0
        %4176 = vmatprep.mubr.bf16.mxu0 %v681
        %4177 = vmatmul.mubr.bf16.gmra.mrb[0].mxu0 %v680
        %v4178 = vpop.f32.mrb[0].mxu0
        %v4179 = vadd.f32 0.0, %v4178
        %v4180 = vpop.f32.mrb[0].mxu0
        %v4181 = vpop.f32.mrb[0].mxu0
        %v4182 = vadd.f32 0.0, %v4181
        %v4183 = vpop.f32.mrb[0].mxu0
        %4184 = vmatprep.mubr.bf16.mxu0 %v686
        %4185 = vmatmul.mubr.bf16.gmra.mrb[0].mxu0 %v685
        %v4186 = vpop.f32.mrb[0].mxu0
        %v4187 = vadd.f32 0.0, %v4186
        %v4188 = vpop.f32.mrb[0].mxu0
        %v4189 = vpop.f32.mrb[0].mxu0
        %v4190 = vadd.f32 0.0, %v4189
        %v4191 = vpop.f32.mrb[0].mxu0
        %4192 = vmatprep.mubr.bf16.mxu0 %v691
        %4193 = vmatmul.mubr.bf16.gmra.mrb[0].mxu0 %v690
        %v4194 = vpop.f32.mrb[0].mxu0
        %v4195 = vadd.f32 0.0, %v4194
        %v4196 = vpop.f32.mrb[0].mxu0
        %v4197 = vpop.f32.mrb[0].mxu0
        %v4198 = vadd.f32 0.0, %v4197
        %v4199 = vpop.f32.mrb[0].mxu0
        %4200 = vmatprep.mubr.bf16.mxu0 %v696
        %4201 = vmatmul.mubr.bf16.gmra.mrb[0].mxu0 %v695
        %v4202 = vpop.f32.mrb[0].mxu0
        %v4203 = vadd.f32 0.0, %v4202
        %v4204 = vpop.f32.mrb[0].mxu0
        %v4205 = vpop.f32.mrb[0].mxu0
        %v4206 = vadd.f32 0.0, %v4205
        %v4207 = vpop.f32.mrb[0].mxu0
        %4208 = vmatprep.mubr.bf16.mxu0 %v701
        %4209 = vmatmul.mubr.bf16.gmra.mrb[0].mxu0 %v700
        %v4210 = vpop.f32.mrb[0].mxu0
        %v4211 = vadd.f32 0.0, %v4210
        %v4212 = vpop.f32.mrb[0].mxu0
        %v4213 = vpop.f32.mrb[0].mxu0
        %v4214 = vadd.f32 0.0, %v4213
        %v4215 = vpop.f32.mrb[0].mxu0
        %4216 = vmatprep.mubr.bf16.mxu0 %v706
        %4217 = vmatmul.mubr.bf16.gmra.mrb[0].mxu0 %v705
        %v4218 = vpop.f32.mrb[0].mxu0
        %v4219 = vadd.f32 0.0, %v4218
        %v4220 = vpop.f32.mrb[0].mxu0
        %v4221 = vpop.f32.mrb[0].mxu0
        %v4222 = vadd.f32 0.0, %v4221
        %v4223 = vpop.f32.mrb[0].mxu0
        %4224 = vmatprep.mubr.bf16.mxu0 %v711
        %4225 = vmatmul.mubr.bf16.gmra.mrb[0].mxu0 %v710
        %v4226 = vpop.f32.mrb[0].mxu0
        %v4227 = vadd.f32 0.0, %v4226
        %v4228 = vpop.f32.mrb[0].mxu0
        %v4229 = vpop.f32.mrb[0].mxu0
        %v4230 = vadd.f32 0.0, %v4229
        %v4231 = vpop.f32.mrb[0].mxu0
        %4232 = vmatprep.mubr.bf16.mxu0 %v716
        %4233 = vmatmul.mubr.bf16.gmra.mrb[0].mxu0 %v715
        %v4234 = vpop.f32.mrb[0].mxu0
        %v4235 = vadd.f32 0.0, %v4234
        %v4236 = vpop.f32.mrb[0].mxu0
        %v4237 = vpop.f32.mrb[0].mxu0
        %v4238 = vadd.f32 0.0, %v4237
        %v4239 = vpop.f32.mrb[0].mxu0
        %4240 = vmatprep.mubr.bf16.mxu0 %v721
        %4241 = vmatmul.mubr.bf16.gmra.mrb[0].mxu0 %v720
        %v4242 = vpop.f32.mrb[0].mxu0
        %v4243 = vadd.f32 0.0, %v4242
        %v4244 = vpop.f32.mrb[0].mxu0
        %v4245 = vpop.f32.mrb[0].mxu0
        %v4246 = vadd.f32 0.0, %v4245
        %v4247 = vpop.f32.mrb[0].mxu0
        %4248 = vmatprep.mubr.bf16.mxu0 %v726
        %4249 = vmatmul.mubr.bf16.gmra.mrb[0].mxu0 %v725
        %v4250 = vpop.f32.mrb[0].mxu0
        %v4251 = vadd.f32 0.0, %v4250
        %v4252 = vpop.f32.mrb[0].mxu0
        %v4253 = vpop.f32.mrb[0].mxu0
        %v4254 = vadd.f32 0.0, %v4253
        %v4255 = vpop.f32.mrb[0].mxu0
        %4256 = vmatprep.mubr.bf16.mxu0 %v731
        %4257 = vmatmul.mubr.bf16.gmra.mrb[0].mxu0 %v730
        %v4258 = vpop.f32.mrb[0].mxu0
        %v4259 = vadd.f32 0.0, %v4258
        %v4260 = vpop.f32.mrb[0].mxu0
        %v4261 = vpop.f32.mrb[0].mxu0
        %v4262 = vadd.f32 0.0, %v4261
        %v4263 = vpop.f32.mrb[0].mxu0
        %4264 = vmatprep.mubr.bf16.mxu0 %v736
        %4265 = vmatmul.mubr.bf16.gmra.mrb[0].mxu0 %v735
        %v4266 = vpop.f32.mrb[0].mxu0
        %v4267 = vadd.f32 0.0, %v4266
        %v4268 = vpop.f32.mrb[0].mxu0
        %v4269 = vpop.f32.mrb[0].mxu0
        %v4270 = vadd.f32 0.0, %v4269
        %v4271 = vpop.f32.mrb[0].mxu0
        %4272 = vmatprep.mubr.bf16.mxu0 %v741
        %4273 = vmatmul.mubr.bf16.gmra.mrb[0].mxu0 %v740
        %v4274 = vpop.f32.mrb[0].mxu0
        %v4275 = vadd.f32 0.0, %v4274
        %v4276 = vpop.f32.mrb[0].mxu0
        %v4277 = vpop.f32.mrb[0].mxu0
        %v4278 = vadd.f32 0.0, %v4277
        %v4279 = vpop.f32.mrb[0].mxu0
        %4280 = vmatprep.mubr.bf16.mxu0 %v746
        %4281 = vmatmul.mubr.bf16.gmra.mrb[0].mxu0 %v745
        %v4282 = vpop.f32.mrb[0].mxu0
        %v4283 = vadd.f32 0.0, %v4282
        %v4284 = vpop.f32.mrb[0].mxu0
        %v4285 = vpop.f32.mrb[0].mxu0
        %v4286 = vadd.f32 0.0, %v4285
        %v4287 = vpop.f32.mrb[0].mxu0
        %4288 = vmatprep.mubr.bf16.mxu0 %v751
        %4289 = vmatmul.mubr.bf16.gmra.mrb[0].mxu0 %v750
        %v4290 = vpop.f32.mrb[0].mxu0
        %v4291 = vadd.f32 0.0, %v4290
        %v4292 = vpop.f32.mrb[0].mxu0
        %v4293 = vpop.f32.mrb[0].mxu0
        %v4294 = vadd.f32 0.0, %v4293
        %v4295 = vpop.f32.mrb[0].mxu0
        %4296 = vmatprep.mubr.bf16.mxu0 %v756
        %4297 = vmatmul.mubr.bf16.gmra.mrb[0].mxu0 %v755
        %v4298 = vpop.f32.mrb[0].mxu0
        %v4299 = vadd.f32 0.0, %v4298
        %v4300 = vpop.f32.mrb[0].mxu0
        %v4301 = vpop.f32.mrb[0].mxu0
        %v4302 = vadd.f32 0.0, %v4301
        %v4303 = vpop.f32.mrb[0].mxu0
        %4304 = vmatprep.mubr.bf16.mxu0 %v761
        %4305 = vmatmul.mubr.bf16.gmra.mrb[0].mxu0 %v760
        %v4306 = vpop.f32.mrb[0].mxu0
        %v4307 = vadd.f32 0.0, %v4306
        %v4308 = vpop.f32.mrb[0].mxu0
        %v4309 = vpop.f32.mrb[0].mxu0
        %v4310 = vadd.f32 0.0, %v4309
        %v4311 = vpop.f32.mrb[0].mxu0
        %4312 = vmatprep.mubr.bf16.mxu0 %v766
        %4313 = vmatmul.mubr.bf16.gmra.mrb[0].mxu0 %v765
        %v4314 = vpop.f32.mrb[0].mxu0
        %v4315 = vadd.f32 0.0, %v4314
        %v4316 = vpop.f32.mrb[0].mxu0
        %v4317 = vpop.f32.mrb[0].mxu0
        %v4318 = vadd.f32 0.0, %v4317
        %v4319 = vpop.f32.mrb[0].mxu0
        %4320 = vmatprep.mubr.bf16.mxu0 %v771
        %4321 = vmatmul.mubr.bf16.gmra.mrb[0].mxu0 %v770
        %v4322 = vpop.f32.mrb[0].mxu0
        %v4323 = vadd.f32 0.0, %v4322
        %v4324 = vpop.f32.mrb[0].mxu0
        %v4325 = vpop.f32.mrb[0].mxu0
        %v4326 = vadd.f32 0.0, %v4325
        %v4327 = vpop.f32.mrb[0].mxu0
        %4328 = vmatprep.mubr.bf16.mxu0 %v776
        %4329 = vmatmul.mubr.bf16.gmra.mrb[0].mxu0 %v775
        %v4330 = vpop.f32.mrb[0].mxu0
        %v4331 = vadd.f32 0.0, %v4330
        %v4332 = vpop.f32.mrb[0].mxu0
        %v4333 = vpop.f32.mrb[0].mxu0
        %v4334 = vadd.f32 0.0, %v4333
        %v4335 = vpop.f32.mrb[0].mxu0
        %4336 = vmatprep.mubr.bf16.mxu0 %v781
        %4337 = vmatmul.mubr.bf16.gmra.mrb[0].mxu0 %v780
        %v4338 = vpop.f32.mrb[0].mxu0
        %v4339 = vadd.f32 0.0, %v4338
        %v4340 = vpop.f32.mrb[0].mxu0
        %v4341 = vpop.f32.mrb[0].mxu0
        %v4342 = vadd.f32 0.0, %v4341
        %v4343 = vpop.f32.mrb[0].mxu0
        %4344 = vdwg.mxu0
        %4345 = vmatprep.subr.bf16.mxu0 0
        %4346 = vmatpush1.bf16.msra.mxu0 %v1584
        %4347 = vmatprep.subr.bf16.mxu0 0
        %4348 = vmatpush1.bf16.msra.mxu0 %v1589
        %4349 = vmatprep.subr.bf16.mxu0 0
        %4350 = vmatpush1.bf16.msra.mxu0 %v1594
        %4351 = vmatprep.subr.bf16.mxu0 0
        %4352 = vmatpush1.bf16.msra.mxu0 %v1599
        %4353 = vmatprep.subr.bf16.mxu0 0
        %4354 = vmatpush1.bf16.msra.mxu0 %v1604
        %4355 = vmatprep.subr.bf16.mxu0 0
        %4356 = vmatpush1.bf16.msra.mxu0 %v1609
        %4357 = vmatprep.subr.bf16.mxu0 0
        %4358 = vmatpush1.bf16.msra.mxu0 %v1614
        %4359 = vmatprep.subr.bf16.mxu0 0
        %4360 = vmatpush1.bf16.msra.mxu0 %v1619
        %4361 = vmatprep.subr.bf16.mxu0 0
        %4362 = vmatpush1.bf16.msra.mxu0 %v1624
        %4363 = vmatprep.subr.bf16.mxu0 0
        %4364 = vmatpush1.bf16.msra.mxu0 %v1629
        %4365 = vmatprep.subr.bf16.mxu0 0
        %4366 = vmatpush1.bf16.msra.mxu0 %v1634
        %4367 = vmatprep.subr.bf16.mxu0 0
        %4368 = vmatpush1.bf16.msra.mxu0 %v1639
        %4369 = vmatprep.subr.bf16.mxu0 0
        %4370 = vmatpush1.bf16.msra.mxu0 %v1644
        %4371 = vmatprep.subr.bf16.mxu0 0
        %4372 = vmatpush1.bf16.msra.mxu0 %v1649
        %4373 = vmatprep.subr.bf16.mxu0 0
        %4374 = vmatpush1.bf16.msra.mxu0 %v1654
        %4375 = vmatprep.subr.bf16.mxu0 0
        %4376 = vmatpush1.bf16.msra.mxu0 %v1659
        %4377 = vmatprep.mubr.bf16.mxu0 %v628
        %4378 = vmatmul.mubr.bf16.gmra.mrb[0].mxu0 %v627
        %v4379 = vpop.f32.mrb[0].mxu0
        %v4380 = vadd.f32 %v4091, %v4379
        %v4381 = vpop.f32.mrb[0].mxu0
        %v4382 = vpop.f32.mrb[0].mxu0
        %v4383 = vadd.f32 %v4094, %v4382
        %v4384 = vpop.f32.mrb[0].mxu0
        %4385 = vmatprep.mubr.bf16.mxu0 %v633
        %4386 = vmatmul.mubr.bf16.gmra.mrb[0].mxu0 %v632
        %v4387 = vpop.f32.mrb[0].mxu0
        %v4388 = vadd.f32 %v4099, %v4387
        %v4389 = vpop.f32.mrb[0].mxu0
        %v4390 = vpop.f32.mrb[0].mxu0
        %v4391 = vadd.f32 %v4102, %v4390
        %v4392 = vpop.f32.mrb[0].mxu0
        %4393 = vmatprep.mubr.bf16.mxu0 %v638
        %4394 = vmatmul.mubr.bf16.gmra.mrb[0].mxu0 %v637
        %v4395 = vpop.f32.mrb[0].mxu0
        %v4396 = vadd.f32 %v4107, %v4395
        %v4397 = vpop.f32.mrb[0].mxu0
        %v4398 = vpop.f32.mrb[0].mxu0
        %v4399 = vadd.f32 %v4110, %v4398
        %v4400 = vpop.f32.mrb[0].mxu0
        %4401 = vmatprep.mubr.bf16.mxu0 %v643
        %4402 = vmatmul.mubr.bf16.gmra.mrb[0].mxu0 %v642
        %v4403 = vpop.f32.mrb[0].mxu0
        %v4404 = vadd.f32 %v4115, %v4403
        %v4405 = vpop.f32.mrb[0].mxu0
        %v4406 = vpop.f32.mrb[0].mxu0
        %v4407 = vadd.f32 %v4118, %v4406
        %v4408 = vpop.f32.mrb[0].mxu0
        %4409 = vmatprep.mubr.bf16.mxu0 %v648
        %4410 = vmatmul.mubr.bf16.gmra.mrb[0].mxu0 %v647
        %v4411 = vpop.f32.mrb[0].mxu0
        %v4412 = vadd.f32 %v4123, %v4411
        %v4413 = vpop.f32.mrb[0].mxu0
        %v4414 = vpop.f32.mrb[0].mxu0
        %v4415 = vadd.f32 %v4126, %v4414
        %v4416 = vpop.f32.mrb[0].mxu0
        %4417 = vmatprep.mubr.bf16.mxu0 %v653
        %4418 = vmatmul.mubr.bf16.gmra.mrb[0].mxu0 %v652
        %v4419 = vpop.f32.mrb[0].mxu0
        %v4420 = vadd.f32 %v4131, %v4419
        %v4421 = vpop.f32.mrb[0].mxu0
        %v4422 = vpop.f32.mrb[0].mxu0
        %v4423 = vadd.f32 %v4134, %v4422
        %v4424 = vpop.f32.mrb[0].mxu0
        %4425 = vmatprep.mubr.bf16.mxu0 %v658
        %4426 = vmatmul.mubr.bf16.gmra.mrb[0].mxu0 %v657
        %v4427 = vpop.f32.mrb[0].mxu0
        %v4428 = vadd.f32 %v4139, %v4427
        %v4429 = vpop.f32.mrb[0].mxu0
        %v4430 = vpop.f32.mrb[0].mxu0
        %v4431 = vadd.f32 %v4142, %v4430
        %v4432 = vpop.f32.mrb[0].mxu0
        %4433 = vmatprep.mubr.bf16.mxu0 %v663
        %4434 = vmatmul.mubr.bf16.gmra.mrb[0].mxu0 %v662
        %v4435 = vpop.f32.mrb[0].mxu0
        %v4436 = vadd.f32 %v4147, %v4435
        %v4437 = vpop.f32.mrb[0].mxu0
        %v4438 = vpop.f32.mrb[0].mxu0
        %v4439 = vadd.f32 %v4150, %v4438
        %v4440 = vpop.f32.mrb[0].mxu0
        %4441 = vmatprep.mubr.bf16.mxu0 %v668
        %4442 = vmatmul.mubr.bf16.gmra.mrb[0].mxu0 %v667
        %v4443 = vpop.f32.mrb[0].mxu0
        %v4444 = vadd.f32 %v4155, %v4443
        %v4445 = vpop.f32.mrb[0].mxu0
        %v4446 = vpop.f32.mrb[0].mxu0
        %v4447 = vadd.f32 %v4158, %v4446
        %v4448 = vpop.f32.mrb[0].mxu0
        %4449 = vmatprep.mubr.bf16.mxu0 %v673
        %4450 = vmatmul.mubr.bf16.gmra.mrb[0].mxu0 %v672
        %v4451 = vpop.f32.mrb[0].mxu0
        %v4452 = vadd.f32 %v4163, %v4451
        %v4453 = vpop.f32.mrb[0].mxu0
        %v4454 = vpop.f32.mrb[0].mxu0
        %v4455 = vadd.f32 %v4166, %v4454
        %v4456 = vpop.f32.mrb[0].mxu0
        %4457 = vmatprep.mubr.bf16.mxu0 %v678
        %4458 = vmatmul.mubr.bf16.gmra.mrb[0].mxu0 %v677
        %v4459 = vpop.f32.mrb[0].mxu0
        %v4460 = vadd.f32 %v4171, %v4459
        %v4461 = vpop.f32.mrb[0].mxu0
        %v4462 = vpop.f32.mrb[0].mxu0
        %v4463 = vadd.f32 %v4174, %v4462
        %v4464 = vpop.f32.mrb[0].mxu0
        %4465 = vmatprep.mubr.bf16.mxu0 %v683
        %4466 = vmatmul.mubr.bf16.gmra.mrb[0].mxu0 %v682
        %v4467 = vpop.f32.mrb[0].mxu0
        %v4468 = vadd.f32 %v4179, %v4467
        %v4469 = vpop.f32.mrb[0].mxu0
        %v4470 = vpop.f32.mrb[0].mxu0
        %v4471 = vadd.f32 %v4182, %v4470
        %v4472 = vpop.f32.mrb[0].mxu0
        %4473 = vmatprep.mubr.bf16.mxu0 %v688
        %4474 = vmatmul.mubr.bf16.gmra.mrb[0].mxu0 %v687
        %v4475 = vpop.f32.mrb[0].mxu0
        %v4476 = vadd.f32 %v4187, %v4475
        %v4477 = vpop.f32.mrb[0].mxu0
        %v4478 = vpop.f32.mrb[0].mxu0
        %v4479 = vadd.f32 %v4190, %v4478
        %v4480 = vpop.f32.mrb[0].mxu0
        %4481 = vmatprep.mubr.bf16.mxu0 %v693
        %4482 = vmatmul.mubr.bf16.gmra.mrb[0].mxu0 %v692
        %v4483 = vpop.f32.mrb[0].mxu0
        %v4484 = vadd.f32 %v4195, %v4483
        %v4485 = vpop.f32.mrb[0].mxu0
        %v4486 = vpop.f32.mrb[0].mxu0
        %v4487 = vadd.f32 %v4198, %v4486
        %v4488 = vpop.f32.mrb[0].mxu0
        %4489 = vmatprep.mubr.bf16.mxu0 %v698
        %4490 = vmatmul.mubr.bf16.gmra.mrb[0].mxu0 %v697
        %v4491 = vpop.f32.mrb[0].mxu0
        %v4492 = vadd.f32 %v4203, %v4491
        %v4493 = vpop.f32.mrb[0].mxu0
        %v4494 = vpop.f32.mrb[0].mxu0
        %v4495 = vadd.f32 %v4206, %v4494
        %v4496 = vpop.f32.mrb[0].mxu0
        %4497 = vmatprep.mubr.bf16.mxu0 %v703
        %4498 = vmatmul.mubr.bf16.gmra.mrb[0].mxu0 %v702
        %v4499 = vpop.f32.mrb[0].mxu0
        %v4500 = vadd.f32 %v4211, %v4499
        %v4501 = vpop.f32.mrb[0].mxu0
        %v4502 = vpop.f32.mrb[0].mxu0
        %v4503 = vadd.f32 %v4214, %v4502
        %v4504 = vpop.f32.mrb[0].mxu0
        %4505 = vmatprep.mubr.bf16.mxu0 %v708
        %4506 = vmatmul.mubr.bf16.gmra.mrb[0].mxu0 %v707
        %v4507 = vpop.f32.mrb[0].mxu0
        %v4508 = vadd.f32 %v4219, %v4507
        %v4509 = vpop.f32.mrb[0].mxu0
        %v4510 = vpop.f32.mrb[0].mxu0
        %v4511 = vadd.f32 %v4222, %v4510
        %v4512 = vpop.f32.mrb[0].mxu0
        %4513 = vmatprep.mubr.bf16.mxu0 %v713
        %4514 = vmatmul.mubr.bf16.gmra.mrb[0].mxu0 %v712
        %v4515 = vpop.f32.mrb[0].mxu0
        %v4516 = vadd.f32 %v4227, %v4515
        %v4517 = vpop.f32.mrb[0].mxu0
        %v4518 = vpop.f32.mrb[0].mxu0
        %v4519 = vadd.f32 %v4230, %v4518
        %v4520 = vpop.f32.mrb[0].mxu0
        %4521 = vmatprep.mubr.bf16.mxu0 %v718
        %4522 = vmatmul.mubr.bf16.gmra.mrb[0].mxu0 %v717
        %v4523 = vpop.f32.mrb[0].mxu0
        %v4524 = vadd.f32 %v4235, %v4523
        %v4525 = vpop.f32.mrb[0].mxu0
        %v4526 = vpop.f32.mrb[0].mxu0
        %v4527 = vadd.f32 %v4238, %v4526
        %v4528 = vpop.f32.mrb[0].mxu0
        %4529 = vmatprep.mubr.bf16.mxu0 %v723
        %4530 = vmatmul.mubr.bf16.gmra.mrb[0].mxu0 %v722
        %v4531 = vpop.f32.mrb[0].mxu0
        %v4532 = vadd.f32 %v4243, %v4531
        %v4533 = vpop.f32.mrb[0].mxu0
        %v4534 = vpop.f32.mrb[0].mxu0
        %v4535 = vadd.f32 %v4246, %v4534
        %v4536 = vpop.f32.mrb[0].mxu0
        %4537 = vmatprep.mubr.bf16.mxu0 %v728
        %4538 = vmatmul.mubr.bf16.gmra.mrb[0].mxu0 %v727
        %v4539 = vpop.f32.mrb[0].mxu0
        %v4540 = vadd.f32 %v4251, %v4539
        %v4541 = vpop.f32.mrb[0].mxu0
        %v4542 = vpop.f32.mrb[0].mxu0
        %v4543 = vadd.f32 %v4254, %v4542
        %v4544 = vpop.f32.mrb[0].mxu0
        %4545 = vmatprep.mubr.bf16.mxu0 %v733
        %4546 = vmatmul.mubr.bf16.gmra.mrb[0].mxu0 %v732
        %v4547 = vpop.f32.mrb[0].mxu0
        %v4548 = vadd.f32 %v4259, %v4547
        %v4549 = vpop.f32.mrb[0].mxu0
        %v4550 = vpop.f32.mrb[0].mxu0
        %v4551 = vadd.f32 %v4262, %v4550
        %v4552 = vpop.f32.mrb[0].mxu0
        %4553 = vmatprep.mubr.bf16.mxu0 %v738
        %4554 = vmatmul.mubr.bf16.gmra.mrb[0].mxu0 %v737
        %v4555 = vpop.f32.mrb[0].mxu0
        %v4556 = vadd.f32 %v4267, %v4555
        %v4557 = vpop.f32.mrb[0].mxu0
        %v4558 = vpop.f32.mrb[0].mxu0
        %v4559 = vadd.f32 %v4270, %v4558
        %v4560 = vpop.f32.mrb[0].mxu0
        %4561 = vmatprep.mubr.bf16.mxu0 %v743
        %4562 = vmatmul.mubr.bf16.gmra.mrb[0].mxu0 %v742
        %v4563 = vpop.f32.mrb[0].mxu0
        %v4564 = vadd.f32 %v4275, %v4563
        %v4565 = vpop.f32.mrb[0].mxu0
        %v4566 = vpop.f32.mrb[0].mxu0
        %v4567 = vadd.f32 %v4278, %v4566
        %v4568 = vpop.f32.mrb[0].mxu0
        %4569 = vmatprep.mubr.bf16.mxu0 %v748
        %4570 = vmatmul.mubr.bf16.gmra.mrb[0].mxu0 %v747
        %v4571 = vpop.f32.mrb[0].mxu0
        %v4572 = vadd.f32 %v4283, %v4571
        %v4573 = vpop.f32.mrb[0].mxu0
        %v4574 = vpop.f32.mrb[0].mxu0
        %v4575 = vadd.f32 %v4286, %v4574
        %v4576 = vpop.f32.mrb[0].mxu0
        %4577 = vmatprep.mubr.bf16.mxu0 %v753
        %4578 = vmatmul.mubr.bf16.gmra.mrb[0].mxu0 %v752
        %v4579 = vpop.f32.mrb[0].mxu0
        %v4580 = vadd.f32 %v4291, %v4579
        %v4581 = vpop.f32.mrb[0].mxu0
        %v4582 = vpop.f32.mrb[0].mxu0
        %v4583 = vadd.f32 %v4294, %v4582
        %v4584 = vpop.f32.mrb[0].mxu0
        %4585 = vmatprep.mubr.bf16.mxu0 %v758
        %4586 = vmatmul.mubr.bf16.gmra.mrb[0].mxu0 %v757
        %v4587 = vpop.f32.mrb[0].mxu0
        %v4588 = vadd.f32 %v4299, %v4587
        %v4589 = vpop.f32.mrb[0].mxu0
        %v4590 = vpop.f32.mrb[0].mxu0
        %v4591 = vadd.f32 %v4302, %v4590
        %v4592 = vpop.f32.mrb[0].mxu0
        %4593 = vmatprep.mubr.bf16.mxu0 %v763
        %4594 = vmatmul.mubr.bf16.gmra.mrb[0].mxu0 %v762
        %v4595 = vpop.f32.mrb[0].mxu0
        %v4596 = vadd.f32 %v4307, %v4595
        %v4597 = vpop.f32.mrb[0].mxu0
        %v4598 = vpop.f32.mrb[0].mxu0
        %v4599 = vadd.f32 %v4310, %v4598
        %v4600 = vpop.f32.mrb[0].mxu0
        %4601 = vmatprep.mubr.bf16.mxu0 %v768
        %4602 = vmatmul.mubr.bf16.gmra.mrb[0].mxu0 %v767
        %v4603 = vpop.f32.mrb[0].mxu0
        %v4604 = vadd.f32 %v4315, %v4603
        %v4605 = vpop.f32.mrb[0].mxu0
        %v4606 = vpop.f32.mrb[0].mxu0
        %v4607 = vadd.f32 %v4318, %v4606
        %v4608 = vpop.f32.mrb[0].mxu0
        %4609 = vmatprep.mubr.bf16.mxu0 %v773
        %4610 = vmatmul.mubr.bf16.gmra.mrb[0].mxu0 %v772
        %v4611 = vpop.f32.mrb[0].mxu0
        %v4612 = vadd.f32 %v4323, %v4611
        %v4613 = vpop.f32.mrb[0].mxu0
        %v4614 = vpop.f32.mrb[0].mxu0
        %v4615 = vadd.f32 %v4326, %v4614
        %v4616 = vpop.f32.mrb[0].mxu0
        %4617 = vmatprep.mubr.bf16.mxu0 %v778
        %4618 = vmatmul.mubr.bf16.gmra.mrb[0].mxu0 %v777
        %v4619 = vpop.f32.mrb[0].mxu0
        %v4620 = vadd.f32 %v4331, %v4619
        %v4621 = vpop.f32.mrb[0].mxu0
        %v4622 = vpop.f32.mrb[0].mxu0
        %v4623 = vadd.f32 %v4334, %v4622
        %v4624 = vpop.f32.mrb[0].mxu0
        %4625 = vmatprep.mubr.bf16.mxu0 %v783
        %4626 = vmatmul.mubr.bf16.gmra.mrb[0].mxu0 %v782
        %v4627 = vpop.f32.mrb[0].mxu0
        %v4628 = vadd.f32 %v4339, %v4627
        %v4629 = vpop.f32.mrb[0].mxu0
        %v4630 = vpop.f32.mrb[0].mxu0
        %v4631 = vadd.f32 %v4342, %v4630
        %v4632 = vpop.f32.mrb[0].mxu0
        %4633 = vdwg.mxu0
        %4634 = vmatprep.subr.bf16.mxu0 0
        %4635 = vmatpush1.bf16.msra.mxu0 %v1936
        %4636 = vmatprep.subr.bf16.mxu0 0
        %4637 = vmatpush1.bf16.msra.mxu0 0
        %4638 = vmatprep.subr.bf16.mxu0 0
        %4639 = vmatpush1.bf16.msra.mxu0 0
        %4640 = vmatprep.subr.bf16.mxu0 0
        %4641 = vmatpush1.bf16.msra.mxu0 0
        %4642 = vmatprep.subr.bf16.mxu0 0
        %4643 = vmatpush1.bf16.msra.mxu0 0
        %4644 = vmatprep.subr.bf16.mxu0 0
        %4645 = vmatpush1.bf16.msra.mxu0 0
        %4646 = vmatprep.subr.bf16.mxu0 0
        %4647 = vmatpush1.bf16.msra.mxu0 0
        %4648 = vmatprep.subr.bf16.mxu0 0
        %4649 = vmatpush1.bf16.msra.mxu0 0
        %4650 = vmatprep.subr.bf16.mxu0 0
        %4651 = vmatpush1.bf16.msra.mxu0 0
        %4652 = vmatprep.subr.bf16.mxu0 0
        %4653 = vmatpush1.bf16.msra.mxu0 0
        %4654 = vmatprep.subr.bf16.mxu0 0
        %4655 = vmatpush1.bf16.msra.mxu0 0
        %4656 = vmatprep.subr.bf16.mxu0 0
        %4657 = vmatpush1.bf16.msra.mxu0 0
        %4658 = vmatprep.subr.bf16.mxu0 0
        %4659 = vmatpush1.bf16.msra.mxu0 0
        %4660 = vmatprep.subr.bf16.mxu0 0
        %4661 = vmatpush1.bf16.msra.mxu0 0
        %4662 = vmatprep.subr.bf16.mxu0 0
        %4663 = vmatpush1.bf16.msra.mxu0 0
        %4664 = vmatprep.subr.bf16.mxu0 0
        %4665 = vmatpush1.bf16.msra.mxu0 0
        %4666 = vmatprep.mubr.bf16.mxu0 0
        %4667 = vmatmul.mubr.bf16.gmra.mrb[0].mxu0 %v1827
        %v4668 = vpop.f32.mrb[0].mxu0
        %v4669 = vadd.f32 %v4380, %v4668
        %v4670 = vpop.f32.mrb[0].mxu0
        %v4671 = vpop.f32.mrb[0].mxu0
        %v4672 = vadd.f32 %v4383, %v4671
        %v4673 = vpop.f32.mrb[0].mxu0
        %4674 = vmatprep.mubr.bf16.mxu0 0
        %4675 = vmatmul.mubr.bf16.gmra.mrb[0].mxu0 %v1830
        %v4676 = vpop.f32.mrb[0].mxu0
        %v4677 = vadd.f32 %v4388, %v4676
        %v4678 = vpop.f32.mrb[0].mxu0
        %v4679 = vpop.f32.mrb[0].mxu0
        %v4680 = vadd.f32 %v4391, %v4679
        %v4681 = vpop.f32.mrb[0].mxu0
        %4682 = vmatprep.mubr.bf16.mxu0 0
        %4683 = vmatmul.mubr.bf16.gmra.mrb[0].mxu0 %v1833
        %v4684 = vpop.f32.mrb[0].mxu0
        %v4685 = vadd.f32 %v4396, %v4684
        %v4686 = vpop.f32.mrb[0].mxu0
        %v4687 = vpop.f32.mrb[0].mxu0
        %v4688 = vadd.f32 %v4399, %v4687
        %v4689 = vpop.f32.mrb[0].mxu0
        %4690 = vmatprep.mubr.bf16.mxu0 0
        %4691 = vmatmul.mubr.bf16.gmra.mrb[0].mxu0 %v1836
        %v4692 = vpop.f32.mrb[0].mxu0
        %v4693 = vadd.f32 %v4404, %v4692
        %v4694 = vpop.f32.mrb[0].mxu0
        %v4695 = vpop.f32.mrb[0].mxu0
        %v4696 = vadd.f32 %v4407, %v4695
        %v4697 = vpop.f32.mrb[0].mxu0
        %4698 = vmatprep.mubr.bf16.mxu0 0
        %4699 = vmatmul.mubr.bf16.gmra.mrb[0].mxu0 %v1839
        %v4700 = vpop.f32.mrb[0].mxu0
        %v4701 = vadd.f32 %v4412, %v4700
        %v4702 = vpop.f32.mrb[0].mxu0
        %v4703 = vpop.f32.mrb[0].mxu0
        %v4704 = vadd.f32 %v4415, %v4703
        %v4705 = vpop.f32.mrb[0].mxu0
        %4706 = vmatprep.mubr.bf16.mxu0 0
        %4707 = vmatmul.mubr.bf16.gmra.mrb[0].mxu0 %v1842
        %v4708 = vpop.f32.mrb[0].mxu0
        %v4709 = vadd.f32 %v4420, %v4708
        %v4710 = vpop.f32.mrb[0].mxu0
        %v4711 = vpop.f32.mrb[0].mxu0
        %v4712 = vadd.f32 %v4423, %v4711
        %v4713 = vpop.f32.mrb[0].mxu0
        %4714 = vmatprep.mubr.bf16.mxu0 0
        %4715 = vmatmul.mubr.bf16.gmra.mrb[0].mxu0 %v1845
        %v4716 = vpop.f32.mrb[0].mxu0
        %v4717 = vadd.f32 %v4428, %v4716
        %v4718 = vpop.f32.mrb[0].mxu0
        %v4719 = vpop.f32.mrb[0].mxu0
        %v4720 = vadd.f32 %v4431, %v4719
        %v4721 = vpop.f32.mrb[0].mxu0
        %4722 = vmatprep.mubr.bf16.mxu0 0
        %4723 = vmatmul.mubr.bf16.gmra.mrb[0].mxu0 %v1848
        %v4724 = vpop.f32.mrb[0].mxu0
        %v4725 = vadd.f32 %v4436, %v4724
        %v4726 = vpop.f32.mrb[0].mxu0
        %v4727 = vpop.f32.mrb[0].mxu0
        %v4728 = vadd.f32 %v4439, %v4727
        %v4729 = vpop.f32.mrb[0].mxu0
        %4730 = vmatprep.mubr.bf16.mxu0 0
        %4731 = vmatmul.mubr.bf16.gmra.mrb[0].mxu0 %v1851
        %v4732 = vpop.f32.mrb[0].mxu0
        %v4733 = vadd.f32 %v4444, %v4732
        %v4734 = vpop.f32.mrb[0].mxu0
        %v4735 = vpop.f32.mrb[0].mxu0
        %v4736 = vadd.f32 %v4447, %v4735
        %v4737 = vpop.f32.mrb[0].mxu0
        %4738 = vmatprep.mubr.bf16.mxu0 0
        %4739 = vmatmul.mubr.bf16.gmra.mrb[0].mxu0 %v1854
        %v4740 = vpop.f32.mrb[0].mxu0
        %v4741 = vadd.f32 %v4452, %v4740
        %v4742 = vpop.f32.mrb[0].mxu0
        %v4743 = vpop.f32.mrb[0].mxu0
        %v4744 = vadd.f32 %v4455, %v4743
        %v4745 = vpop.f32.mrb[0].mxu0
        %4746 = vmatprep.mubr.bf16.mxu0 0
        %4747 = vmatmul.mubr.bf16.gmra.mrb[0].mxu0 %v1857
        %v4748 = vpop.f32.mrb[0].mxu0
        %v4749 = vadd.f32 %v4460, %v4748
        %v4750 = vpop.f32.mrb[0].mxu0
        %v4751 = vpop.f32.mrb[0].mxu0
        %v4752 = vadd.f32 %v4463, %v4751
        %v4753 = vpop.f32.mrb[0].mxu0
        %4754 = vmatprep.mubr.bf16.mxu0 0
        %4755 = vmatmul.mubr.bf16.gmra.mrb[0].mxu0 %v1860
        %v4756 = vpop.f32.mrb[0].mxu0
        %v4757 = vadd.f32 %v4468, %v4756
        %v4758 = vpop.f32.mrb[0].mxu0
        %v4759 = vpop.f32.mrb[0].mxu0
        %v4760 = vadd.f32 %v4471, %v4759
        %v4761 = vpop.f32.mrb[0].mxu0
        %4762 = vmatprep.mubr.bf16.mxu0 0
        %4763 = vmatmul.mubr.bf16.gmra.mrb[0].mxu0 %v1863
        %v4764 = vpop.f32.mrb[0].mxu0
        %v4765 = vadd.f32 %v4476, %v4764
        %v4766 = vpop.f32.mrb[0].mxu0
        %v4767 = vpop.f32.mrb[0].mxu0
        %v4768 = vadd.f32 %v4479, %v4767
        %v4769 = vpop.f32.mrb[0].mxu0
        %4770 = vmatprep.mubr.bf16.mxu0 0
        %4771 = vmatmul.mubr.bf16.gmra.mrb[0].mxu0 %v1866
        %v4772 = vpop.f32.mrb[0].mxu0
        %v4773 = vadd.f32 %v4484, %v4772
        %v4774 = vpop.f32.mrb[0].mxu0
        %v4775 = vpop.f32.mrb[0].mxu0
        %v4776 = vadd.f32 %v4487, %v4775
        %v4777 = vpop.f32.mrb[0].mxu0
        %4778 = vmatprep.mubr.bf16.mxu0 0
        %4779 = vmatmul.mubr.bf16.gmra.mrb[0].mxu0 %v1869
        %v4780 = vpop.f32.mrb[0].mxu0
        %v4781 = vadd.f32 %v4492, %v4780
        %v4782 = vpop.f32.mrb[0].mxu0
        %v4783 = vpop.f32.mrb[0].mxu0
        %v4784 = vadd.f32 %v4495, %v4783
        %v4785 = vpop.f32.mrb[0].mxu0
        %4786 = vmatprep.mubr.bf16.mxu0 0
        %4787 = vmatmul.mubr.bf16.gmra.mrb[0].mxu0 %v1872
        %v4788 = vpop.f32.mrb[0].mxu0
        %v4789 = vadd.f32 %v4500, %v4788
        %v4790 = vpop.f32.mrb[0].mxu0
        %v4791 = vpop.f32.mrb[0].mxu0
        %v4792 = vadd.f32 %v4503, %v4791
        %v4793 = vpop.f32.mrb[0].mxu0
        %4794 = vmatprep.mubr.bf16.mxu0 0
        %4795 = vmatmul.mubr.bf16.gmra.mrb[0].mxu0 %v1875
        %v4796 = vpop.f32.mrb[0].mxu0
        %v4797 = vadd.f32 %v4508, %v4796
        %v4798 = vpop.f32.mrb[0].mxu0
        %v4799 = vpop.f32.mrb[0].mxu0
        %v4800 = vadd.f32 %v4511, %v4799
        %v4801 = vpop.f32.mrb[0].mxu0
        %4802 = vmatprep.mubr.bf16.mxu0 0
        %4803 = vmatmul.mubr.bf16.gmra.mrb[0].mxu0 %v1878
        %v4804 = vpop.f32.mrb[0].mxu0
        %v4805 = vadd.f32 %v4516, %v4804
        %v4806 = vpop.f32.mrb[0].mxu0
        %v4807 = vpop.f32.mrb[0].mxu0
        %v4808 = vadd.f32 %v4519, %v4807
        %v4809 = vpop.f32.mrb[0].mxu0
        %4810 = vmatprep.mubr.bf16.mxu0 0
        %4811 = vmatmul.mubr.bf16.gmra.mrb[0].mxu0 %v1881
        %v4812 = vpop.f32.mrb[0].mxu0
        %v4813 = vadd.f32 %v4524, %v4812
        %v4814 = vpop.f32.mrb[0].mxu0
        %v4815 = vpop.f32.mrb[0].mxu0
        %v4816 = vadd.f32 %v4527, %v4815
        %v4817 = vpop.f32.mrb[0].mxu0
        %4818 = vmatprep.mubr.bf16.mxu0 0
        %4819 = vmatmul.mubr.bf16.gmra.mrb[0].mxu0 %v1884
        %v4820 = vpop.f32.mrb[0].mxu0
        %v4821 = vadd.f32 %v4532, %v4820
        %v4822 = vpop.f32.mrb[0].mxu0
        %v4823 = vpop.f32.mrb[0].mxu0
        %v4824 = vadd.f32 %v4535, %v4823
        %v4825 = vpop.f32.mrb[0].mxu0
        %4826 = vmatprep.mubr.bf16.mxu0 0
        %4827 = vmatmul.mubr.bf16.gmra.mrb[0].mxu0 %v1887
        %v4828 = vpop.f32.mrb[0].mxu0
        %v4829 = vadd.f32 %v4540, %v4828
        %v4830 = vpop.f32.mrb[0].mxu0
        %v4831 = vpop.f32.mrb[0].mxu0
        %v4832 = vadd.f32 %v4543, %v4831
        %v4833 = vpop.f32.mrb[0].mxu0
        %4834 = vmatprep.mubr.bf16.mxu0 0
        %4835 = vmatmul.mubr.bf16.gmra.mrb[0].mxu0 %v1890
        %v4836 = vpop.f32.mrb[0].mxu0
        %v4837 = vadd.f32 %v4548, %v4836
        %v4838 = vpop.f32.mrb[0].mxu0
        %v4839 = vpop.f32.mrb[0].mxu0
        %v4840 = vadd.f32 %v4551, %v4839
        %v4841 = vpop.f32.mrb[0].mxu0
        %4842 = vmatprep.mubr.bf16.mxu0 0
        %4843 = vmatmul.mubr.bf16.gmra.mrb[0].mxu0 %v1893
        %v4844 = vpop.f32.mrb[0].mxu0
        %v4845 = vadd.f32 %v4556, %v4844
        %v4846 = vpop.f32.mrb[0].mxu0
        %v4847 = vpop.f32.mrb[0].mxu0
        %v4848 = vadd.f32 %v4559, %v4847
        %v4849 = vpop.f32.mrb[0].mxu0
        %4850 = vmatprep.mubr.bf16.mxu0 0
        %4851 = vmatmul.mubr.bf16.gmra.mrb[0].mxu0 %v1896
        %v4852 = vpop.f32.mrb[0].mxu0
        %v4853 = vadd.f32 %v4564, %v4852
        %v4854 = vpop.f32.mrb[0].mxu0
        %v4855 = vpop.f32.mrb[0].mxu0
        %v4856 = vadd.f32 %v4567, %v4855
        %v4857 = vpop.f32.mrb[0].mxu0
        %4858 = vmatprep.mubr.bf16.mxu0 0
        %4859 = vmatmul.mubr.bf16.gmra.mrb[0].mxu0 %v1899
        %v4860 = vpop.f32.mrb[0].mxu0
        %v4861 = vadd.f32 %v4572, %v4860
        %v4862 = vpop.f32.mrb[0].mxu0
        %v4863 = vpop.f32.mrb[0].mxu0
        %v4864 = vadd.f32 %v4575, %v4863
        %v4865 = vpop.f32.mrb[0].mxu0
        %4866 = vmatprep.mubr.bf16.mxu0 0
        %4867 = vmatmul.mubr.bf16.gmra.mrb[0].mxu0 %v1902
        %v4868 = vpop.f32.mrb[0].mxu0
        %v4869 = vadd.f32 %v4580, %v4868
        %v4870 = vpop.f32.mrb[0].mxu0
        %v4871 = vpop.f32.mrb[0].mxu0
        %v4872 = vadd.f32 %v4583, %v4871
        %v4873 = vpop.f32.mrb[0].mxu0
        %4874 = vmatprep.mubr.bf16.mxu0 0
        %4875 = vmatmul.mubr.bf16.gmra.mrb[0].mxu0 %v1905
        %v4876 = vpop.f32.mrb[0].mxu0
        %v4877 = vadd.f32 %v4588, %v4876
        %v4878 = vpop.f32.mrb[0].mxu0
        %v4879 = vpop.f32.mrb[0].mxu0
        %v4880 = vadd.f32 %v4591, %v4879
        %v4881 = vpop.f32.mrb[0].mxu0
        %4882 = vmatprep.mubr.bf16.mxu0 0
        %4883 = vmatmul.mubr.bf16.gmra.mrb[0].mxu0 %v1908
        %v4884 = vpop.f32.mrb[0].mxu0
        %v4885 = vadd.f32 %v4596, %v4884
        %v4886 = vpop.f32.mrb[0].mxu0
        %v4887 = vpop.f32.mrb[0].mxu0
        %v4888 = vadd.f32 %v4599, %v4887
        %v4889 = vpop.f32.mrb[0].mxu0
        %4890 = vmatprep.mubr.bf16.mxu0 0
        %4891 = vmatmul.mubr.bf16.gmra.mrb[0].mxu0 %v1911
        %v4892 = vpop.f32.mrb[0].mxu0
        %v4893 = vadd.f32 %v4604, %v4892
        %v4894 = vpop.f32.mrb[0].mxu0
        %v4895 = vpop.f32.mrb[0].mxu0
        %v4896 = vadd.f32 %v4607, %v4895
        %v4897 = vpop.f32.mrb[0].mxu0
        %4898 = vmatprep.mubr.bf16.mxu0 0
        %4899 = vmatmul.mubr.bf16.gmra.mrb[0].mxu0 %v1914
        %v4900 = vpop.f32.mrb[0].mxu0
        %v4901 = vadd.f32 %v4612, %v4900
        %v4902 = vpop.f32.mrb[0].mxu0
        %v4903 = vpop.f32.mrb[0].mxu0
        %v4904 = vadd.f32 %v4615, %v4903
        %v4905 = vpop.f32.mrb[0].mxu0
        %4906 = vmatprep.mubr.bf16.mxu0 0
        %4907 = vmatmul.mubr.bf16.gmra.mrb[0].mxu0 %v1917
        %v4908 = vpop.f32.mrb[0].mxu0
        %v4909 = vadd.f32 %v4620, %v4908
        %v4910 = vpop.f32.mrb[0].mxu0
        %v4911 = vpop.f32.mrb[0].mxu0
        %v4912 = vadd.f32 %v4623, %v4911
        %v4913 = vpop.f32.mrb[0].mxu0
        %4914 = vmatprep.mubr.bf16.mxu0 0
        %4915 = vmatmul.mubr.bf16.gmra.mrb[0].mxu0 %v1920
        %v4916 = vpop.f32.mrb[0].mxu0
        %v4917 = vadd.f32 %v4628, %v4916
        %v4918 = vpop.f32.mrb[0].mxu0
        %v4919 = vpop.f32.mrb[0].mxu0
        %v4920 = vadd.f32 %v4631, %v4919
        %v4921 = vpop.f32.mrb[0].mxu0
        %4922 = vdwg.mxu0
        %v4923 = vld [vmem:[%s286] sm:$0xff]
        %v4924 = vld [vmem:[%s286 + $0x8] sm:$0xff]
        %v4925 = vld [vmem:[%s286 + $0x10] sm:$0xff]
        %v4926 = vld [vmem:[%s286 + $0x18] sm:$0xff]
        %v4927 = vld [vmem:[%s286 + $0x20] sm:$0xff]
        %v4928 = vld [vmem:[%s286 + $0x28] sm:$0xff]
        %v4929 = vld [vmem:[%s286 + $0x30] sm:$0xff]
        %v4930 = vld [vmem:[%s286 + $0x38] sm:$0xff]
        %v4931 = vld [vmem:[%s286 + $0x40] sm:$0xff]
        %v4932 = vld [vmem:[%s286 + $0x48] sm:$0xff]
        %v4933 = vld [vmem:[%s286 + $0x50] sm:$0xff]
        %v4934 = vld [vmem:[%s286 + $0x58] sm:$0xff]
        %v4935 = vld [vmem:[%s286 + $0x60] sm:$0xff]
        %v4936 = vld [vmem:[%s286 + $0x68] sm:$0xff]
        %v4937 = vld [vmem:[%s286 + $0x70] sm:$0xff]
        %v4938 = vld [vmem:[%s286 + $0x78] sm:$0xff]
        %v4939 = vld [vmem:[%s286 + $0x80] sm:$0xff]
        %v4940 = vld [vmem:[%s286 + $0x88] sm:$0xff]
        %v4941 = vld [vmem:[%s286 + $0x90] sm:$0xff]
        %v4942 = vld [vmem:[%s286 + $0x98] sm:$0xff]
        %v4943 = vld [vmem:[%s286 + $0xa0] sm:$0xff]
        %v4944 = vld [vmem:[%s286 + $0xa8] sm:$0xff]
        %v4945 = vld [vmem:[%s286 + $0xb0] sm:$0xff]
        %v4946 = vld [vmem:[%s286 + $0xb8] sm:$0xff]
        %v4947 = vld [vmem:[%s286 + $0xc0] sm:$0xff]
        %v4948 = vld [vmem:[%s286 + $0xc8] sm:$0xff]
        %v4949 = vld [vmem:[%s286 + $0xd0] sm:$0xff]
        %v4950 = vld [vmem:[%s286 + $0xd8] sm:$0xff]
        %v4951 = vld [vmem:[%s286 + $0xe0] sm:$0xff]
        %v4952 = vld [vmem:[%s286 + $0xe8] sm:$0xff]
        %v4953 = vld [vmem:[%s286 + $0xf0] sm:$0xff]
        %v4954 = vld [vmem:[%s286 + $0xf8] sm:$0xff]
        %v4955 = vld [vmem:[%s286 + $0x100] sm:$0xff]
        %v4956 = vld [vmem:[%s286 + $0x108] sm:$0xff]
        %v4957 = vld [vmem:[%s286 + $0x110] sm:$0xff]
        %v4958 = vld [vmem:[%s286 + $0x118] sm:$0xff]
        %v4959 = vld [vmem:[%s286 + $0x120] sm:$0xff]
        %v4960 = vld [vmem:[%s286 + $0x128] sm:$0xff]
        %v4961 = vld [vmem:[%s286 + $0x130] sm:$0xff]
        %v4962 = vld [vmem:[%s286 + $0x138] sm:$0xff]
        %v4963 = vld [vmem:[%s286 + $0x140] sm:$0xff]
        %v4964 = vld [vmem:[%s286 + $0x148] sm:$0xff]
        %v4965 = vld [vmem:[%s286 + $0x150] sm:$0xff]
        %v4966 = vld [vmem:[%s286 + $0x158] sm:$0xff]
        %v4967 = vld [vmem:[%s286 + $0x160] sm:$0xff]
        %v4968 = vld [vmem:[%s286 + $0x168] sm:$0xff]
        %v4969 = vld [vmem:[%s286 + $0x170] sm:$0xff]
        %v4970 = vld [vmem:[%s286 + $0x178] sm:$0xff]
        %v4971 = vld [vmem:[%s286 + $0x180] sm:$0xff]
        %v4972 = vld [vmem:[%s286 + $0x188] sm:$0xff]
        %v4973 = vld [vmem:[%s286 + $0x190] sm:$0xff]
        %v4974 = vld [vmem:[%s286 + $0x198] sm:$0xff]
        %v4975 = vld [vmem:[%s286 + $0x1a0] sm:$0xff]
        %v4976 = vld [vmem:[%s286 + $0x1a8] sm:$0xff]
        %v4977 = vld [vmem:[%s286 + $0x1b0] sm:$0xff]
        %v4978 = vld [vmem:[%s286 + $0x1b8] sm:$0xff]
        %v4979 = vld [vmem:[%s286 + $0x1c0] sm:$0xff]
        %v4980 = vld [vmem:[%s286 + $0x1c8] sm:$0xff]
        %v4981 = vld [vmem:[%s286 + $0x1d0] sm:$0xff]
        %v4982 = vld [vmem:[%s286 + $0x1d8] sm:$0xff]
        %v4983 = vld [vmem:[%s286 + $0x1e0] sm:$0xff]
        %v4984 = vld [vmem:[%s286 + $0x1e8] sm:$0xff]
        %v4985 = vld [vmem:[%s286 + $0x1f0] sm:$0xff]
        %v4986 = vld [vmem:[%s286 + $0x1f8] sm:$0xff]
        %v4987 = vld [vmem:[%s295] sm:$0x1f]
        %4988 = vset.pattern.permute.xlu0 0
        %4989 = vperm.xlu0 %4988, %v4923
        %v4990 = vpop.permute.xlu0 %4989
        %4991 = vset.pattern.permute.xlu0 0
        %4992 = vperm.xlu0 %4991, %v4924
        %v4993 = vpop.permute.xlu0 %4992
        %4994 = vset.pattern.permute.xlu0 0
        %4995 = vperm.xlu0 %4994, %v4925
        %v4996 = vpop.permute.xlu0 %4995
        %4997 = vset.pattern.permute.xlu0 0
        %4998 = vperm.xlu0 %4997, %v4926
        %v4999 = vpop.permute.xlu0 %4998
        %5000 = vset.pattern.permute.xlu0 0
        %5001 = vperm.xlu0 %5000, %v4927
        %v5002 = vpop.permute.xlu0 %5001
        %5003 = vset.pattern.permute.xlu0 0
        %5004 = vperm.xlu0 %5003, %v4928
        %v5005 = vpop.permute.xlu0 %5004
        %5006 = vset.pattern.permute.xlu0 0
        %5007 = vperm.xlu0 %5006, %v4929
        %v5008 = vpop.permute.xlu0 %5007
        %5009 = vset.pattern.permute.xlu0 0
        %5010 = vperm.xlu0 %5009, %v4930
        %v5011 = vpop.permute.xlu0 %5010
        %5012 = vset.pattern.permute.xlu0 0
        %5013 = vperm.xlu0 %5012, %v4931
        %v5014 = vpop.permute.xlu0 %5013
        %5015 = vset.pattern.permute.xlu0 0
        %5016 = vperm.xlu0 %5015, %v4932
        %v5017 = vpop.permute.xlu0 %5016
        %5018 = vset.pattern.permute.xlu0 0
        %5019 = vperm.xlu0 %5018, %v4933
        %v5020 = vpop.permute.xlu0 %5019
        %5021 = vset.pattern.permute.xlu0 0
        %5022 = vperm.xlu0 %5021, %v4934
        %v5023 = vpop.permute.xlu0 %5022
        %5024 = vset.pattern.permute.xlu0 0
        %5025 = vperm.xlu0 %5024, %v4935
        %v5026 = vpop.permute.xlu0 %5025
        %5027 = vset.pattern.permute.xlu0 0
        %5028 = vperm.xlu0 %5027, %v4936
        %v5029 = vpop.permute.xlu0 %5028
        %5030 = vset.pattern.permute.xlu0 0
        %5031 = vperm.xlu0 %5030, %v4937
        %v5032 = vpop.permute.xlu0 %5031
        %5033 = vset.pattern.permute.xlu0 0
        %5034 = vperm.xlu0 %5033, %v4938
        %v5035 = vpop.permute.xlu0 %5034
        %5036 = vset.pattern.permute.xlu0 0
        %5037 = vperm.xlu0 %5036, %v4939
        %v5038 = vpop.permute.xlu0 %5037
        %5039 = vset.pattern.permute.xlu0 0
        %5040 = vperm.xlu0 %5039, %v4940
        %v5041 = vpop.permute.xlu0 %5040
        %5042 = vset.pattern.permute.xlu0 0
        %5043 = vperm.xlu0 %5042, %v4941
        %v5044 = vpop.permute.xlu0 %5043
        %5045 = vset.pattern.permute.xlu0 0
        %5046 = vperm.xlu0 %5045, %v4942
        %v5047 = vpop.permute.xlu0 %5046
        %5048 = vset.pattern.permute.xlu0 0
        %5049 = vperm.xlu0 %5048, %v4943
        %v5050 = vpop.permute.xlu0 %5049
        %5051 = vset.pattern.permute.xlu0 0
        %5052 = vperm.xlu0 %5051, %v4944
        %v5053 = vpop.permute.xlu0 %5052
        %5054 = vset.pattern.permute.xlu0 0
        %5055 = vperm.xlu0 %5054, %v4945
        %v5056 = vpop.permute.xlu0 %5055
        %5057 = vset.pattern.permute.xlu0 0
        %5058 = vperm.xlu0 %5057, %v4946
        %v5059 = vpop.permute.xlu0 %5058
        %5060 = vset.pattern.permute.xlu0 0
        %5061 = vperm.xlu0 %5060, %v4947
        %v5062 = vpop.permute.xlu0 %5061
        %5063 = vset.pattern.permute.xlu0 0
        %5064 = vperm.xlu0 %5063, %v4948
        %v5065 = vpop.permute.xlu0 %5064
        %5066 = vset.pattern.permute.xlu0 0
        %5067 = vperm.xlu0 %5066, %v4949
        %v5068 = vpop.permute.xlu0 %5067
        %5069 = vset.pattern.permute.xlu0 0
        %5070 = vperm.xlu0 %5069, %v4950
        %v5071 = vpop.permute.xlu0 %5070
        %5072 = vset.pattern.permute.xlu0 0
        %5073 = vperm.xlu0 %5072, %v4951
        %v5074 = vpop.permute.xlu0 %5073
        %5075 = vset.pattern.permute.xlu0 0
        %5076 = vperm.xlu0 %5075, %v4952
        %v5077 = vpop.permute.xlu0 %5076
        %5078 = vset.pattern.permute.xlu0 0
        %5079 = vperm.xlu0 %5078, %v4953
        %v5080 = vpop.permute.xlu0 %5079
        %5081 = vset.pattern.permute.xlu0 0
        %5082 = vperm.xlu0 %5081, %v4954
        %v5083 = vpop.permute.xlu0 %5082
        %5084 = vset.pattern.permute.xlu0 0
        %5085 = vperm.xlu0 %5084, %v4955
        %v5086 = vpop.permute.xlu0 %5085
        %5087 = vset.pattern.permute.xlu0 0
        %5088 = vperm.xlu0 %5087, %v4956
        %v5089 = vpop.permute.xlu0 %5088
        %5090 = vset.pattern.permute.xlu0 0
        %5091 = vperm.xlu0 %5090, %v4957
        %v5092 = vpop.permute.xlu0 %5091
        %5093 = vset.pattern.permute.xlu0 0
        %5094 = vperm.xlu0 %5093, %v4958
        %v5095 = vpop.permute.xlu0 %5094
        %5096 = vset.pattern.permute.xlu0 0
        %5097 = vperm.xlu0 %5096, %v4959
        %v5098 = vpop.permute.xlu0 %5097
        %5099 = vset.pattern.permute.xlu0 0
        %5100 = vperm.xlu0 %5099, %v4960
        %v5101 = vpop.permute.xlu0 %5100
        %5102 = vset.pattern.permute.xlu0 0
        %5103 = vperm.xlu0 %5102, %v4961
        %v5104 = vpop.permute.xlu0 %5103
        %5105 = vset.pattern.permute.xlu0 0
        %5106 = vperm.xlu0 %5105, %v4962
        %v5107 = vpop.permute.xlu0 %5106
        %5108 = vset.pattern.permute.xlu0 0
        %5109 = vperm.xlu0 %5108, %v4963
        %v5110 = vpop.permute.xlu0 %5109
        %5111 = vset.pattern.permute.xlu0 0
        %5112 = vperm.xlu0 %5111, %v4964
        %v5113 = vpop.permute.xlu0 %5112
        %5114 = vset.pattern.permute.xlu0 0
        %5115 = vperm.xlu0 %5114, %v4965
        %v5116 = vpop.permute.xlu0 %5115
        %5117 = vset.pattern.permute.xlu0 0
        %5118 = vperm.xlu0 %5117, %v4966
        %v5119 = vpop.permute.xlu0 %5118
        %5120 = vset.pattern.permute.xlu0 0
        %5121 = vperm.xlu0 %5120, %v4967
        %v5122 = vpop.permute.xlu0 %5121
        %5123 = vset.pattern.permute.xlu0 0
        %5124 = vperm.xlu0 %5123, %v4968
        %v5125 = vpop.permute.xlu0 %5124
        %5126 = vset.pattern.permute.xlu0 0
        %5127 = vperm.xlu0 %5126, %v4969
        %v5128 = vpop.permute.xlu0 %5127
        %5129 = vset.pattern.permute.xlu0 0
        %5130 = vperm.xlu0 %5129, %v4970
        %v5131 = vpop.permute.xlu0 %5130
        %5132 = vset.pattern.permute.xlu0 0
        %5133 = vperm.xlu0 %5132, %v4971
        %v5134 = vpop.permute.xlu0 %5133
        %5135 = vset.pattern.permute.xlu0 0
        %5136 = vperm.xlu0 %5135, %v4972
        %v5137 = vpop.permute.xlu0 %5136
        %5138 = vset.pattern.permute.xlu0 0
        %5139 = vperm.xlu0 %5138, %v4973
        %v5140 = vpop.permute.xlu0 %5139
        %5141 = vset.pattern.permute.xlu0 0
        %5142 = vperm.xlu0 %5141, %v4974
        %v5143 = vpop.permute.xlu0 %5142
        %5144 = vset.pattern.permute.xlu0 0
        %5145 = vperm.xlu0 %5144, %v4975
        %v5146 = vpop.permute.xlu0 %5145
        %5147 = vset.pattern.permute.xlu0 0
        %5148 = vperm.xlu0 %5147, %v4976
        %v5149 = vpop.permute.xlu0 %5148
        %5150 = vset.pattern.permute.xlu0 0
        %5151 = vperm.xlu0 %5150, %v4977
        %v5152 = vpop.permute.xlu0 %5151
        %5153 = vset.pattern.permute.xlu0 0
        %5154 = vperm.xlu0 %5153, %v4978
        %v5155 = vpop.permute.xlu0 %5154
        %5156 = vset.pattern.permute.xlu0 0
        %5157 = vperm.xlu0 %5156, %v4979
        %v5158 = vpop.permute.xlu0 %5157
        %5159 = vset.pattern.permute.xlu0 0
        %5160 = vperm.xlu0 %5159, %v4980
        %v5161 = vpop.permute.xlu0 %5160
        %5162 = vset.pattern.permute.xlu0 0
        %5163 = vperm.xlu0 %5162, %v4981
        %v5164 = vpop.permute.xlu0 %5163
        %5165 = vset.pattern.permute.xlu0 0
        %5166 = vperm.xlu0 %5165, %v4982
        %v5167 = vpop.permute.xlu0 %5166
        %5168 = vset.pattern.permute.xlu0 0
        %5169 = vperm.xlu0 %5168, %v4983
        %v5170 = vpop.permute.xlu0 %5169
        %5171 = vset.pattern.permute.xlu0 0
        %5172 = vperm.xlu0 %5171, %v4984
        %v5173 = vpop.permute.xlu0 %5172
        %5174 = vset.pattern.permute.xlu0 0
        %5175 = vperm.xlu0 %5174, %v4985
        %v5176 = vpop.permute.xlu0 %5175
        %5177 = vset.pattern.permute.xlu0 0
        %5178 = vperm.xlu0 %5177, %v4986
        %v5179 = vpop.permute.xlu0 %5178
        %v5180 = vlaneseq
        %v5181 = vshrl.u32 %v5180, 7
        %v5182 = vsub.s32 0, %v5181
        %v5183 = vrot.slane %v4987, %v5182
        %v5184 = vlaneseq
        %v5185 = vshrl.u32 %v5184, 7
        %v5186 = vsub.s32 1, %v5185
        %v5187 = vrot.slane %v4987, %v5186
        %v5188 = vlaneseq
        %v5189 = vshrl.u32 %v5188, 7
        %v5190 = vsub.s32 2, %v5189
        %v5191 = vrot.slane %v4987, %v5190
        %v5192 = vlaneseq
        %v5193 = vshrl.u32 %v5192, 7
        %v5194 = vsub.s32 3, %v5193
        %v5195 = vrot.slane %v4987, %v5194
        %v5196 = vlaneseq
        %v5197 = vshrl.u32 %v5196, 7
        %v5198 = vsub.s32 4, %v5197
        %v5199 = vrot.slane %v4987, %v5198
        %v5200 = vadd.s32 %v4990, %v5183
        %v5201 = vadd.s32 %v4990, %v5187
        %v5202 = vadd.s32 %v4990, %v5191
        %v5203 = vadd.s32 %v4990, %v5195
        %v5204 = vadd.s32 %v4990, %v5199
        %v5205 = vadd.s32 %v4993, %v5183
        %v5206 = vadd.s32 %v4993, %v5187
        %v5207 = vadd.s32 %v4993, %v5191
        %v5208 = vadd.s32 %v4993, %v5195
        %v5209 = vadd.s32 %v4993, %v5199
        %v5210 = vadd.s32 %v4996, %v5183
        %v5211 = vadd.s32 %v4996, %v5187
        %v5212 = vadd.s32 %v4996, %v5191
        %v5213 = vadd.s32 %v4996, %v5195
        %v5214 = vadd.s32 %v4996, %v5199
        %v5215 = vadd.s32 %v4999, %v5183
        %v5216 = vadd.s32 %v4999, %v5187
        %v5217 = vadd.s32 %v4999, %v5191
        %v5218 = vadd.s32 %v4999, %v5195
        %v5219 = vadd.s32 %v4999, %v5199
        %v5220 = vadd.s32 %v5002, %v5183
        %v5221 = vadd.s32 %v5002, %v5187
        %v5222 = vadd.s32 %v5002, %v5191
        %v5223 = vadd.s32 %v5002, %v5195
        %v5224 = vadd.s32 %v5002, %v5199
        %v5225 = vadd.s32 %v5005, %v5183
        %v5226 = vadd.s32 %v5005, %v5187
        %v5227 = vadd.s32 %v5005, %v5191
        %v5228 = vadd.s32 %v5005, %v5195
        %v5229 = vadd.s32 %v5005, %v5199
        %v5230 = vadd.s32 %v5008, %v5183
        %v5231 = vadd.s32 %v5008, %v5187
        %v5232 = vadd.s32 %v5008, %v5191
        %v5233 = vadd.s32 %v5008, %v5195
        %v5234 = vadd.s32 %v5008, %v5199
        %v5235 = vadd.s32 %v5011, %v5183
        %v5236 = vadd.s32 %v5011, %v5187
        %v5237 = vadd.s32 %v5011, %v5191
        %v5238 = vadd.s32 %v5011, %v5195
        %v5239 = vadd.s32 %v5011, %v5199
        %v5240 = vadd.s32 %v5014, %v5183
        %v5241 = vadd.s32 %v5014, %v5187
        %v5242 = vadd.s32 %v5014, %v5191
        %v5243 = vadd.s32 %v5014, %v5195
        %v5244 = vadd.s32 %v5014, %v5199
        %v5245 = vadd.s32 %v5017, %v5183
        %v5246 = vadd.s32 %v5017, %v5187
        %v5247 = vadd.s32 %v5017, %v5191
        %v5248 = vadd.s32 %v5017, %v5195
        %v5249 = vadd.s32 %v5017, %v5199
        %v5250 = vadd.s32 %v5020, %v5183
        %v5251 = vadd.s32 %v5020, %v5187
        %v5252 = vadd.s32 %v5020, %v5191
        %v5253 = vadd.s32 %v5020, %v5195
        %v5254 = vadd.s32 %v5020, %v5199
        %v5255 = vadd.s32 %v5023, %v5183
        %v5256 = vadd.s32 %v5023, %v5187
        %v5257 = vadd.s32 %v5023, %v5191
        %v5258 = vadd.s32 %v5023, %v5195
        %v5259 = vadd.s32 %v5023, %v5199
        %v5260 = vadd.s32 %v5026, %v5183
        %v5261 = vadd.s32 %v5026, %v5187
        %v5262 = vadd.s32 %v5026, %v5191
        %v5263 = vadd.s32 %v5026, %v5195
        %v5264 = vadd.s32 %v5026, %v5199
        %v5265 = vadd.s32 %v5029, %v5183
        %v5266 = vadd.s32 %v5029, %v5187
        %v5267 = vadd.s32 %v5029, %v5191
        %v5268 = vadd.s32 %v5029, %v5195
        %v5269 = vadd.s32 %v5029, %v5199
        %v5270 = vadd.s32 %v5032, %v5183
        %v5271 = vadd.s32 %v5032, %v5187
        %v5272 = vadd.s32 %v5032, %v5191
        %v5273 = vadd.s32 %v5032, %v5195
        %v5274 = vadd.s32 %v5032, %v5199
        %v5275 = vadd.s32 %v5035, %v5183
        %v5276 = vadd.s32 %v5035, %v5187
        %v5277 = vadd.s32 %v5035, %v5191
        %v5278 = vadd.s32 %v5035, %v5195
        %v5279 = vadd.s32 %v5035, %v5199
        %v5280 = vadd.s32 %v5038, %v5183
        %v5281 = vadd.s32 %v5038, %v5187
        %v5282 = vadd.s32 %v5038, %v5191
        %v5283 = vadd.s32 %v5038, %v5195
        %v5284 = vadd.s32 %v5038, %v5199
        %v5285 = vadd.s32 %v5041, %v5183
        %v5286 = vadd.s32 %v5041, %v5187
        %v5287 = vadd.s32 %v5041, %v5191
        %v5288 = vadd.s32 %v5041, %v5195
        %v5289 = vadd.s32 %v5041, %v5199
        %v5290 = vadd.s32 %v5044, %v5183
        %v5291 = vadd.s32 %v5044, %v5187
        %v5292 = vadd.s32 %v5044, %v5191
        %v5293 = vadd.s32 %v5044, %v5195
        %v5294 = vadd.s32 %v5044, %v5199
        %v5295 = vadd.s32 %v5047, %v5183
        %v5296 = vadd.s32 %v5047, %v5187
        %v5297 = vadd.s32 %v5047, %v5191
        %v5298 = vadd.s32 %v5047, %v5195
        %v5299 = vadd.s32 %v5047, %v5199
        %v5300 = vadd.s32 %v5050, %v5183
        %v5301 = vadd.s32 %v5050, %v5187
        %v5302 = vadd.s32 %v5050, %v5191
        %v5303 = vadd.s32 %v5050, %v5195
        %v5304 = vadd.s32 %v5050, %v5199
        %v5305 = vadd.s32 %v5053, %v5183
        %v5306 = vadd.s32 %v5053, %v5187
        %v5307 = vadd.s32 %v5053, %v5191
        %v5308 = vadd.s32 %v5053, %v5195
        %v5309 = vadd.s32 %v5053, %v5199
        %v5310 = vadd.s32 %v5056, %v5183
        %v5311 = vadd.s32 %v5056, %v5187
        %v5312 = vadd.s32 %v5056, %v5191
        %v5313 = vadd.s32 %v5056, %v5195
        %v5314 = vadd.s32 %v5056, %v5199
        %v5315 = vadd.s32 %v5059, %v5183
        %v5316 = vadd.s32 %v5059, %v5187
        %v5317 = vadd.s32 %v5059, %v5191
        %v5318 = vadd.s32 %v5059, %v5195
        %v5319 = vadd.s32 %v5059, %v5199
        %v5320 = vadd.s32 %v5062, %v5183
        %v5321 = vadd.s32 %v5062, %v5187
        %v5322 = vadd.s32 %v5062, %v5191
        %v5323 = vadd.s32 %v5062, %v5195
        %v5324 = vadd.s32 %v5062, %v5199
        %v5325 = vadd.s32 %v5065, %v5183
        %v5326 = vadd.s32 %v5065, %v5187
        %v5327 = vadd.s32 %v5065, %v5191
        %v5328 = vadd.s32 %v5065, %v5195
        %v5329 = vadd.s32 %v5065, %v5199
        %v5330 = vadd.s32 %v5068, %v5183
        %v5331 = vadd.s32 %v5068, %v5187
        %v5332 = vadd.s32 %v5068, %v5191
        %v5333 = vadd.s32 %v5068, %v5195
        %v5334 = vadd.s32 %v5068, %v5199
        %v5335 = vadd.s32 %v5071, %v5183
        %v5336 = vadd.s32 %v5071, %v5187
        %v5337 = vadd.s32 %v5071, %v5191
        %v5338 = vadd.s32 %v5071, %v5195
        %v5339 = vadd.s32 %v5071, %v5199
        %v5340 = vadd.s32 %v5074, %v5183
        %v5341 = vadd.s32 %v5074, %v5187
        %v5342 = vadd.s32 %v5074, %v5191
        %v5343 = vadd.s32 %v5074, %v5195
        %v5344 = vadd.s32 %v5074, %v5199
        %v5345 = vadd.s32 %v5077, %v5183
        %v5346 = vadd.s32 %v5077, %v5187
        %v5347 = vadd.s32 %v5077, %v5191
        %v5348 = vadd.s32 %v5077, %v5195
        %v5349 = vadd.s32 %v5077, %v5199
        %v5350 = vadd.s32 %v5080, %v5183
        %v5351 = vadd.s32 %v5080, %v5187
        %v5352 = vadd.s32 %v5080, %v5191
        %v5353 = vadd.s32 %v5080, %v5195
        %v5354 = vadd.s32 %v5080, %v5199
        %v5355 = vadd.s32 %v5083, %v5183
        %v5356 = vadd.s32 %v5083, %v5187
        %v5357 = vadd.s32 %v5083, %v5191
        %v5358 = vadd.s32 %v5083, %v5195
        %v5359 = vadd.s32 %v5083, %v5199
        %v5360 = vadd.s32 %v5086, %v5183
        %v5361 = vadd.s32 %v5086, %v5187
        %v5362 = vadd.s32 %v5086, %v5191
        %v5363 = vadd.s32 %v5086, %v5195
        %v5364 = vadd.s32 %v5086, %v5199
        %v5365 = vadd.s32 %v5089, %v5183
        %v5366 = vadd.s32 %v5089, %v5187
        %v5367 = vadd.s32 %v5089, %v5191
        %v5368 = vadd.s32 %v5089, %v5195
        %v5369 = vadd.s32 %v5089, %v5199
        %v5370 = vadd.s32 %v5092, %v5183
        %v5371 = vadd.s32 %v5092, %v5187
        %v5372 = vadd.s32 %v5092, %v5191
        %v5373 = vadd.s32 %v5092, %v5195
        %v5374 = vadd.s32 %v5092, %v5199
        %v5375 = vadd.s32 %v5095, %v5183
        %v5376 = vadd.s32 %v5095, %v5187
        %v5377 = vadd.s32 %v5095, %v5191
        %v5378 = vadd.s32 %v5095, %v5195
        %v5379 = vadd.s32 %v5095, %v5199
        %v5380 = vadd.s32 %v5098, %v5183
        %v5381 = vadd.s32 %v5098, %v5187
        %v5382 = vadd.s32 %v5098, %v5191
        %v5383 = vadd.s32 %v5098, %v5195
        %v5384 = vadd.s32 %v5098, %v5199
        %v5385 = vadd.s32 %v5101, %v5183
        %v5386 = vadd.s32 %v5101, %v5187
        %v5387 = vadd.s32 %v5101, %v5191
        %v5388 = vadd.s32 %v5101, %v5195
        %v5389 = vadd.s32 %v5101, %v5199
        %v5390 = vadd.s32 %v5104, %v5183
        %v5391 = vadd.s32 %v5104, %v5187
        %v5392 = vadd.s32 %v5104, %v5191
        %v5393 = vadd.s32 %v5104, %v5195
        %v5394 = vadd.s32 %v5104, %v5199
        %v5395 = vadd.s32 %v5107, %v5183
        %v5396 = vadd.s32 %v5107, %v5187
        %v5397 = vadd.s32 %v5107, %v5191
        %v5398 = vadd.s32 %v5107, %v5195
        %v5399 = vadd.s32 %v5107, %v5199
        %v5400 = vadd.s32 %v5110, %v5183
        %v5401 = vadd.s32 %v5110, %v5187
        %v5402 = vadd.s32 %v5110, %v5191
        %v5403 = vadd.s32 %v5110, %v5195
        %v5404 = vadd.s32 %v5110, %v5199
        %v5405 = vadd.s32 %v5113, %v5183
        %v5406 = vadd.s32 %v5113, %v5187
        %v5407 = vadd.s32 %v5113, %v5191
        %v5408 = vadd.s32 %v5113, %v5195
        %v5409 = vadd.s32 %v5113, %v5199
        %v5410 = vadd.s32 %v5116, %v5183
        %v5411 = vadd.s32 %v5116, %v5187
        %v5412 = vadd.s32 %v5116, %v5191
        %v5413 = vadd.s32 %v5116, %v5195
        %v5414 = vadd.s32 %v5116, %v5199
        %v5415 = vadd.s32 %v5119, %v5183
        %v5416 = vadd.s32 %v5119, %v5187
        %v5417 = vadd.s32 %v5119, %v5191
        %v5418 = vadd.s32 %v5119, %v5195
        %v5419 = vadd.s32 %v5119, %v5199
        %v5420 = vadd.s32 %v5122, %v5183
        %v5421 = vadd.s32 %v5122, %v5187
        %v5422 = vadd.s32 %v5122, %v5191
        %v5423 = vadd.s32 %v5122, %v5195
        %v5424 = vadd.s32 %v5122, %v5199
        %v5425 = vadd.s32 %v5125, %v5183
        %v5426 = vadd.s32 %v5125, %v5187
        %v5427 = vadd.s32 %v5125, %v5191
        %v5428 = vadd.s32 %v5125, %v5195
        %v5429 = vadd.s32 %v5125, %v5199
        %v5430 = vadd.s32 %v5128, %v5183
        %v5431 = vadd.s32 %v5128, %v5187
        %v5432 = vadd.s32 %v5128, %v5191
        %v5433 = vadd.s32 %v5128, %v5195
        %v5434 = vadd.s32 %v5128, %v5199
        %v5435 = vadd.s32 %v5131, %v5183
        %v5436 = vadd.s32 %v5131, %v5187
        %v5437 = vadd.s32 %v5131, %v5191
        %v5438 = vadd.s32 %v5131, %v5195
        %v5439 = vadd.s32 %v5131, %v5199
        %v5440 = vadd.s32 %v5134, %v5183
        %v5441 = vadd.s32 %v5134, %v5187
        %v5442 = vadd.s32 %v5134, %v5191
        %v5443 = vadd.s32 %v5134, %v5195
        %v5444 = vadd.s32 %v5134, %v5199
        %v5445 = vadd.s32 %v5137, %v5183
        %v5446 = vadd.s32 %v5137, %v5187
        %v5447 = vadd.s32 %v5137, %v5191
        %v5448 = vadd.s32 %v5137, %v5195
        %v5449 = vadd.s32 %v5137, %v5199
        %v5450 = vadd.s32 %v5140, %v5183
        %v5451 = vadd.s32 %v5140, %v5187
        %v5452 = vadd.s32 %v5140, %v5191
        %v5453 = vadd.s32 %v5140, %v5195
        %v5454 = vadd.s32 %v5140, %v5199
        %v5455 = vadd.s32 %v5143, %v5183
        %v5456 = vadd.s32 %v5143, %v5187
        %v5457 = vadd.s32 %v5143, %v5191
        %v5458 = vadd.s32 %v5143, %v5195
        %v5459 = vadd.s32 %v5143, %v5199
        %v5460 = vadd.s32 %v5146, %v5183
        %v5461 = vadd.s32 %v5146, %v5187
        %v5462 = vadd.s32 %v5146, %v5191
        %v5463 = vadd.s32 %v5146, %v5195
        %v5464 = vadd.s32 %v5146, %v5199
        %v5465 = vadd.s32 %v5149, %v5183
        %v5466 = vadd.s32 %v5149, %v5187
        %v5467 = vadd.s32 %v5149, %v5191
        %v5468 = vadd.s32 %v5149, %v5195
        %v5469 = vadd.s32 %v5149, %v5199
        %v5470 = vadd.s32 %v5152, %v5183
        %v5471 = vadd.s32 %v5152, %v5187
        %v5472 = vadd.s32 %v5152, %v5191
        %v5473 = vadd.s32 %v5152, %v5195
        %v5474 = vadd.s32 %v5152, %v5199
        %v5475 = vadd.s32 %v5155, %v5183
        %v5476 = vadd.s32 %v5155, %v5187
        %v5477 = vadd.s32 %v5155, %v5191
        %v5478 = vadd.s32 %v5155, %v5195
        %v5479 = vadd.s32 %v5155, %v5199
        %v5480 = vadd.s32 %v5158, %v5183
        %v5481 = vadd.s32 %v5158, %v5187
        %v5482 = vadd.s32 %v5158, %v5191
        %v5483 = vadd.s32 %v5158, %v5195
        %v5484 = vadd.s32 %v5158, %v5199
        %v5485 = vadd.s32 %v5161, %v5183
        %v5486 = vadd.s32 %v5161, %v5187
        %v5487 = vadd.s32 %v5161, %v5191
        %v5488 = vadd.s32 %v5161, %v5195
        %v5489 = vadd.s32 %v5161, %v5199
        %v5490 = vadd.s32 %v5164, %v5183
        %v5491 = vadd.s32 %v5164, %v5187
        %v5492 = vadd.s32 %v5164, %v5191
        %v5493 = vadd.s32 %v5164, %v5195
        %v5494 = vadd.s32 %v5164, %v5199
        %v5495 = vadd.s32 %v5167, %v5183
        %v5496 = vadd.s32 %v5167, %v5187
        %v5497 = vadd.s32 %v5167, %v5191
        %v5498 = vadd.s32 %v5167, %v5195
        %v5499 = vadd.s32 %v5167, %v5199
        %v5500 = vadd.s32 %v5170, %v5183
        %v5501 = vadd.s32 %v5170, %v5187
        %v5502 = vadd.s32 %v5170, %v5191
        %v5503 = vadd.s32 %v5170, %v5195
        %v5504 = vadd.s32 %v5170, %v5199
        %v5505 = vadd.s32 %v5173, %v5183
        %v5506 = vadd.s32 %v5173, %v5187
        %v5507 = vadd.s32 %v5173, %v5191
        %v5508 = vadd.s32 %v5173, %v5195
        %v5509 = vadd.s32 %v5173, %v5199
        %v5510 = vadd.s32 %v5176, %v5183
        %v5511 = vadd.s32 %v5176, %v5187
        %v5512 = vadd.s32 %v5176, %v5191
        %v5513 = vadd.s32 %v5176, %v5195
        %v5514 = vadd.s32 %v5176, %v5199
        %v5515 = vadd.s32 %v5179, %v5183
        %v5516 = vadd.s32 %v5179, %v5187
        %v5517 = vadd.s32 %v5179, %v5191
        %v5518 = vadd.s32 %v5179, %v5195
        %v5519 = vadd.s32 %v5179, %v5199
        %vm5520 = vcmp.gt.s32.totalorder %v5200, 0
        %vm5521 = vcmp.gt.s32.totalorder %v5201, 0
        %vm5522 = vcmp.gt.s32.totalorder %v5202, 0
        %vm5523 = vcmp.gt.s32.totalorder %v5203, 0
        %vm5524 = vcmp.gt.s32.totalorder %v5204, 0
        %vm5525 = vcmp.gt.s32.totalorder %v5205, 0
        %vm5526 = vcmp.gt.s32.totalorder %v5206, 0
        %vm5527 = vcmp.gt.s32.totalorder %v5207, 0
        %vm5528 = vcmp.gt.s32.totalorder %v5208, 0
        %vm5529 = vcmp.gt.s32.totalorder %v5209, 0
        %vm5530 = vcmp.gt.s32.totalorder %v5210, 0
        %vm5531 = vcmp.gt.s32.totalorder %v5211, 0
        %vm5532 = vcmp.gt.s32.totalorder %v5212, 0
        %vm5533 = vcmp.gt.s32.totalorder %v5213, 0
        %vm5534 = vcmp.gt.s32.totalorder %v5214, 0
        %vm5535 = vcmp.gt.s32.totalorder %v5215, 0
        %vm5536 = vcmp.gt.s32.totalorder %v5216, 0
        %vm5537 = vcmp.gt.s32.totalorder %v5217, 0
        %vm5538 = vcmp.gt.s32.totalorder %v5218, 0
        %vm5539 = vcmp.gt.s32.totalorder %v5219, 0
        %vm5540 = vcmp.gt.s32.totalorder %v5220, 0
        %vm5541 = vcmp.gt.s32.totalorder %v5221, 0
        %vm5542 = vcmp.gt.s32.totalorder %v5222, 0
        %vm5543 = vcmp.gt.s32.totalorder %v5223, 0
        %vm5544 = vcmp.gt.s32.totalorder %v5224, 0
        %vm5545 = vcmp.gt.s32.totalorder %v5225, 0
        %vm5546 = vcmp.gt.s32.totalorder %v5226, 0
        %vm5547 = vcmp.gt.s32.totalorder %v5227, 0
        %vm5548 = vcmp.gt.s32.totalorder %v5228, 0
        %vm5549 = vcmp.gt.s32.totalorder %v5229, 0
        %vm5550 = vcmp.gt.s32.totalorder %v5230, 0
        %vm5551 = vcmp.gt.s32.totalorder %v5231, 0
        %vm5552 = vcmp.gt.s32.totalorder %v5232, 0
        %vm5553 = vcmp.gt.s32.totalorder %v5233, 0
        %vm5554 = vcmp.gt.s32.totalorder %v5234, 0
        %vm5555 = vcmp.gt.s32.totalorder %v5235, 0
        %vm5556 = vcmp.gt.s32.totalorder %v5236, 0
        %vm5557 = vcmp.gt.s32.totalorder %v5237, 0
        %vm5558 = vcmp.gt.s32.totalorder %v5238, 0
        %vm5559 = vcmp.gt.s32.totalorder %v5239, 0
        %vm5560 = vcmp.gt.s32.totalorder %v5240, 0
        %vm5561 = vcmp.gt.s32.totalorder %v5241, 0
        %vm5562 = vcmp.gt.s32.totalorder %v5242, 0
        %vm5563 = vcmp.gt.s32.totalorder %v5243, 0
        %vm5564 = vcmp.gt.s32.totalorder %v5244, 0
        %vm5565 = vcmp.gt.s32.totalorder %v5245, 0
        %vm5566 = vcmp.gt.s32.totalorder %v5246, 0
        %vm5567 = vcmp.gt.s32.totalorder %v5247, 0
        %vm5568 = vcmp.gt.s32.totalorder %v5248, 0
        %vm5569 = vcmp.gt.s32.totalorder %v5249, 0
        %vm5570 = vcmp.gt.s32.totalorder %v5250, 0
        %vm5571 = vcmp.gt.s32.totalorder %v5251, 0
        %vm5572 = vcmp.gt.s32.totalorder %v5252, 0
        %vm5573 = vcmp.gt.s32.totalorder %v5253, 0
        %vm5574 = vcmp.gt.s32.totalorder %v5254, 0
        %vm5575 = vcmp.gt.s32.totalorder %v5255, 0
        %vm5576 = vcmp.gt.s32.totalorder %v5256, 0
        %vm5577 = vcmp.gt.s32.totalorder %v5257, 0
        %vm5578 = vcmp.gt.s32.totalorder %v5258, 0
        %vm5579 = vcmp.gt.s32.totalorder %v5259, 0
        %vm5580 = vcmp.gt.s32.totalorder %v5260, 0
        %vm5581 = vcmp.gt.s32.totalorder %v5261, 0
        %vm5582 = vcmp.gt.s32.totalorder %v5262, 0
        %vm5583 = vcmp.gt.s32.totalorder %v5263, 0
        %vm5584 = vcmp.gt.s32.totalorder %v5264, 0
        %vm5585 = vcmp.gt.s32.totalorder %v5265, 0
        %vm5586 = vcmp.gt.s32.totalorder %v5266, 0
        %vm5587 = vcmp.gt.s32.totalorder %v5267, 0
        %vm5588 = vcmp.gt.s32.totalorder %v5268, 0
        %vm5589 = vcmp.gt.s32.totalorder %v5269, 0
        %vm5590 = vcmp.gt.s32.totalorder %v5270, 0
        %vm5591 = vcmp.gt.s32.totalorder %v5271, 0
        %vm5592 = vcmp.gt.s32.totalorder %v5272, 0
        %vm5593 = vcmp.gt.s32.totalorder %v5273, 0
        %vm5594 = vcmp.gt.s32.totalorder %v5274, 0
        %vm5595 = vcmp.gt.s32.totalorder %v5275, 0
        %vm5596 = vcmp.gt.s32.totalorder %v5276, 0
        %vm5597 = vcmp.gt.s32.totalorder %v5277, 0
        %vm5598 = vcmp.gt.s32.totalorder %v5278, 0
        %vm5599 = vcmp.gt.s32.totalorder %v5279, 0
        %vm5600 = vcmp.gt.s32.totalorder %v5280, 0
        %vm5601 = vcmp.gt.s32.totalorder %v5281, 0
        %vm5602 = vcmp.gt.s32.totalorder %v5282, 0
        %vm5603 = vcmp.gt.s32.totalorder %v5283, 0
        %vm5604 = vcmp.gt.s32.totalorder %v5284, 0
        %vm5605 = vcmp.gt.s32.totalorder %v5285, 0
        %vm5606 = vcmp.gt.s32.totalorder %v5286, 0
        %vm5607 = vcmp.gt.s32.totalorder %v5287, 0
        %vm5608 = vcmp.gt.s32.totalorder %v5288, 0
        %vm5609 = vcmp.gt.s32.totalorder %v5289, 0
        %vm5610 = vcmp.gt.s32.totalorder %v5290, 0
        %vm5611 = vcmp.gt.s32.totalorder %v5291, 0
        %vm5612 = vcmp.gt.s32.totalorder %v5292, 0
        %vm5613 = vcmp.gt.s32.totalorder %v5293, 0
        %vm5614 = vcmp.gt.s32.totalorder %v5294, 0
        %vm5615 = vcmp.gt.s32.totalorder %v5295, 0
        %vm5616 = vcmp.gt.s32.totalorder %v5296, 0
        %vm5617 = vcmp.gt.s32.totalorder %v5297, 0
        %vm5618 = vcmp.gt.s32.totalorder %v5298, 0
        %vm5619 = vcmp.gt.s32.totalorder %v5299, 0
        %vm5620 = vcmp.gt.s32.totalorder %v5300, 0
        %vm5621 = vcmp.gt.s32.totalorder %v5301, 0
        %vm5622 = vcmp.gt.s32.totalorder %v5302, 0
        %vm5623 = vcmp.gt.s32.totalorder %v5303, 0
        %vm5624 = vcmp.gt.s32.totalorder %v5304, 0
        %vm5625 = vcmp.gt.s32.totalorder %v5305, 0
        %vm5626 = vcmp.gt.s32.totalorder %v5306, 0
        %vm5627 = vcmp.gt.s32.totalorder %v5307, 0
        %vm5628 = vcmp.gt.s32.totalorder %v5308, 0
        %vm5629 = vcmp.gt.s32.totalorder %v5309, 0
        %vm5630 = vcmp.gt.s32.totalorder %v5310, 0
        %vm5631 = vcmp.gt.s32.totalorder %v5311, 0
        %vm5632 = vcmp.gt.s32.totalorder %v5312, 0
        %vm5633 = vcmp.gt.s32.totalorder %v5313, 0
        %vm5634 = vcmp.gt.s32.totalorder %v5314, 0
        %vm5635 = vcmp.gt.s32.totalorder %v5315, 0
        %vm5636 = vcmp.gt.s32.totalorder %v5316, 0
        %vm5637 = vcmp.gt.s32.totalorder %v5317, 0
        %vm5638 = vcmp.gt.s32.totalorder %v5318, 0
        %vm5639 = vcmp.gt.s32.totalorder %v5319, 0
        %vm5640 = vcmp.gt.s32.totalorder %v5320, 0
        %vm5641 = vcmp.gt.s32.totalorder %v5321, 0
        %vm5642 = vcmp.gt.s32.totalorder %v5322, 0
        %vm5643 = vcmp.gt.s32.totalorder %v5323, 0
        %vm5644 = vcmp.gt.s32.totalorder %v5324, 0
        %vm5645 = vcmp.gt.s32.totalorder %v5325, 0
        %vm5646 = vcmp.gt.s32.totalorder %v5326, 0
        %vm5647 = vcmp.gt.s32.totalorder %v5327, 0
        %vm5648 = vcmp.gt.s32.totalorder %v5328, 0
        %vm5649 = vcmp.gt.s32.totalorder %v5329, 0
        %vm5650 = vcmp.gt.s32.totalorder %v5330, 0
        %vm5651 = vcmp.gt.s32.totalorder %v5331, 0
        %vm5652 = vcmp.gt.s32.totalorder %v5332, 0
        %vm5653 = vcmp.gt.s32.totalorder %v5333, 0
        %vm5654 = vcmp.gt.s32.totalorder %v5334, 0
        %vm5655 = vcmp.gt.s32.totalorder %v5335, 0
        %vm5656 = vcmp.gt.s32.totalorder %v5336, 0
        %vm5657 = vcmp.gt.s32.totalorder %v5337, 0
        %vm5658 = vcmp.gt.s32.totalorder %v5338, 0
        %vm5659 = vcmp.gt.s32.totalorder %v5339, 0
        %vm5660 = vcmp.gt.s32.totalorder %v5340, 0
        %vm5661 = vcmp.gt.s32.totalorder %v5341, 0
        %vm5662 = vcmp.gt.s32.totalorder %v5342, 0
        %vm5663 = vcmp.gt.s32.totalorder %v5343, 0
        %vm5664 = vcmp.gt.s32.totalorder %v5344, 0
        %vm5665 = vcmp.gt.s32.totalorder %v5345, 0
        %vm5666 = vcmp.gt.s32.totalorder %v5346, 0
        %vm5667 = vcmp.gt.s32.totalorder %v5347, 0
        %vm5668 = vcmp.gt.s32.totalorder %v5348, 0
        %vm5669 = vcmp.gt.s32.totalorder %v5349, 0
        %vm5670 = vcmp.gt.s32.totalorder %v5350, 0
        %vm5671 = vcmp.gt.s32.totalorder %v5351, 0
        %vm5672 = vcmp.gt.s32.totalorder %v5352, 0
        %vm5673 = vcmp.gt.s32.totalorder %v5353, 0
        %vm5674 = vcmp.gt.s32.totalorder %v5354, 0
        %vm5675 = vcmp.gt.s32.totalorder %v5355, 0
        %vm5676 = vcmp.gt.s32.totalorder %v5356, 0
        %vm5677 = vcmp.gt.s32.totalorder %v5357, 0
        %vm5678 = vcmp.gt.s32.totalorder %v5358, 0
        %vm5679 = vcmp.gt.s32.totalorder %v5359, 0
        %vm5680 = vcmp.gt.s32.totalorder %v5360, 0
        %vm5681 = vcmp.gt.s32.totalorder %v5361, 0
        %vm5682 = vcmp.gt.s32.totalorder %v5362, 0
        %vm5683 = vcmp.gt.s32.totalorder %v5363, 0
        %vm5684 = vcmp.gt.s32.totalorder %v5364, 0
        %vm5685 = vcmp.gt.s32.totalorder %v5365, 0
        %vm5686 = vcmp.gt.s32.totalorder %v5366, 0
        %vm5687 = vcmp.gt.s32.totalorder %v5367, 0
        %vm5688 = vcmp.gt.s32.totalorder %v5368, 0
        %vm5689 = vcmp.gt.s32.totalorder %v5369, 0
        %vm5690 = vcmp.gt.s32.totalorder %v5370, 0
        %vm5691 = vcmp.gt.s32.totalorder %v5371, 0
        %vm5692 = vcmp.gt.s32.totalorder %v5372, 0
        %vm5693 = vcmp.gt.s32.totalorder %v5373, 0
        %vm5694 = vcmp.gt.s32.totalorder %v5374, 0
        %vm5695 = vcmp.gt.s32.totalorder %v5375, 0
        %vm5696 = vcmp.gt.s32.totalorder %v5376, 0
        %vm5697 = vcmp.gt.s32.totalorder %v5377, 0
        %vm5698 = vcmp.gt.s32.totalorder %v5378, 0
        %vm5699 = vcmp.gt.s32.totalorder %v5379, 0
        %vm5700 = vcmp.gt.s32.totalorder %v5380, 0
        %vm5701 = vcmp.gt.s32.totalorder %v5381, 0
        %vm5702 = vcmp.gt.s32.totalorder %v5382, 0
        %vm5703 = vcmp.gt.s32.totalorder %v5383, 0
        %vm5704 = vcmp.gt.s32.totalorder %v5384, 0
        %vm5705 = vcmp.gt.s32.totalorder %v5385, 0
        %vm5706 = vcmp.gt.s32.totalorder %v5386, 0
        %vm5707 = vcmp.gt.s32.totalorder %v5387, 0
        %vm5708 = vcmp.gt.s32.totalorder %v5388, 0
        %vm5709 = vcmp.gt.s32.totalorder %v5389, 0
        %vm5710 = vcmp.gt.s32.totalorder %v5390, 0
        %vm5711 = vcmp.gt.s32.totalorder %v5391, 0
        %vm5712 = vcmp.gt.s32.totalorder %v5392, 0
        %vm5713 = vcmp.gt.s32.totalorder %v5393, 0
        %vm5714 = vcmp.gt.s32.totalorder %v5394, 0
        %vm5715 = vcmp.gt.s32.totalorder %v5395, 0
        %vm5716 = vcmp.gt.s32.totalorder %v5396, 0
        %vm5717 = vcmp.gt.s32.totalorder %v5397, 0
        %vm5718 = vcmp.gt.s32.totalorder %v5398, 0
        %vm5719 = vcmp.gt.s32.totalorder %v5399, 0
        %vm5720 = vcmp.gt.s32.totalorder %v5400, 0
        %vm5721 = vcmp.gt.s32.totalorder %v5401, 0
        %vm5722 = vcmp.gt.s32.totalorder %v5402, 0
        %vm5723 = vcmp.gt.s32.totalorder %v5403, 0
        %vm5724 = vcmp.gt.s32.totalorder %v5404, 0
        %vm5725 = vcmp.gt.s32.totalorder %v5405, 0
        %vm5726 = vcmp.gt.s32.totalorder %v5406, 0
        %vm5727 = vcmp.gt.s32.totalorder %v5407, 0
        %vm5728 = vcmp.gt.s32.totalorder %v5408, 0
        %vm5729 = vcmp.gt.s32.totalorder %v5409, 0
        %vm5730 = vcmp.gt.s32.totalorder %v5410, 0
        %vm5731 = vcmp.gt.s32.totalorder %v5411, 0
        %vm5732 = vcmp.gt.s32.totalorder %v5412, 0
        %vm5733 = vcmp.gt.s32.totalorder %v5413, 0
        %vm5734 = vcmp.gt.s32.totalorder %v5414, 0
        %vm5735 = vcmp.gt.s32.totalorder %v5415, 0
        %vm5736 = vcmp.gt.s32.totalorder %v5416, 0
        %vm5737 = vcmp.gt.s32.totalorder %v5417, 0
        %vm5738 = vcmp.gt.s32.totalorder %v5418, 0
        %vm5739 = vcmp.gt.s32.totalorder %v5419, 0
        %vm5740 = vcmp.gt.s32.totalorder %v5420, 0
        %vm5741 = vcmp.gt.s32.totalorder %v5421, 0
        %vm5742 = vcmp.gt.s32.totalorder %v5422, 0
        %vm5743 = vcmp.gt.s32.totalorder %v5423, 0
        %vm5744 = vcmp.gt.s32.totalorder %v5424, 0
        %vm5745 = vcmp.gt.s32.totalorder %v5425, 0
        %vm5746 = vcmp.gt.s32.totalorder %v5426, 0
        %vm5747 = vcmp.gt.s32.totalorder %v5427, 0
        %vm5748 = vcmp.gt.s32.totalorder %v5428, 0
        %vm5749 = vcmp.gt.s32.totalorder %v5429, 0
        %vm5750 = vcmp.gt.s32.totalorder %v5430, 0
        %vm5751 = vcmp.gt.s32.totalorder %v5431, 0
        %vm5752 = vcmp.gt.s32.totalorder %v5432, 0
        %vm5753 = vcmp.gt.s32.totalorder %v5433, 0
        %vm5754 = vcmp.gt.s32.totalorder %v5434, 0
        %vm5755 = vcmp.gt.s32.totalorder %v5435, 0
        %vm5756 = vcmp.gt.s32.totalorder %v5436, 0
        %vm5757 = vcmp.gt.s32.totalorder %v5437, 0
        %vm5758 = vcmp.gt.s32.totalorder %v5438, 0
        %vm5759 = vcmp.gt.s32.totalorder %v5439, 0
        %vm5760 = vcmp.gt.s32.totalorder %v5440, 0
        %vm5761 = vcmp.gt.s32.totalorder %v5441, 0
        %vm5762 = vcmp.gt.s32.totalorder %v5442, 0
        %vm5763 = vcmp.gt.s32.totalorder %v5443, 0
        %vm5764 = vcmp.gt.s32.totalorder %v5444, 0
        %vm5765 = vcmp.gt.s32.totalorder %v5445, 0
        %vm5766 = vcmp.gt.s32.totalorder %v5446, 0
        %vm5767 = vcmp.gt.s32.totalorder %v5447, 0
        %vm5768 = vcmp.gt.s32.totalorder %v5448, 0
        %vm5769 = vcmp.gt.s32.totalorder %v5449, 0
        %vm5770 = vcmp.gt.s32.totalorder %v5450, 0
        %vm5771 = vcmp.gt.s32.totalorder %v5451, 0
        %vm5772 = vcmp.gt.s32.totalorder %v5452, 0
        %vm5773 = vcmp.gt.s32.totalorder %v5453, 0
        %vm5774 = vcmp.gt.s32.totalorder %v5454, 0
        %vm5775 = vcmp.gt.s32.totalorder %v5455, 0
        %vm5776 = vcmp.gt.s32.totalorder %v5456, 0
        %vm5777 = vcmp.gt.s32.totalorder %v5457, 0
        %vm5778 = vcmp.gt.s32.totalorder %v5458, 0
        %vm5779 = vcmp.gt.s32.totalorder %v5459, 0
        %vm5780 = vcmp.gt.s32.totalorder %v5460, 0
        %vm5781 = vcmp.gt.s32.totalorder %v5461, 0
        %vm5782 = vcmp.gt.s32.totalorder %v5462, 0
        %vm5783 = vcmp.gt.s32.totalorder %v5463, 0
        %vm5784 = vcmp.gt.s32.totalorder %v5464, 0
        %vm5785 = vcmp.gt.s32.totalorder %v5465, 0
        %vm5786 = vcmp.gt.s32.totalorder %v5466, 0
        %vm5787 = vcmp.gt.s32.totalorder %v5467, 0
        %vm5788 = vcmp.gt.s32.totalorder %v5468, 0
        %vm5789 = vcmp.gt.s32.totalorder %v5469, 0
        %vm5790 = vcmp.gt.s32.totalorder %v5470, 0
        %vm5791 = vcmp.gt.s32.totalorder %v5471, 0
        %vm5792 = vcmp.gt.s32.totalorder %v5472, 0
        %vm5793 = vcmp.gt.s32.totalorder %v5473, 0
        %vm5794 = vcmp.gt.s32.totalorder %v5474, 0
        %vm5795 = vcmp.gt.s32.totalorder %v5475, 0
        %vm5796 = vcmp.gt.s32.totalorder %v5476, 0
        %vm5797 = vcmp.gt.s32.totalorder %v5477, 0
        %vm5798 = vcmp.gt.s32.totalorder %v5478, 0
        %vm5799 = vcmp.gt.s32.totalorder %v5479, 0
        %vm5800 = vcmp.gt.s32.totalorder %v5480, 0
        %vm5801 = vcmp.gt.s32.totalorder %v5481, 0
        %vm5802 = vcmp.gt.s32.totalorder %v5482, 0
        %vm5803 = vcmp.gt.s32.totalorder %v5483, 0
        %vm5804 = vcmp.gt.s32.totalorder %v5484, 0
        %vm5805 = vcmp.gt.s32.totalorder %v5485, 0
        %vm5806 = vcmp.gt.s32.totalorder %v5486, 0
        %vm5807 = vcmp.gt.s32.totalorder %v5487, 0
        %vm5808 = vcmp.gt.s32.totalorder %v5488, 0
        %vm5809 = vcmp.gt.s32.totalorder %v5489, 0
        %vm5810 = vcmp.gt.s32.totalorder %v5490, 0
        %vm5811 = vcmp.gt.s32.totalorder %v5491, 0
        %vm5812 = vcmp.gt.s32.totalorder %v5492, 0
        %vm5813 = vcmp.gt.s32.totalorder %v5493, 0
        %vm5814 = vcmp.gt.s32.totalorder %v5494, 0
        %vm5815 = vcmp.gt.s32.totalorder %v5495, 0
        %vm5816 = vcmp.gt.s32.totalorder %v5496, 0
        %vm5817 = vcmp.gt.s32.totalorder %v5497, 0
        %vm5818 = vcmp.gt.s32.totalorder %v5498, 0
        %vm5819 = vcmp.gt.s32.totalorder %v5499, 0
        %vm5820 = vcmp.gt.s32.totalorder %v5500, 0
        %vm5821 = vcmp.gt.s32.totalorder %v5501, 0
        %vm5822 = vcmp.gt.s32.totalorder %v5502, 0
        %vm5823 = vcmp.gt.s32.totalorder %v5503, 0
        %vm5824 = vcmp.gt.s32.totalorder %v5504, 0
        %vm5825 = vcmp.gt.s32.totalorder %v5505, 0
        %vm5826 = vcmp.gt.s32.totalorder %v5506, 0
        %vm5827 = vcmp.gt.s32.totalorder %v5507, 0
        %vm5828 = vcmp.gt.s32.totalorder %v5508, 0
        %vm5829 = vcmp.gt.s32.totalorder %v5509, 0
        %vm5830 = vcmp.gt.s32.totalorder %v5510, 0
        %vm5831 = vcmp.gt.s32.totalorder %v5511, 0
        %vm5832 = vcmp.gt.s32.totalorder %v5512, 0
        %vm5833 = vcmp.gt.s32.totalorder %v5513, 0
        %vm5834 = vcmp.gt.s32.totalorder %v5514, 0
        %vm5835 = vcmp.gt.s32.totalorder %v5515, 0
        %vm5836 = vcmp.gt.s32.totalorder %v5516, 0
        %vm5837 = vcmp.gt.s32.totalorder %v5517, 0
        %vm5838 = vcmp.gt.s32.totalorder %v5518, 0
        %vm5839 = vcmp.gt.s32.totalorder %v5519, 0
        %v5840 = vsel %vm5520, 0.0, %v2679
        %v5841 = vsel %vm5521, 0.0, %v2681
        %v5842 = vsel %vm5522, 0.0, %v3738
        %v5843 = vsel %vm5523, 0.0, %v3740
        %v5844 = vsel %vm5524, 0.0, %v4669
        %v5845 = vsel %vm5525, 0.0, %v2683
        %v5846 = vsel %vm5526, 0.0, %v2685
        %v5847 = vsel %vm5527, 0.0, %v3742
        %v5848 = vsel %vm5528, 0.0, %v3744
        %v5849 = vsel %vm5529, 0.0, %v4672
        %v5850 = vsel %vm5530, 0.0, %v2689
        %v5851 = vsel %vm5531, 0.0, %v2691
        %v5852 = vsel %vm5532, 0.0, %v3748
        %v5853 = vsel %vm5533, 0.0, %v3750
        %v5854 = vsel %vm5534, 0.0, %v4677
        %v5855 = vsel %vm5535, 0.0, %v2693
        %v5856 = vsel %vm5536, 0.0, %v2695
        %v5857 = vsel %vm5537, 0.0, %v3752
        %v5858 = vsel %vm5538, 0.0, %v3754
        %v5859 = vsel %vm5539, 0.0, %v4680
        %v5860 = vsel %vm5540, 0.0, %v2699
        %v5861 = vsel %vm5541, 0.0, %v2701
        %v5862 = vsel %vm5542, 0.0, %v3758
        %v5863 = vsel %vm5543, 0.0, %v3760
        %v5864 = vsel %vm5544, 0.0, %v4685
        %v5865 = vsel %vm5545, 0.0, %v2703
        %v5866 = vsel %vm5546, 0.0, %v2705
        %v5867 = vsel %vm5547, 0.0, %v3762
        %v5868 = vsel %vm5548, 0.0, %v3764
        %v5869 = vsel %vm5549, 0.0, %v4688
        %v5870 = vsel %vm5550, 0.0, %v2709
        %v5871 = vsel %vm5551, 0.0, %v2711
        %v5872 = vsel %vm5552, 0.0, %v3768
        %v5873 = vsel %vm5553, 0.0, %v3770
        %v5874 = vsel %vm5554, 0.0, %v4693
        %v5875 = vsel %vm5555, 0.0, %v2713
        %v5876 = vsel %vm5556, 0.0, %v2715
        %v5877 = vsel %vm5557, 0.0, %v3772
        %v5878 = vsel %vm5558, 0.0, %v3774
        %v5879 = vsel %vm5559, 0.0, %v4696
        %v5880 = vsel %vm5560, 0.0, %v2719
        %v5881 = vsel %vm5561, 0.0, %v2721
        %v5882 = vsel %vm5562, 0.0, %v3778
        %v5883 = vsel %vm5563, 0.0, %v3780
        %v5884 = vsel %vm5564, 0.0, %v4701
        %v5885 = vsel %vm5565, 0.0, %v2723
        %v5886 = vsel %vm5566, 0.0, %v2725
        %v5887 = vsel %vm5567, 0.0, %v3782
        %v5888 = vsel %vm5568, 0.0, %v3784
        %v5889 = vsel %vm5569, 0.0, %v4704
        %v5890 = vsel %vm5570, 0.0, %v2729
        %v5891 = vsel %vm5571, 0.0, %v2731
        %v5892 = vsel %vm5572, 0.0, %v3788
        %v5893 = vsel %vm5573, 0.0, %v3790
        %v5894 = vsel %vm5574, 0.0, %v4709
        %v5895 = vsel %vm5575, 0.0, %v2733
        %v5896 = vsel %vm5576, 0.0, %v2735
        %v5897 = vsel %vm5577, 0.0, %v3792
        %v5898 = vsel %vm5578, 0.0, %v3794
        %v5899 = vsel %vm5579, 0.0, %v4712
        %v5900 = vsel %vm5580, 0.0, %v2739
        %v5901 = vsel %vm5581, 0.0, %v2741
        %v5902 = vsel %vm5582, 0.0, %v3798
        %v5903 = vsel %vm5583, 0.0, %v3800
        %v5904 = vsel %vm5584, 0.0, %v4717
        %v5905 = vsel %vm5585, 0.0, %v2743
        %v5906 = vsel %vm5586, 0.0, %v2745
        %v5907 = vsel %vm5587, 0.0, %v3802
        %v5908 = vsel %vm5588, 0.0, %v3804
        %v5909 = vsel %vm5589, 0.0, %v4720
        %v5910 = vsel %vm5590, 0.0, %v2749
        %v5911 = vsel %vm5591, 0.0, %v2751
        %v5912 = vsel %vm5592, 0.0, %v3808
        %v5913 = vsel %vm5593, 0.0, %v3810
        %v5914 = vsel %vm5594, 0.0, %v4725
        %v5915 = vsel %vm5595, 0.0, %v2753
        %v5916 = vsel %vm5596, 0.0, %v2755
        %v5917 = vsel %vm5597, 0.0, %v3812
        %v5918 = vsel %vm5598, 0.0, %v3814
        %v5919 = vsel %vm5599, 0.0, %v4728
        %v5920 = vsel %vm5600, 0.0, %v2759
        %v5921 = vsel %vm5601, 0.0, %v2761
        %v5922 = vsel %vm5602, 0.0, %v3818
        %v5923 = vsel %vm5603, 0.0, %v3820
        %v5924 = vsel %vm5604, 0.0, %v4733
        %v5925 = vsel %vm5605, 0.0, %v2763
        %v5926 = vsel %vm5606, 0.0, %v2765
        %v5927 = vsel %vm5607, 0.0, %v3822
        %v5928 = vsel %vm5608, 0.0, %v3824
        %v5929 = vsel %vm5609, 0.0, %v4736
        %v5930 = vsel %vm5610, 0.0, %v2769
        %v5931 = vsel %vm5611, 0.0, %v2771
        %v5932 = vsel %vm5612, 0.0, %v3828
        %v5933 = vsel %vm5613, 0.0, %v3830
        %v5934 = vsel %vm5614, 0.0, %v4741
        %v5935 = vsel %vm5615, 0.0, %v2773
        %v5936 = vsel %vm5616, 0.0, %v2775
        %v5937 = vsel %vm5617, 0.0, %v3832
        %v5938 = vsel %vm5618, 0.0, %v3834
        %v5939 = vsel %vm5619, 0.0, %v4744
        %v5940 = vsel %vm5620, 0.0, %v2779
        %v5941 = vsel %vm5621, 0.0, %v2781
        %v5942 = vsel %vm5622, 0.0, %v3838
        %v5943 = vsel %vm5623, 0.0, %v3840
        %v5944 = vsel %vm5624, 0.0, %v4749
        %v5945 = vsel %vm5625, 0.0, %v2783
        %v5946 = vsel %vm5626, 0.0, %v2785
        %v5947 = vsel %vm5627, 0.0, %v3842
        %v5948 = vsel %vm5628, 0.0, %v3844
        %v5949 = vsel %vm5629, 0.0, %v4752
        %v5950 = vsel %vm5630, 0.0, %v2789
        %v5951 = vsel %vm5631, 0.0, %v2791
        %v5952 = vsel %vm5632, 0.0, %v3848
        %v5953 = vsel %vm5633, 0.0, %v3850
        %v5954 = vsel %vm5634, 0.0, %v4757
        %v5955 = vsel %vm5635, 0.0, %v2793
        %v5956 = vsel %vm5636, 0.0, %v2795
        %v5957 = vsel %vm5637, 0.0, %v3852
        %v5958 = vsel %vm5638, 0.0, %v3854
        %v5959 = vsel %vm5639, 0.0, %v4760
        %v5960 = vsel %vm5640, 0.0, %v2799
        %v5961 = vsel %vm5641, 0.0, %v2801
        %v5962 = vsel %vm5642, 0.0, %v3858
        %v5963 = vsel %vm5643, 0.0, %v3860
        %v5964 = vsel %vm5644, 0.0, %v4765
        %v5965 = vsel %vm5645, 0.0, %v2803
        %v5966 = vsel %vm5646, 0.0, %v2805
        %v5967 = vsel %vm5647, 0.0, %v3862
        %v5968 = vsel %vm5648, 0.0, %v3864
        %v5969 = vsel %vm5649, 0.0, %v4768
        %v5970 = vsel %vm5650, 0.0, %v2809
        %v5971 = vsel %vm5651, 0.0, %v2811
        %v5972 = vsel %vm5652, 0.0, %v3868
        %v5973 = vsel %vm5653, 0.0, %v3870
        %v5974 = vsel %vm5654, 0.0, %v4773
        %v5975 = vsel %vm5655, 0.0, %v2813
        %v5976 = vsel %vm5656, 0.0, %v2815
        %v5977 = vsel %vm5657, 0.0, %v3872
        %v5978 = vsel %vm5658, 0.0, %v3874
        %v5979 = vsel %vm5659, 0.0, %v4776
        %v5980 = vsel %vm5660, 0.0, %v2819
        %v5981 = vsel %vm5661, 0.0, %v2821
        %v5982 = vsel %vm5662, 0.0, %v3878
        %v5983 = vsel %vm5663, 0.0, %v3880
        %v5984 = vsel %vm5664, 0.0, %v4781
        %v5985 = vsel %vm5665, 0.0, %v2823
        %v5986 = vsel %vm5666, 0.0, %v2825
        %v5987 = vsel %vm5667, 0.0, %v3882
        %v5988 = vsel %vm5668, 0.0, %v3884
        %v5989 = vsel %vm5669, 0.0, %v4784
        %v5990 = vsel %vm5670, 0.0, %v2829
        %v5991 = vsel %vm5671, 0.0, %v2831
        %v5992 = vsel %vm5672, 0.0, %v3888
        %v5993 = vsel %vm5673, 0.0, %v3890
        %v5994 = vsel %vm5674, 0.0, %v4789
        %v5995 = vsel %vm5675, 0.0, %v2833
        %v5996 = vsel %vm5676, 0.0, %v2835
        %v5997 = vsel %vm5677, 0.0, %v3892
        %v5998 = vsel %vm5678, 0.0, %v3894
        %v5999 = vsel %vm5679, 0.0, %v4792
        %v6000 = vsel %vm5680, 0.0, %v2839
        %v6001 = vsel %vm5681, 0.0, %v2841
        %v6002 = vsel %vm5682, 0.0, %v3898
        %v6003 = vsel %vm5683, 0.0, %v3900
        %v6004 = vsel %vm5684, 0.0, %v4797
        %v6005 = vsel %vm5685, 0.0, %v2843
        %v6006 = vsel %vm5686, 0.0, %v2845
        %v6007 = vsel %vm5687, 0.0, %v3902
        %v6008 = vsel %vm5688, 0.0, %v3904
        %v6009 = vsel %vm5689, 0.0, %v4800
        %v6010 = vsel %vm5690, 0.0, %v2849
        %v6011 = vsel %vm5691, 0.0, %v2851
        %v6012 = vsel %vm5692, 0.0, %v3908
        %v6013 = vsel %vm5693, 0.0, %v3910
        %v6014 = vsel %vm5694, 0.0, %v4805
        %v6015 = vsel %vm5695, 0.0, %v2853
        %v6016 = vsel %vm5696, 0.0, %v2855
        %v6017 = vsel %vm5697, 0.0, %v3912
        %v6018 = vsel %vm5698, 0.0, %v3914
        %v6019 = vsel %vm5699, 0.0, %v4808
        %v6020 = vsel %vm5700, 0.0, %v2859
        %v6021 = vsel %vm5701, 0.0, %v2861
        %v6022 = vsel %vm5702, 0.0, %v3918
        %v6023 = vsel %vm5703, 0.0, %v3920
        %v6024 = vsel %vm5704, 0.0, %v4813
        %v6025 = vsel %vm5705, 0.0, %v2863
        %v6026 = vsel %vm5706, 0.0, %v2865
        %v6027 = vsel %vm5707, 0.0, %v3922
        %v6028 = vsel %vm5708, 0.0, %v3924
        %v6029 = vsel %vm5709, 0.0, %v4816
        %v6030 = vsel %vm5710, 0.0, %v2869
        %v6031 = vsel %vm5711, 0.0, %v2871
        %v6032 = vsel %vm5712, 0.0, %v3928
        %v6033 = vsel %vm5713, 0.0, %v3930
        %v6034 = vsel %vm5714, 0.0, %v4821
        %v6035 = vsel %vm5715, 0.0, %v2873
        %v6036 = vsel %vm5716, 0.0, %v2875
        %v6037 = vsel %vm5717, 0.0, %v3932
        %v6038 = vsel %vm5718, 0.0, %v3934
        %v6039 = vsel %vm5719, 0.0, %v4824
        %v6040 = vsel %vm5720, 0.0, %v2879
        %v6041 = vsel %vm5721, 0.0, %v2881
        %v6042 = vsel %vm5722, 0.0, %v3938
        %v6043 = vsel %vm5723, 0.0, %v3940
        %v6044 = vsel %vm5724, 0.0, %v4829
        %v6045 = vsel %vm5725, 0.0, %v2883
        %v6046 = vsel %vm5726, 0.0, %v2885
        %v6047 = vsel %vm5727, 0.0, %v3942
        %v6048 = vsel %vm5728, 0.0, %v3944
        %v6049 = vsel %vm5729, 0.0, %v4832
        %v6050 = vsel %vm5730, 0.0, %v2889
        %v6051 = vsel %vm5731, 0.0, %v2891
        %v6052 = vsel %vm5732, 0.0, %v3948
        %v6053 = vsel %vm5733, 0.0, %v3950
        %v6054 = vsel %vm5734, 0.0, %v4837
        %v6055 = vsel %vm5735, 0.0, %v2893
        %v6056 = vsel %vm5736, 0.0, %v2895
        %v6057 = vsel %vm5737, 0.0, %v3952
        %v6058 = vsel %vm5738, 0.0, %v3954
        %v6059 = vsel %vm5739, 0.0, %v4840
        %v6060 = vsel %vm5740, 0.0, %v2899
        %v6061 = vsel %vm5741, 0.0, %v2901
        %v6062 = vsel %vm5742, 0.0, %v3958
        %v6063 = vsel %vm5743, 0.0, %v3960
        %v6064 = vsel %vm5744, 0.0, %v4845
        %v6065 = vsel %vm5745, 0.0, %v2903
        %v6066 = vsel %vm5746, 0.0, %v2905
        %v6067 = vsel %vm5747, 0.0, %v3962
        %v6068 = vsel %vm5748, 0.0, %v3964
        %v6069 = vsel %vm5749, 0.0, %v4848
        %v6070 = vsel %vm5750, 0.0, %v2909
        %v6071 = vsel %vm5751, 0.0, %v2911
        %v6072 = vsel %vm5752, 0.0, %v3968
        %v6073 = vsel %vm5753, 0.0, %v3970
        %v6074 = vsel %vm5754, 0.0, %v4853
        %v6075 = vsel %vm5755, 0.0, %v2913
        %v6076 = vsel %vm5756, 0.0, %v2915
        %v6077 = vsel %vm5757, 0.0, %v3972
        %v6078 = vsel %vm5758, 0.0, %v3974
        %v6079 = vsel %vm5759, 0.0, %v4856
        %v6080 = vsel %vm5760, 0.0, %v2919
        %v6081 = vsel %vm5761, 0.0, %v2921
        %v6082 = vsel %vm5762, 0.0, %v3978
        %v6083 = vsel %vm5763, 0.0, %v3980
        %v6084 = vsel %vm5764, 0.0, %v4861
        %v6085 = vsel %vm5765, 0.0, %v2923
        %v6086 = vsel %vm5766, 0.0, %v2925
        %v6087 = vsel %vm5767, 0.0, %v3982
        %v6088 = vsel %vm5768, 0.0, %v3984
        %v6089 = vsel %vm5769, 0.0, %v4864
        %v6090 = vsel %vm5770, 0.0, %v2929
        %v6091 = vsel %vm5771, 0.0, %v2931
        %v6092 = vsel %vm5772, 0.0, %v3988
        %v6093 = vsel %vm5773, 0.0, %v3990
        %v6094 = vsel %vm5774, 0.0, %v4869
        %v6095 = vsel %vm5775, 0.0, %v2933
        %v6096 = vsel %vm5776, 0.0, %v2935
        %v6097 = vsel %vm5777, 0.0, %v3992
        %v6098 = vsel %vm5778, 0.0, %v3994
        %v6099 = vsel %vm5779, 0.0, %v4872
        %v6100 = vsel %vm5780, 0.0, %v2939
        %v6101 = vsel %vm5781, 0.0, %v2941
        %v6102 = vsel %vm5782, 0.0, %v3998
        %v6103 = vsel %vm5783, 0.0, %v4000
        %v6104 = vsel %vm5784, 0.0, %v4877
        %v6105 = vsel %vm5785, 0.0, %v2943
        %v6106 = vsel %vm5786, 0.0, %v2945
        %v6107 = vsel %vm5787, 0.0, %v4002
        %v6108 = vsel %vm5788, 0.0, %v4004
        %v6109 = vsel %vm5789, 0.0, %v4880
        %v6110 = vsel %vm5790, 0.0, %v2949
        %v6111 = vsel %vm5791, 0.0, %v2951
        %v6112 = vsel %vm5792, 0.0, %v4008
        %v6113 = vsel %vm5793, 0.0, %v4010
        %v6114 = vsel %vm5794, 0.0, %v4885
        %v6115 = vsel %vm5795, 0.0, %v2953
        %v6116 = vsel %vm5796, 0.0, %v2955
        %v6117 = vsel %vm5797, 0.0, %v4012
        %v6118 = vsel %vm5798, 0.0, %v4014
        %v6119 = vsel %vm5799, 0.0, %v4888
        %v6120 = vsel %vm5800, 0.0, %v2959
        %v6121 = vsel %vm5801, 0.0, %v2961
        %v6122 = vsel %vm5802, 0.0, %v4018
        %v6123 = vsel %vm5803, 0.0, %v4020
        %v6124 = vsel %vm5804, 0.0, %v4893
        %v6125 = vsel %vm5805, 0.0, %v2963
        %v6126 = vsel %vm5806, 0.0, %v2965
        %v6127 = vsel %vm5807, 0.0, %v4022
        %v6128 = vsel %vm5808, 0.0, %v4024
        %v6129 = vsel %vm5809, 0.0, %v4896
        %v6130 = vsel %vm5810, 0.0, %v2969
        %v6131 = vsel %vm5811, 0.0, %v2971
        %v6132 = vsel %vm5812, 0.0, %v4028
        %v6133 = vsel %vm5813, 0.0, %v4030
        %v6134 = vsel %vm5814, 0.0, %v4901
        %v6135 = vsel %vm5815, 0.0, %v2973
        %v6136 = vsel %vm5816, 0.0, %v2975
        %v6137 = vsel %vm5817, 0.0, %v4032
        %v6138 = vsel %vm5818, 0.0, %v4034
        %v6139 = vsel %vm5819, 0.0, %v4904
        %v6140 = vsel %vm5820, 0.0, %v2979
        %v6141 = vsel %vm5821, 0.0, %v2981
        %v6142 = vsel %vm5822, 0.0, %v4038
        %v6143 = vsel %vm5823, 0.0, %v4040
        %v6144 = vsel %vm5824, 0.0, %v4909
        %v6145 = vsel %vm5825, 0.0, %v2983
        %v6146 = vsel %vm5826, 0.0, %v2985
        %v6147 = vsel %vm5827, 0.0, %v4042
        %v6148 = vsel %vm5828, 0.0, %v4044
        %v6149 = vsel %vm5829, 0.0, %v4912
        %v6150 = vsel %vm5830, 0.0, %v2989
        %v6151 = vsel %vm5831, 0.0, %v2991
        %v6152 = vsel %vm5832, 0.0, %v4048
        %v6153 = vsel %vm5833, 0.0, %v4050
        %v6154 = vsel %vm5834, 0.0, %v4917
        %v6155 = vsel %vm5835, 0.0, %v2993
        %v6156 = vsel %vm5836, 0.0, %v2995
        %v6157 = vsel %vm5837, 0.0, %v4052
        %v6158 = vsel %vm5838, 0.0, %v4054
        %v6159 = vsel %vm5839, 0.0, %v4920
        %6160 = vst [vmem:[%s260] sm:$0xff] %v5840
        %6161 = vst [vmem:[%s260 + $0x8] sm:$0xff] %v5841
        %6162 = vst [vmem:[%s260 + $0x10] sm:$0xff] %v5842
        %6163 = vst [vmem:[%s260 + $0x18] sm:$0xff] %v5843
        %6164 = vst.msk [vmem:[%s260 + $0x20] sm:$0xff] %vm1825, %v5844
        %6165 = vst [vmem:[%s260 + $0x28] sm:$0xff] %v5845
        %6166 = vst [vmem:[%s260 + $0x30] sm:$0xff] %v5846
        %6167 = vst [vmem:[%s260 + $0x38] sm:$0xff] %v5847
        %6168 = vst [vmem:[%s260 + $0x40] sm:$0xff] %v5848
        %6169 = vst.msk [vmem:[%s260 + $0x48] sm:$0xff] %vm1825, %v5849
        %6170 = vst [vmem:[%s260 + $0x50] sm:$0xff] %v5850
        %6171 = vst [vmem:[%s260 + $0x58] sm:$0xff] %v5851
        %6172 = vst [vmem:[%s260 + $0x60] sm:$0xff] %v5852
        %6173 = vst [vmem:[%s260 + $0x68] sm:$0xff] %v5853
        %6174 = vst.msk [vmem:[%s260 + $0x70] sm:$0xff] %vm1825, %v5854
        %6175 = vst [vmem:[%s260 + $0x78] sm:$0xff] %v5855
        %6176 = vst [vmem:[%s260 + $0x80] sm:$0xff] %v5856
        %6177 = vst [vmem:[%s260 + $0x88] sm:$0xff] %v5857
        %6178 = vst [vmem:[%s260 + $0x90] sm:$0xff] %v5858
        %6179 = vst.msk [vmem:[%s260 + $0x98] sm:$0xff] %vm1825, %v5859
        %6180 = vst [vmem:[%s260 + $0xa0] sm:$0xff] %v5860
        %6181 = vst [vmem:[%s260 + $0xa8] sm:$0xff] %v5861
        %6182 = vst [vmem:[%s260 + $0xb0] sm:$0xff] %v5862
        %6183 = vst [vmem:[%s260 + $0xb8] sm:$0xff] %v5863
        %6184 = vst.msk [vmem:[%s260 + $0xc0] sm:$0xff] %vm1825, %v5864
        %6185 = vst [vmem:[%s260 + $0xc8] sm:$0xff] %v5865
        %6186 = vst [vmem:[%s260 + $0xd0] sm:$0xff] %v5866
        %6187 = vst [vmem:[%s260 + $0xd8] sm:$0xff] %v5867
        %6188 = vst [vmem:[%s260 + $0xe0] sm:$0xff] %v5868
        %6189 = vst.msk [vmem:[%s260 + $0xe8] sm:$0xff] %vm1825, %v5869
        %6190 = vst [vmem:[%s260 + $0xf0] sm:$0xff] %v5870
        %6191 = vst [vmem:[%s260 + $0xf8] sm:$0xff] %v5871
        %6192 = vst [vmem:[%s260 + $0x100] sm:$0xff] %v5872
        %6193 = vst [vmem:[%s260 + $0x108] sm:$0xff] %v5873
        %6194 = vst.msk [vmem:[%s260 + $0x110] sm:$0xff] %vm1825, %v5874
        %6195 = vst [vmem:[%s260 + $0x118] sm:$0xff] %v5875
        %6196 = vst [vmem:[%s260 + $0x120] sm:$0xff] %v5876
        %6197 = vst [vmem:[%s260 + $0x128] sm:$0xff] %v5877
        %6198 = vst [vmem:[%s260 + $0x130] sm:$0xff] %v5878
        %6199 = vst.msk [vmem:[%s260 + $0x138] sm:$0xff] %vm1825, %v5879
        %6200 = vst [vmem:[%s260 + $0x140] sm:$0xff] %v5880
        %6201 = vst [vmem:[%s260 + $0x148] sm:$0xff] %v5881
        %6202 = vst [vmem:[%s260 + $0x150] sm:$0xff] %v5882
        %6203 = vst [vmem:[%s260 + $0x158] sm:$0xff] %v5883
        %6204 = vst.msk [vmem:[%s260 + $0x160] sm:$0xff] %vm1825, %v5884
        %6205 = vst [vmem:[%s260 + $0x168] sm:$0xff] %v5885
        %6206 = vst [vmem:[%s260 + $0x170] sm:$0xff] %v5886
        %6207 = vst [vmem:[%s260 + $0x178] sm:$0xff] %v5887
        %6208 = vst [vmem:[%s260 + $0x180] sm:$0xff] %v5888
        %6209 = vst.msk [vmem:[%s260 + $0x188] sm:$0xff] %vm1825, %v5889
        %6210 = vst [vmem:[%s260 + $0x190] sm:$0xff] %v5890
        %6211 = vst [vmem:[%s260 + $0x198] sm:$0xff] %v5891
        %6212 = vst [vmem:[%s260 + $0x1a0] sm:$0xff] %v5892
        %6213 = vst [vmem:[%s260 + $0x1a8] sm:$0xff] %v5893
        %6214 = vst.msk [vmem:[%s260 + $0x1b0] sm:$0xff] %vm1825, %v5894
        %6215 = vst [vmem:[%s260 + $0x1b8] sm:$0xff] %v5895
        %6216 = vst [vmem:[%s260 + $0x1c0] sm:$0xff] %v5896
        %6217 = vst [vmem:[%s260 + $0x1c8] sm:$0xff] %v5897
        %6218 = vst [vmem:[%s260 + $0x1d0] sm:$0xff] %v5898
        %6219 = vst.msk [vmem:[%s260 + $0x1d8] sm:$0xff] %vm1825, %v5899
        %6220 = vst [vmem:[%s260 + $0x1e0] sm:$0xff] %v5900
        %6221 = vst [vmem:[%s260 + $0x1e8] sm:$0xff] %v5901
        %6222 = vst [vmem:[%s260 + $0x1f0] sm:$0xff] %v5902
        %6223 = vst [vmem:[%s260 + $0x1f8] sm:$0xff] %v5903
        %6224 = vst.msk [vmem:[%s260 + $0x200] sm:$0xff] %vm1825, %v5904
        %6225 = vst [vmem:[%s260 + $0x208] sm:$0xff] %v5905
        %6226 = vst [vmem:[%s260 + $0x210] sm:$0xff] %v5906
        %6227 = vst [vmem:[%s260 + $0x218] sm:$0xff] %v5907
        %6228 = vst [vmem:[%s260 + $0x220] sm:$0xff] %v5908
        %6229 = vst.msk [vmem:[%s260 + $0x228] sm:$0xff] %vm1825, %v5909
        %6230 = vst [vmem:[%s260 + $0x230] sm:$0xff] %v5910
        %6231 = vst [vmem:[%s260 + $0x238] sm:$0xff] %v5911
        %6232 = vst [vmem:[%s260 + $0x240] sm:$0xff] %v5912
        %6233 = vst [vmem:[%s260 + $0x248] sm:$0xff] %v5913
        %6234 = vst.msk [vmem:[%s260 + $0x250] sm:$0xff] %vm1825, %v5914
        %6235 = vst [vmem:[%s260 + $0x258] sm:$0xff] %v5915
        %6236 = vst [vmem:[%s260 + $0x260] sm:$0xff] %v5916
        %6237 = vst [vmem:[%s260 + $0x268] sm:$0xff] %v5917
        %6238 = vst [vmem:[%s260 + $0x270] sm:$0xff] %v5918
        %6239 = vst.msk [vmem:[%s260 + $0x278] sm:$0xff] %vm1825, %v5919
        %6240 = vst [vmem:[%s260 + $0x280] sm:$0xff] %v5920
        %6241 = vst [vmem:[%s260 + $0x288] sm:$0xff] %v5921
        %6242 = vst [vmem:[%s260 + $0x290] sm:$0xff] %v5922
        %6243 = vst [vmem:[%s260 + $0x298] sm:$0xff] %v5923
        %6244 = vst.msk [vmem:[%s260 + $0x2a0] sm:$0xff] %vm1825, %v5924
        %6245 = vst [vmem:[%s260 + $0x2a8] sm:$0xff] %v5925
        %6246 = vst [vmem:[%s260 + $0x2b0] sm:$0xff] %v5926
        %6247 = vst [vmem:[%s260 + $0x2b8] sm:$0xff] %v5927
        %6248 = vst [vmem:[%s260 + $0x2c0] sm:$0xff] %v5928
        %6249 = vst.msk [vmem:[%s260 + $0x2c8] sm:$0xff] %vm1825, %v5929
        %6250 = vst [vmem:[%s260 + $0x2d0] sm:$0xff] %v5930
        %6251 = vst [vmem:[%s260 + $0x2d8] sm:$0xff] %v5931
        %6252 = vst [vmem:[%s260 + $0x2e0] sm:$0xff] %v5932
        %6253 = vst [vmem:[%s260 + $0x2e8] sm:$0xff] %v5933
        %6254 = vst.msk [vmem:[%s260 + $0x2f0] sm:$0xff] %vm1825, %v5934
        %6255 = vst [vmem:[%s260 + $0x2f8] sm:$0xff] %v5935
        %6256 = vst [vmem:[%s260 + $0x300] sm:$0xff] %v5936
        %6257 = vst [vmem:[%s260 + $0x308] sm:$0xff] %v5937
        %6258 = vst [vmem:[%s260 + $0x310] sm:$0xff] %v5938
        %6259 = vst.msk [vmem:[%s260 + $0x318] sm:$0xff] %vm1825, %v5939
        %6260 = vst [vmem:[%s260 + $0x320] sm:$0xff] %v5940
        %6261 = vst [vmem:[%s260 + $0x328] sm:$0xff] %v5941
        %6262 = vst [vmem:[%s260 + $0x330] sm:$0xff] %v5942
        %6263 = vst [vmem:[%s260 + $0x338] sm:$0xff] %v5943
        %6264 = vst.msk [vmem:[%s260 + $0x340] sm:$0xff] %vm1825, %v5944
        %6265 = vst [vmem:[%s260 + $0x348] sm:$0xff] %v5945
        %6266 = vst [vmem:[%s260 + $0x350] sm:$0xff] %v5946
        %6267 = vst [vmem:[%s260 + $0x358] sm:$0xff] %v5947
        %6268 = vst [vmem:[%s260 + $0x360] sm:$0xff] %v5948
        %6269 = vst.msk [vmem:[%s260 + $0x368] sm:$0xff] %vm1825, %v5949
        %6270 = vst [vmem:[%s260 + $0x370] sm:$0xff] %v5950
        %6271 = vst [vmem:[%s260 + $0x378] sm:$0xff] %v5951
        %6272 = vst [vmem:[%s260 + $0x380] sm:$0xff] %v5952
        %6273 = vst [vmem:[%s260 + $0x388] sm:$0xff] %v5953
        %6274 = vst.msk [vmem:[%s260 + $0x390] sm:$0xff] %vm1825, %v5954
        %6275 = vst [vmem:[%s260 + $0x398] sm:$0xff] %v5955
        %6276 = vst [vmem:[%s260 + $0x3a0] sm:$0xff] %v5956
        %6277 = vst [vmem:[%s260 + $0x3a8] sm:$0xff] %v5957
        %6278 = vst [vmem:[%s260 + $0x3b0] sm:$0xff] %v5958
        %6279 = vst.msk [vmem:[%s260 + $0x3b8] sm:$0xff] %vm1825, %v5959
        %6280 = vst [vmem:[%s260 + $0x3c0] sm:$0xff] %v5960
        %6281 = vst [vmem:[%s260 + $0x3c8] sm:$0xff] %v5961
        %6282 = vst [vmem:[%s260 + $0x3d0] sm:$0xff] %v5962
        %6283 = vst [vmem:[%s260 + $0x3d8] sm:$0xff] %v5963
        %6284 = vst.msk [vmem:[%s260 + $0x3e0] sm:$0xff] %vm1825, %v5964
        %6285 = vst [vmem:[%s260 + $0x3e8] sm:$0xff] %v5965
        %6286 = vst [vmem:[%s260 + $0x3f0] sm:$0xff] %v5966
        %6287 = vst [vmem:[%s260 + $0x3f8] sm:$0xff] %v5967
        %6288 = vst [vmem:[%s260 + $0x400] sm:$0xff] %v5968
        %6289 = vst.msk [vmem:[%s260 + $0x408] sm:$0xff] %vm1825, %v5969
        %6290 = vst [vmem:[%s260 + $0x410] sm:$0xff] %v5970
        %6291 = vst [vmem:[%s260 + $0x418] sm:$0xff] %v5971
        %6292 = vst [vmem:[%s260 + $0x420] sm:$0xff] %v5972
        %6293 = vst [vmem:[%s260 + $0x428] sm:$0xff] %v5973
        %6294 = vst.msk [vmem:[%s260 + $0x430] sm:$0xff] %vm1825, %v5974
        %6295 = vst [vmem:[%s260 + $0x438] sm:$0xff] %v5975
        %6296 = vst [vmem:[%s260 + $0x440] sm:$0xff] %v5976
        %6297 = vst [vmem:[%s260 + $0x448] sm:$0xff] %v5977
        %6298 = vst [vmem:[%s260 + $0x450] sm:$0xff] %v5978
        %6299 = vst.msk [vmem:[%s260 + $0x458] sm:$0xff] %vm1825, %v5979
        %6300 = vst [vmem:[%s260 + $0x460] sm:$0xff] %v5980
        %6301 = vst [vmem:[%s260 + $0x468] sm:$0xff] %v5981
        %6302 = vst [vmem:[%s260 + $0x470] sm:$0xff] %v5982
        %6303 = vst [vmem:[%s260 + $0x478] sm:$0xff] %v5983
        %6304 = vst.msk [vmem:[%s260 + $0x480] sm:$0xff] %vm1825, %v5984
        %6305 = vst [vmem:[%s260 + $0x488] sm:$0xff] %v5985
        %6306 = vst [vmem:[%s260 + $0x490] sm:$0xff] %v5986
        %6307 = vst [vmem:[%s260 + $0x498] sm:$0xff] %v5987
        %6308 = vst [vmem:[%s260 + $0x4a0] sm:$0xff] %v5988
        %6309 = vst.msk [vmem:[%s260 + $0x4a8] sm:$0xff] %vm1825, %v5989
        %6310 = vst [vmem:[%s260 + $0x4b0] sm:$0xff] %v5990
        %6311 = vst [vmem:[%s260 + $0x4b8] sm:$0xff] %v5991
        %6312 = vst [vmem:[%s260 + $0x4c0] sm:$0xff] %v5992
        %6313 = vst [vmem:[%s260 + $0x4c8] sm:$0xff] %v5993
        %6314 = vst.msk [vmem:[%s260 + $0x4d0] sm:$0xff] %vm1825, %v5994
        %6315 = vst [vmem:[%s260 + $0x4d8] sm:$0xff] %v5995
        %6316 = vst [vmem:[%s260 + $0x4e0] sm:$0xff] %v5996
        %6317 = vst [vmem:[%s260 + $0x4e8] sm:$0xff] %v5997
        %6318 = vst [vmem:[%s260 + $0x4f0] sm:$0xff] %v5998
        %6319 = vst.msk [vmem:[%s260 + $0x4f8] sm:$0xff] %vm1825, %v5999
        %6320 = vst [vmem:[%s260 + $0x500] sm:$0xff] %v6000
        %6321 = vst [vmem:[%s260 + $0x508] sm:$0xff] %v6001
        %6322 = vst [vmem:[%s260 + $0x510] sm:$0xff] %v6002
        %6323 = vst [vmem:[%s260 + $0x518] sm:$0xff] %v6003
        %6324 = vst.msk [vmem:[%s260 + $0x520] sm:$0xff] %vm1825, %v6004
        %6325 = vst [vmem:[%s260 + $0x528] sm:$0xff] %v6005
        %6326 = vst [vmem:[%s260 + $0x530] sm:$0xff] %v6006
        %6327 = vst [vmem:[%s260 + $0x538] sm:$0xff] %v6007
        %6328 = vst [vmem:[%s260 + $0x540] sm:$0xff] %v6008
        %6329 = vst.msk [vmem:[%s260 + $0x548] sm:$0xff] %vm1825, %v6009
        %6330 = vst [vmem:[%s260 + $0x550] sm:$0xff] %v6010
        %6331 = vst [vmem:[%s260 + $0x558] sm:$0xff] %v6011
        %6332 = vst [vmem:[%s260 + $0x560] sm:$0xff] %v6012
        %6333 = vst [vmem:[%s260 + $0x568] sm:$0xff] %v6013
        %6334 = vst.msk [vmem:[%s260 + $0x570] sm:$0xff] %vm1825, %v6014
        %6335 = vst [vmem:[%s260 + $0x578] sm:$0xff] %v6015
        %6336 = vst [vmem:[%s260 + $0x580] sm:$0xff] %v6016
        %6337 = vst [vmem:[%s260 + $0x588] sm:$0xff] %v6017
        %6338 = vst [vmem:[%s260 + $0x590] sm:$0xff] %v6018
        %6339 = vst.msk [vmem:[%s260 + $0x598] sm:$0xff] %vm1825, %v6019
        %6340 = vst [vmem:[%s260 + $0x5a0] sm:$0xff] %v6020
        %6341 = vst [vmem:[%s260 + $0x5a8] sm:$0xff] %v6021
        %6342 = vst [vmem:[%s260 + $0x5b0] sm:$0xff] %v6022
        %6343 = vst [vmem:[%s260 + $0x5b8] sm:$0xff] %v6023
        %6344 = vst.msk [vmem:[%s260 + $0x5c0] sm:$0xff] %vm1825, %v6024
        %6345 = vst [vmem:[%s260 + $0x5c8] sm:$0xff] %v6025
        %6346 = vst [vmem:[%s260 + $0x5d0] sm:$0xff] %v6026
        %6347 = vst [vmem:[%s260 + $0x5d8] sm:$0xff] %v6027
        %6348 = vst [vmem:[%s260 + $0x5e0] sm:$0xff] %v6028
        %6349 = vst.msk [vmem:[%s260 + $0x5e8] sm:$0xff] %vm1825, %v6029
        %6350 = vst [vmem:[%s260 + $0x5f0] sm:$0xff] %v6030
        %6351 = vst [vmem:[%s260 + $0x5f8] sm:$0xff] %v6031
        %6352 = vst [vmem:[%s260 + $0x600] sm:$0xff] %v6032
        %6353 = vst [vmem:[%s260 + $0x608] sm:$0xff] %v6033
        %6354 = vst.msk [vmem:[%s260 + $0x610] sm:$0xff] %vm1825, %v6034
        %6355 = vst [vmem:[%s260 + $0x618] sm:$0xff] %v6035
        %6356 = vst [vmem:[%s260 + $0x620] sm:$0xff] %v6036
        %6357 = vst [vmem:[%s260 + $0x628] sm:$0xff] %v6037
        %6358 = vst [vmem:[%s260 + $0x630] sm:$0xff] %v6038
        %6359 = vst.msk [vmem:[%s260 + $0x638] sm:$0xff] %vm1825, %v6039
        %6360 = vst [vmem:[%s260 + $0x640] sm:$0xff] %v6040
        %6361 = vst [vmem:[%s260 + $0x648] sm:$0xff] %v6041
        %6362 = vst [vmem:[%s260 + $0x650] sm:$0xff] %v6042
        %6363 = vst [vmem:[%s260 + $0x658] sm:$0xff] %v6043
        %6364 = vst.msk [vmem:[%s260 + $0x660] sm:$0xff] %vm1825, %v6044
        %6365 = vst [vmem:[%s260 + $0x668] sm:$0xff] %v6045
        %6366 = vst [vmem:[%s260 + $0x670] sm:$0xff] %v6046
        %6367 = vst [vmem:[%s260 + $0x678] sm:$0xff] %v6047
        %6368 = vst [vmem:[%s260 + $0x680] sm:$0xff] %v6048
        %6369 = vst.msk [vmem:[%s260 + $0x688] sm:$0xff] %vm1825, %v6049
        %6370 = vst [vmem:[%s260 + $0x690] sm:$0xff] %v6050
        %6371 = vst [vmem:[%s260 + $0x698] sm:$0xff] %v6051
        %6372 = vst [vmem:[%s260 + $0x6a0] sm:$0xff] %v6052
        %6373 = vst [vmem:[%s260 + $0x6a8] sm:$0xff] %v6053
        %6374 = vst.msk [vmem:[%s260 + $0x6b0] sm:$0xff] %vm1825, %v6054
        %6375 = vst [vmem:[%s260 + $0x6b8] sm:$0xff] %v6055
        %6376 = vst [vmem:[%s260 + $0x6c0] sm:$0xff] %v6056
        %6377 = vst [vmem:[%s260 + $0x6c8] sm:$0xff] %v6057
        %6378 = vst [vmem:[%s260 + $0x6d0] sm:$0xff] %v6058
        %6379 = vst.msk [vmem:[%s260 + $0x6d8] sm:$0xff] %vm1825, %v6059
        %6380 = vst [vmem:[%s260 + $0x6e0] sm:$0xff] %v6060
        %6381 = vst [vmem:[%s260 + $0x6e8] sm:$0xff] %v6061
        %6382 = vst [vmem:[%s260 + $0x6f0] sm:$0xff] %v6062
        %6383 = vst [vmem:[%s260 + $0x6f8] sm:$0xff] %v6063
        %6384 = vst.msk [vmem:[%s260 + $0x700] sm:$0xff] %vm1825, %v6064
        %6385 = vst [vmem:[%s260 + $0x708] sm:$0xff] %v6065
        %6386 = vst [vmem:[%s260 + $0x710] sm:$0xff] %v6066
        %6387 = vst [vmem:[%s260 + $0x718] sm:$0xff] %v6067
        %6388 = vst [vmem:[%s260 + $0x720] sm:$0xff] %v6068
        %6389 = vst.msk [vmem:[%s260 + $0x728] sm:$0xff] %vm1825, %v6069
        %6390 = vst [vmem:[%s260 + $0x730] sm:$0xff] %v6070
        %6391 = vst [vmem:[%s260 + $0x738] sm:$0xff] %v6071
        %6392 = vst [vmem:[%s260 + $0x740] sm:$0xff] %v6072
        %6393 = vst [vmem:[%s260 + $0x748] sm:$0xff] %v6073
        %6394 = vst.msk [vmem:[%s260 + $0x750] sm:$0xff] %vm1825, %v6074
        %6395 = vst [vmem:[%s260 + $0x758] sm:$0xff] %v6075
        %6396 = vst [vmem:[%s260 + $0x760] sm:$0xff] %v6076
        %6397 = vst [vmem:[%s260 + $0x768] sm:$0xff] %v6077
        %6398 = vst [vmem:[%s260 + $0x770] sm:$0xff] %v6078
        %6399 = vst.msk [vmem:[%s260 + $0x778] sm:$0xff] %vm1825, %v6079
        %6400 = vst [vmem:[%s260 + $0x780] sm:$0xff] %v6080
        %6401 = vst [vmem:[%s260 + $0x788] sm:$0xff] %v6081
        %6402 = vst [vmem:[%s260 + $0x790] sm:$0xff] %v6082
        %6403 = vst [vmem:[%s260 + $0x798] sm:$0xff] %v6083
        %6404 = vst.msk [vmem:[%s260 + $0x7a0] sm:$0xff] %vm1825, %v6084
        %6405 = vst [vmem:[%s260 + $0x7a8] sm:$0xff] %v6085
        %6406 = vst [vmem:[%s260 + $0x7b0] sm:$0xff] %v6086
        %6407 = vst [vmem:[%s260 + $0x7b8] sm:$0xff] %v6087
        %6408 = vst [vmem:[%s260 + $0x7c0] sm:$0xff] %v6088
        %6409 = vst.msk [vmem:[%s260 + $0x7c8] sm:$0xff] %vm1825, %v6089
        %6410 = vst [vmem:[%s260 + $0x7d0] sm:$0xff] %v6090
        %6411 = vst [vmem:[%s260 + $0x7d8] sm:$0xff] %v6091
        %6412 = vst [vmem:[%s260 + $0x7e0] sm:$0xff] %v6092
        %6413 = vst [vmem:[%s260 + $0x7e8] sm:$0xff] %v6093
        %6414 = vst.msk [vmem:[%s260 + $0x7f0] sm:$0xff] %vm1825, %v6094
        %6415 = vst [vmem:[%s260 + $0x7f8] sm:$0xff] %v6095
        %6416 = vst [vmem:[%s260 + $0x800] sm:$0xff] %v6096
        %6417 = vst [vmem:[%s260 + $0x808] sm:$0xff] %v6097
        %6418 = vst [vmem:[%s260 + $0x810] sm:$0xff] %v6098
        %6419 = vst.msk [vmem:[%s260 + $0x818] sm:$0xff] %vm1825, %v6099
        %6420 = vst [vmem:[%s260 + $0x820] sm:$0xff] %v6100
        %6421 = vst [vmem:[%s260 + $0x828] sm:$0xff] %v6101
        %6422 = vst [vmem:[%s260 + $0x830] sm:$0xff] %v6102
        %6423 = vst [vmem:[%s260 + $0x838] sm:$0xff] %v6103
        %6424 = vst.msk [vmem:[%s260 + $0x840] sm:$0xff] %vm1825, %v6104
        %6425 = vst [vmem:[%s260 + $0x848] sm:$0xff] %v6105
        %6426 = vst [vmem:[%s260 + $0x850] sm:$0xff] %v6106
        %6427 = vst [vmem:[%s260 + $0x858] sm:$0xff] %v6107
        %6428 = vst [vmem:[%s260 + $0x860] sm:$0xff] %v6108
        %6429 = vst.msk [vmem:[%s260 + $0x868] sm:$0xff] %vm1825, %v6109
        %6430 = vst [vmem:[%s260 + $0x870] sm:$0xff] %v6110
        %6431 = vst [vmem:[%s260 + $0x878] sm:$0xff] %v6111
        %6432 = vst [vmem:[%s260 + $0x880] sm:$0xff] %v6112
        %6433 = vst [vmem:[%s260 + $0x888] sm:$0xff] %v6113
        %6434 = vst.msk [vmem:[%s260 + $0x890] sm:$0xff] %vm1825, %v6114
        %6435 = vst [vmem:[%s260 + $0x898] sm:$0xff] %v6115
        %6436 = vst [vmem:[%s260 + $0x8a0] sm:$0xff] %v6116
        %6437 = vst [vmem:[%s260 + $0x8a8] sm:$0xff] %v6117
        %6438 = vst [vmem:[%s260 + $0x8b0] sm:$0xff] %v6118
        %6439 = vst.msk [vmem:[%s260 + $0x8b8] sm:$0xff] %vm1825, %v6119
        %6440 = vst [vmem:[%s260 + $0x8c0] sm:$0xff] %v6120
        %6441 = vst [vmem:[%s260 + $0x8c8] sm:$0xff] %v6121
        %6442 = vst [vmem:[%s260 + $0x8d0] sm:$0xff] %v6122
        %6443 = vst [vmem:[%s260 + $0x8d8] sm:$0xff] %v6123
        %6444 = vst.msk [vmem:[%s260 + $0x8e0] sm:$0xff] %vm1825, %v6124
        %6445 = vst [vmem:[%s260 + $0x8e8] sm:$0xff] %v6125
        %6446 = vst [vmem:[%s260 + $0x8f0] sm:$0xff] %v6126
        %6447 = vst [vmem:[%s260 + $0x8f8] sm:$0xff] %v6127
        %6448 = vst [vmem:[%s260 + $0x900] sm:$0xff] %v6128
        %6449 = vst.msk [vmem:[%s260 + $0x908] sm:$0xff] %vm1825, %v6129
        %6450 = vst [vmem:[%s260 + $0x910] sm:$0xff] %v6130
        %6451 = vst [vmem:[%s260 + $0x918] sm:$0xff] %v6131
        %6452 = vst [vmem:[%s260 + $0x920] sm:$0xff] %v6132
        %6453 = vst [vmem:[%s260 + $0x928] sm:$0xff] %v6133
        %6454 = vst.msk [vmem:[%s260 + $0x930] sm:$0xff] %vm1825, %v6134
        %6455 = vst [vmem:[%s260 + $0x938] sm:$0xff] %v6135
        %6456 = vst [vmem:[%s260 + $0x940] sm:$0xff] %v6136
        %6457 = vst [vmem:[%s260 + $0x948] sm:$0xff] %v6137
        %6458 = vst [vmem:[%s260 + $0x950] sm:$0xff] %v6138
        %6459 = vst.msk [vmem:[%s260 + $0x958] sm:$0xff] %vm1825, %v6139
        %6460 = vst [vmem:[%s260 + $0x960] sm:$0xff] %v6140
        %6461 = vst [vmem:[%s260 + $0x968] sm:$0xff] %v6141
        %6462 = vst [vmem:[%s260 + $0x970] sm:$0xff] %v6142
        %6463 = vst [vmem:[%s260 + $0x978] sm:$0xff] %v6143
        %6464 = vst.msk [vmem:[%s260 + $0x980] sm:$0xff] %vm1825, %v6144
        %6465 = vst [vmem:[%s260 + $0x988] sm:$0xff] %v6145
        %6466 = vst [vmem:[%s260 + $0x990] sm:$0xff] %v6146
        %6467 = vst [vmem:[%s260 + $0x998] sm:$0xff] %v6147
        %6468 = vst [vmem:[%s260 + $0x9a0] sm:$0xff] %v6148
        %6469 = vst.msk [vmem:[%s260 + $0x9a8] sm:$0xff] %vm1825, %v6149
        %6470 = vst [vmem:[%s260 + $0x9b0] sm:$0xff] %v6150
        %6471 = vst [vmem:[%s260 + $0x9b8] sm:$0xff] %v6151
        %6472 = vst [vmem:[%s260 + $0x9c0] sm:$0xff] %v6152
        %6473 = vst [vmem:[%s260 + $0x9c8] sm:$0xff] %v6153
        %6474 = vst.msk [vmem:[%s260 + $0x9d0] sm:$0xff] %vm1825, %v6154
        %6475 = vst [vmem:[%s260 + $0x9d8] sm:$0xff] %v6155
        %6476 = vst [vmem:[%s260 + $0x9e0] sm:$0xff] %v6156
        %6477 = vst [vmem:[%s260 + $0x9e8] sm:$0xff] %v6157
        %6478 = vst [vmem:[%s260 + $0x9f0] sm:$0xff] %v6158
        %6479 = vst.msk [vmem:[%s260 + $0x9f8] sm:$0xff] %vm1825, %v6159
        %s6480 = sand.u32 %s136, 1
        %s6481 = sand.u32 %s136, 1
        %s6482 = smul.addr %s6481, 2560
        %s6483 = scalar_lea.vmem [#allocation2], %s6482
        // Predicated region
        $region37: #{tpu_custom_call.1} parent=35 // pred_check
          %p6484 = pneg %p146
        $region38: #{tpu_custom_call.1} parent=35 // pred_check_branch
          %6486 = sbr.rel (%p6484) target = $region40
        $region39: #{tpu_custom_call.1} parent=35 // pred_region
          %s6487 = smul.u32 64, %s19
          %s6488 = smul.u32 5, %s20
          %s6489 = ssub.s32 80, %s6487
          %p6490 = scmp.lt.s32.totalorder %s6489, 64
          %s6491 = scalar_select %p6490, %s6489, 64
          %s6492 = smul.u32 128, %s6491
          %s6493 = smul.u32 %s6492, 5
          %p6494 = scmp.ne.s32.totalorder 0, %s6493
          %s6495 = smul.addr %s6487, 5
          %s6496 = sadd.s32 %s6488, %s6495
          %s6497 = smul.addr %s6496, 8
          %s6498 = scalar_lea.vmem %s4, %s6497
          // Predicated region
          $region41: #{tpu_custom_call.1} parent=39 // pred_check
            %p6499 = pneg %p6494
          $region42: #{tpu_custom_call.1} parent=39 // pred_check_branch
            %6501 = sbr.rel (%p6499) target = $region44
          $region43: #{tpu_custom_call.1} parent=39 // pred_region
            // Predicated region
            $region45: #{tpu_custom_call.1} parent=43 // pred_check
              _
            $region46: #{tpu_custom_call.1} parent=43 // pred_check_branch
              %6503 = sbr.rel (0) target = $region48
            $region47: #{tpu_custom_call.1} parent=43 // pred_region
              %s6504 = sdiv.u32.pop %s6491, 13
              %s6505 = srem.u32.pop %s6491, 13
              // While loop
              $region49: #{tpu_custom_call.1} parent=47 // loop_pre_header
                _
              $region50: #{tpu_custom_call.1} parent=47 // loop_header
                %s6507 = sphi 0, %s6509
                %p6508 = scmp.ge.s32.totalorder %s6507, %s6504
                %s6512 = sphi 0, %s6647
                %s6513 = sphi %s6483, %s6650
                %s6514 = sphi %s6498, %s6651
              $region51: #{tpu_custom_call.1} parent=47 // loop_header_branch
                %6511 = sbr.rel (%p6508) target = $region55
              $region52: #{tpu_custom_call.1} parent=47 // loop_body
                %v6515 = vld [vmem:[%s6513] sm:$0xff]
                %6516 = vst [vmem:[%s6514] sm:$0xff] %v6515
                %v6517 = vld [vmem:[%s6513 + $0x28] sm:$0xff]
                %6518 = vst [vmem:[%s6514 + $0x28] sm:$0xff] %v6517
                %v6519 = vld [vmem:[%s6513 + $0x50] sm:$0xff]
                %6520 = vst [vmem:[%s6514 + $0x50] sm:$0xff] %v6519
                %v6521 = vld [vmem:[%s6513 + $0x78] sm:$0xff]
                %6522 = vst [vmem:[%s6514 + $0x78] sm:$0xff] %v6521
                %v6523 = vld [vmem:[%s6513 + $0xa0] sm:$0xff]
                %6524 = vst [vmem:[%s6514 + $0xa0] sm:$0xff] %v6523
                %v6525 = vld [vmem:[%s6513 + $0xc8] sm:$0xff]
                %6526 = vst [vmem:[%s6514 + $0xc8] sm:$0xff] %v6525
                %v6527 = vld [vmem:[%s6513 + $0xf0] sm:$0xff]
                %6528 = vst [vmem:[%s6514 + $0xf0] sm:$0xff] %v6527
                %v6529 = vld [vmem:[%s6513 + $0x118] sm:$0xff]
                %6530 = vst [vmem:[%s6514 + $0x118] sm:$0xff] %v6529
                %v6531 = vld [vmem:[%s6513 + $0x140] sm:$0xff]
                %6532 = vst [vmem:[%s6514 + $0x140] sm:$0xff] %v6531
                %v6533 = vld [vmem:[%s6513 + $0x168] sm:$0xff]
                %6534 = vst [vmem:[%s6514 + $0x168] sm:$0xff] %v6533
                %v6535 = vld [vmem:[%s6513 + $0x190] sm:$0xff]
                %6536 = vst [vmem:[%s6514 + $0x190] sm:$0xff] %v6535
                %v6537 = vld [vmem:[%s6513 + $0x1b8] sm:$0xff]
                %6538 = vst [vmem:[%s6514 + $0x1b8] sm:$0xff] %v6537
                %v6539 = vld [vmem:[%s6513 + $0x1e0] sm:$0xff]
                %6540 = vst [vmem:[%s6514 + $0x1e0] sm:$0xff] %v6539
                %v6541 = vld [vmem:[%s6513 + $0x8] sm:$0xff]
                %6542 = vst [vmem:[%s6514 + $0x8] sm:$0xff] %v6541
                %v6543 = vld [vmem:[%s6513 + $0x30] sm:$0xff]
                %6544 = vst [vmem:[%s6514 + $0x30] sm:$0xff] %v6543
                %v6545 = vld [vmem:[%s6513 + $0x58] sm:$0xff]
                %6546 = vst [vmem:[%s6514 + $0x58] sm:$0xff] %v6545
                %v6547 = vld [vmem:[%s6513 + $0x80] sm:$0xff]
                %6548 = vst [vmem:[%s6514 + $0x80] sm:$0xff] %v6547
                %v6549 = vld [vmem:[%s6513 + $0xa8] sm:$0xff]
                %6550 = vst [vmem:[%s6514 + $0xa8] sm:$0xff] %v6549
                %v6551 = vld [vmem:[%s6513 + $0xd0] sm:$0xff]
                %6552 = vst [vmem:[%s6514 + $0xd0] sm:$0xff] %v6551
                %v6553 = vld [vmem:[%s6513 + $0xf8] sm:$0xff]
                %6554 = vst [vmem:[%s6514 + $0xf8] sm:$0xff] %v6553
                %v6555 = vld [vmem:[%s6513 + $0x120] sm:$0xff]
                %6556 = vst [vmem:[%s6514 + $0x120] sm:$0xff] %v6555
                %v6557 = vld [vmem:[%s6513 + $0x148] sm:$0xff]
                %6558 = vst [vmem:[%s6514 + $0x148] sm:$0xff] %v6557
                %v6559 = vld [vmem:[%s6513 + $0x170] sm:$0xff]
                %6560 = vst [vmem:[%s6514 + $0x170] sm:$0xff] %v6559
                %v6561 = vld [vmem:[%s6513 + $0x198] sm:$0xff]
                %6562 = vst [vmem:[%s6514 + $0x198] sm:$0xff] %v6561
                %v6563 = vld [vmem:[%s6513 + $0x1c0] sm:$0xff]
                %6564 = vst [vmem:[%s6514 + $0x1c0] sm:$0xff] %v6563
                %v6565 = vld [vmem:[%s6513 + $0x1e8] sm:$0xff]
                %6566 = vst [vmem:[%s6514 + $0x1e8] sm:$0xff] %v6565
                %v6567 = vld [vmem:[%s6513 + $0x10] sm:$0xff]
                %6568 = vst [vmem:[%s6514 + $0x10] sm:$0xff] %v6567
                %v6569 = vld [vmem:[%s6513 + $0x38] sm:$0xff]
                %6570 = vst [vmem:[%s6514 + $0x38] sm:$0xff] %v6569
                %v6571 = vld [vmem:[%s6513 + $0x60] sm:$0xff]
                %6572 = vst [vmem:[%s6514 + $0x60] sm:$0xff] %v6571
                %v6573 = vld [vmem:[%s6513 + $0x88] sm:$0xff]
                %6574 = vst [vmem:[%s6514 + $0x88] sm:$0xff] %v6573
                %v6575 = vld [vmem:[%s6513 + $0xb0] sm:$0xff]
                %6576 = vst [vmem:[%s6514 + $0xb0] sm:$0xff] %v6575
                %v6577 = vld [vmem:[%s6513 + $0xd8] sm:$0xff]
                %6578 = vst [vmem:[%s6514 + $0xd8] sm:$0xff] %v6577
                %v6579 = vld [vmem:[%s6513 + $0x100] sm:$0xff]
                %6580 = vst [vmem:[%s6514 + $0x100] sm:$0xff] %v6579
                %v6581 = vld [vmem:[%s6513 + $0x128] sm:$0xff]
                %6582 = vst [vmem:[%s6514 + $0x128] sm:$0xff] %v6581
                %v6583 = vld [vmem:[%s6513 + $0x150] sm:$0xff]
                %6584 = vst [vmem:[%s6514 + $0x150] sm:$0xff] %v6583
                %v6585 = vld [vmem:[%s6513 + $0x178] sm:$0xff]
                %6586 = vst [vmem:[%s6514 + $0x178] sm:$0xff] %v6585
                %v6587 = vld [vmem:[%s6513 + $0x1a0] sm:$0xff]
                %6588 = vst [vmem:[%s6514 + $0x1a0] sm:$0xff] %v6587
                %v6589 = vld [vmem:[%s6513 + $0x1c8] sm:$0xff]
                %6590 = vst [vmem:[%s6514 + $0x1c8] sm:$0xff] %v6589
                %v6591 = vld [vmem:[%s6513 + $0x1f0] sm:$0xff]
                %6592 = vst [vmem:[%s6514 + $0x1f0] sm:$0xff] %v6591
                %v6593 = vld [vmem:[%s6513 + $0x18] sm:$0xff]
                %6594 = vst [vmem:[%s6514 + $0x18] sm:$0xff] %v6593
                %v6595 = vld [vmem:[%s6513 + $0x40] sm:$0xff]
                %6596 = vst [vmem:[%s6514 + $0x40] sm:$0xff] %v6595
                %v6597 = vld [vmem:[%s6513 + $0x68] sm:$0xff]
                %6598 = vst [vmem:[%s6514 + $0x68] sm:$0xff] %v6597
                %v6599 = vld [vmem:[%s6513 + $0x90] sm:$0xff]
                %6600 = vst [vmem:[%s6514 + $0x90] sm:$0xff] %v6599
                %v6601 = vld [vmem:[%s6513 + $0xb8] sm:$0xff]
                %6602 = vst [vmem:[%s6514 + $0xb8] sm:$0xff] %v6601
                %v6603 = vld [vmem:[%s6513 + $0xe0] sm:$0xff]
                %6604 = vst [vmem:[%s6514 + $0xe0] sm:$0xff] %v6603
                %v6605 = vld [vmem:[%s6513 + $0x108] sm:$0xff]
                %6606 = vst [vmem:[%s6514 + $0x108] sm:$0xff] %v6605
                %v6607 = vld [vmem:[%s6513 + $0x130] sm:$0xff]
                %6608 = vst [vmem:[%s6514 + $0x130] sm:$0xff] %v6607
                %v6609 = vld [vmem:[%s6513 + $0x158] sm:$0xff]
                %6610 = vst [vmem:[%s6514 + $0x158] sm:$0xff] %v6609
                %v6611 = vld [vmem:[%s6513 + $0x180] sm:$0xff]
                %6612 = vst [vmem:[%s6514 + $0x180] sm:$0xff] %v6611
                %v6613 = vld [vmem:[%s6513 + $0x1a8] sm:$0xff]
                %6614 = vst [vmem:[%s6514 + $0x1a8] sm:$0xff] %v6613
                %v6615 = vld [vmem:[%s6513 + $0x1d0] sm:$0xff]
                %6616 = vst [vmem:[%s6514 + $0x1d0] sm:$0xff] %v6615
                %v6617 = vld [vmem:[%s6513 + $0x1f8] sm:$0xff]
                %6618 = vst [vmem:[%s6514 + $0x1f8] sm:$0xff] %v6617
                %v6619 = vld [vmem:[%s6513 + $0x20] sm:$0xff]
                %6620 = vst [vmem:[%s6514 + $0x20] sm:$0xff] %v6619
                %v6621 = vld [vmem:[%s6513 + $0x48] sm:$0xff]
                %6622 = vst [vmem:[%s6514 + $0x48] sm:$0xff] %v6621
                %v6623 = vld [vmem:[%s6513 + $0x70] sm:$0xff]
                %6624 = vst [vmem:[%s6514 + $0x70] sm:$0xff] %v6623
                %v6625 = vld [vmem:[%s6513 + $0x98] sm:$0xff]
                %6626 = vst [vmem:[%s6514 + $0x98] sm:$0xff] %v6625
                %v6627 = vld [vmem:[%s6513 + $0xc0] sm:$0xff]
                %6628 = vst [vmem:[%s6514 + $0xc0] sm:$0xff] %v6627
                %v6629 = vld [vmem:[%s6513 + $0xe8] sm:$0xff]
                %6630 = vst [vmem:[%s6514 + $0xe8] sm:$0xff] %v6629
                %v6631 = vld [vmem:[%s6513 + $0x110] sm:$0xff]
                %6632 = vst [vmem:[%s6514 + $0x110] sm:$0xff] %v6631
                %v6633 = vld [vmem:[%s6513 + $0x138] sm:$0xff]
                %6634 = vst [vmem:[%s6514 + $0x138] sm:$0xff] %v6633
                %v6635 = vld [vmem:[%s6513 + $0x160] sm:$0xff]
                %6636 = vst [vmem:[%s6514 + $0x160] sm:$0xff] %v6635
                %v6637 = vld [vmem:[%s6513 + $0x188] sm:$0xff]
                %6638 = vst [vmem:[%s6514 + $0x188] sm:$0xff] %v6637
                %v6639 = vld [vmem:[%s6513 + $0x1b0] sm:$0xff]
                %6640 = vst [vmem:[%s6514 + $0x1b0] sm:$0xff] %v6639
                %v6641 = vld [vmem:[%s6513 + $0x1d8] sm:$0xff]
                %6642 = vst [vmem:[%s6514 + $0x1d8] sm:$0xff] %v6641
                %v6643 = vld [vmem:[%s6513 + $0x200] sm:$0xff]
                %6644 = vst [vmem:[%s6514 + $0x200] sm:$0xff] %v6643
                %s6645 = sadd.s32 1, %s6512
                %p6646 = scmp.ge.s32.totalorder %s6645, %s6504
                %s6647 = scalar_select %p6646, 0, %s6645
                %s6648 = smul.u32 %s6647, 520
                %s6649 = smul.u32 %s6647, 520
                %s6650 = scalar_lea.vmem %s6483, %s6648 [#allocation2]
                %s6651 = scalar_lea.vmem %s6498, %s6649
              $region53: #{tpu_custom_call.1} parent=47 // loop_footer
                %s6509 = sadd.s32 %s6507, 1
              $region54: #{tpu_custom_call.1} parent=47 // loop_footer_branch
                %6506 = sbr.rel target = $region50
              $region55: #{tpu_custom_call.1} parent=47 // loop_exit
                _
              %s6652 = sdiv.u32.pop %s6491, 13
              %s6653 = srem.u32.pop %s6491, 13
              %s6654 = smul.u32 %s6652, 13
              %s6655 = smul.u32 40, %s6654
              %s6656 = scalar_lea.vmem %s6483, %s6655 [#allocation2]
              %s6657 = smul.u32 40, %s6654
              %s6658 = scalar_lea.vmem %s6498, %s6657
              // While loop
              $region56: #{tpu_custom_call.1} parent=47 // loop_pre_header
                _
              $region57: #{tpu_custom_call.1} parent=47 // loop_header
                %s6660 = sphi 0, %s6662
                %p6661 = scmp.ge.s32.totalorder %s6660, %s6653
                %s6665 = sphi 0, %s6680
                %s6666 = sphi %s6656, %s6683
                %s6667 = sphi %s6658, %s6684
              $region58: #{tpu_custom_call.1} parent=47 // loop_header_branch
                %6664 = sbr.rel (%p6661) target = $region62
              $region59: #{tpu_custom_call.1} parent=47 // loop_body
                %v6668 = vld [vmem:[%s6666] sm:$0xff]
                %6669 = vst [vmem:[%s6667] sm:$0xff] %v6668
                %v6670 = vld [vmem:[%s6666 + $0x8] sm:$0xff]
                %6671 = vst [vmem:[%s6667 + $0x8] sm:$0xff] %v6670
                %v6672 = vld [vmem:[%s6666 + $0x10] sm:$0xff]
                %6673 = vst [vmem:[%s6667 + $0x10] sm:$0xff] %v6672
                %v6674 = vld [vmem:[%s6666 + $0x18] sm:$0xff]
                %6675 = vst [vmem:[%s6667 + $0x18] sm:$0xff] %v6674
                %v6676 = vld [vmem:[%s6666 + $0x20] sm:$0xff]
                %6677 = vst [vmem:[%s6667 + $0x20] sm:$0xff] %v6676
                %s6678 = sadd.s32 1, %s6665
                %p6679 = scmp.ge.s32.totalorder %s6678, %s6653
                %s6680 = scalar_select %p6679, 0, %s6678
                %s6681 = smul.u32 %s6680, 40
                %s6682 = smul.u32 %s6680, 40
                %s6683 = scalar_lea.vmem %s6656, %s6681 [#allocation2]
                %s6684 = scalar_lea.vmem %s6658, %s6682
              $region60: #{tpu_custom_call.1} parent=47 // loop_footer
                %s6662 = sadd.s32 %s6660, 1
              $region61: #{tpu_custom_call.1} parent=47 // loop_footer_branch
                %6659 = sbr.rel target = $region57
              $region62: #{tpu_custom_call.1} parent=47 // loop_exit
                _
            $region48: #{tpu_custom_call.1} parent=43 // pred_fallthru
              _
            // Predicated region
            $region63: #{tpu_custom_call.1} parent=43 // pred_check
              _
            $region64: #{tpu_custom_call.1} parent=43 // pred_check_branch
              %6686 = sbr.rel target = $region66
            $region65: #{tpu_custom_call.1} parent=43 // pred_region
              _
            $region66: #{tpu_custom_call.1} parent=43 // pred_fallthru
              _
          $region44: #{tpu_custom_call.1} parent=39 // pred_fallthru
            _
          %6687 = vnop
        $region40: #{tpu_custom_call.1} parent=35 // pred_fallthru
          _
      $region36: #{tpu_custom_call.1} parent=5 // pred_fallthru
        _
      %p6688 = scmp.le.s32.totalorder 2, %s10
      // Predicated region
      $region67: #{tpu_custom_call.1} parent=5 // pred_check
        %p6689 = pneg %p6688
      $region68: #{tpu_custom_call.1} parent=5 // pred_check_branch
        %6691 = sbr.rel (%p6689) target = $region70
      $region69: #{tpu_custom_call.1} parent=5 // pred_region
        %s6692 = ssub.s32 %s10, 2
        // Predicated region
        $region71: #{tpu_custom_call.1} parent=69 // pred_check
          %p6693 = pneg %p152
        $region72: #{tpu_custom_call.1} parent=69 // pred_check_branch
          %6695 = sbr.rel (%p6693) target = $region74
        $region73: #{tpu_custom_call.1} parent=69 // pred_region
          %s6696 = sand.u32 %s137, 1
          %s6697 = sand.u32 %s137, 1
          %s6698 = smul.addr %s6697, 2560
          %s6699 = scalar_lea.vmem [#allocation2], %s6698
        $region74: #{tpu_custom_call.1} parent=69 // pred_fallthru
          _
      $region70: #{tpu_custom_call.1} parent=5 // pred_fallthru
        _
    $region6: #{tpu_custom_call.1} parent=1 // loop_footer
      %s14 = sadd.s32 1, %s10
    $region7: #{tpu_custom_call.1} parent=1 // loop_footer_branch
      %9 = sbr.rel target = $region3
    $region8: #{tpu_custom_call.1} parent=1 // loop_exit
      _

</llo_original>
